<compile_context>
chip_gen: v7x
topology: tpu7x:2x2x1
jax: 0.10.0
libtpu: 0.0.40
codegen_flags: <defaults>
</compile_context>

<pallas_src>
import jax
import jax.numpy as jnp
from jax.experimental import pallas as pl
from jax.experimental.pallas import tpu as pltpu


def _round_up(x, m):
    return (x + m - 1) // m * m


# ---------------------------------------------------------------------------
# Pallas kernel 1: fused  relu(X @ W + b)  — conv-as-GEMM, gridded over rows.
# ---------------------------------------------------------------------------
def _gemm_bias_relu_kernel(x_ref, w_ref, b_ref, o_ref):
    acc = jnp.dot(x_ref[...], w_ref[...], preferred_element_type=jnp.float32)
    acc = acc + b_ref[...]                      # (1, N) broadcasts over rows (f32)
    o_ref[...] = jnp.maximum(acc, 0.0).astype(o_ref.dtype)


def matmul_bias_relu(x, w, b, out_dtype=jnp.bfloat16, tm_max=512):
    """relu(x @ w + b). x:(M,K) bf16, w:(K,N) bf16, b:(1,N) f32. No padding/slicing:
    K and N use full-extent blocks; M is tiled with an (8-aligned) row grid."""
    M, K = x.shape
    K2, N = w.shape
    assert K == K2
    tm = min(tm_max, _round_up(M, 8))
    grid_m = pl.cdiv(M, tm)
    return pl.pallas_call(
        _gemm_bias_relu_kernel,
        out_shape=jax.ShapeDtypeStruct((M, N), out_dtype),
        grid=(grid_m,),
        in_specs=[
            pl.BlockSpec((tm, K), lambda m: (m, 0)),   # row tile of patches
            pl.BlockSpec((K, N), lambda m: (0, 0)),    # whole weight, VMEM resident
            pl.BlockSpec((1, N), lambda m: (0, 0)),    # bias row
        ],
        out_specs=pl.BlockSpec((tm, N), lambda m: (m, 0)),
        compiler_params=pltpu.CompilerParams(
            dimension_semantics=("parallel",)),        # shard row tiles across TCs
    )(x, w, b)


# ---------------------------------------------------------------------------
# Pallas kernel 2: fused classifier  fc1 -> relu -> fc2 -> relu -> fc3 -> relu.
# The feat1/feat2/flag concat is folded in via split fc1 weights.
# ---------------------------------------------------------------------------
def _classifier_kernel(feat_ref, flag_ref, w1a_ref, w1b_ref, w1c_ref, b1_ref,
                       w2_ref, b2_ref, w3_ref, b3_ref, o_ref):
    f1 = feat_ref[0]                                   # (B, 1600) bf16
    f2 = feat_ref[1]                                   # (B, 1600) bf16
    h1 = jnp.dot(f1, w1a_ref[...], preferred_element_type=jnp.float32)
    h1 = h1 + jnp.dot(f2, w1b_ref[...], preferred_element_type=jnp.float32)
    h1 = h1 + flag_ref[...] * w1c_ref[...]             # (B,1)*(1,288) on the VPU
    h1 = jnp.maximum(h1 + b1_ref[...], 0.0)            # f32 epilogue
    h2 = jnp.dot(h1.astype(jnp.bfloat16), w2_ref[...],
                 preferred_element_type=jnp.float32)
    h2 = jnp.maximum(h2 + b2_ref[...], 0.0)
    h3 = jnp.dot(h2.astype(jnp.bfloat16), w3_ref[...],
                 preferred_element_type=jnp.float32)
    o_ref[...] = jnp.maximum(h3 + b3_ref[...], 0.0)


# ---------------------------------------------------------------------------
# Conv layers: thin XLA im2col glue + Pallas GEMM (ReLU fused).
# ---------------------------------------------------------------------------
def _im2col(x_nhwc, kh, kw, stride):
    B, H, W, C = x_nhwc.shape
    Ho = (H - kh) // stride + 1
    Wo = (W - kw) // stride + 1
    cols = []
    for i in range(kh):
        for j in range(kw):
            sl = x_nhwc[:, i:i + stride * (Ho - 1) + 1:stride,
                           j:j + stride * (Wo - 1) + 1:stride, :]
            cols.append(sl)                            # (B, Ho, Wo, C)
    patches = jnp.stack(cols, axis=3)                  # (B, Ho, Wo, kh*kw, C)
    return patches.reshape(B * Ho * Wo, kh * kw * C), Ho, Wo


def conv_block(x_nhwc, w_mat, b_row, stride):
    B = x_nhwc.shape[0]
    Cout = w_mat.shape[1]
    patches, Ho, Wo = _im2col(x_nhwc, 3, 3, stride)
    y = matmul_bias_relu(patches, w_mat, b_row, out_dtype=jnp.bfloat16)
    return y.reshape(B, Ho, Wo, Cout)


def featnet(x_nchw, pp):
    # Single batched tower chain on (2B, 1, 25, 25).
    x = jnp.transpose(x_nchw, (0, 2, 3, 1)).astype(jnp.bfloat16)   # NHWC bf16
    x = conv_block(x, pp["conv1_wm"], pp["conv1_b"], 1)            # 25 -> 23, C=16
    x = conv_block(x, pp["conv2_wm"], pp["conv2_b"], 2)            # 23 -> 11, C=32
    x = conv_block(x, pp["conv3_wm"], pp["conv3_b"], 2)            # 11 -> 5,  C=64
    return x.reshape(x.shape[0], -1)                               # (2B, 1600) NHWC order


def two_tower_forward(pp, input1, input2, flag):
    B = input1.shape[0]
    x12 = jnp.concatenate([input1, input2], axis=0)                # (2B,1,25,25)
    feat = featnet(x12, pp)                                        # (2B,1600) bf16
    feat = feat.reshape(2, B, feat.shape[-1])                      # [0]=tower1 [1]=tower2
    out = pl.pallas_call(
        _classifier_kernel,
        out_shape=jax.ShapeDtypeStruct((B, pp["fc3_b"].shape[-1]), jnp.float32),
        in_specs=[pl.BlockSpec(memory_space=pltpu.MemorySpace.VMEM)] * 10,
        out_specs=pl.BlockSpec(memory_space=pltpu.MemorySpace.VMEM),
    )(feat, flag.astype(jnp.float32),
      pp["fc1_wa"], pp["fc1_wb"], pp["fc1_wc"], pp["fc1_b"],
      pp["fc2_w"], pp["fc2_b"], pp["fc3_w"], pp["fc3_b"])
    return out


# ---------------------------------------------------------------------------
# One-time weight preparation (no per-forward pads / transposes / casts).
# ---------------------------------------------------------------------------
def prepare_params(p):
    def conv_w(w):  # (Cout,Cin,kh,kw) -> (kh*kw*Cin, Cout), matches im2col tap order
        Cout, Cin, kh, kw = w.shape
        return (jnp.transpose(w, (2, 3, 1, 0))
                .reshape(kh * kw * Cin, Cout).astype(jnp.bfloat16))

    def row(b):
        return b.reshape(1, -1).astype(jnp.float32)

    feat_len = 64 * 5 * 5
    idx = jnp.arange(feat_len)
    s = idx // 64                       # spatial position h*5 + w (NHWC order)
    c = idx % 64                        # channel
    perm = c * 25 + s                   # corresponding torch NCHW-flatten row
    fc1 = p["fc1_w"]
    return {
        "conv1_wm": conv_w(p["conv1_w"]), "conv1_b": row(p["conv1_b"]),
        "conv2_wm": conv_w(p["conv2_w"]), "conv2_b": row(p["conv2_b"]),
        "conv3_wm": conv_w(p["conv3_w"]), "conv3_b": row(p["conv3_b"]),
        # fc1 rows split into tower1 / tower2 / flag, permuted to NHWC order.
        "fc1_wa": fc1[perm].astype(jnp.bfloat16),
        "fc1_wb": fc1[feat_len + perm].astype(jnp.bfloat16),
        "fc1_wc": fc1[2 * feat_len:2 * feat_len + 1].astype(jnp.float32),
        "fc1_b": row(p["fc1_b"]),
        "fc2_w": p["fc2_w"].astype(jnp.bfloat16), "fc2_b": row(p["fc2_b"]),
        "fc3_w": p["fc3_w"].astype(jnp.bfloat16), "fc3_b": row(p["fc3_b"]),
    }


# ---------------------------------------------------------------------------
# Deterministic synthetic parameters (same shapes as the PyTorch module).
# Linear weights stored as (in_features, out_features) = W_torch.T.
# ---------------------------------------------------------------------------
def init_params(key, in_channel=1, out_channel=10):
    ks = jax.random.split(key, 12)
    s = 0.05

    def nrm(k, shape):
        return jax.random.normal(k, shape, dtype=jnp.float32) * s

    return {
        "conv1_w": nrm(ks[0], (16, in_channel, 3, 3)), "conv1_b": nrm(ks[1], (16,)),
        "conv2_w": nrm(ks[2], (32, 16, 3, 3)),         "conv2_b": nrm(ks[3], (32,)),
        "conv3_w": nrm(ks[4], (64, 32, 3, 3)),         "conv3_b": nrm(ks[5], (64,)),
        "fc1_w": nrm(ks[6], (3201, 3 * 3 * 32)),       "fc1_b": nrm(ks[7], (3 * 3 * 32,)),
        "fc2_w": nrm(ks[8], (3 * 3 * 32, 3 * 3 * 16)), "fc2_b": nrm(ks[9], (3 * 3 * 16,)),
        "fc3_w": nrm(ks[10], (3 * 3 * 16, out_channel)), "fc3_b": nrm(ks[11], (out_channel,)),
    }


# Pure-JAX f32 reference following the original torch semantics exactly
# (NCHW conv, NCHW flatten, concat(feat1, feat2, flag), Linear->ReLU x3).
def reference_forward(p, input1, input2, flag):
    def feat(x):
        y = x
        for wn, bn, st in (("conv1_w", "conv1_b", 1),
                           ("conv2_w", "conv2_b", 2),
                           ("conv3_w", "conv3_b", 2)):
            y = jax.lax.conv_general_dilated(
                y, p[wn], window_strides=(st, st), padding="VALID",
                dimension_numbers=("NCHW", "OIHW", "NCHW"))
            y = jnp.maximum(y + p[bn][None, :, None, None], 0.0)
        return y.reshape(y.shape[0], -1)

    x = jnp.concatenate([feat(input1), feat(input2), flag], axis=1)
    for wn, bn in (("fc1_w", "fc1_b"), ("fc2_w", "fc2_b"), ("fc3_w", "fc3_b")):
        x = jnp.maximum(x @ p[wn] + p[bn], 0.0)
    return x


if __name__ == "__main__":
    key = jax.random.PRNGKey(0)
    kp, k1, k2, kf = jax.random.split(key, 4)
    params = init_params(kp)
    prepared = prepare_params(params)   # once, outside the jitted forward

    B = 2
    input1 = jax.random.normal(k1, (B, 1, 25, 25), dtype=jnp.float32)
    input2 = jax.random.normal(k2, (B, 1, 25, 25), dtype=jnp.float32)
    flag = jax.random.normal(kf, (B, 1), dtype=jnp.float32)

    fwd = jax.jit(two_tower_forward)
    out = jax.block_until_ready(fwd(prepared, input1, input2, flag))

    assert out.shape == (B, 10), out.shape
    assert bool(jnp.all(jnp.isfinite(out)))

    ref = reference_forward(params, input1, input2, flag)
    rel_err = float(jnp.max(jnp.abs(out - ref)) / (jnp.max(jnp.abs(ref)) + 1e-6))
    assert rel_err < 0.1, f"mismatch vs f32 reference: rel_err={rel_err}"

    print("KERNEL_OK")
</pallas_src>

<mosaic_0001>
module attributes {stable_mosaic.version = 11 : i64} {
  func.func @_gemm_bias_relu_kernel(%arg0: i32, %arg1: memref<512x9xbf16, #tpu.memory_space<vmem>>, %arg2: memref<9x16xbf16, #tpu.memory_space<vmem>>, %arg3: memref<1x16xf32, #tpu.memory_space<vmem>>, %arg4: memref<512x16xbf16, #tpu.memory_space<vmem>>) attributes {dimension_semantics = [#tpu.dimension_semantics<parallel>], iteration_bounds = array<i64: 5>, scalar_prefetch = 0 : i64, scratch_operands = 0 : i64, tpu.core_type = #tpu.core_type<tc>, window_params = [{transform_indices = @transform_0, window_bounds = array<i64: 512, 9>}, {pipeline_mode = #tpu.pipeline_mode<synchronous>, transform_indices = @transform_1, window_bounds = array<i64: 9, 16>}, {pipeline_mode = #tpu.pipeline_mode<synchronous>, transform_indices = @transform_2, window_bounds = array<i64: 1, 16>}, {transform_indices = @transform_3, window_bounds = array<i64: 512, 16>}]} {
    %c0 = arith.constant 0 : index
    %c0_0 = arith.constant 0 : index
    %0 = vector.load %arg1[%c0, %c0_0] : memref<512x9xbf16, #tpu.memory_space<vmem>>, vector<512x9xbf16>
    %c0_1 = arith.constant 0 : index
    %c0_2 = arith.constant 0 : index
    %1 = vector.load %arg2[%c0_1, %c0_2] : memref<9x16xbf16, #tpu.memory_space<vmem>>, vector<9x16xbf16>
    %cst = arith.constant dense<0.000000e+00> : vector<512x16xf32>
    %2 = tpu.matmul %0, %1, %cst {dimension_numbers = #tpu.dot_dimension_numbers<[1], [0], [0], [1], [0, 0, 1, 1], [], []>} : vector<512x9xbf16>, vector<9x16xbf16>, vector<512x16xf32> -> vector<512x16xf32>
    %c0_3 = arith.constant 0 : index
    %c0_4 = arith.constant 0 : index
    %3 = vector.load %arg3[%c0_3, %c0_4] : memref<1x16xf32, #tpu.memory_space<vmem>>, vector<1x16xf32>
    %4 = vector.broadcast %3 : vector<1x16xf32> to vector<512x16xf32>
    %5 = arith.addf %2, %4 : vector<512x16xf32>
    %cst_5 = arith.constant 0.000000e+00 : f32
    %6 = vector.broadcast %cst_5 : f32 to vector<512x16xf32>
    %7 = arith.maximumf %5, %6 : vector<512x16xf32>
    %8 = arith.truncf %7 : vector<512x16xf32> to vector<512x16xbf16>
    %c0_6 = arith.constant 0 : index
    %c0_7 = arith.constant 0 : index
    %9 = vector.load %arg4[%c0_6, %c0_7] : memref<512x16xbf16, #tpu.memory_space<vmem>>, vector<512x16xbf16>
    tpu.vector_store %arg4[%c0_6, %c0_7], %8 {strides = array<i32>} : memref<512x16xbf16, #tpu.memory_space<vmem>>, vector<512x16xbf16>,
    return
  }
  func.func @transform_0(%arg0: i32) -> (i32, i32) {
    %c0_i32 = arith.constant 0 : i32
    %c0_i32_0 = arith.constant 0 : i32
    return %arg0, %c0_i32 : i32, i32
  }
  func.func @transform_1(%arg0: i32) -> (i32, i32) {
    %c0_i32 = arith.constant 0 : i32
    %c0_i32_0 = arith.constant 0 : i32
    %c0_i32_1 = arith.constant 0 : i32
    return %c0_i32, %c0_i32_0 : i32, i32
  }
  func.func @transform_2(%arg0: i32) -> (i32, i32) {
    %c0_i32 = arith.constant 0 : i32
    %c0_i32_0 = arith.constant 0 : i32
    %c0_i32_1 = arith.constant 0 : i32
    return %c0_i32, %c0_i32_0 : i32, i32
  }
  func.func @transform_3(%arg0: i32) -> (i32, i32) {
    %c0_i32 = arith.constant 0 : i32
    %c0_i32_0 = arith.constant 0 : i32
    return %arg0, %c0_i32 : i32, i32
  }
}

module attributes {stable_mosaic.version = 11 : i64} {
  func.func @_gemm_bias_relu_kernel(%arg0: i32, %arg1: memref<488x144xbf16, #tpu.memory_space<vmem>>, %arg2: memref<144x32xbf16, #tpu.memory_space<vmem>>, %arg3: memref<1x32xf32, #tpu.memory_space<vmem>>, %arg4: memref<488x32xbf16, #tpu.memory_space<vmem>>) attributes {dimension_semantics = [#tpu.dimension_semantics<parallel>], iteration_bounds = array<i64: 1>, scalar_prefetch = 0 : i64, scratch_operands = 0 : i64, tpu.core_type = #tpu.core_type<tc>, window_params = [{transform_indices = @transform_0, window_bounds = array<i64: 488, 144>}, {pipeline_mode = #tpu.pipeline_mode<synchronous>, transform_indices = @transform_1, window_bounds = array<i64: 144, 32>}, {pipeline_mode = #tpu.pipeline_mode<synchronous>, transform_indices = @transform_2, window_bounds = array<i64: 1, 32>}, {transform_indices = @transform_3, window_bounds = array<i64: 488, 32>}]} {
    %c0 = arith.constant 0 : index
    %c0_0 = arith.constant 0 : index
    %0 = vector.load %arg1[%c0, %c0_0] : memref<488x144xbf16, #tpu.memory_space<vmem>>, vector<488x144xbf16>
    %c0_1 = arith.constant 0 : index
    %c0_2 = arith.constant 0 : index
    %1 = vector.load %arg2[%c0_1, %c0_2] : memref<144x32xbf16, #tpu.memory_space<vmem>>, vector<144x32xbf16>
    %cst = arith.constant dense<0.000000e+00> : vector<488x32xf32>
    %2 = tpu.matmul %0, %1, %cst {dimension_numbers = #tpu.dot_dimension_numbers<[1], [0], [0], [1], [0, 0, 1, 1], [], []>} : vector<488x144xbf16>, vector<144x32xbf16>, vector<488x32xf32> -> vector<488x32xf32>
    %c0_3 = arith.constant 0 : index
    %c0_4 = arith.constant 0 : index
    %3 = vector.load %arg3[%c0_3, %c0_4] : memref<1x32xf32, #tpu.memory_space<vmem>>, vector<1x32xf32>
    %4 = vector.broadcast %3 : vector<1x32xf32> to vector<488x32xf32>
    %5 = arith.addf %2, %4 : vector<488x32xf32>
    %cst_5 = arith.constant 0.000000e+00 : f32
    %6 = vector.broadcast %cst_5 : f32 to vector<488x32xf32>
    %7 = arith.maximumf %5, %6 : vector<488x32xf32>
    %8 = arith.truncf %7 : vector<488x32xf32> to vector<488x32xbf16>
    %c0_6 = arith.constant 0 : index
    %c0_7 = arith.constant 0 : index
    %9 = vector.load %arg4[%c0_6, %c0_7] : memref<488x32xbf16, #tpu.memory_space<vmem>>, vector<488x32xbf16>
    tpu.vector_store %arg4[%c0_6, %c0_7], %8 {strides = array<i32>} : memref<488x32xbf16, #tpu.memory_space<vmem>>, vector<488x32xbf16>,
    return
  }
  func.func @transform_0(%arg0: i32) -> (i32, i32) {
    %c0_i32 = arith.constant 0 : i32
    %c0_i32_0 = arith.constant 0 : i32
    return %arg0, %c0_i32 : i32, i32
  }
  func.func @transform_1(%arg0: i32) -> (i32, i32) {
    %c0_i32 = arith.constant 0 : i32
    %c0_i32_0 = arith.constant 0 : i32
    %c0_i32_1 = arith.constant 0 : i32
    return %c0_i32, %c0_i32_0 : i32, i32
  }
  func.func @transform_2(%arg0: i32) -> (i32, i32) {
    %c0_i32 = arith.constant 0 : i32
    %c0_i32_0 = arith.constant 0 : i32
    %c0_i32_1 = arith.constant 0 : i32
    return %c0_i32, %c0_i32_0 : i32, i32
  }
  func.func @transform_3(%arg0: i32) -> (i32, i32) {
    %c0_i32 = arith.constant 0 : i32
    %c0_i32_0 = arith.constant 0 : i32
    return %arg0, %c0_i32 : i32, i32
  }
}

module attributes {stable_mosaic.version = 11 : i64} {
  func.func @_gemm_bias_relu_kernel(%arg0: i32, %arg1: memref<104x288xbf16, #tpu.memory_space<vmem>>, %arg2: memref<288x64xbf16, #tpu.memory_space<vmem>>, %arg3: memref<1x64xf32, #tpu.memory_space<vmem>>, %arg4: memref<104x64xbf16, #tpu.memory_space<vmem>>) attributes {dimension_semantics = [#tpu.dimension_semantics<parallel>], iteration_bounds = array<i64: 1>, scalar_prefetch = 0 : i64, scratch_operands = 0 : i64, tpu.core_type = #tpu.core_type<tc>, window_params = [{transform_indices = @transform_0, window_bounds = array<i64: 104, 288>}, {pipeline_mode = #tpu.pipeline_mode<synchronous>, transform_indices = @transform_1, window_bounds = array<i64: 288, 64>}, {pipeline_mode = #tpu.pipeline_mode<synchronous>, transform_indices = @transform_2, window_bounds = array<i64: 1, 64>}, {transform_indices = @transform_3, window_bounds = array<i64: 104, 64>}]} {
    %c0 = arith.constant 0 : index
    %c0_0 = arith.constant 0 : index
    %0 = vector.load %arg1[%c0, %c0_0] : memref<104x288xbf16, #tpu.memory_space<vmem>>, vector<104x288xbf16>
    %c0_1 = arith.constant 0 : index
    %c0_2 = arith.constant 0 : index
    %1 = vector.load %arg2[%c0_1, %c0_2] : memref<288x64xbf16, #tpu.memory_space<vmem>>, vector<288x64xbf16>
    %cst = arith.constant dense<0.000000e+00> : vector<104x64xf32>
    %2 = tpu.matmul %0, %1, %cst {dimension_numbers = #tpu.dot_dimension_numbers<[1], [0], [0], [1], [0, 0, 1, 1], [], []>} : vector<104x288xbf16>, vector<288x64xbf16>, vector<104x64xf32> -> vector<104x64xf32>
    %c0_3 = arith.constant 0 : index
    %c0_4 = arith.constant 0 : index
    %3 = vector.load %arg3[%c0_3, %c0_4] : memref<1x64xf32, #tpu.memory_space<vmem>>, vector<1x64xf32>
    %4 = vector.broadcast %3 : vector<1x64xf32> to vector<104x64xf32>
    %5 = arith.addf %2, %4 : vector<104x64xf32>
    %cst_5 = arith.constant 0.000000e+00 : f32
    %6 = vector.broadcast %cst_5 : f32 to vector<104x64xf32>
    %7 = arith.maximumf %5, %6 : vector<104x64xf32>
    %8 = arith.truncf %7 : vector<104x64xf32> to vector<104x64xbf16>
    %c0_6 = arith.constant 0 : index
    %c0_7 = arith.constant 0 : index
    %9 = vector.load %arg4[%c0_6, %c0_7] : memref<104x64xbf16, #tpu.memory_space<vmem>>, vector<104x64xbf16>
    tpu.vector_store %arg4[%c0_6, %c0_7], %8 {strides = array<i32>} : memref<104x64xbf16, #tpu.memory_space<vmem>>, vector<104x64xbf16>,
    return
  }
  func.func @transform_0(%arg0: i32) -> (i32, i32) {
    %c0_i32 = arith.constant 0 : i32
    %c0_i32_0 = arith.constant 0 : i32
    return %arg0, %c0_i32 : i32, i32
  }
  func.func @transform_1(%arg0: i32) -> (i32, i32) {
    %c0_i32 = arith.constant 0 : i32
    %c0_i32_0 = arith.constant 0 : i32
    %c0_i32_1 = arith.constant 0 : i32
    return %c0_i32, %c0_i32_0 : i32, i32
  }
  func.func @transform_2(%arg0: i32) -> (i32, i32) {
    %c0_i32 = arith.constant 0 : i32
    %c0_i32_0 = arith.constant 0 : i32
    %c0_i32_1 = arith.constant 0 : i32
    return %c0_i32, %c0_i32_0 : i32, i32
  }
  func.func @transform_3(%arg0: i32) -> (i32, i32) {
    %c0_i32 = arith.constant 0 : i32
    %c0_i32_0 = arith.constant 0 : i32
    return %arg0, %c0_i32 : i32, i32
  }
}

module attributes {stable_mosaic.version = 11 : i64} {
  func.func @_classifier_kernel(%arg0: memref<2x2x1600xbf16, #tpu.memory_space<vmem>>, %arg1: memref<2x1xf32, #tpu.memory_space<vmem>>, %arg2: memref<1600x288xbf16, #tpu.memory_space<vmem>>, %arg3: memref<1600x288xbf16, #tpu.memory_space<vmem>>, %arg4: memref<1x288xf32, #tpu.memory_space<vmem>>, %arg5: memref<1x288xf32, #tpu.memory_space<vmem>>, %arg6: memref<288x144xbf16, #tpu.memory_space<vmem>>, %arg7: memref<1x144xf32, #tpu.memory_space<vmem>>, %arg8: memref<144x10xbf16, #tpu.memory_space<vmem>>, %arg9: memref<1x10xf32, #tpu.memory_space<vmem>>, %arg10: memref<2x10xf32, #tpu.memory_space<vmem>>) attributes {dimension_semantics = [], scalar_prefetch = 0 : i64, scratch_operands = 0 : i64, tpu.core_type = #tpu.core_type<tc>} {
    %c0 = arith.constant 0 : index
    %c0_0 = arith.constant 0 : index
    %c0_1 = arith.constant 0 : index
    %0 = vector.load %arg0[%c0, %c0_0, %c0_1] : memref<2x2x1600xbf16, #tpu.memory_space<vmem>>, vector<1x2x1600xbf16>
    %1 = vector.shape_cast %0 : vector<1x2x1600xbf16> to vector<2x1600xbf16>
    %c1 = arith.constant 1 : index
    %c0_2 = arith.constant 0 : index
    %c0_3 = arith.constant 0 : index
    %2 = vector.load %arg0[%c1, %c0_2, %c0_3] : memref<2x2x1600xbf16, #tpu.memory_space<vmem>>, vector<1x2x1600xbf16>
    %3 = vector.shape_cast %2 : vector<1x2x1600xbf16> to vector<2x1600xbf16>
    %c0_4 = arith.constant 0 : index
    %c0_5 = arith.constant 0 : index
    %4 = vector.load %arg2[%c0_4, %c0_5] : memref<1600x288xbf16, #tpu.memory_space<vmem>>, vector<1600x288xbf16>
    %cst = arith.constant dense<0.000000e+00> : vector<2x288xf32>
    %5 = tpu.matmul %1, %4, %cst {dimension_numbers = #tpu.dot_dimension_numbers<[1], [0], [0], [1], [0, 0, 1, 1], [], []>} : vector<2x1600xbf16>, vector<1600x288xbf16>, vector<2x288xf32> -> vector<2x288xf32>
    %c0_6 = arith.constant 0 : index
    %c0_7 = arith.constant 0 : index
    %6 = vector.load %arg3[%c0_6, %c0_7] : memref<1600x288xbf16, #tpu.memory_space<vmem>>, vector<1600x288xbf16>
    %cst_8 = arith.constant dense<0.000000e+00> : vector<2x288xf32>
    %7 = tpu.matmul %3, %6, %cst_8 {dimension_numbers = #tpu.dot_dimension_numbers<[1], [0], [0], [1], [0, 0, 1, 1], [], []>} : vector<2x1600xbf16>, vector<1600x288xbf16>, vector<2x288xf32> -> vector<2x288xf32>
    %8 = arith.addf %5, %7 : vector<2x288xf32>
    %c0_9 = arith.constant 0 : index
    %c0_10 = arith.constant 0 : index
    %9 = vector.load %arg1[%c0_9, %c0_10] : memref<2x1xf32, #tpu.memory_space<vmem>>, vector<2x1xf32>
    %c0_11 = arith.constant 0 : index
    %c0_12 = arith.constant 0 : index
    %10 = vector.load %arg4[%c0_11, %c0_12] : memref<1x288xf32, #tpu.memory_space<vmem>>, vector<1x288xf32>
    %11 = vector.broadcast %9 : vector<2x1xf32> to vector<2x288xf32>
    %12 = vector.broadcast %10 : vector<1x288xf32> to vector<2x288xf32>
    %13 = arith.mulf %11, %12 : vector<2x288xf32>
    %14 = arith.addf %8, %13 : vector<2x288xf32>
    %c0_13 = arith.constant 0 : index
    %c0_14 = arith.constant 0 : index
    %15 = vector.load %arg5[%c0_13, %c0_14] : memref<1x288xf32, #tpu.memory_space<vmem>>, vector<1x288xf32>
    %16 = vector.broadcast %15 : vector<1x288xf32> to vector<2x288xf32>
    %17 = arith.addf %14, %16 : vector<2x288xf32>
    %cst_15 = arith.constant 0.000000e+00 : f32
    %18 = vector.broadcast %cst_15 : f32 to vector<2x288xf32>
    %19 = arith.maximumf %17, %18 : vector<2x288xf32>
    %20 = arith.truncf %19 : vector<2x288xf32> to vector<2x288xbf16>
    %c0_16 = arith.constant 0 : index
    %c0_17 = arith.constant 0 : index
    %21 = vector.load %arg6[%c0_16, %c0_17] : memref<288x144xbf16, #tpu.memory_space<vmem>>, vector<288x144xbf16>
    %cst_18 = arith.constant dense<0.000000e+00> : vector<2x144xf32>
    %22 = tpu.matmul %20, %21, %cst_18 {dimension_numbers = #tpu.dot_dimension_numbers<[1], [0], [0], [1], [0, 0, 1, 1], [], []>} : vector<2x288xbf16>, vector<288x144xbf16>, vector<2x144xf32> -> vector<2x144xf32>
    %c0_19 = arith.constant 0 : index
    %c0_20 = arith.constant 0 : index
    %23 = vector.load %arg7[%c0_19, %c0_20] : memref<1x144xf32, #tpu.memory_space<vmem>>, vector<1x144xf32>
    %24 = vector.broadcast %23 : vector<1x144xf32> to vector<2x144xf32>
    %25 = arith.addf %22, %24 : vector<2x144xf32>
    %cst_21 = arith.constant 0.000000e+00 : f32
    %26 = vector.broadcast %cst_21 : f32 to vector<2x144xf32>
    %27 = arith.maximumf %25, %26 : vector<2x144xf32>
    %28 = arith.truncf %27 : vector<2x144xf32> to vector<2x144xbf16>
    %c0_22 = arith.constant 0 : index
    %c0_23 = arith.constant 0 : index
    %29 = vector.load %arg8[%c0_22, %c0_23] : memref<144x10xbf16, #tpu.memory_space<vmem>>, vector<144x10xbf16>
    %cst_24 = arith.constant dense<0.000000e+00> : vector<2x10xf32>
    %30 = tpu.matmul %28, %29, %cst_24 {dimension_numbers = #tpu.dot_dimension_numbers<[1], [0], [0], [1], [0, 0, 1, 1], [], []>} : vector<2x144xbf16>, vector<144x10xbf16>, vector<2x10xf32> -> vector<2x10xf32>
    %c0_25 = arith.constant 0 : index
    %c0_26 = arith.constant 0 : index
    %31 = vector.load %arg9[%c0_25, %c0_26] : memref<1x10xf32, #tpu.memory_space<vmem>>, vector<1x10xf32>
    %32 = vector.broadcast %31 : vector<1x10xf32> to vector<2x10xf32>
    %33 = arith.addf %30, %32 : vector<2x10xf32>
    %cst_27 = arith.constant 0.000000e+00 : f32
    %34 = vector.broadcast %cst_27 : f32 to vector<2x10xf32>
    %35 = arith.maximumf %33, %34 : vector<2x10xf32>
    %c0_28 = arith.constant 0 : index
    %c0_29 = arith.constant 0 : index
    %36 = vector.load %arg10[%c0_28, %c0_29] : memref<2x10xf32, #tpu.memory_space<vmem>>, vector<2x10xf32>
    tpu.vector_store %arg10[%c0_28, %c0_29], %35 {strides = array<i32>} : memref<2x10xf32, #tpu.memory_space<vmem>>, vector<2x10xf32>,
    return
  }
}

</mosaic_0001>

<llo_original>
// kernel: two_tower_forward.4
$region0: #{two_tower_forward.4}
  #allocation0 [shape = 'u32[]', space=smem, size = 0x4, offset = 0x4, fixed_abs, tag = 'smem constant byte address 0x4 - core index']
  #allocation1 [shape = 'u32[144,128]{1,0:T(1,128)}', space=vmem, size = 0x12000, scoped, tag = 'internal scratch']
  %s0 = inlined_call_operand.vmem [shape: bf16[2116,9], index: 0, kind: input, shape index: {}]
  %s1 = inlined_call_operand.hbm [shape: bf16[9,16], index: 1, kind: input, shape index: {}]
  %s2 = inlined_call_operand.hbm [shape: f32[1,16], index: 2, kind: input, shape index: {}]
  %s3 = inlined_call_operand.vmem [shape: bf16[2116,16], index: 3, kind: output, shape index: {}]
  %s4 = sld [smem:[#allocation0]]
  $region97: #{two_tower_forward.4} parent=0
    _
  %s6 = ssub.s32 1, %s4
  %s7 = scalar_select 0, %s6, %s4
  $region1: #{two_tower_forward.4} parent=0
    #allocation2 [shape = 'u8[4096]{0}', space=vmem, size = 0x1000, scoped, tag = 'input window, operand 1, single buffered']
    #allocation3 [shape = 's32[2]{0}', space=sflag, size = 0x8, scoped, tag = 'scoped memory for two_tower_forward.4']
    #allocation4 [shape = 'u8[512]{0}', space=vmem, size = 0x400, scoped, tag = 'input window, operand 2, single buffered']
    #allocation5 [shape = 's32[1]{0}', space=sflag, size = 0x4, scoped, tag = 'scoped memory for two_tower_forward.4']
    #allocation6 [shape = 'u8[262144]{0}', space=vmem, size = 0x40000, scoped, tag = 'output window, operand 0']
    %8 = vsyncpa [#allocation3], 0
    %9 = vsyncpa [#allocation5], 0
    loop: start=0, step=1, limit=7
    $region2: #{two_tower_forward.4} parent=1 // loop_pre_header
      _
    $region3: #{two_tower_forward.4} parent=1 // loop_header
      %s11 = sphi 0, %s15
      %p12 = scmp.ge.s32.totalorder %s11, 7
      %s21 = sphi 0, %s23
      %s24 = sphi 0, %s21
      %s25 = sphi 0, %s24
      %s41 = sphi 0, %s25
      %s45 = sphi 0, %s45
      %s47 = sphi 0, %s45
      %s48 = sphi 0, %s47
      %s62 = sphi 0, %s48
      %s66 = sphi 0, %s66
      %s68 = sphi 0, %s66
      %s69 = sphi 0, %s68
      %s83 = sphi 0, %s69
      %s89 = sphi 0, %s91
      %s92 = sphi 0, %s89
      %s93 = sphi 0, %s92
      %s109 = sphi 0, %s93
    $region4: #{two_tower_forward.4} parent=1 // loop_header_branch
      %14 = sbr.rel (%p12) target = $region8
    $region5: #{two_tower_forward.4} parent=1 // loop_body
      %s16 = ssub.s32 %s11, 1
      %s17 = ssub.s32 %s11, 2
      %s18 = sadd.s32 %s11, 1
      %s19 = ssub.s32 %s11, %s18
      %p20 = scmp.eq.s32.totalorder %s19, 0
      %s22 = sadd.s32 %s21, 1
      %s23 = scalar_select %p20, %s21, %s22
      %p26 = pneg %p20
      %p27 = scmp.eq.s32.totalorder %s11, 4
      %p28 = por %p26, %p27
      %p29 = scmp.ne.s32.totalorder %s21, %s24
      %p30 = scmp.eq.s32.totalorder %s11, 0
      %p31 = por %p29, %p30
      %p32 = scmp.ne.s32.totalorder %s21, %s24
      %p33 = scmp.eq.s32.totalorder %s16, 4
      %p34 = por %p32, %p33
      %p35 = scmp.ne.s32.totalorder %s24, %s25
      %p36 = scmp.eq.s32.totalorder %s16, 0
      %p37 = por %p35, %p36
      %p38 = scmp.ne.s32.totalorder %s24, %s25
      %p39 = scmp.eq.s32.totalorder %s17, 4
      %p40 = por %p38, %p39
      %p42 = scmp.ne.s32.totalorder %s25, %s41
      %p43 = scmp.eq.s32.totalorder %s17, 0
      %p44 = por %p42, %p43
      %s46 = sadd.s32 %s45, 1
      %p49 = scmp.eq.s32.totalorder %s11, 4
      %p50 = scmp.ne.s32.totalorder %s45, %s47
      %p51 = scmp.eq.s32.totalorder %s11, 0
      %p52 = por %p50, %p51
      %p53 = scmp.ne.s32.totalorder %s45, %s47
      %p54 = scmp.eq.s32.totalorder %s16, 4
      %p55 = por %p53, %p54
      %p56 = scmp.ne.s32.totalorder %s47, %s48
      %p57 = scmp.eq.s32.totalorder %s16, 0
      %p58 = por %p56, %p57
      %p59 = scmp.ne.s32.totalorder %s47, %s48
      %p60 = scmp.eq.s32.totalorder %s17, 4
      %p61 = por %p59, %p60
      %p63 = scmp.ne.s32.totalorder %s48, %s62
      %p64 = scmp.eq.s32.totalorder %s17, 0
      %p65 = por %p63, %p64
      %s67 = sadd.s32 %s66, 1
      %p70 = scmp.eq.s32.totalorder %s11, 4
      %p71 = scmp.ne.s32.totalorder %s66, %s68
      %p72 = scmp.eq.s32.totalorder %s11, 0
      %p73 = por %p71, %p72
      %p74 = scmp.ne.s32.totalorder %s66, %s68
      %p75 = scmp.eq.s32.totalorder %s16, 4
      %p76 = por %p74, %p75
      %p77 = scmp.ne.s32.totalorder %s68, %s69
      %p78 = scmp.eq.s32.totalorder %s16, 0
      %p79 = por %p77, %p78
      %p80 = scmp.ne.s32.totalorder %s68, %s69
      %p81 = scmp.eq.s32.totalorder %s17, 4
      %p82 = por %p80, %p81
      %p84 = scmp.ne.s32.totalorder %s69, %s83
      %p85 = scmp.eq.s32.totalorder %s17, 0
      %p86 = por %p84, %p85
      %s87 = ssub.s32 %s11, %s18
      %p88 = scmp.eq.s32.totalorder %s87, 0
      %s90 = sadd.s32 %s89, 1
      %s91 = scalar_select %p88, %s89, %s90
      %p94 = pneg %p88
      %p95 = scmp.eq.s32.totalorder %s11, 4
      %p96 = por %p94, %p95
      %p97 = scmp.ne.s32.totalorder %s89, %s92
      %p98 = scmp.eq.s32.totalorder %s11, 0
      %p99 = por %p97, %p98
      %p100 = scmp.ne.s32.totalorder %s89, %s92
      %p101 = scmp.eq.s32.totalorder %s16, 4
      %p102 = por %p100, %p101
      %p103 = scmp.ne.s32.totalorder %s92, %s93
      %p104 = scmp.eq.s32.totalorder %s16, 0
      %p105 = por %p103, %p104
      %p106 = scmp.ne.s32.totalorder %s92, %s93
      %p107 = scmp.eq.s32.totalorder %s17, 4
      %p108 = por %p106, %p107
      %p110 = scmp.ne.s32.totalorder %s93, %s109
      %p111 = scmp.eq.s32.totalorder %s17, 0
      %p112 = por %p110, %p111
      %p113 = scmp.le.s32.totalorder 1, %s11
      %p114 = scmp.lt.s32.totalorder %s11, 6
      %p115 = pnand %p113, %p114
      %p116 = pneg %p115
      // Predicated region
      $region9: #{two_tower_forward.4} parent=5 // pred_check
        _
      $region10: #{two_tower_forward.4} parent=5 // pred_check_branch
        %118 = sbr.rel (%p115) target = $region12
      $region11: #{two_tower_forward.4} parent=5 // pred_region
        %s119 = ssub.s32 %s11, 1
        // Predicated region
        $region13: #{two_tower_forward.4} parent=11 // pred_check
          %p120 = pneg %p58
        $region14: #{two_tower_forward.4} parent=11 // pred_check_branch
          %122 = sbr.rel (%p120) target = $region16
        $region15: #{two_tower_forward.4} parent=11 // pred_region
          %s124 = ssub.s32 128, 128
          %125 = vsyncadd [#allocation3], %s124
          %s126 = sshll.u32 [#allocation2], 4
          %s127 = int_to_ptr.vmem [resolvable:$true] %s126
          %132 = dma.hbm_to_vmem [thread:$0]  %s1, 128, %s127, [#allocation3], 64, 64, 4
        $region16: #{two_tower_forward.4} parent=11 // pred_fallthru
          _
        // Predicated region
        $region17: #{two_tower_forward.4} parent=11 // pred_check
          %p133 = pneg %p79
        $region18: #{two_tower_forward.4} parent=11 // pred_check_branch
          %135 = sbr.rel (%p133) target = $region20
        $region19: #{two_tower_forward.4} parent=11 // pred_region
          %s137 = ssub.s32 16, 16
          %138 = vsyncadd [#allocation5], %s137
          %s140 = sshll.u32 [#allocation4], 4
          %s141 = int_to_ptr.vmem [resolvable:$true] %s140
          %143 = dma.hbm_to_vmem [thread:$0]  %s2, 16, %s141, [#allocation5]
        $region20: #{two_tower_forward.4} parent=11 // pred_fallthru
          _
      $region12: #{two_tower_forward.4} parent=5 // pred_fallthru
        _
      %p144 = scmp.lt.s32.totalorder %s11, 5
      // Predicated region
      $region21: #{two_tower_forward.4} parent=5 // pred_check
        %p145 = pneg %p144
      $region22: #{two_tower_forward.4} parent=5 // pred_check_branch
        %147 = sbr.rel (%p145) target = $region24
      $region23: #{two_tower_forward.4} parent=5 // pred_region
        // Predicated region
        $region25: #{two_tower_forward.4} parent=23 // pred_check
          %p148 = pneg %p31
        $region26: #{two_tower_forward.4} parent=23 // pred_check_branch
          %150 = sbr.rel (%p148) target = $region28
        $region27: #{two_tower_forward.4} parent=23 // pred_region
          %s151 = smul.u32 64, %s11
          %s152 = ssub.s32 265, %s151
          %p153 = scmp.lt.s32.totalorder %s152, 64
          %s154 = scalar_select %p153, %s152, 64
          %s155 = smul.u32 64, %s154
          %p156 = scmp.lt.s32.totalorder %s151, 264
          %s157 = scalar_select %p156, %s151, 264
          %s158 = smul.addr %s157, 4
          %s159 = scalar_lea.vmem %s0, %s158
          %s160 = smul.u32 64, %s11
          %s161 = ssub.s32 265, %s160
          %p162 = scmp.lt.s32.totalorder %s161, 64
          %s163 = scalar_select %p162, %s161, 64
          %s164 = smul.u32 64, %s163
        $region28: #{two_tower_forward.4} parent=23 // pred_fallthru
          _
      $region24: #{two_tower_forward.4} parent=5 // pred_fallthru
        _
      %p165 = scmp.le.s32.totalorder 1, %s11
      %p166 = scmp.lt.s32.totalorder %s11, 6
      %p167 = pnand %p165, %p166
      %p168 = pneg %p167
      // Predicated region
      $region29: #{two_tower_forward.4} parent=5 // pred_check
        _
      $region30: #{two_tower_forward.4} parent=5 // pred_check_branch
        %170 = sbr.rel (%p167) target = $region32
      $region31: #{two_tower_forward.4} parent=5 // pred_region
        %s171 = ssub.s32 %s11, 1
        // Predicated region
        $region33: #{two_tower_forward.4} parent=31 // pred_check
          %p172 = pneg %p58
        $region34: #{two_tower_forward.4} parent=31 // pred_check_branch
          %174 = sbr.rel (%p172) target = $region36
        $region35: #{two_tower_forward.4} parent=31 // pred_region
          %175 = dma.done [#allocation3], 128
        $region36: #{two_tower_forward.4} parent=31 // pred_fallthru
          _
        // Predicated region
        $region37: #{two_tower_forward.4} parent=31 // pred_check
          %p176 = pneg %p79
        $region38: #{two_tower_forward.4} parent=31 // pred_check_branch
          %178 = sbr.rel (%p176) target = $region40
        $region39: #{two_tower_forward.4} parent=31 // pred_region
          %179 = dma.done [#allocation5], 16
        $region40: #{two_tower_forward.4} parent=31 // pred_fallthru
          _
        %s180 = smul.u32 64, %s16
        %s181 = ssub.s32 265, %s180
        %p182 = scmp.lt.s32.totalorder %s181, 64
        %s183 = scalar_select %p182, %s181, 64
        %s184 = smul.u32 64, %s183
        %p185 = scmp.lt.s32.totalorder %s180, 264
        %s186 = scalar_select %p185, %s180, 264
        %s187 = smul.addr %s186, 4
        %s188 = scalar_lea.vmem %s0, %s187
        %p189 = pneg %p37
        %p190 = pneg %p34
        %p191 = pneg %p58
        %p192 = pneg %p55
        %p193 = pneg %p79
        %p194 = pneg %p76
        %p195 = pneg %p105
        %p196 = pneg %p102
        %s197 = sand.u32 %s92, 1
        %s198 = sand.u32 %s92, 1
        %s199 = smul.addr %s198, 256
        %s200 = scalar_lea.vmem [#allocation6], %s199
        %s201 = smul.u32 64, %s16
        %s202 = ssub.s32 265, %s201
        %p203 = scmp.lt.s32.totalorder %s202, 64
        %s204 = scalar_select %p203, %s202, 64
        %s205 = smul.u32 64, %s204
        %p206 = scmp.lt.s32.totalorder %s201, 264
        %s207 = scalar_select %p206, %s201, 264
        %s208 = smul.addr %s207, 4
        %s209 = scalar_lea.vmem %s0, %s208
        %s210 = smul.u32 64, %s16
        %s211 = ssub.s32 265, %s210
        %p212 = scmp.lt.s32.totalorder %s211, 64
        %s213 = scalar_select %p212, %s211, 64
        %s214 = smul.u32 64, %s213
        %s215 = smul.u32 64, %s16
        %s216 = ssub.s32 265, %s215
        %p217 = scmp.lt.s32.totalorder %s216, 64
        %s218 = scalar_select %p217, %s216, 64
        %s219 = smul.u32 64, %s218
        %v221 = vld [vmem:[%s209] sm:$0xf]
        %v222 = vld [vmem:[%s209 + $0x4] sm:$0xf]
        %v223 = vld [vmem:[%s209 + $0x8] sm:$0xf]
        %v224 = vld [vmem:[%s209 + $0xc] sm:$0xf]
        %v225 = vld [vmem:[%s209 + $0x10] sm:$0xf]
        %v226 = vld [vmem:[%s209 + $0x14] sm:$0xf]
        %v227 = vld [vmem:[%s209 + $0x18] sm:$0xf]
        %v228 = vld [vmem:[%s209 + $0x1c] sm:$0xf]
        %v229 = vld [vmem:[%s209 + $0x20] sm:$0xf]
        %v230 = vld [vmem:[%s209 + $0x24] sm:$0xf]
        %v231 = vld [vmem:[%s209 + $0x28] sm:$0xf]
        %v232 = vld [vmem:[%s209 + $0x2c] sm:$0xf]
        %v233 = vld [vmem:[%s209 + $0x30] sm:$0xf]
        %v234 = vld [vmem:[%s209 + $0x34] sm:$0xf]
        %v235 = vld [vmem:[%s209 + $0x38] sm:$0xf]
        %v236 = vld [vmem:[%s209 + $0x3c] sm:$0xf]
        %v237 = vld [vmem:[%s209 + $0x40] sm:$0xf]
        %v238 = vld [vmem:[%s209 + $0x44] sm:$0xf]
        %v239 = vld [vmem:[%s209 + $0x48] sm:$0xf]
        %v240 = vld [vmem:[%s209 + $0x4c] sm:$0xf]
        %v241 = vld [vmem:[%s209 + $0x50] sm:$0xf]
        %v242 = vld [vmem:[%s209 + $0x54] sm:$0xf]
        %v243 = vld [vmem:[%s209 + $0x58] sm:$0xf]
        %v244 = vld [vmem:[%s209 + $0x5c] sm:$0xf]
        %v245 = vld [vmem:[%s209 + $0x60] sm:$0xf]
        %v246 = vld [vmem:[%s209 + $0x64] sm:$0xf]
        %v247 = vld [vmem:[%s209 + $0x68] sm:$0xf]
        %v248 = vld [vmem:[%s209 + $0x6c] sm:$0xf]
        %v249 = vld [vmem:[%s209 + $0x70] sm:$0xf]
        %v250 = vld [vmem:[%s209 + $0x74] sm:$0xf]
        %v251 = vld [vmem:[%s209 + $0x78] sm:$0xf]
        %v252 = vld [vmem:[%s209 + $0x7c] sm:$0xf]
        %v253 = vld [vmem:[%s209 + $0x80] sm:$0xf]
        %v254 = vld [vmem:[%s209 + $0x84] sm:$0xf]
        %v255 = vld [vmem:[%s209 + $0x88] sm:$0xf]
        %v256 = vld [vmem:[%s209 + $0x8c] sm:$0xf]
        %v257 = vld [vmem:[%s209 + $0x90] sm:$0xf]
        %v258 = vld [vmem:[%s209 + $0x94] sm:$0xf]
        %v259 = vld [vmem:[%s209 + $0x98] sm:$0xf]
        %v260 = vld [vmem:[%s209 + $0x9c] sm:$0xf]
        %v261 = vld [vmem:[%s209 + $0xa0] sm:$0xf]
        %v262 = vld [vmem:[%s209 + $0xa4] sm:$0xf]
        %v263 = vld [vmem:[%s209 + $0xa8] sm:$0xf]
        %v264 = vld [vmem:[%s209 + $0xac] sm:$0xf]
        %v265 = vld [vmem:[%s209 + $0xb0] sm:$0xf]
        %v266 = vld [vmem:[%s209 + $0xb4] sm:$0xf]
        %v267 = vld [vmem:[%s209 + $0xb8] sm:$0xf]
        %v268 = vld [vmem:[%s209 + $0xbc] sm:$0xf]
        %v269 = vld [vmem:[%s209 + $0xc0] sm:$0xf]
        %v270 = vld [vmem:[%s209 + $0xc4] sm:$0xf]
        %v271 = vld [vmem:[%s209 + $0xc8] sm:$0xf]
        %v272 = vld [vmem:[%s209 + $0xcc] sm:$0xf]
        %v273 = vld [vmem:[%s209 + $0xd0] sm:$0xf]
        %v274 = vld [vmem:[%s209 + $0xd4] sm:$0xf]
        %v275 = vld [vmem:[%s209 + $0xd8] sm:$0xf]
        %v276 = vld [vmem:[%s209 + $0xdc] sm:$0xf]
        %v277 = vld [vmem:[%s209 + $0xe0] sm:$0xf]
        %v278 = vld [vmem:[%s209 + $0xe4] sm:$0xf]
        %v279 = vld [vmem:[%s209 + $0xe8] sm:$0xf]
        %v280 = vld [vmem:[%s209 + $0xec] sm:$0xf]
        %v281 = vld [vmem:[%s209 + $0xf0] sm:$0xf]
        %v282 = vld [vmem:[%s209 + $0xf4] sm:$0xf]
        %v283 = vld [vmem:[%s209 + $0xf8] sm:$0xf]
        %v284 = vld [vmem:[%s209 + $0xfc] sm:$0xf]
        %v285 = vld [vmem:[#allocation2] sm:$0xf]
        %v286 = vld [vmem:[#allocation2 + $0x4] sm:$0x1]
        %v287 = vld [vmem:[#allocation4] sm:$0x1]
        %v289 = vlaneseq
        %v290 = vshrl.u32 %v289, 7
        %v291 = vsub.s32 0, %v290
        %v292 = vrot.slane %v287, %v291
        %v358 = vunpack.c.l.b16 %v221
        %v359 = vunpack.c.l.b16 %v222
        %v360 = vunpack.c.l.b16 %v223
        %v361 = vunpack.c.l.b16 %v224
        %v362 = vunpack.c.l.b16 %v225
        %v363 = vunpack.c.l.b16 %v226
        %v364 = vunpack.c.l.b16 %v227
        %v365 = vunpack.c.l.b16 %v228
        %v366 = vunpack.c.l.b16 %v229
        %v367 = vunpack.c.l.b16 %v230
        %v368 = vunpack.c.l.b16 %v231
        %v369 = vunpack.c.l.b16 %v232
        %v370 = vunpack.c.l.b16 %v233
        %v371 = vunpack.c.l.b16 %v234
        %v372 = vunpack.c.l.b16 %v235
        %v373 = vunpack.c.l.b16 %v236
        %v374 = vunpack.c.l.b16 %v237
        %v375 = vunpack.c.l.b16 %v238
        %v376 = vunpack.c.l.b16 %v239
        %v377 = vunpack.c.l.b16 %v240
        %v378 = vunpack.c.l.b16 %v241
        %v379 = vunpack.c.l.b16 %v242
        %v380 = vunpack.c.l.b16 %v243
        %v381 = vunpack.c.l.b16 %v244
        %v382 = vunpack.c.l.b16 %v245
        %v383 = vunpack.c.l.b16 %v246
        %v384 = vunpack.c.l.b16 %v247
        %v385 = vunpack.c.l.b16 %v248
        %v386 = vunpack.c.l.b16 %v249
        %v387 = vunpack.c.l.b16 %v250
        %v388 = vunpack.c.l.b16 %v251
        %v389 = vunpack.c.l.b16 %v252
        %v390 = vunpack.c.l.b16 %v253
        %v391 = vunpack.c.l.b16 %v254
        %v392 = vunpack.c.l.b16 %v255
        %v393 = vunpack.c.l.b16 %v256
        %v394 = vunpack.c.l.b16 %v257
        %v395 = vunpack.c.l.b16 %v258
        %v396 = vunpack.c.l.b16 %v259
        %v397 = vunpack.c.l.b16 %v260
        %v398 = vunpack.c.l.b16 %v261
        %v399 = vunpack.c.l.b16 %v262
        %v400 = vunpack.c.l.b16 %v263
        %v401 = vunpack.c.l.b16 %v264
        %v402 = vunpack.c.l.b16 %v265
        %v403 = vunpack.c.l.b16 %v266
        %v404 = vunpack.c.l.b16 %v267
        %v405 = vunpack.c.l.b16 %v268
        %v406 = vunpack.c.l.b16 %v269
        %v407 = vunpack.c.l.b16 %v270
        %v408 = vunpack.c.l.b16 %v271
        %v409 = vunpack.c.l.b16 %v272
        %v410 = vunpack.c.l.b16 %v273
        %v411 = vunpack.c.l.b16 %v274
        %v412 = vunpack.c.l.b16 %v275
        %v413 = vunpack.c.l.b16 %v276
        %v414 = vunpack.c.l.b16 %v277
        %v415 = vunpack.c.l.b16 %v278
        %v416 = vunpack.c.l.b16 %v279
        %v417 = vunpack.c.l.b16 %v280
        %v418 = vunpack.c.l.b16 %v281
        %v419 = vunpack.c.l.b16 %v282
        %v420 = vunpack.c.l.b16 %v283
        %v421 = vunpack.c.l.b16 %v284
        %v422 = vpack.c.b16 %v359, %v358
        %v423 = vpack.c.b16 %v361, %v360
        %v424 = vpack.c.b16 %v363, %v362
        %v425 = vpack.c.b16 %v365, %v364
        %v426 = vpack.c.b16 %v367, %v366
        %v427 = vpack.c.b16 %v369, %v368
        %v428 = vpack.c.b16 %v371, %v370
        %v429 = vpack.c.b16 %v373, %v372
        %v430 = vpack.c.b16 %v375, %v374
        %v431 = vpack.c.b16 %v377, %v376
        %v432 = vpack.c.b16 %v379, %v378
        %v433 = vpack.c.b16 %v381, %v380
        %v434 = vpack.c.b16 %v383, %v382
        %v435 = vpack.c.b16 %v385, %v384
        %v436 = vpack.c.b16 %v387, %v386
        %v437 = vpack.c.b16 %v389, %v388
        %v438 = vpack.c.b16 %v391, %v390
        %v439 = vpack.c.b16 %v393, %v392
        %v440 = vpack.c.b16 %v395, %v394
        %v441 = vpack.c.b16 %v397, %v396
        %v442 = vpack.c.b16 %v399, %v398
        %v443 = vpack.c.b16 %v401, %v400
        %v444 = vpack.c.b16 %v403, %v402
        %v445 = vpack.c.b16 %v405, %v404
        %v446 = vpack.c.b16 %v407, %v406
        %v447 = vpack.c.b16 %v409, %v408
        %v448 = vpack.c.b16 %v411, %v410
        %v449 = vpack.c.b16 %v413, %v412
        %v450 = vpack.c.b16 %v415, %v414
        %v451 = vpack.c.b16 %v417, %v416
        %v452 = vpack.c.b16 %v419, %v418
        %v453 = vpack.c.b16 %v421, %v420
        %v456 = vunpack.c.l.b16 %v285
        %v457 = vunpack.c.l.b16 %v286
        %v458 = vpack.c.b16 %v457, %v456
        %vm459 = vcmask 72704
        %v461 = vsel %vm459, %v422, 0
        %v464 = vsel %vm459, %v423, 0
        %v467 = vsel %vm459, %v424, 0
        %v470 = vsel %vm459, %v425, 0
        %v473 = vsel %vm459, %v426, 0
        %v476 = vsel %vm459, %v427, 0
        %v479 = vsel %vm459, %v428, 0
        %v482 = vsel %vm459, %v429, 0
        %v485 = vsel %vm459, %v430, 0
        %v488 = vsel %vm459, %v431, 0
        %v491 = vsel %vm459, %v432, 0
        %v494 = vsel %vm459, %v433, 0
        %v497 = vsel %vm459, %v434, 0
        %v500 = vsel %vm459, %v435, 0
        %v503 = vsel %vm459, %v436, 0
        %v506 = vsel %vm459, %v437, 0
        %v509 = vsel %vm459, %v438, 0
        %v512 = vsel %vm459, %v439, 0
        %v515 = vsel %vm459, %v440, 0
        %v518 = vsel %vm459, %v441, 0
        %v521 = vsel %vm459, %v442, 0
        %v524 = vsel %vm459, %v443, 0
        %v527 = vsel %vm459, %v444, 0
        %v530 = vsel %vm459, %v445, 0
        %v533 = vsel %vm459, %v446, 0
        %v536 = vsel %vm459, %v447, 0
        %v539 = vsel %vm459, %v448, 0
        %v542 = vsel %vm459, %v449, 0
        %v545 = vsel %vm459, %v450, 0
        %v548 = vsel %vm459, %v451, 0
        %v551 = vsel %vm459, %v452, 0
        %v554 = vsel %vm459, %v453, 0
        %vm556 = vcmask 1043456
        %vm557 = vcmask 1044480
        %v558 = vsel %vm556, 4294967295, 65535
        %v559 = vsel %vm557, %v558, 0
        %v561 = vand.u32 %v458, %v559
        %563 = vmatprep.subr.bf16.mxu0 0
        %564 = vmatpush1.bf16.msra.mxu0 %v561
        %565 = vmatprep.subr.bf16.mxu0 0
        %566 = vmatpush1.bf16.msra.mxu0 0
        %567 = vmatprep.subr.bf16.mxu0 0
        %568 = vmatpush1.bf16.msra.mxu0 0
        %569 = vmatprep.subr.bf16.mxu0 0
        %570 = vmatpush1.bf16.msra.mxu0 0
        %571 = vmatprep.subr.bf16.mxu0 0
        %572 = vmatpush1.bf16.msra.mxu0 0
        %573 = vmatprep.subr.bf16.mxu0 0
        %574 = vmatpush1.bf16.msra.mxu0 0
        %575 = vmatprep.subr.bf16.mxu0 0
        %576 = vmatpush1.bf16.msra.mxu0 0
        %577 = vmatprep.subr.bf16.mxu0 0
        %578 = vmatpush1.bf16.msra.mxu0 0
        %579 = vmatprep.subr.bf16.mxu0 0
        %580 = vmatpush1.bf16.msra.mxu0 0
        %581 = vmatprep.subr.bf16.mxu0 0
        %582 = vmatpush1.bf16.msra.mxu0 0
        %583 = vmatprep.subr.bf16.mxu0 0
        %584 = vmatpush1.bf16.msra.mxu0 0
        %585 = vmatprep.subr.bf16.mxu0 0
        %586 = vmatpush1.bf16.msra.mxu0 0
        %587 = vmatprep.subr.bf16.mxu0 0
        %588 = vmatpush1.bf16.msra.mxu0 0
        %589 = vmatprep.subr.bf16.mxu0 0
        %590 = vmatpush1.bf16.msra.mxu0 0
        %591 = vmatprep.subr.bf16.mxu0 0
        %592 = vmatpush1.bf16.msra.mxu0 0
        %593 = vmatprep.subr.bf16.mxu0 0
        %594 = vmatpush1.bf16.msra.mxu0 0
        %595 = vmatprep.mubr.bf16.mxu0 0
        %596 = vmatmul.mubr.bf16.gmra.mrb[0].mxu0 %v461
        %v597 = vpop.f32.mrb[0].mxu0
        %v598 = vadd.f32 %v292, %v597
        %v599 = vpop.f32.mrb[0].mxu0
        %v600 = vpop.f32.mrb[0].mxu0
        %v601 = vadd.f32 %v292, %v600
        %v602 = vpop.f32.mrb[0].mxu0
        %603 = vmatprep.mubr.bf16.mxu0 0
        %604 = vmatmul.mubr.bf16.gmra.mrb[0].mxu0 %v464
        %v605 = vpop.f32.mrb[0].mxu0
        %v606 = vadd.f32 %v292, %v605
        %v607 = vpop.f32.mrb[0].mxu0
        %v608 = vpop.f32.mrb[0].mxu0
        %v609 = vadd.f32 %v292, %v608
        %v610 = vpop.f32.mrb[0].mxu0
        %611 = vmatprep.mubr.bf16.mxu0 0
        %612 = vmatmul.mubr.bf16.gmra.mrb[0].mxu0 %v467
        %v613 = vpop.f32.mrb[0].mxu0
        %v614 = vadd.f32 %v292, %v613
        %v615 = vpop.f32.mrb[0].mxu0
        %v616 = vpop.f32.mrb[0].mxu0
        %v617 = vadd.f32 %v292, %v616
        %v618 = vpop.f32.mrb[0].mxu0
        %619 = vmatprep.mubr.bf16.mxu0 0
        %620 = vmatmul.mubr.bf16.gmra.mrb[0].mxu0 %v470
        %v621 = vpop.f32.mrb[0].mxu0
        %v622 = vadd.f32 %v292, %v621
        %v623 = vpop.f32.mrb[0].mxu0
        %v624 = vpop.f32.mrb[0].mxu0
        %v625 = vadd.f32 %v292, %v624
        %v626 = vpop.f32.mrb[0].mxu0
        %627 = vmatprep.mubr.bf16.mxu0 0
        %628 = vmatmul.mubr.bf16.gmra.mrb[0].mxu0 %v473
        %v629 = vpop.f32.mrb[0].mxu0
        %v630 = vadd.f32 %v292, %v629
        %v631 = vpop.f32.mrb[0].mxu0
        %v632 = vpop.f32.mrb[0].mxu0
        %v633 = vadd.f32 %v292, %v632
        %v634 = vpop.f32.mrb[0].mxu0
        %635 = vmatprep.mubr.bf16.mxu0 0
        %636 = vmatmul.mubr.bf16.gmra.mrb[0].mxu0 %v476
        %v637 = vpop.f32.mrb[0].mxu0
        %v638 = vadd.f32 %v292, %v637
        %v639 = vpop.f32.mrb[0].mxu0
        %v640 = vpop.f32.mrb[0].mxu0
        %v641 = vadd.f32 %v292, %v640
        %v642 = vpop.f32.mrb[0].mxu0
        %643 = vmatprep.mubr.bf16.mxu0 0
        %644 = vmatmul.mubr.bf16.gmra.mrb[0].mxu0 %v479
        %v645 = vpop.f32.mrb[0].mxu0
        %v646 = vadd.f32 %v292, %v645
        %v647 = vpop.f32.mrb[0].mxu0
        %v648 = vpop.f32.mrb[0].mxu0
        %v649 = vadd.f32 %v292, %v648
        %v650 = vpop.f32.mrb[0].mxu0
        %651 = vmatprep.mubr.bf16.mxu0 0
        %652 = vmatmul.mubr.bf16.gmra.mrb[0].mxu0 %v482
        %v653 = vpop.f32.mrb[0].mxu0
        %v654 = vadd.f32 %v292, %v653
        %v655 = vpop.f32.mrb[0].mxu0
        %v656 = vpop.f32.mrb[0].mxu0
        %v657 = vadd.f32 %v292, %v656
        %v658 = vpop.f32.mrb[0].mxu0
        %659 = vmatprep.mubr.bf16.mxu0 0
        %660 = vmatmul.mubr.bf16.gmra.mrb[0].mxu0 %v485
        %v661 = vpop.f32.mrb[0].mxu0
        %v662 = vadd.f32 %v292, %v661
        %v663 = vpop.f32.mrb[0].mxu0
        %v664 = vpop.f32.mrb[0].mxu0
        %v665 = vadd.f32 %v292, %v664
        %v666 = vpop.f32.mrb[0].mxu0
        %667 = vmatprep.mubr.bf16.mxu0 0
        %668 = vmatmul.mubr.bf16.gmra.mrb[0].mxu0 %v488
        %v669 = vpop.f32.mrb[0].mxu0
        %v670 = vadd.f32 %v292, %v669
        %v671 = vpop.f32.mrb[0].mxu0
        %v672 = vpop.f32.mrb[0].mxu0
        %v673 = vadd.f32 %v292, %v672
        %v674 = vpop.f32.mrb[0].mxu0
        %675 = vmatprep.mubr.bf16.mxu0 0
        %676 = vmatmul.mubr.bf16.gmra.mrb[0].mxu0 %v491
        %v677 = vpop.f32.mrb[0].mxu0
        %v678 = vadd.f32 %v292, %v677
        %v679 = vpop.f32.mrb[0].mxu0
        %v680 = vpop.f32.mrb[0].mxu0
        %v681 = vadd.f32 %v292, %v680
        %v682 = vpop.f32.mrb[0].mxu0
        %683 = vmatprep.mubr.bf16.mxu0 0
        %684 = vmatmul.mubr.bf16.gmra.mrb[0].mxu0 %v494
        %v685 = vpop.f32.mrb[0].mxu0
        %v686 = vadd.f32 %v292, %v685
        %v687 = vpop.f32.mrb[0].mxu0
        %v688 = vpop.f32.mrb[0].mxu0
        %v689 = vadd.f32 %v292, %v688
        %v690 = vpop.f32.mrb[0].mxu0
        %691 = vmatprep.mubr.bf16.mxu0 0
        %692 = vmatmul.mubr.bf16.gmra.mrb[0].mxu0 %v497
        %v693 = vpop.f32.mrb[0].mxu0
        %v694 = vadd.f32 %v292, %v693
        %v695 = vpop.f32.mrb[0].mxu0
        %v696 = vpop.f32.mrb[0].mxu0
        %v697 = vadd.f32 %v292, %v696
        %v698 = vpop.f32.mrb[0].mxu0
        %699 = vmatprep.mubr.bf16.mxu0 0
        %700 = vmatmul.mubr.bf16.gmra.mrb[0].mxu0 %v500
        %v701 = vpop.f32.mrb[0].mxu0
        %v702 = vadd.f32 %v292, %v701
        %v703 = vpop.f32.mrb[0].mxu0
        %v704 = vpop.f32.mrb[0].mxu0
        %v705 = vadd.f32 %v292, %v704
        %v706 = vpop.f32.mrb[0].mxu0
        %707 = vmatprep.mubr.bf16.mxu0 0
        %708 = vmatmul.mubr.bf16.gmra.mrb[0].mxu0 %v503
        %v709 = vpop.f32.mrb[0].mxu0
        %v710 = vadd.f32 %v292, %v709
        %v711 = vpop.f32.mrb[0].mxu0
        %v712 = vpop.f32.mrb[0].mxu0
        %v713 = vadd.f32 %v292, %v712
        %v714 = vpop.f32.mrb[0].mxu0
        %715 = vmatprep.mubr.bf16.mxu0 0
        %716 = vmatmul.mubr.bf16.gmra.mrb[0].mxu0 %v506
        %v717 = vpop.f32.mrb[0].mxu0
        %v718 = vadd.f32 %v292, %v717
        %v719 = vpop.f32.mrb[0].mxu0
        %v720 = vpop.f32.mrb[0].mxu0
        %v721 = vadd.f32 %v292, %v720
        %v722 = vpop.f32.mrb[0].mxu0
        %723 = vmatprep.mubr.bf16.mxu0 0
        %724 = vmatmul.mubr.bf16.gmra.mrb[0].mxu0 %v509
        %v725 = vpop.f32.mrb[0].mxu0
        %v726 = vadd.f32 %v292, %v725
        %v727 = vpop.f32.mrb[0].mxu0
        %v728 = vpop.f32.mrb[0].mxu0
        %v729 = vadd.f32 %v292, %v728
        %v730 = vpop.f32.mrb[0].mxu0
        %731 = vmatprep.mubr.bf16.mxu0 0
        %732 = vmatmul.mubr.bf16.gmra.mrb[0].mxu0 %v512
        %v733 = vpop.f32.mrb[0].mxu0
        %v734 = vadd.f32 %v292, %v733
        %v735 = vpop.f32.mrb[0].mxu0
        %v736 = vpop.f32.mrb[0].mxu0
        %v737 = vadd.f32 %v292, %v736
        %v738 = vpop.f32.mrb[0].mxu0
        %739 = vmatprep.mubr.bf16.mxu0 0
        %740 = vmatmul.mubr.bf16.gmra.mrb[0].mxu0 %v515
        %v741 = vpop.f32.mrb[0].mxu0
        %v742 = vadd.f32 %v292, %v741
        %v743 = vpop.f32.mrb[0].mxu0
        %v744 = vpop.f32.mrb[0].mxu0
        %v745 = vadd.f32 %v292, %v744
        %v746 = vpop.f32.mrb[0].mxu0
        %747 = vmatprep.mubr.bf16.mxu0 0
        %748 = vmatmul.mubr.bf16.gmra.mrb[0].mxu0 %v518
        %v749 = vpop.f32.mrb[0].mxu0
        %v750 = vadd.f32 %v292, %v749
        %v751 = vpop.f32.mrb[0].mxu0
        %v752 = vpop.f32.mrb[0].mxu0
        %v753 = vadd.f32 %v292, %v752
        %v754 = vpop.f32.mrb[0].mxu0
        %755 = vmatprep.mubr.bf16.mxu0 0
        %756 = vmatmul.mubr.bf16.gmra.mrb[0].mxu0 %v521
        %v757 = vpop.f32.mrb[0].mxu0
        %v758 = vadd.f32 %v292, %v757
        %v759 = vpop.f32.mrb[0].mxu0
        %v760 = vpop.f32.mrb[0].mxu0
        %v761 = vadd.f32 %v292, %v760
        %v762 = vpop.f32.mrb[0].mxu0
        %763 = vmatprep.mubr.bf16.mxu0 0
        %764 = vmatmul.mubr.bf16.gmra.mrb[0].mxu0 %v524
        %v765 = vpop.f32.mrb[0].mxu0
        %v766 = vadd.f32 %v292, %v765
        %v767 = vpop.f32.mrb[0].mxu0
        %v768 = vpop.f32.mrb[0].mxu0
        %v769 = vadd.f32 %v292, %v768
        %v770 = vpop.f32.mrb[0].mxu0
        %771 = vmatprep.mubr.bf16.mxu0 0
        %772 = vmatmul.mubr.bf16.gmra.mrb[0].mxu0 %v527
        %v773 = vpop.f32.mrb[0].mxu0
        %v774 = vadd.f32 %v292, %v773
        %v775 = vpop.f32.mrb[0].mxu0
        %v776 = vpop.f32.mrb[0].mxu0
        %v777 = vadd.f32 %v292, %v776
        %v778 = vpop.f32.mrb[0].mxu0
        %779 = vmatprep.mubr.bf16.mxu0 0
        %780 = vmatmul.mubr.bf16.gmra.mrb[0].mxu0 %v530
        %v781 = vpop.f32.mrb[0].mxu0
        %v782 = vadd.f32 %v292, %v781
        %v783 = vpop.f32.mrb[0].mxu0
        %v784 = vpop.f32.mrb[0].mxu0
        %v785 = vadd.f32 %v292, %v784
        %v786 = vpop.f32.mrb[0].mxu0
        %787 = vmatprep.mubr.bf16.mxu0 0
        %788 = vmatmul.mubr.bf16.gmra.mrb[0].mxu0 %v533
        %v789 = vpop.f32.mrb[0].mxu0
        %v790 = vadd.f32 %v292, %v789
        %v791 = vpop.f32.mrb[0].mxu0
        %v792 = vpop.f32.mrb[0].mxu0
        %v793 = vadd.f32 %v292, %v792
        %v794 = vpop.f32.mrb[0].mxu0
        %795 = vmatprep.mubr.bf16.mxu0 0
        %796 = vmatmul.mubr.bf16.gmra.mrb[0].mxu0 %v536
        %v797 = vpop.f32.mrb[0].mxu0
        %v798 = vadd.f32 %v292, %v797
        %v799 = vpop.f32.mrb[0].mxu0
        %v800 = vpop.f32.mrb[0].mxu0
        %v801 = vadd.f32 %v292, %v800
        %v802 = vpop.f32.mrb[0].mxu0
        %803 = vmatprep.mubr.bf16.mxu0 0
        %804 = vmatmul.mubr.bf16.gmra.mrb[0].mxu0 %v539
        %v805 = vpop.f32.mrb[0].mxu0
        %v806 = vadd.f32 %v292, %v805
        %v807 = vpop.f32.mrb[0].mxu0
        %v808 = vpop.f32.mrb[0].mxu0
        %v809 = vadd.f32 %v292, %v808
        %v810 = vpop.f32.mrb[0].mxu0
        %811 = vmatprep.mubr.bf16.mxu0 0
        %812 = vmatmul.mubr.bf16.gmra.mrb[0].mxu0 %v542
        %v813 = vpop.f32.mrb[0].mxu0
        %v814 = vadd.f32 %v292, %v813
        %v815 = vpop.f32.mrb[0].mxu0
        %v816 = vpop.f32.mrb[0].mxu0
        %v817 = vadd.f32 %v292, %v816
        %v818 = vpop.f32.mrb[0].mxu0
        %819 = vmatprep.mubr.bf16.mxu0 0
        %820 = vmatmul.mubr.bf16.gmra.mrb[0].mxu0 %v545
        %v821 = vpop.f32.mrb[0].mxu0
        %v822 = vadd.f32 %v292, %v821
        %v823 = vpop.f32.mrb[0].mxu0
        %v824 = vpop.f32.mrb[0].mxu0
        %v825 = vadd.f32 %v292, %v824
        %v826 = vpop.f32.mrb[0].mxu0
        %827 = vmatprep.mubr.bf16.mxu0 0
        %828 = vmatmul.mubr.bf16.gmra.mrb[0].mxu0 %v548
        %v829 = vpop.f32.mrb[0].mxu0
        %v830 = vadd.f32 %v292, %v829
        %v831 = vpop.f32.mrb[0].mxu0
        %v832 = vpop.f32.mrb[0].mxu0
        %v833 = vadd.f32 %v292, %v832
        %v834 = vpop.f32.mrb[0].mxu0
        %835 = vmatprep.mubr.bf16.mxu0 0
        %836 = vmatmul.mubr.bf16.gmra.mrb[0].mxu0 %v551
        %v837 = vpop.f32.mrb[0].mxu0
        %v838 = vadd.f32 %v292, %v837
        %v839 = vpop.f32.mrb[0].mxu0
        %v840 = vpop.f32.mrb[0].mxu0
        %v841 = vadd.f32 %v292, %v840
        %v842 = vpop.f32.mrb[0].mxu0
        %843 = vmatprep.mubr.bf16.mxu0 0
        %844 = vmatmul.mubr.bf16.gmra.mrb[0].mxu0 %v554
        %v845 = vpop.f32.mrb[0].mxu0
        %v846 = vadd.f32 %v292, %v845
        %v847 = vpop.f32.mrb[0].mxu0
        %v848 = vpop.f32.mrb[0].mxu0
        %v849 = vadd.f32 %v292, %v848
        %v850 = vpop.f32.mrb[0].mxu0
        %851 = vdwg.mxu0
        %v852 = vmax.f32 %v598, 0.0
        %v853 = vmax.f32 %v601, 0.0
        %v854 = vmax.f32 %v606, 0.0
        %v855 = vmax.f32 %v609, 0.0
        %v856 = vmax.f32 %v614, 0.0
        %v857 = vmax.f32 %v617, 0.0
        %v858 = vmax.f32 %v622, 0.0
        %v859 = vmax.f32 %v625, 0.0
        %v860 = vmax.f32 %v630, 0.0
        %v861 = vmax.f32 %v633, 0.0
        %v862 = vmax.f32 %v638, 0.0
        %v863 = vmax.f32 %v641, 0.0
        %v864 = vmax.f32 %v646, 0.0
        %v865 = vmax.f32 %v649, 0.0
        %v866 = vmax.f32 %v654, 0.0
        %v867 = vmax.f32 %v657, 0.0
        %v868 = vmax.f32 %v662, 0.0
        %v869 = vmax.f32 %v665, 0.0
        %v870 = vmax.f32 %v670, 0.0
        %v871 = vmax.f32 %v673, 0.0
        %v872 = vmax.f32 %v678, 0.0
        %v873 = vmax.f32 %v681, 0.0
        %v874 = vmax.f32 %v686, 0.0
        %v875 = vmax.f32 %v689, 0.0
        %v876 = vmax.f32 %v694, 0.0
        %v877 = vmax.f32 %v697, 0.0
        %v878 = vmax.f32 %v702, 0.0
        %v879 = vmax.f32 %v705, 0.0
        %v880 = vmax.f32 %v710, 0.0
        %v881 = vmax.f32 %v713, 0.0
        %v882 = vmax.f32 %v718, 0.0
        %v883 = vmax.f32 %v721, 0.0
        %v884 = vmax.f32 %v726, 0.0
        %v885 = vmax.f32 %v729, 0.0
        %v886 = vmax.f32 %v734, 0.0
        %v887 = vmax.f32 %v737, 0.0
        %v888 = vmax.f32 %v742, 0.0
        %v889 = vmax.f32 %v745, 0.0
        %v890 = vmax.f32 %v750, 0.0
        %v891 = vmax.f32 %v753, 0.0
        %v892 = vmax.f32 %v758, 0.0
        %v893 = vmax.f32 %v761, 0.0
        %v894 = vmax.f32 %v766, 0.0
        %v895 = vmax.f32 %v769, 0.0
        %v896 = vmax.f32 %v774, 0.0
        %v897 = vmax.f32 %v777, 0.0
        %v898 = vmax.f32 %v782, 0.0
        %v899 = vmax.f32 %v785, 0.0
        %v900 = vmax.f32 %v790, 0.0
        %v901 = vmax.f32 %v793, 0.0
        %v902 = vmax.f32 %v798, 0.0
        %v903 = vmax.f32 %v801, 0.0
        %v904 = vmax.f32 %v806, 0.0
        %v905 = vmax.f32 %v809, 0.0
        %v906 = vmax.f32 %v814, 0.0
        %v907 = vmax.f32 %v817, 0.0
        %v908 = vmax.f32 %v822, 0.0
        %v909 = vmax.f32 %v825, 0.0
        %v910 = vmax.f32 %v830, 0.0
        %v911 = vmax.f32 %v833, 0.0
        %v912 = vmax.f32 %v838, 0.0
        %v913 = vmax.f32 %v841, 0.0
        %v914 = vmax.f32 %v846, 0.0
        %v915 = vmax.f32 %v849, 0.0
        %v916 = vpack.c.bf16 %v853, %v852
        %v917 = vpack.c.bf16 %v855, %v854
        %v918 = vpack.c.bf16 %v857, %v856
        %v919 = vpack.c.bf16 %v859, %v858
        %v920 = vpack.c.bf16 %v861, %v860
        %v921 = vpack.c.bf16 %v863, %v862
        %v922 = vpack.c.bf16 %v865, %v864
        %v923 = vpack.c.bf16 %v867, %v866
        %v924 = vpack.c.bf16 %v869, %v868
        %v925 = vpack.c.bf16 %v871, %v870
        %v926 = vpack.c.bf16 %v873, %v872
        %v927 = vpack.c.bf16 %v875, %v874
        %v928 = vpack.c.bf16 %v877, %v876
        %v929 = vpack.c.bf16 %v879, %v878
        %v930 = vpack.c.bf16 %v881, %v880
        %v931 = vpack.c.bf16 %v883, %v882
        %v932 = vpack.c.bf16 %v885, %v884
        %v933 = vpack.c.bf16 %v887, %v886
        %v934 = vpack.c.bf16 %v889, %v888
        %v935 = vpack.c.bf16 %v891, %v890
        %v936 = vpack.c.bf16 %v893, %v892
        %v937 = vpack.c.bf16 %v895, %v894
        %v938 = vpack.c.bf16 %v897, %v896
        %v939 = vpack.c.bf16 %v899, %v898
        %v940 = vpack.c.bf16 %v901, %v900
        %v941 = vpack.c.bf16 %v903, %v902
        %v942 = vpack.c.bf16 %v905, %v904
        %v943 = vpack.c.bf16 %v907, %v906
        %v944 = vpack.c.bf16 %v909, %v908
        %v945 = vpack.c.bf16 %v911, %v910
        %v946 = vpack.c.bf16 %v913, %v912
        %v947 = vpack.c.bf16 %v915, %v914
        %v980 = vunpack.c.l.b16 %v916
        %v981 = vunpack.c.h.b16 %v916
        %v982 = vunpack.c.l.b16 %v917
        %v983 = vunpack.c.h.b16 %v917
        %v984 = vunpack.c.l.b16 %v918
        %v985 = vunpack.c.h.b16 %v918
        %v986 = vunpack.c.l.b16 %v919
        %v987 = vunpack.c.h.b16 %v919
        %v988 = vunpack.c.l.b16 %v920
        %v989 = vunpack.c.h.b16 %v920
        %v990 = vunpack.c.l.b16 %v921
        %v991 = vunpack.c.h.b16 %v921
        %v992 = vunpack.c.l.b16 %v922
        %v993 = vunpack.c.h.b16 %v922
        %v994 = vunpack.c.l.b16 %v923
        %v995 = vunpack.c.h.b16 %v923
        %v996 = vunpack.c.l.b16 %v924
        %v997 = vunpack.c.h.b16 %v924
        %v998 = vunpack.c.l.b16 %v925
        %v999 = vunpack.c.h.b16 %v925
        %v1000 = vunpack.c.l.b16 %v926
        %v1001 = vunpack.c.h.b16 %v926
        %v1002 = vunpack.c.l.b16 %v927
        %v1003 = vunpack.c.h.b16 %v927
        %v1004 = vunpack.c.l.b16 %v928
        %v1005 = vunpack.c.h.b16 %v928
        %v1006 = vunpack.c.l.b16 %v929
        %v1007 = vunpack.c.h.b16 %v929
        %v1008 = vunpack.c.l.b16 %v930
        %v1009 = vunpack.c.h.b16 %v930
        %v1010 = vunpack.c.l.b16 %v931
        %v1011 = vunpack.c.h.b16 %v931
        %v1012 = vunpack.c.l.b16 %v932
        %v1013 = vunpack.c.h.b16 %v932
        %v1014 = vunpack.c.l.b16 %v933
        %v1015 = vunpack.c.h.b16 %v933
        %v1016 = vunpack.c.l.b16 %v934
        %v1017 = vunpack.c.h.b16 %v934
        %v1018 = vunpack.c.l.b16 %v935
        %v1019 = vunpack.c.h.b16 %v935
        %v1020 = vunpack.c.l.b16 %v936
        %v1021 = vunpack.c.h.b16 %v936
        %v1022 = vunpack.c.l.b16 %v937
        %v1023 = vunpack.c.h.b16 %v937
        %v1024 = vunpack.c.l.b16 %v938
        %v1025 = vunpack.c.h.b16 %v938
        %v1026 = vunpack.c.l.b16 %v939
        %v1027 = vunpack.c.h.b16 %v939
        %v1028 = vunpack.c.l.b16 %v940
        %v1029 = vunpack.c.h.b16 %v940
        %v1030 = vunpack.c.l.b16 %v941
        %v1031 = vunpack.c.h.b16 %v941
        %v1032 = vunpack.c.l.b16 %v942
        %v1033 = vunpack.c.h.b16 %v942
        %v1034 = vunpack.c.l.b16 %v943
        %v1035 = vunpack.c.h.b16 %v943
        %v1036 = vunpack.c.l.b16 %v944
        %v1037 = vunpack.c.h.b16 %v944
        %v1038 = vunpack.c.l.b16 %v945
        %v1039 = vunpack.c.h.b16 %v945
        %v1040 = vunpack.c.l.b16 %v946
        %v1041 = vunpack.c.h.b16 %v946
        %v1042 = vunpack.c.l.b16 %v947
        %v1043 = vunpack.c.h.b16 %v947
        %v1044 = vpack.c.b16 %v980, %v980
        %v1045 = vpack.c.b16 %v981, %v981
        %v1046 = vpack.c.b16 %v982, %v982
        %v1047 = vpack.c.b16 %v983, %v983
        %v1048 = vpack.c.b16 %v984, %v984
        %v1049 = vpack.c.b16 %v985, %v985
        %v1050 = vpack.c.b16 %v986, %v986
        %v1051 = vpack.c.b16 %v987, %v987
        %v1052 = vpack.c.b16 %v988, %v988
        %v1053 = vpack.c.b16 %v989, %v989
        %v1054 = vpack.c.b16 %v990, %v990
        %v1055 = vpack.c.b16 %v991, %v991
        %v1056 = vpack.c.b16 %v992, %v992
        %v1057 = vpack.c.b16 %v993, %v993
        %v1058 = vpack.c.b16 %v994, %v994
        %v1059 = vpack.c.b16 %v995, %v995
        %v1060 = vpack.c.b16 %v996, %v996
        %v1061 = vpack.c.b16 %v997, %v997
        %v1062 = vpack.c.b16 %v998, %v998
        %v1063 = vpack.c.b16 %v999, %v999
        %v1064 = vpack.c.b16 %v1000, %v1000
        %v1065 = vpack.c.b16 %v1001, %v1001
        %v1066 = vpack.c.b16 %v1002, %v1002
        %v1067 = vpack.c.b16 %v1003, %v1003
        %v1068 = vpack.c.b16 %v1004, %v1004
        %v1069 = vpack.c.b16 %v1005, %v1005
        %v1070 = vpack.c.b16 %v1006, %v1006
        %v1071 = vpack.c.b16 %v1007, %v1007
        %v1072 = vpack.c.b16 %v1008, %v1008
        %v1073 = vpack.c.b16 %v1009, %v1009
        %v1074 = vpack.c.b16 %v1010, %v1010
        %v1075 = vpack.c.b16 %v1011, %v1011
        %v1076 = vpack.c.b16 %v1012, %v1012
        %v1077 = vpack.c.b16 %v1013, %v1013
        %v1078 = vpack.c.b16 %v1014, %v1014
        %v1079 = vpack.c.b16 %v1015, %v1015
        %v1080 = vpack.c.b16 %v1016, %v1016
        %v1081 = vpack.c.b16 %v1017, %v1017
        %v1082 = vpack.c.b16 %v1018, %v1018
        %v1083 = vpack.c.b16 %v1019, %v1019
        %v1084 = vpack.c.b16 %v1020, %v1020
        %v1085 = vpack.c.b16 %v1021, %v1021
        %v1086 = vpack.c.b16 %v1022, %v1022
        %v1087 = vpack.c.b16 %v1023, %v1023
        %v1088 = vpack.c.b16 %v1024, %v1024
        %v1089 = vpack.c.b16 %v1025, %v1025
        %v1090 = vpack.c.b16 %v1026, %v1026
        %v1091 = vpack.c.b16 %v1027, %v1027
        %v1092 = vpack.c.b16 %v1028, %v1028
        %v1093 = vpack.c.b16 %v1029, %v1029
        %v1094 = vpack.c.b16 %v1030, %v1030
        %v1095 = vpack.c.b16 %v1031, %v1031
        %v1096 = vpack.c.b16 %v1032, %v1032
        %v1097 = vpack.c.b16 %v1033, %v1033
        %v1098 = vpack.c.b16 %v1034, %v1034
        %v1099 = vpack.c.b16 %v1035, %v1035
        %v1100 = vpack.c.b16 %v1036, %v1036
        %v1101 = vpack.c.b16 %v1037, %v1037
        %v1102 = vpack.c.b16 %v1038, %v1038
        %v1103 = vpack.c.b16 %v1039, %v1039
        %v1104 = vpack.c.b16 %v1040, %v1040
        %v1105 = vpack.c.b16 %v1041, %v1041
        %v1106 = vpack.c.b16 %v1042, %v1042
        %v1107 = vpack.c.b16 %v1043, %v1043
        %vm1172 = vcmask 125952
        %1173 = vst.msk [vmem:[%s200] sm:$0xf] %vm1172, %v1044
        %1174 = vst.msk [vmem:[%s200 + $0x4] sm:$0xf] %vm1172, %v1045
        %1175 = vst.msk [vmem:[%s200 + $0x8] sm:$0xf] %vm1172, %v1046
        %1176 = vst.msk [vmem:[%s200 + $0xc] sm:$0xf] %vm1172, %v1047
        %1177 = vst.msk [vmem:[%s200 + $0x10] sm:$0xf] %vm1172, %v1048
        %1178 = vst.msk [vmem:[%s200 + $0x14] sm:$0xf] %vm1172, %v1049
        %1179 = vst.msk [vmem:[%s200 + $0x18] sm:$0xf] %vm1172, %v1050
        %1180 = vst.msk [vmem:[%s200 + $0x1c] sm:$0xf] %vm1172, %v1051
        %1181 = vst.msk [vmem:[%s200 + $0x20] sm:$0xf] %vm1172, %v1052
        %1182 = vst.msk [vmem:[%s200 + $0x24] sm:$0xf] %vm1172, %v1053
        %1183 = vst.msk [vmem:[%s200 + $0x28] sm:$0xf] %vm1172, %v1054
        %1184 = vst.msk [vmem:[%s200 + $0x2c] sm:$0xf] %vm1172, %v1055
        %1185 = vst.msk [vmem:[%s200 + $0x30] sm:$0xf] %vm1172, %v1056
        %1186 = vst.msk [vmem:[%s200 + $0x34] sm:$0xf] %vm1172, %v1057
        %1187 = vst.msk [vmem:[%s200 + $0x38] sm:$0xf] %vm1172, %v1058
        %1188 = vst.msk [vmem:[%s200 + $0x3c] sm:$0xf] %vm1172, %v1059
        %1189 = vst.msk [vmem:[%s200 + $0x40] sm:$0xf] %vm1172, %v1060
        %1190 = vst.msk [vmem:[%s200 + $0x44] sm:$0xf] %vm1172, %v1061
        %1191 = vst.msk [vmem:[%s200 + $0x48] sm:$0xf] %vm1172, %v1062
        %1192 = vst.msk [vmem:[%s200 + $0x4c] sm:$0xf] %vm1172, %v1063
        %1193 = vst.msk [vmem:[%s200 + $0x50] sm:$0xf] %vm1172, %v1064
        %1194 = vst.msk [vmem:[%s200 + $0x54] sm:$0xf] %vm1172, %v1065
        %1195 = vst.msk [vmem:[%s200 + $0x58] sm:$0xf] %vm1172, %v1066
        %1196 = vst.msk [vmem:[%s200 + $0x5c] sm:$0xf] %vm1172, %v1067
        %1197 = vst.msk [vmem:[%s200 + $0x60] sm:$0xf] %vm1172, %v1068
        %1198 = vst.msk [vmem:[%s200 + $0x64] sm:$0xf] %vm1172, %v1069
        %1199 = vst.msk [vmem:[%s200 + $0x68] sm:$0xf] %vm1172, %v1070
        %1200 = vst.msk [vmem:[%s200 + $0x6c] sm:$0xf] %vm1172, %v1071
        %1201 = vst.msk [vmem:[%s200 + $0x70] sm:$0xf] %vm1172, %v1072
        %1202 = vst.msk [vmem:[%s200 + $0x74] sm:$0xf] %vm1172, %v1073
        %1203 = vst.msk [vmem:[%s200 + $0x78] sm:$0xf] %vm1172, %v1074
        %1204 = vst.msk [vmem:[%s200 + $0x7c] sm:$0xf] %vm1172, %v1075
        %1205 = vst.msk [vmem:[%s200 + $0x80] sm:$0xf] %vm1172, %v1076
        %1206 = vst.msk [vmem:[%s200 + $0x84] sm:$0xf] %vm1172, %v1077
        %1207 = vst.msk [vmem:[%s200 + $0x88] sm:$0xf] %vm1172, %v1078
        %1208 = vst.msk [vmem:[%s200 + $0x8c] sm:$0xf] %vm1172, %v1079
        %1209 = vst.msk [vmem:[%s200 + $0x90] sm:$0xf] %vm1172, %v1080
        %1210 = vst.msk [vmem:[%s200 + $0x94] sm:$0xf] %vm1172, %v1081
        %1211 = vst.msk [vmem:[%s200 + $0x98] sm:$0xf] %vm1172, %v1082
        %1212 = vst.msk [vmem:[%s200 + $0x9c] sm:$0xf] %vm1172, %v1083
        %1213 = vst.msk [vmem:[%s200 + $0xa0] sm:$0xf] %vm1172, %v1084
        %1214 = vst.msk [vmem:[%s200 + $0xa4] sm:$0xf] %vm1172, %v1085
        %1215 = vst.msk [vmem:[%s200 + $0xa8] sm:$0xf] %vm1172, %v1086
        %1216 = vst.msk [vmem:[%s200 + $0xac] sm:$0xf] %vm1172, %v1087
        %1217 = vst.msk [vmem:[%s200 + $0xb0] sm:$0xf] %vm1172, %v1088
        %1218 = vst.msk [vmem:[%s200 + $0xb4] sm:$0xf] %vm1172, %v1089
        %1219 = vst.msk [vmem:[%s200 + $0xb8] sm:$0xf] %vm1172, %v1090
        %1220 = vst.msk [vmem:[%s200 + $0xbc] sm:$0xf] %vm1172, %v1091
        %1221 = vst.msk [vmem:[%s200 + $0xc0] sm:$0xf] %vm1172, %v1092
        %1222 = vst.msk [vmem:[%s200 + $0xc4] sm:$0xf] %vm1172, %v1093
        %1223 = vst.msk [vmem:[%s200 + $0xc8] sm:$0xf] %vm1172, %v1094
        %1224 = vst.msk [vmem:[%s200 + $0xcc] sm:$0xf] %vm1172, %v1095
        %1225 = vst.msk [vmem:[%s200 + $0xd0] sm:$0xf] %vm1172, %v1096
        %1226 = vst.msk [vmem:[%s200 + $0xd4] sm:$0xf] %vm1172, %v1097
        %1227 = vst.msk [vmem:[%s200 + $0xd8] sm:$0xf] %vm1172, %v1098
        %1228 = vst.msk [vmem:[%s200 + $0xdc] sm:$0xf] %vm1172, %v1099
        %1229 = vst.msk [vmem:[%s200 + $0xe0] sm:$0xf] %vm1172, %v1100
        %1230 = vst.msk [vmem:[%s200 + $0xe4] sm:$0xf] %vm1172, %v1101
        %1231 = vst.msk [vmem:[%s200 + $0xe8] sm:$0xf] %vm1172, %v1102
        %1232 = vst.msk [vmem:[%s200 + $0xec] sm:$0xf] %vm1172, %v1103
        %1233 = vst.msk [vmem:[%s200 + $0xf0] sm:$0xf] %vm1172, %v1104
        %1234 = vst.msk [vmem:[%s200 + $0xf4] sm:$0xf] %vm1172, %v1105
        %1235 = vst.msk [vmem:[%s200 + $0xf8] sm:$0xf] %vm1172, %v1106
        %1236 = vst.msk [vmem:[%s200 + $0xfc] sm:$0xf] %vm1172, %v1107
        %s1237 = sand.u32 %s92, 1
        %s1238 = sand.u32 %s92, 1
        %s1239 = smul.addr %s1238, 256
        %s1240 = scalar_lea.vmem [#allocation6], %s1239
        // Predicated region
        $region41: #{two_tower_forward.4} parent=31 // pred_check
          %p1241 = pneg %p102
        $region42: #{two_tower_forward.4} parent=31 // pred_check_branch
          %1243 = sbr.rel (%p1241) target = $region44
        $region43: #{two_tower_forward.4} parent=31 // pred_region
          %s1244 = smul.u32 64, %s16
          %s1245 = ssub.s32 265, %s1244
          %p1246 = scmp.lt.s32.totalorder %s1245, 64
          %s1247 = scalar_select %p1246, %s1245, 64
          %s1248 = smul.u32 64, %s1247
          %p1249 = scmp.ne.s32.totalorder 0, %s1248
          %s1250 = smul.addr %s1244, 4
          %s1251 = scalar_lea.vmem %s3, %s1250
          // Predicated region
          $region45: #{two_tower_forward.4} parent=43 // pred_check
            %p1252 = pneg %p1249
          $region46: #{two_tower_forward.4} parent=43 // pred_check_branch
            %1254 = sbr.rel (%p1252) target = $region48
          $region47: #{two_tower_forward.4} parent=43 // pred_region
            // Predicated region
            $region49: #{two_tower_forward.4} parent=47 // pred_check
              _
            $region50: #{two_tower_forward.4} parent=47 // pred_check_branch
              %1256 = sbr.rel target = $region52
            $region51: #{two_tower_forward.4} parent=47 // pred_region
              // Predicated region
              $region71: #{two_tower_forward.4} parent=51 // pred_check
                _
              $region72: #{two_tower_forward.4} parent=51 // pred_check_branch
                %1431 = sbr.rel (0) target = $region74
              $region73: #{two_tower_forward.4} parent=51 // pred_region
                %s1433 = sshrl.u32 %s1247, 6
                // While loop
                $region75: #{two_tower_forward.4} parent=73 // loop_pre_header
                  _
                $region76: #{two_tower_forward.4} parent=73 // loop_header
                  %s1435 = sphi 0, %s1437
                  %p1436 = scmp.ge.s32.totalorder %s1435, %s1433
                  %s1440 = sphi 0, %s1573
                  %s1441 = sphi %s1240, %s1576
                  %s1442 = sphi %s1251, %s1577
                $region77: #{two_tower_forward.4} parent=73 // loop_header_branch
                  %1439 = sbr.rel (%p1436) target = $region81
                $region78: #{two_tower_forward.4} parent=73 // loop_body
                  %v1443 = vld [vmem:[%s1441] sm:$0xf]
                  %1444 = vst [vmem:[%s1442] sm:$0xf] %v1443
                  %v1445 = vld [vmem:[%s1441 + $0x4] sm:$0xf]
                  %1446 = vst [vmem:[%s1442 + $0x4] sm:$0xf] %v1445
                  %v1447 = vld [vmem:[%s1441 + $0x8] sm:$0xf]
                  %1448 = vst [vmem:[%s1442 + $0x8] sm:$0xf] %v1447
                  %v1449 = vld [vmem:[%s1441 + $0xc] sm:$0xf]
                  %1450 = vst [vmem:[%s1442 + $0xc] sm:$0xf] %v1449
                  %v1451 = vld [vmem:[%s1441 + $0x10] sm:$0xf]
                  %1452 = vst [vmem:[%s1442 + $0x10] sm:$0xf] %v1451
                  %v1453 = vld [vmem:[%s1441 + $0x14] sm:$0xf]
                  %1454 = vst [vmem:[%s1442 + $0x14] sm:$0xf] %v1453
                  %v1455 = vld [vmem:[%s1441 + $0x18] sm:$0xf]
                  %1456 = vst [vmem:[%s1442 + $0x18] sm:$0xf] %v1455
                  %v1457 = vld [vmem:[%s1441 + $0x1c] sm:$0xf]
                  %1458 = vst [vmem:[%s1442 + $0x1c] sm:$0xf] %v1457
                  %v1459 = vld [vmem:[%s1441 + $0x20] sm:$0xf]
                  %1460 = vst [vmem:[%s1442 + $0x20] sm:$0xf] %v1459
                  %v1461 = vld [vmem:[%s1441 + $0x24] sm:$0xf]
                  %1462 = vst [vmem:[%s1442 + $0x24] sm:$0xf] %v1461
                  %v1463 = vld [vmem:[%s1441 + $0x28] sm:$0xf]
                  %1464 = vst [vmem:[%s1442 + $0x28] sm:$0xf] %v1463
                  %v1465 = vld [vmem:[%s1441 + $0x2c] sm:$0xf]
                  %1466 = vst [vmem:[%s1442 + $0x2c] sm:$0xf] %v1465
                  %v1467 = vld [vmem:[%s1441 + $0x30] sm:$0xf]
                  %1468 = vst [vmem:[%s1442 + $0x30] sm:$0xf] %v1467
                  %v1469 = vld [vmem:[%s1441 + $0x34] sm:$0xf]
                  %1470 = vst [vmem:[%s1442 + $0x34] sm:$0xf] %v1469
                  %v1471 = vld [vmem:[%s1441 + $0x38] sm:$0xf]
                  %1472 = vst [vmem:[%s1442 + $0x38] sm:$0xf] %v1471
                  %v1473 = vld [vmem:[%s1441 + $0x3c] sm:$0xf]
                  %1474 = vst [vmem:[%s1442 + $0x3c] sm:$0xf] %v1473
                  %v1475 = vld [vmem:[%s1441 + $0x40] sm:$0xf]
                  %1476 = vst [vmem:[%s1442 + $0x40] sm:$0xf] %v1475
                  %v1477 = vld [vmem:[%s1441 + $0x44] sm:$0xf]
                  %1478 = vst [vmem:[%s1442 + $0x44] sm:$0xf] %v1477
                  %v1479 = vld [vmem:[%s1441 + $0x48] sm:$0xf]
                  %1480 = vst [vmem:[%s1442 + $0x48] sm:$0xf] %v1479
                  %v1481 = vld [vmem:[%s1441 + $0x4c] sm:$0xf]
                  %1482 = vst [vmem:[%s1442 + $0x4c] sm:$0xf] %v1481
                  %v1483 = vld [vmem:[%s1441 + $0x50] sm:$0xf]
                  %1484 = vst [vmem:[%s1442 + $0x50] sm:$0xf] %v1483
                  %v1485 = vld [vmem:[%s1441 + $0x54] sm:$0xf]
                  %1486 = vst [vmem:[%s1442 + $0x54] sm:$0xf] %v1485
                  %v1487 = vld [vmem:[%s1441 + $0x58] sm:$0xf]
                  %1488 = vst [vmem:[%s1442 + $0x58] sm:$0xf] %v1487
                  %v1489 = vld [vmem:[%s1441 + $0x5c] sm:$0xf]
                  %1490 = vst [vmem:[%s1442 + $0x5c] sm:$0xf] %v1489
                  %v1491 = vld [vmem:[%s1441 + $0x60] sm:$0xf]
                  %1492 = vst [vmem:[%s1442 + $0x60] sm:$0xf] %v1491
                  %v1493 = vld [vmem:[%s1441 + $0x64] sm:$0xf]
                  %1494 = vst [vmem:[%s1442 + $0x64] sm:$0xf] %v1493
                  %v1495 = vld [vmem:[%s1441 + $0x68] sm:$0xf]
                  %1496 = vst [vmem:[%s1442 + $0x68] sm:$0xf] %v1495
                  %v1497 = vld [vmem:[%s1441 + $0x6c] sm:$0xf]
                  %1498 = vst [vmem:[%s1442 + $0x6c] sm:$0xf] %v1497
                  %v1499 = vld [vmem:[%s1441 + $0x70] sm:$0xf]
                  %1500 = vst [vmem:[%s1442 + $0x70] sm:$0xf] %v1499
                  %v1501 = vld [vmem:[%s1441 + $0x74] sm:$0xf]
                  %1502 = vst [vmem:[%s1442 + $0x74] sm:$0xf] %v1501
                  %v1503 = vld [vmem:[%s1441 + $0x78] sm:$0xf]
                  %1504 = vst [vmem:[%s1442 + $0x78] sm:$0xf] %v1503
                  %v1505 = vld [vmem:[%s1441 + $0x7c] sm:$0xf]
                  %1506 = vst [vmem:[%s1442 + $0x7c] sm:$0xf] %v1505
                  %v1507 = vld [vmem:[%s1441 + $0x80] sm:$0xf]
                  %1508 = vst [vmem:[%s1442 + $0x80] sm:$0xf] %v1507
                  %v1509 = vld [vmem:[%s1441 + $0x84] sm:$0xf]
                  %1510 = vst [vmem:[%s1442 + $0x84] sm:$0xf] %v1509
                  %v1511 = vld [vmem:[%s1441 + $0x88] sm:$0xf]
                  %1512 = vst [vmem:[%s1442 + $0x88] sm:$0xf] %v1511
                  %v1513 = vld [vmem:[%s1441 + $0x8c] sm:$0xf]
                  %1514 = vst [vmem:[%s1442 + $0x8c] sm:$0xf] %v1513
                  %v1515 = vld [vmem:[%s1441 + $0x90] sm:$0xf]
                  %1516 = vst [vmem:[%s1442 + $0x90] sm:$0xf] %v1515
                  %v1517 = vld [vmem:[%s1441 + $0x94] sm:$0xf]
                  %1518 = vst [vmem:[%s1442 + $0x94] sm:$0xf] %v1517
                  %v1519 = vld [vmem:[%s1441 + $0x98] sm:$0xf]
                  %1520 = vst [vmem:[%s1442 + $0x98] sm:$0xf] %v1519
                  %v1521 = vld [vmem:[%s1441 + $0x9c] sm:$0xf]
                  %1522 = vst [vmem:[%s1442 + $0x9c] sm:$0xf] %v1521
                  %v1523 = vld [vmem:[%s1441 + $0xa0] sm:$0xf]
                  %1524 = vst [vmem:[%s1442 + $0xa0] sm:$0xf] %v1523
                  %v1525 = vld [vmem:[%s1441 + $0xa4] sm:$0xf]
                  %1526 = vst [vmem:[%s1442 + $0xa4] sm:$0xf] %v1525
                  %v1527 = vld [vmem:[%s1441 + $0xa8] sm:$0xf]
                  %1528 = vst [vmem:[%s1442 + $0xa8] sm:$0xf] %v1527
                  %v1529 = vld [vmem:[%s1441 + $0xac] sm:$0xf]
                  %1530 = vst [vmem:[%s1442 + $0xac] sm:$0xf] %v1529
                  %v1531 = vld [vmem:[%s1441 + $0xb0] sm:$0xf]
                  %1532 = vst [vmem:[%s1442 + $0xb0] sm:$0xf] %v1531
                  %v1533 = vld [vmem:[%s1441 + $0xb4] sm:$0xf]
                  %1534 = vst [vmem:[%s1442 + $0xb4] sm:$0xf] %v1533
                  %v1535 = vld [vmem:[%s1441 + $0xb8] sm:$0xf]
                  %1536 = vst [vmem:[%s1442 + $0xb8] sm:$0xf] %v1535
                  %v1537 = vld [vmem:[%s1441 + $0xbc] sm:$0xf]
                  %1538 = vst [vmem:[%s1442 + $0xbc] sm:$0xf] %v1537
                  %v1539 = vld [vmem:[%s1441 + $0xc0] sm:$0xf]
                  %1540 = vst [vmem:[%s1442 + $0xc0] sm:$0xf] %v1539
                  %v1541 = vld [vmem:[%s1441 + $0xc4] sm:$0xf]
                  %1542 = vst [vmem:[%s1442 + $0xc4] sm:$0xf] %v1541
                  %v1543 = vld [vmem:[%s1441 + $0xc8] sm:$0xf]
                  %1544 = vst [vmem:[%s1442 + $0xc8] sm:$0xf] %v1543
                  %v1545 = vld [vmem:[%s1441 + $0xcc] sm:$0xf]
                  %1546 = vst [vmem:[%s1442 + $0xcc] sm:$0xf] %v1545
                  %v1547 = vld [vmem:[%s1441 + $0xd0] sm:$0xf]
                  %1548 = vst [vmem:[%s1442 + $0xd0] sm:$0xf] %v1547
                  %v1549 = vld [vmem:[%s1441 + $0xd4] sm:$0xf]
                  %1550 = vst [vmem:[%s1442 + $0xd4] sm:$0xf] %v1549
                  %v1551 = vld [vmem:[%s1441 + $0xd8] sm:$0xf]
                  %1552 = vst [vmem:[%s1442 + $0xd8] sm:$0xf] %v1551
                  %v1553 = vld [vmem:[%s1441 + $0xdc] sm:$0xf]
                  %1554 = vst [vmem:[%s1442 + $0xdc] sm:$0xf] %v1553
                  %v1555 = vld [vmem:[%s1441 + $0xe0] sm:$0xf]
                  %1556 = vst [vmem:[%s1442 + $0xe0] sm:$0xf] %v1555
                  %v1557 = vld [vmem:[%s1441 + $0xe4] sm:$0xf]
                  %1558 = vst [vmem:[%s1442 + $0xe4] sm:$0xf] %v1557
                  %v1559 = vld [vmem:[%s1441 + $0xe8] sm:$0xf]
                  %1560 = vst [vmem:[%s1442 + $0xe8] sm:$0xf] %v1559
                  %v1561 = vld [vmem:[%s1441 + $0xec] sm:$0xf]
                  %1562 = vst [vmem:[%s1442 + $0xec] sm:$0xf] %v1561
                  %v1563 = vld [vmem:[%s1441 + $0xf0] sm:$0xf]
                  %1564 = vst [vmem:[%s1442 + $0xf0] sm:$0xf] %v1563
                  %v1565 = vld [vmem:[%s1441 + $0xf4] sm:$0xf]
                  %1566 = vst [vmem:[%s1442 + $0xf4] sm:$0xf] %v1565
                  %v1567 = vld [vmem:[%s1441 + $0xf8] sm:$0xf]
                  %1568 = vst [vmem:[%s1442 + $0xf8] sm:$0xf] %v1567
                  %v1569 = vld [vmem:[%s1441 + $0xfc] sm:$0xf]
                  %1570 = vst [vmem:[%s1442 + $0xfc] sm:$0xf] %v1569
                  %s1571 = sadd.s32 1, %s1440
                  %p1572 = scmp.ge.s32.totalorder %s1571, %s1433
                  %s1573 = scalar_select %p1572, 0, %s1571
                  %s1574 = smul.u32 %s1573, 256
                  %s1575 = smul.u32 %s1573, 256
                  %s1576 = scalar_lea.vmem %s1240, %s1574 [#allocation6]
                  %s1577 = scalar_lea.vmem %s1251, %s1575
                $region79: #{two_tower_forward.4} parent=73 // loop_footer
                  %s1437 = sadd.s32 %s1435, 1
                $region80: #{two_tower_forward.4} parent=73 // loop_footer_branch
                  %1434 = sbr.rel target = $region76
                $region81: #{two_tower_forward.4} parent=73 // loop_exit
                  _
                %s1578 = sshrl.u32 %s1247, 6
                %s1579 = sand.u32 %s1247, 63
                %s1580 = smul.u32 %s1578, 64
                %s1581 = smul.u32 4, %s1580
                %s1582 = scalar_lea.vmem %s1240, %s1581 [#allocation6]
                %s1583 = smul.u32 4, %s1580
                %s1584 = scalar_lea.vmem %s1251, %s1583
                // While loop
                $region82: #{two_tower_forward.4} parent=73 // loop_pre_header
                  _
                $region83: #{two_tower_forward.4} parent=73 // loop_header
                  %s1586 = sphi 0, %s1588
                  %p1587 = scmp.ge.s32.totalorder %s1586, %s1579
                  %s1591 = sphi 0, %s1598
                  %s1592 = sphi %s1582, %s1601
                  %s1593 = sphi %s1584, %s1602
                $region84: #{two_tower_forward.4} parent=73 // loop_header_branch
                  %1590 = sbr.rel (%p1587) target = $region88
                $region85: #{two_tower_forward.4} parent=73 // loop_body
                  %v1594 = vld [vmem:[%s1592] sm:$0xf]
                  %1595 = vst [vmem:[%s1593] sm:$0xf] %v1594
                  %s1596 = sadd.s32 1, %s1591
                  %p1597 = scmp.ge.s32.totalorder %s1596, %s1579
                  %s1598 = scalar_select %p1597, 0, %s1596
                  %s1599 = smul.u32 %s1598, 4
                  %s1600 = smul.u32 %s1598, 4
                  %s1601 = scalar_lea.vmem %s1582, %s1599 [#allocation6]
                  %s1602 = scalar_lea.vmem %s1584, %s1600
                $region86: #{two_tower_forward.4} parent=73 // loop_footer
                  %s1588 = sadd.s32 %s1586, 1
                $region87: #{two_tower_forward.4} parent=73 // loop_footer_branch
                  %1585 = sbr.rel target = $region83
                $region88: #{two_tower_forward.4} parent=73 // loop_exit
                  _
              $region74: #{two_tower_forward.4} parent=51 // pred_fallthru
                _
            $region52: #{two_tower_forward.4} parent=47 // pred_fallthru
              _
            // Predicated region
            $region53: #{two_tower_forward.4} parent=47 // pred_check
              _
            $region54: #{two_tower_forward.4} parent=47 // pred_check_branch
              %1258 = sbr.rel (0) target = $region56
            $region55: #{two_tower_forward.4} parent=47 // pred_region
              %s1260 = sshrl.u32 %s1247, 6
              // While loop
              $region57: #{two_tower_forward.4} parent=55 // loop_pre_header
                _
              $region58: #{two_tower_forward.4} parent=55 // loop_header
                %s1262 = sphi 0, %s1264
                %p1263 = scmp.ge.s32.totalorder %s1262, %s1260
                %s1267 = sphi 0, %s1400
                %s1268 = sphi %s1240, %s1403
                %s1269 = sphi %s1251, %s1404
              $region59: #{two_tower_forward.4} parent=55 // loop_header_branch
                %1266 = sbr.rel (%p1263) target = $region63
              $region60: #{two_tower_forward.4} parent=55 // loop_body
                %v1270 = vld [vmem:[%s1268] sm:$0xf]
                %1271 = vst [vmem:[%s1269] sm:$0xf] %v1270
                %v1272 = vld [vmem:[%s1268 + $0x4] sm:$0xf]
                %1273 = vst [vmem:[%s1269 + $0x4] sm:$0xf] %v1272
                %v1274 = vld [vmem:[%s1268 + $0x8] sm:$0xf]
                %1275 = vst [vmem:[%s1269 + $0x8] sm:$0xf] %v1274
                %v1276 = vld [vmem:[%s1268 + $0xc] sm:$0xf]
                %1277 = vst [vmem:[%s1269 + $0xc] sm:$0xf] %v1276
                %v1278 = vld [vmem:[%s1268 + $0x10] sm:$0xf]
                %1279 = vst [vmem:[%s1269 + $0x10] sm:$0xf] %v1278
                %v1280 = vld [vmem:[%s1268 + $0x14] sm:$0xf]
                %1281 = vst [vmem:[%s1269 + $0x14] sm:$0xf] %v1280
                %v1282 = vld [vmem:[%s1268 + $0x18] sm:$0xf]
                %1283 = vst [vmem:[%s1269 + $0x18] sm:$0xf] %v1282
                %v1284 = vld [vmem:[%s1268 + $0x1c] sm:$0xf]
                %1285 = vst [vmem:[%s1269 + $0x1c] sm:$0xf] %v1284
                %v1286 = vld [vmem:[%s1268 + $0x20] sm:$0xf]
                %1287 = vst [vmem:[%s1269 + $0x20] sm:$0xf] %v1286
                %v1288 = vld [vmem:[%s1268 + $0x24] sm:$0xf]
                %1289 = vst [vmem:[%s1269 + $0x24] sm:$0xf] %v1288
                %v1290 = vld [vmem:[%s1268 + $0x28] sm:$0xf]
                %1291 = vst [vmem:[%s1269 + $0x28] sm:$0xf] %v1290
                %v1292 = vld [vmem:[%s1268 + $0x2c] sm:$0xf]
                %1293 = vst [vmem:[%s1269 + $0x2c] sm:$0xf] %v1292
                %v1294 = vld [vmem:[%s1268 + $0x30] sm:$0xf]
                %1295 = vst [vmem:[%s1269 + $0x30] sm:$0xf] %v1294
                %v1296 = vld [vmem:[%s1268 + $0x34] sm:$0xf]
                %1297 = vst [vmem:[%s1269 + $0x34] sm:$0xf] %v1296
                %v1298 = vld [vmem:[%s1268 + $0x38] sm:$0xf]
                %1299 = vst [vmem:[%s1269 + $0x38] sm:$0xf] %v1298
                %v1300 = vld [vmem:[%s1268 + $0x3c] sm:$0xf]
                %1301 = vst [vmem:[%s1269 + $0x3c] sm:$0xf] %v1300
                %v1302 = vld [vmem:[%s1268 + $0x40] sm:$0xf]
                %1303 = vst [vmem:[%s1269 + $0x40] sm:$0xf] %v1302
                %v1304 = vld [vmem:[%s1268 + $0x44] sm:$0xf]
                %1305 = vst [vmem:[%s1269 + $0x44] sm:$0xf] %v1304
                %v1306 = vld [vmem:[%s1268 + $0x48] sm:$0xf]
                %1307 = vst [vmem:[%s1269 + $0x48] sm:$0xf] %v1306
                %v1308 = vld [vmem:[%s1268 + $0x4c] sm:$0xf]
                %1309 = vst [vmem:[%s1269 + $0x4c] sm:$0xf] %v1308
                %v1310 = vld [vmem:[%s1268 + $0x50] sm:$0xf]
                %1311 = vst [vmem:[%s1269 + $0x50] sm:$0xf] %v1310
                %v1312 = vld [vmem:[%s1268 + $0x54] sm:$0xf]
                %1313 = vst [vmem:[%s1269 + $0x54] sm:$0xf] %v1312
                %v1314 = vld [vmem:[%s1268 + $0x58] sm:$0xf]
                %1315 = vst [vmem:[%s1269 + $0x58] sm:$0xf] %v1314
                %v1316 = vld [vmem:[%s1268 + $0x5c] sm:$0xf]
                %1317 = vst [vmem:[%s1269 + $0x5c] sm:$0xf] %v1316
                %v1318 = vld [vmem:[%s1268 + $0x60] sm:$0xf]
                %1319 = vst [vmem:[%s1269 + $0x60] sm:$0xf] %v1318
                %v1320 = vld [vmem:[%s1268 + $0x64] sm:$0xf]
                %1321 = vst [vmem:[%s1269 + $0x64] sm:$0xf] %v1320
                %v1322 = vld [vmem:[%s1268 + $0x68] sm:$0xf]
                %1323 = vst [vmem:[%s1269 + $0x68] sm:$0xf] %v1322
                %v1324 = vld [vmem:[%s1268 + $0x6c] sm:$0xf]
                %1325 = vst [vmem:[%s1269 + $0x6c] sm:$0xf] %v1324
                %v1326 = vld [vmem:[%s1268 + $0x70] sm:$0xf]
                %1327 = vst [vmem:[%s1269 + $0x70] sm:$0xf] %v1326
                %v1328 = vld [vmem:[%s1268 + $0x74] sm:$0xf]
                %1329 = vst [vmem:[%s1269 + $0x74] sm:$0xf] %v1328
                %v1330 = vld [vmem:[%s1268 + $0x78] sm:$0xf]
                %1331 = vst [vmem:[%s1269 + $0x78] sm:$0xf] %v1330
                %v1332 = vld [vmem:[%s1268 + $0x7c] sm:$0xf]
                %1333 = vst [vmem:[%s1269 + $0x7c] sm:$0xf] %v1332
                %v1334 = vld [vmem:[%s1268 + $0x80] sm:$0xf]
                %1335 = vst [vmem:[%s1269 + $0x80] sm:$0xf] %v1334
                %v1336 = vld [vmem:[%s1268 + $0x84] sm:$0xf]
                %1337 = vst [vmem:[%s1269 + $0x84] sm:$0xf] %v1336
                %v1338 = vld [vmem:[%s1268 + $0x88] sm:$0xf]
                %1339 = vst [vmem:[%s1269 + $0x88] sm:$0xf] %v1338
                %v1340 = vld [vmem:[%s1268 + $0x8c] sm:$0xf]
                %1341 = vst [vmem:[%s1269 + $0x8c] sm:$0xf] %v1340
                %v1342 = vld [vmem:[%s1268 + $0x90] sm:$0xf]
                %1343 = vst [vmem:[%s1269 + $0x90] sm:$0xf] %v1342
                %v1344 = vld [vmem:[%s1268 + $0x94] sm:$0xf]
                %1345 = vst [vmem:[%s1269 + $0x94] sm:$0xf] %v1344
                %v1346 = vld [vmem:[%s1268 + $0x98] sm:$0xf]
                %1347 = vst [vmem:[%s1269 + $0x98] sm:$0xf] %v1346
                %v1348 = vld [vmem:[%s1268 + $0x9c] sm:$0xf]
                %1349 = vst [vmem:[%s1269 + $0x9c] sm:$0xf] %v1348
                %v1350 = vld [vmem:[%s1268 + $0xa0] sm:$0xf]
                %1351 = vst [vmem:[%s1269 + $0xa0] sm:$0xf] %v1350
                %v1352 = vld [vmem:[%s1268 + $0xa4] sm:$0xf]
                %1353 = vst [vmem:[%s1269 + $0xa4] sm:$0xf] %v1352
                %v1354 = vld [vmem:[%s1268 + $0xa8] sm:$0xf]
                %1355 = vst [vmem:[%s1269 + $0xa8] sm:$0xf] %v1354
                %v1356 = vld [vmem:[%s1268 + $0xac] sm:$0xf]
                %1357 = vst [vmem:[%s1269 + $0xac] sm:$0xf] %v1356
                %v1358 = vld [vmem:[%s1268 + $0xb0] sm:$0xf]
                %1359 = vst [vmem:[%s1269 + $0xb0] sm:$0xf] %v1358
                %v1360 = vld [vmem:[%s1268 + $0xb4] sm:$0xf]
                %1361 = vst [vmem:[%s1269 + $0xb4] sm:$0xf] %v1360
                %v1362 = vld [vmem:[%s1268 + $0xb8] sm:$0xf]
                %1363 = vst [vmem:[%s1269 + $0xb8] sm:$0xf] %v1362
                %v1364 = vld [vmem:[%s1268 + $0xbc] sm:$0xf]
                %1365 = vst [vmem:[%s1269 + $0xbc] sm:$0xf] %v1364
                %v1366 = vld [vmem:[%s1268 + $0xc0] sm:$0xf]
                %1367 = vst [vmem:[%s1269 + $0xc0] sm:$0xf] %v1366
                %v1368 = vld [vmem:[%s1268 + $0xc4] sm:$0xf]
                %1369 = vst [vmem:[%s1269 + $0xc4] sm:$0xf] %v1368
                %v1370 = vld [vmem:[%s1268 + $0xc8] sm:$0xf]
                %1371 = vst [vmem:[%s1269 + $0xc8] sm:$0xf] %v1370
                %v1372 = vld [vmem:[%s1268 + $0xcc] sm:$0xf]
                %1373 = vst [vmem:[%s1269 + $0xcc] sm:$0xf] %v1372
                %v1374 = vld [vmem:[%s1268 + $0xd0] sm:$0xf]
                %1375 = vst [vmem:[%s1269 + $0xd0] sm:$0xf] %v1374
                %v1376 = vld [vmem:[%s1268 + $0xd4] sm:$0xf]
                %1377 = vst [vmem:[%s1269 + $0xd4] sm:$0xf] %v1376
                %v1378 = vld [vmem:[%s1268 + $0xd8] sm:$0xf]
                %1379 = vst [vmem:[%s1269 + $0xd8] sm:$0xf] %v1378
                %v1380 = vld [vmem:[%s1268 + $0xdc] sm:$0xf]
                %1381 = vst [vmem:[%s1269 + $0xdc] sm:$0xf] %v1380
                %v1382 = vld [vmem:[%s1268 + $0xe0] sm:$0xf]
                %1383 = vst [vmem:[%s1269 + $0xe0] sm:$0xf] %v1382
                %v1384 = vld [vmem:[%s1268 + $0xe4] sm:$0xf]
                %1385 = vst [vmem:[%s1269 + $0xe4] sm:$0xf] %v1384
                %v1386 = vld [vmem:[%s1268 + $0xe8] sm:$0xf]
                %1387 = vst [vmem:[%s1269 + $0xe8] sm:$0xf] %v1386
                %v1388 = vld [vmem:[%s1268 + $0xec] sm:$0xf]
                %1389 = vst [vmem:[%s1269 + $0xec] sm:$0xf] %v1388
                %v1390 = vld [vmem:[%s1268 + $0xf0] sm:$0xf]
                %1391 = vst [vmem:[%s1269 + $0xf0] sm:$0xf] %v1390
                %v1392 = vld [vmem:[%s1268 + $0xf4] sm:$0xf]
                %1393 = vst [vmem:[%s1269 + $0xf4] sm:$0xf] %v1392
                %v1394 = vld [vmem:[%s1268 + $0xf8] sm:$0xf]
                %1395 = vst [vmem:[%s1269 + $0xf8] sm:$0xf] %v1394
                %v1396 = vld [vmem:[%s1268 + $0xfc] sm:$0xf]
                %1397 = vst [vmem:[%s1269 + $0xfc] sm:$0xf] %v1396
                %s1398 = sadd.s32 1, %s1267
                %p1399 = scmp.ge.s32.totalorder %s1398, %s1260
                %s1400 = scalar_select %p1399, 0, %s1398
                %s1401 = smul.u32 %s1400, 256
                %s1402 = smul.u32 %s1400, 256
                %s1403 = scalar_lea.vmem %s1240, %s1401 [#allocation6]
                %s1404 = scalar_lea.vmem %s1251, %s1402
              $region61: #{two_tower_forward.4} parent=55 // loop_footer
                %s1264 = sadd.s32 %s1262, 1
              $region62: #{two_tower_forward.4} parent=55 // loop_footer_branch
                %1261 = sbr.rel target = $region58
              $region63: #{two_tower_forward.4} parent=55 // loop_exit
                _
              %s1405 = sshrl.u32 %s1247, 6
              %s1406 = sand.u32 %s1247, 63
              %s1407 = smul.u32 %s1405, 64
              %s1408 = smul.u32 4, %s1407
              %s1409 = scalar_lea.vmem %s1240, %s1408 [#allocation6]
              %s1410 = smul.u32 4, %s1407
              %s1411 = scalar_lea.vmem %s1251, %s1410
              // While loop
              $region64: #{two_tower_forward.4} parent=55 // loop_pre_header
                _
              $region65: #{two_tower_forward.4} parent=55 // loop_header
                %s1413 = sphi 0, %s1415
                %p1414 = scmp.ge.s32.totalorder %s1413, %s1406
                %s1418 = sphi 0, %s1425
                %s1419 = sphi %s1409, %s1428
                %s1420 = sphi %s1411, %s1429
              $region66: #{two_tower_forward.4} parent=55 // loop_header_branch
                %1417 = sbr.rel (%p1414) target = $region70
              $region67: #{two_tower_forward.4} parent=55 // loop_body
                %v1421 = vld [vmem:[%s1419] sm:$0xf]
                %1422 = vst [vmem:[%s1420] sm:$0xf] %v1421
                %s1423 = sadd.s32 1, %s1418
                %p1424 = scmp.ge.s32.totalorder %s1423, %s1406
                %s1425 = scalar_select %p1424, 0, %s1423
                %s1426 = smul.u32 %s1425, 4
                %s1427 = smul.u32 %s1425, 4
                %s1428 = scalar_lea.vmem %s1409, %s1426 [#allocation6]
                %s1429 = scalar_lea.vmem %s1411, %s1427
              $region68: #{two_tower_forward.4} parent=55 // loop_footer
                %s1415 = sadd.s32 %s1413, 1
              $region69: #{two_tower_forward.4} parent=55 // loop_footer_branch
                %1412 = sbr.rel target = $region65
              $region70: #{two_tower_forward.4} parent=55 // loop_exit
                _
            $region56: #{two_tower_forward.4} parent=47 // pred_fallthru
              _
          $region48: #{two_tower_forward.4} parent=43 // pred_fallthru
            _
          %1603 = vnop
        $region44: #{two_tower_forward.4} parent=31 // pred_fallthru
          _
      $region32: #{two_tower_forward.4} parent=5 // pred_fallthru
        _
      %p1604 = scmp.le.s32.totalorder 2, %s11
      // Predicated region
      $region89: #{two_tower_forward.4} parent=5 // pred_check
        %p1605 = pneg %p1604
      $region90: #{two_tower_forward.4} parent=5 // pred_check_branch
        %1607 = sbr.rel (%p1605) target = $region92
      $region91: #{two_tower_forward.4} parent=5 // pred_region
        %s1608 = ssub.s32 %s11, 2
        // Predicated region
        $region93: #{two_tower_forward.4} parent=91 // pred_check
          %p1609 = pneg %p108
        $region94: #{two_tower_forward.4} parent=91 // pred_check_branch
          %1611 = sbr.rel (%p1609) target = $region96
        $region95: #{two_tower_forward.4} parent=91 // pred_region
          %s1612 = sand.u32 %s93, 1
          %s1613 = sand.u32 %s93, 1
          %s1614 = smul.addr %s1613, 256
          %s1615 = scalar_lea.vmem [#allocation6], %s1614
        $region96: #{two_tower_forward.4} parent=91 // pred_fallthru
          _
      $region92: #{two_tower_forward.4} parent=5 // pred_fallthru
        _
    $region6: #{two_tower_forward.4} parent=1 // loop_footer
      %s15 = sadd.s32 1, %s11
    $region7: #{two_tower_forward.4} parent=1 // loop_footer_branch
      %10 = sbr.rel target = $region3
    $region8: #{two_tower_forward.4} parent=1 // loop_exit
      _
    %1616 = vsyncpa [#allocation3], 1
    %s1617 = scalar_lea.sflag [#allocation3], 1
    %1618 = vsyncpa %s1617, 1
    %1619 = vsyncpa [#allocation5], 1

// kernel: two_tower_forward.5
$region0: #{two_tower_forward.5}
  #allocation0 [shape = 'u32[]', space=smem, size = 0x4, offset = 0x4, fixed_abs, tag = 'smem constant byte address 0x4 - core index']
  #allocation1 [shape = 'u32[144,128]{1,0:T(1,128)}', space=vmem, size = 0x12000, scoped, tag = 'internal scratch']
  %s0 = inlined_call_operand.vmem [shape: bf16[484,144], index: 0, kind: input, shape index: {}]
  %s1 = inlined_call_operand.vmem [shape: bf16[144,32], index: 1, kind: input, shape index: {}]
  %s2 = inlined_call_operand.vmem [shape: f32[1,32], index: 2, kind: input, shape index: {}]
  %s3 = inlined_call_operand.vmem [shape: bf16[484,32], index: 3, kind: output, shape index: {}]
  %s4 = sld [smem:[#allocation0]]
  $region22: #{two_tower_forward.5} parent=0
    _
  %s6 = ssub.s32 1, %s4
  %s7 = scalar_select 0, %s6, %s4
  // Predicated region
  $region2: #{two_tower_forward.5} parent=0 // pred_check
    _
  $region3: #{two_tower_forward.5} parent=0 // pred_check_branch
    %9 = sbr.rel (0) target = $region5
  $region4: #{two_tower_forward.5} parent=0 // pred_region
    _
  $region5: #{two_tower_forward.5} parent=0 // pred_fallthru
    _
  // Predicated region
  $region6: #{two_tower_forward.5} parent=0 // pred_check
    _
  $region7: #{two_tower_forward.5} parent=0 // pred_check_branch
    %11 = sbr.rel (0) target = $region9
  $region8: #{two_tower_forward.5} parent=0 // pred_region
    _
  $region9: #{two_tower_forward.5} parent=0 // pred_fallthru
    _
  // Predicated region
  $region10: #{two_tower_forward.5} parent=0 // pred_check
    _
  $region11: #{two_tower_forward.5} parent=0 // pred_check_branch
    %13 = sbr.rel (0) target = $region13
  $region12: #{two_tower_forward.5} parent=0 // pred_region
    _
  $region13: #{two_tower_forward.5} parent=0 // pred_fallthru
    _
  %v15 = vld [vmem:[%s0] sm:$0xff]
  %v16 = vld [vmem:[%s0 + $0x8] sm:$0xff]
  %v17 = vld [vmem:[%s0 + $0x10] sm:$0xff]
  %v18 = vld [vmem:[%s0 + $0x18] sm:$0xff]
  %v19 = vld [vmem:[%s0 + $0x20] sm:$0xff]
  %v20 = vld [vmem:[%s0 + $0x28] sm:$0xff]
  %v21 = vld [vmem:[%s0 + $0x30] sm:$0xff]
  %v22 = vld [vmem:[%s0 + $0x38] sm:$0xff]
  %v23 = vld [vmem:[%s0 + $0x40] sm:$0xff]
  %v24 = vld [vmem:[%s0 + $0x48] sm:$0xff]
  %v25 = vld [vmem:[%s0 + $0x50] sm:$0xff]
  %v26 = vld [vmem:[%s0 + $0x58] sm:$0xff]
  %v27 = vld [vmem:[%s0 + $0x60] sm:$0xff]
  %v28 = vld [vmem:[%s0 + $0x68] sm:$0xff]
  %v29 = vld [vmem:[%s0 + $0x70] sm:$0xff]
  %v30 = vld [vmem:[%s0 + $0x78] sm:$0xff]
  %v31 = vld [vmem:[%s0 + $0x80] sm:$0xff]
  %v32 = vld [vmem:[%s0 + $0x88] sm:$0xff]
  %v33 = vld [vmem:[%s0 + $0x90] sm:$0xff]
  %v34 = vld [vmem:[%s0 + $0x98] sm:$0xff]
  %v35 = vld [vmem:[%s0 + $0xa0] sm:$0xff]
  %v36 = vld [vmem:[%s0 + $0xa8] sm:$0xff]
  %v37 = vld [vmem:[%s0 + $0xb0] sm:$0xff]
  %v38 = vld [vmem:[%s0 + $0xb8] sm:$0xff]
  %v39 = vld [vmem:[%s0 + $0xc0] sm:$0xff]
  %v40 = vld [vmem:[%s0 + $0xc8] sm:$0xff]
  %v41 = vld [vmem:[%s0 + $0xd0] sm:$0xff]
  %v42 = vld [vmem:[%s0 + $0xd8] sm:$0xff]
  %v43 = vld [vmem:[%s0 + $0xe0] sm:$0xff]
  %v44 = vld [vmem:[%s0 + $0xe8] sm:$0xff]
  %v45 = vld [vmem:[%s0 + $0xf0] sm:$0xff]
  %v46 = vld [vmem:[%s0 + $0xf8] sm:$0xff]
  %v47 = vld [vmem:[%s0 + $0x100] sm:$0xff]
  %v48 = vld [vmem:[%s0 + $0x108] sm:$0xff]
  %v49 = vld [vmem:[%s0 + $0x110] sm:$0xff]
  %v50 = vld [vmem:[%s0 + $0x118] sm:$0xff]
  %v51 = vld [vmem:[%s0 + $0x120] sm:$0xff]
  %v52 = vld [vmem:[%s0 + $0x128] sm:$0xff]
  %v53 = vld [vmem:[%s0 + $0x130] sm:$0xff]
  %v54 = vld [vmem:[%s0 + $0x138] sm:$0xff]
  %v55 = vld [vmem:[%s0 + $0x140] sm:$0xff]
  %v56 = vld [vmem:[%s0 + $0x148] sm:$0xff]
  %v57 = vld [vmem:[%s0 + $0x150] sm:$0xff]
  %v58 = vld [vmem:[%s0 + $0x158] sm:$0xff]
  %v59 = vld [vmem:[%s0 + $0x160] sm:$0xff]
  %v60 = vld [vmem:[%s0 + $0x168] sm:$0xff]
  %v61 = vld [vmem:[%s0 + $0x170] sm:$0xff]
  %v62 = vld [vmem:[%s0 + $0x178] sm:$0xff]
  %v63 = vld [vmem:[%s0 + $0x180] sm:$0xff]
  %v64 = vld [vmem:[%s0 + $0x188] sm:$0xff]
  %v65 = vld [vmem:[%s0 + $0x190] sm:$0xff]
  %v66 = vld [vmem:[%s0 + $0x198] sm:$0xff]
  %v67 = vld [vmem:[%s0 + $0x1a0] sm:$0xff]
  %v68 = vld [vmem:[%s0 + $0x1a8] sm:$0xff]
  %v69 = vld [vmem:[%s0 + $0x1b0] sm:$0xff]
  %v70 = vld [vmem:[%s0 + $0x1b8] sm:$0xff]
  %v71 = vld [vmem:[%s0 + $0x1c0] sm:$0xff]
  %v72 = vld [vmem:[%s0 + $0x1c8] sm:$0xff]
  %v73 = vld [vmem:[%s0 + $0x1d0] sm:$0xff]
  %v74 = vld [vmem:[%s0 + $0x1d8] sm:$0xff]
  %v75 = vld [vmem:[%s0 + $0x1e0] sm:$0xff]
  %v76 = vld [vmem:[%s1] sm:$0xf]
  %v77 = vld [vmem:[%s1 + $0x4] sm:$0xf]
  %v78 = vld [vmem:[%s1 + $0x8] sm:$0xf]
  %v79 = vld [vmem:[%s1 + $0xc] sm:$0xf]
  %v80 = vld [vmem:[%s1 + $0x10] sm:$0xf]
  %v81 = vld [vmem:[%s1 + $0x14] sm:$0xf]
  %v82 = vld [vmem:[%s1 + $0x18] sm:$0xf]
  %v83 = vld [vmem:[%s1 + $0x1c] sm:$0xf]
  %v84 = vld [vmem:[%s1 + $0x20] sm:$0xf]
  %v85 = vld [vmem:[%s1 + $0x24] sm:$0xf]
  %v86 = vld [vmem:[%s1 + $0x28] sm:$0xf]
  %v87 = vld [vmem:[%s1 + $0x2c] sm:$0xf]
  %v88 = vld [vmem:[%s1 + $0x30] sm:$0xf]
  %v89 = vld [vmem:[%s1 + $0x34] sm:$0xf]
  %v90 = vld [vmem:[%s1 + $0x38] sm:$0xf]
  %v91 = vld [vmem:[%s1 + $0x3c] sm:$0xf]
  %v92 = vld [vmem:[%s1 + $0x40] sm:$0xf]
  %v93 = vld [vmem:[%s1 + $0x44] sm:$0xf]
  %v94 = vld [vmem:[%s2] sm:$0x1]
  %v96 = vlaneseq
  %v97 = vshrl.u32 %v96, 7
  %v98 = vsub.s32 0, %v97
  %v99 = vrot.slane %v94, %v98
  %v162 = vunpack.c.l.b16 %v15
  %v163 = vunpack.c.h.b16 %v15
  %v164 = vunpack.c.l.b16 %v16
  %v165 = vunpack.c.h.b16 %v16
  %v166 = vunpack.c.l.b16 %v17
  %v167 = vunpack.c.h.b16 %v17
  %v168 = vunpack.c.l.b16 %v18
  %v169 = vunpack.c.h.b16 %v18
  %v170 = vunpack.c.l.b16 %v19
  %v171 = vunpack.c.h.b16 %v19
  %v172 = vunpack.c.l.b16 %v20
  %v173 = vunpack.c.h.b16 %v20
  %v174 = vunpack.c.l.b16 %v21
  %v175 = vunpack.c.h.b16 %v21
  %v176 = vunpack.c.l.b16 %v22
  %v177 = vunpack.c.h.b16 %v22
  %v178 = vunpack.c.l.b16 %v23
  %v179 = vunpack.c.h.b16 %v23
  %v180 = vunpack.c.l.b16 %v24
  %v181 = vunpack.c.h.b16 %v24
  %v182 = vunpack.c.l.b16 %v25
  %v183 = vunpack.c.h.b16 %v25
  %v184 = vunpack.c.l.b16 %v26
  %v185 = vunpack.c.h.b16 %v26
  %v186 = vunpack.c.l.b16 %v27
  %v187 = vunpack.c.h.b16 %v27
  %v188 = vunpack.c.l.b16 %v28
  %v189 = vunpack.c.h.b16 %v28
  %v190 = vunpack.c.l.b16 %v29
  %v191 = vunpack.c.h.b16 %v29
  %v192 = vunpack.c.l.b16 %v30
  %v193 = vunpack.c.h.b16 %v30
  %v194 = vunpack.c.l.b16 %v31
  %v195 = vunpack.c.h.b16 %v31
  %v196 = vunpack.c.l.b16 %v32
  %v197 = vunpack.c.h.b16 %v32
  %v198 = vunpack.c.l.b16 %v33
  %v199 = vunpack.c.h.b16 %v33
  %v200 = vunpack.c.l.b16 %v34
  %v201 = vunpack.c.h.b16 %v34
  %v202 = vunpack.c.l.b16 %v35
  %v203 = vunpack.c.h.b16 %v35
  %v204 = vunpack.c.l.b16 %v36
  %v205 = vunpack.c.h.b16 %v36
  %v206 = vunpack.c.l.b16 %v37
  %v207 = vunpack.c.h.b16 %v37
  %v208 = vunpack.c.l.b16 %v38
  %v209 = vunpack.c.h.b16 %v38
  %v210 = vunpack.c.l.b16 %v39
  %v211 = vunpack.c.h.b16 %v39
  %v212 = vunpack.c.l.b16 %v40
  %v213 = vunpack.c.h.b16 %v40
  %v214 = vunpack.c.l.b16 %v41
  %v215 = vunpack.c.h.b16 %v41
  %v216 = vunpack.c.l.b16 %v42
  %v217 = vunpack.c.h.b16 %v42
  %v218 = vunpack.c.l.b16 %v43
  %v219 = vunpack.c.h.b16 %v43
  %v220 = vunpack.c.l.b16 %v44
  %v221 = vunpack.c.h.b16 %v44
  %v222 = vunpack.c.l.b16 %v45
  %v223 = vunpack.c.h.b16 %v45
  %v224 = vunpack.c.l.b16 %v46
  %v225 = vunpack.c.h.b16 %v46
  %v226 = vunpack.c.l.b16 %v47
  %v227 = vunpack.c.h.b16 %v47
  %v228 = vunpack.c.l.b16 %v48
  %v229 = vunpack.c.h.b16 %v48
  %v230 = vunpack.c.l.b16 %v49
  %v231 = vunpack.c.h.b16 %v49
  %v232 = vunpack.c.l.b16 %v50
  %v233 = vunpack.c.h.b16 %v50
  %v234 = vunpack.c.l.b16 %v51
  %v235 = vunpack.c.h.b16 %v51
  %v236 = vunpack.c.l.b16 %v52
  %v237 = vunpack.c.h.b16 %v52
  %v238 = vunpack.c.l.b16 %v53
  %v239 = vunpack.c.h.b16 %v53
  %v240 = vunpack.c.l.b16 %v54
  %v241 = vunpack.c.h.b16 %v54
  %v242 = vunpack.c.l.b16 %v55
  %v243 = vunpack.c.h.b16 %v55
  %v244 = vunpack.c.l.b16 %v56
  %v245 = vunpack.c.h.b16 %v56
  %v246 = vunpack.c.l.b16 %v57
  %v247 = vunpack.c.h.b16 %v57
  %v248 = vunpack.c.l.b16 %v58
  %v249 = vunpack.c.h.b16 %v58
  %v250 = vunpack.c.l.b16 %v59
  %v251 = vunpack.c.h.b16 %v59
  %v252 = vunpack.c.l.b16 %v60
  %v253 = vunpack.c.h.b16 %v60
  %v254 = vunpack.c.l.b16 %v61
  %v255 = vunpack.c.h.b16 %v61
  %v256 = vunpack.c.l.b16 %v62
  %v257 = vunpack.c.h.b16 %v62
  %v258 = vunpack.c.l.b16 %v63
  %v259 = vunpack.c.h.b16 %v63
  %v260 = vunpack.c.l.b16 %v64
  %v261 = vunpack.c.h.b16 %v64
  %v262 = vunpack.c.l.b16 %v65
  %v263 = vunpack.c.h.b16 %v65
  %v264 = vunpack.c.l.b16 %v66
  %v265 = vunpack.c.h.b16 %v66
  %v266 = vunpack.c.l.b16 %v67
  %v267 = vunpack.c.h.b16 %v67
  %v268 = vunpack.c.l.b16 %v68
  %v269 = vunpack.c.h.b16 %v68
  %v270 = vunpack.c.l.b16 %v69
  %v271 = vunpack.c.h.b16 %v69
  %v272 = vunpack.c.l.b16 %v70
  %v273 = vunpack.c.h.b16 %v70
  %v274 = vunpack.c.l.b16 %v71
  %v275 = vunpack.c.h.b16 %v71
  %v276 = vunpack.c.l.b16 %v72
  %v277 = vunpack.c.h.b16 %v72
  %v278 = vunpack.c.l.b16 %v73
  %v279 = vunpack.c.h.b16 %v73
  %v280 = vunpack.c.l.b16 %v74
  %v281 = vunpack.c.h.b16 %v74
  %v282 = vunpack.c.l.b16 %v75
  %v283 = vunpack.c.h.b16 %v75
  %v284 = vpack.c.b16 %v164, %v162
  %v285 = vpack.c.b16 %v165, %v163
  %v286 = vpack.c.b16 %v168, %v166
  %v287 = vpack.c.b16 %v169, %v167
  %v288 = vpack.c.b16 %v172, %v170
  %v289 = vpack.c.b16 %v173, %v171
  %v290 = vpack.c.b16 %v176, %v174
  %v291 = vpack.c.b16 %v177, %v175
  %v292 = vpack.c.b16 %v180, %v178
  %v293 = vpack.c.b16 %v181, %v179
  %v294 = vpack.c.b16 %v184, %v182
  %v295 = vpack.c.b16 %v185, %v183
  %v296 = vpack.c.b16 %v188, %v186
  %v297 = vpack.c.b16 %v189, %v187
  %v298 = vpack.c.b16 %v192, %v190
  %v299 = vpack.c.b16 %v193, %v191
  %v300 = vpack.c.b16 %v196, %v194
  %v301 = vpack.c.b16 %v197, %v195
  %v302 = vpack.c.b16 %v200, %v198
  %v303 = vpack.c.b16 %v201, %v199
  %v304 = vpack.c.b16 %v204, %v202
  %v305 = vpack.c.b16 %v205, %v203
  %v306 = vpack.c.b16 %v208, %v206
  %v307 = vpack.c.b16 %v209, %v207
  %v308 = vpack.c.b16 %v212, %v210
  %v309 = vpack.c.b16 %v213, %v211
  %v310 = vpack.c.b16 %v216, %v214
  %v311 = vpack.c.b16 %v217, %v215
  %v312 = vpack.c.b16 %v220, %v218
  %v313 = vpack.c.b16 %v221, %v219
  %v314 = vpack.c.b16 %v224, %v222
  %v315 = vpack.c.b16 %v225, %v223
  %v316 = vpack.c.b16 %v228, %v226
  %v317 = vpack.c.b16 %v229, %v227
  %v318 = vpack.c.b16 %v232, %v230
  %v319 = vpack.c.b16 %v233, %v231
  %v320 = vpack.c.b16 %v236, %v234
  %v321 = vpack.c.b16 %v237, %v235
  %v322 = vpack.c.b16 %v240, %v238
  %v323 = vpack.c.b16 %v241, %v239
  %v324 = vpack.c.b16 %v244, %v242
  %v325 = vpack.c.b16 %v245, %v243
  %v326 = vpack.c.b16 %v248, %v246
  %v327 = vpack.c.b16 %v249, %v247
  %v328 = vpack.c.b16 %v252, %v250
  %v329 = vpack.c.b16 %v253, %v251
  %v330 = vpack.c.b16 %v256, %v254
  %v331 = vpack.c.b16 %v257, %v255
  %v332 = vpack.c.b16 %v260, %v258
  %v333 = vpack.c.b16 %v261, %v259
  %v334 = vpack.c.b16 %v264, %v262
  %v335 = vpack.c.b16 %v265, %v263
  %v336 = vpack.c.b16 %v268, %v266
  %v337 = vpack.c.b16 %v269, %v267
  %v338 = vpack.c.b16 %v272, %v270
  %v339 = vpack.c.b16 %v273, %v271
  %v340 = vpack.c.b16 %v276, %v274
  %v341 = vpack.c.b16 %v277, %v275
  %v342 = vpack.c.b16 %v280, %v278
  %v343 = vpack.c.b16 %v281, %v279
  %v344 = vpack.c.b16 %v282, %v282
  %v345 = vpack.c.b16 %v283, %v283
  %v395 = vunpack.c.l.b16 %v76
  %v396 = vunpack.c.l.b16 %v77
  %v397 = vunpack.c.l.b16 %v78
  %v398 = vunpack.c.l.b16 %v79
  %v399 = vunpack.c.l.b16 %v80
  %v400 = vunpack.c.l.b16 %v81
  %v401 = vunpack.c.l.b16 %v82
  %v402 = vunpack.c.l.b16 %v83
  %v403 = vunpack.c.l.b16 %v84
  %v404 = vunpack.c.l.b16 %v85
  %v405 = vunpack.c.l.b16 %v86
  %v406 = vunpack.c.l.b16 %v87
  %v407 = vunpack.c.l.b16 %v88
  %v408 = vunpack.c.l.b16 %v89
  %v409 = vunpack.c.l.b16 %v90
  %v410 = vunpack.c.l.b16 %v91
  %v411 = vunpack.c.l.b16 %v92
  %v412 = vunpack.c.l.b16 %v93
  %v413 = vpack.c.b16 %v396, %v395
  %v414 = vpack.c.b16 %v398, %v397
  %v415 = vpack.c.b16 %v400, %v399
  %v416 = vpack.c.b16 %v402, %v401
  %v417 = vpack.c.b16 %v404, %v403
  %v418 = vpack.c.b16 %v406, %v405
  %v419 = vpack.c.b16 %v408, %v407
  %v420 = vpack.c.b16 %v410, %v409
  %v421 = vpack.c.b16 %v412, %v411
  %vm431 = vcmask 130048
  %v433 = vsel %vm431, %v285, 0
  %v436 = vsel %vm431, %v287, 0
  %v439 = vsel %vm431, %v289, 0
  %v442 = vsel %vm431, %v291, 0
  %v445 = vsel %vm431, %v293, 0
  %v448 = vsel %vm431, %v295, 0
  %v451 = vsel %vm431, %v297, 0
  %v454 = vsel %vm431, %v299, 0
  %v457 = vsel %vm431, %v301, 0
  %v460 = vsel %vm431, %v303, 0
  %v463 = vsel %vm431, %v305, 0
  %v466 = vsel %vm431, %v307, 0
  %v469 = vsel %vm431, %v309, 0
  %v472 = vsel %vm431, %v311, 0
  %v475 = vsel %vm431, %v313, 0
  %v478 = vsel %vm431, %v315, 0
  %v481 = vsel %vm431, %v317, 0
  %v484 = vsel %vm431, %v319, 0
  %v487 = vsel %vm431, %v321, 0
  %v490 = vsel %vm431, %v323, 0
  %v493 = vsel %vm431, %v325, 0
  %v496 = vsel %vm431, %v327, 0
  %v499 = vsel %vm431, %v329, 0
  %v502 = vsel %vm431, %v331, 0
  %v505 = vsel %vm431, %v333, 0
  %v508 = vsel %vm431, %v335, 0
  %v511 = vsel %vm431, %v337, 0
  %v514 = vsel %vm431, %v339, 0
  %v517 = vsel %vm431, %v341, 0
  %v520 = vsel %vm431, %v343, 0
  %v523 = vsel %vm431, %v345, 0
  %525 = vmatprep.subr.bf16.mxu0 0
  %526 = vmatpush1.bf16.msra.mxu0 %v413
  %527 = vmatprep.subr.bf16.mxu0 0
  %528 = vmatpush1.bf16.msra.mxu0 %v414
  %529 = vmatprep.subr.bf16.mxu0 0
  %530 = vmatpush1.bf16.msra.mxu0 %v415
  %531 = vmatprep.subr.bf16.mxu0 0
  %532 = vmatpush1.bf16.msra.mxu0 %v416
  %533 = vmatprep.subr.bf16.mxu0 0
  %534 = vmatpush1.bf16.msra.mxu0 %v417
  %535 = vmatprep.subr.bf16.mxu0 0
  %536 = vmatpush1.bf16.msra.mxu0 %v418
  %537 = vmatprep.subr.bf16.mxu0 0
  %538 = vmatpush1.bf16.msra.mxu0 %v419
  %539 = vmatprep.subr.bf16.mxu0 0
  %540 = vmatpush1.bf16.msra.mxu0 %v420
  %541 = vmatprep.subr.bf16.mxu0 0
  %542 = vmatpush1.bf16.msra.mxu0 %v421
  %543 = vmatprep.subr.bf16.mxu0 0
  %544 = vmatpush1.bf16.msra.mxu0 0
  %545 = vmatprep.subr.bf16.mxu0 0
  %546 = vmatpush1.bf16.msra.mxu0 0
  %547 = vmatprep.subr.bf16.mxu0 0
  %548 = vmatpush1.bf16.msra.mxu0 0
  %549 = vmatprep.subr.bf16.mxu0 0
  %550 = vmatpush1.bf16.msra.mxu0 0
  %551 = vmatprep.subr.bf16.mxu0 0
  %552 = vmatpush1.bf16.msra.mxu0 0
  %553 = vmatprep.subr.bf16.mxu0 0
  %554 = vmatpush1.bf16.msra.mxu0 0
  %555 = vmatprep.subr.bf16.mxu0 0
  %556 = vmatpush1.bf16.msra.mxu0 0
  %557 = vmatprep.mubr.bf16.mxu0 %v433
  %558 = vmatmul.mubr.bf16.gmra.mrb[0].mxu0 %v284
  %v559 = vpop.f32.mrb[0].mxu0
  %v560 = vadd.f32 %v99, %v559
  %v561 = vpop.f32.mrb[0].mxu0
  %v562 = vpop.f32.mrb[0].mxu0
  %v563 = vadd.f32 %v99, %v562
  %v564 = vpop.f32.mrb[0].mxu0
  %565 = vmatprep.mubr.bf16.mxu0 %v436
  %566 = vmatmul.mubr.bf16.gmra.mrb[0].mxu0 %v286
  %v567 = vpop.f32.mrb[0].mxu0
  %v568 = vadd.f32 %v99, %v567
  %v569 = vpop.f32.mrb[0].mxu0
  %v570 = vpop.f32.mrb[0].mxu0
  %v571 = vadd.f32 %v99, %v570
  %v572 = vpop.f32.mrb[0].mxu0
  %573 = vmatprep.mubr.bf16.mxu0 %v439
  %574 = vmatmul.mubr.bf16.gmra.mrb[0].mxu0 %v288
  %v575 = vpop.f32.mrb[0].mxu0
  %v576 = vadd.f32 %v99, %v575
  %v577 = vpop.f32.mrb[0].mxu0
  %v578 = vpop.f32.mrb[0].mxu0
  %v579 = vadd.f32 %v99, %v578
  %v580 = vpop.f32.mrb[0].mxu0
  %581 = vmatprep.mubr.bf16.mxu0 %v442
  %582 = vmatmul.mubr.bf16.gmra.mrb[0].mxu0 %v290
  %v583 = vpop.f32.mrb[0].mxu0
  %v584 = vadd.f32 %v99, %v583
  %v585 = vpop.f32.mrb[0].mxu0
  %v586 = vpop.f32.mrb[0].mxu0
  %v587 = vadd.f32 %v99, %v586
  %v588 = vpop.f32.mrb[0].mxu0
  %589 = vmatprep.mubr.bf16.mxu0 %v445
  %590 = vmatmul.mubr.bf16.gmra.mrb[0].mxu0 %v292
  %v591 = vpop.f32.mrb[0].mxu0
  %v592 = vadd.f32 %v99, %v591
  %v593 = vpop.f32.mrb[0].mxu0
  %v594 = vpop.f32.mrb[0].mxu0
  %v595 = vadd.f32 %v99, %v594
  %v596 = vpop.f32.mrb[0].mxu0
  %597 = vmatprep.mubr.bf16.mxu0 %v448
  %598 = vmatmul.mubr.bf16.gmra.mrb[0].mxu0 %v294
  %v599 = vpop.f32.mrb[0].mxu0
  %v600 = vadd.f32 %v99, %v599
  %v601 = vpop.f32.mrb[0].mxu0
  %v602 = vpop.f32.mrb[0].mxu0
  %v603 = vadd.f32 %v99, %v602
  %v604 = vpop.f32.mrb[0].mxu0
  %605 = vmatprep.mubr.bf16.mxu0 %v451
  %606 = vmatmul.mubr.bf16.gmra.mrb[0].mxu0 %v296
  %v607 = vpop.f32.mrb[0].mxu0
  %v608 = vadd.f32 %v99, %v607
  %v609 = vpop.f32.mrb[0].mxu0
  %v610 = vpop.f32.mrb[0].mxu0
  %v611 = vadd.f32 %v99, %v610
  %v612 = vpop.f32.mrb[0].mxu0
  %613 = vmatprep.mubr.bf16.mxu0 %v454
  %614 = vmatmul.mubr.bf16.gmra.mrb[0].mxu0 %v298
  %v615 = vpop.f32.mrb[0].mxu0
  %v616 = vadd.f32 %v99, %v615
  %v617 = vpop.f32.mrb[0].mxu0
  %v618 = vpop.f32.mrb[0].mxu0
  %v619 = vadd.f32 %v99, %v618
  %v620 = vpop.f32.mrb[0].mxu0
  %621 = vmatprep.mubr.bf16.mxu0 %v457
  %622 = vmatmul.mubr.bf16.gmra.mrb[0].mxu0 %v300
  %v623 = vpop.f32.mrb[0].mxu0
  %v624 = vadd.f32 %v99, %v623
  %v625 = vpop.f32.mrb[0].mxu0
  %v626 = vpop.f32.mrb[0].mxu0
  %v627 = vadd.f32 %v99, %v626
  %v628 = vpop.f32.mrb[0].mxu0
  %629 = vmatprep.mubr.bf16.mxu0 %v460
  %630 = vmatmul.mubr.bf16.gmra.mrb[0].mxu0 %v302
  %v631 = vpop.f32.mrb[0].mxu0
  %v632 = vadd.f32 %v99, %v631
  %v633 = vpop.f32.mrb[0].mxu0
  %v634 = vpop.f32.mrb[0].mxu0
  %v635 = vadd.f32 %v99, %v634
  %v636 = vpop.f32.mrb[0].mxu0
  %637 = vmatprep.mubr.bf16.mxu0 %v463
  %638 = vmatmul.mubr.bf16.gmra.mrb[0].mxu0 %v304
  %v639 = vpop.f32.mrb[0].mxu0
  %v640 = vadd.f32 %v99, %v639
  %v641 = vpop.f32.mrb[0].mxu0
  %v642 = vpop.f32.mrb[0].mxu0
  %v643 = vadd.f32 %v99, %v642
  %v644 = vpop.f32.mrb[0].mxu0
  %645 = vmatprep.mubr.bf16.mxu0 %v466
  %646 = vmatmul.mubr.bf16.gmra.mrb[0].mxu0 %v306
  %v647 = vpop.f32.mrb[0].mxu0
  %v648 = vadd.f32 %v99, %v647
  %v649 = vpop.f32.mrb[0].mxu0
  %v650 = vpop.f32.mrb[0].mxu0
  %v651 = vadd.f32 %v99, %v650
  %v652 = vpop.f32.mrb[0].mxu0
  %653 = vmatprep.mubr.bf16.mxu0 %v469
  %654 = vmatmul.mubr.bf16.gmra.mrb[0].mxu0 %v308
  %v655 = vpop.f32.mrb[0].mxu0
  %v656 = vadd.f32 %v99, %v655
  %v657 = vpop.f32.mrb[0].mxu0
  %v658 = vpop.f32.mrb[0].mxu0
  %v659 = vadd.f32 %v99, %v658
  %v660 = vpop.f32.mrb[0].mxu0
  %661 = vmatprep.mubr.bf16.mxu0 %v472
  %662 = vmatmul.mubr.bf16.gmra.mrb[0].mxu0 %v310
  %v663 = vpop.f32.mrb[0].mxu0
  %v664 = vadd.f32 %v99, %v663
  %v665 = vpop.f32.mrb[0].mxu0
  %v666 = vpop.f32.mrb[0].mxu0
  %v667 = vadd.f32 %v99, %v666
  %v668 = vpop.f32.mrb[0].mxu0
  %669 = vmatprep.mubr.bf16.mxu0 %v475
  %670 = vmatmul.mubr.bf16.gmra.mrb[0].mxu0 %v312
  %v671 = vpop.f32.mrb[0].mxu0
  %v672 = vadd.f32 %v99, %v671
  %v673 = vpop.f32.mrb[0].mxu0
  %v674 = vpop.f32.mrb[0].mxu0
  %v675 = vadd.f32 %v99, %v674
  %v676 = vpop.f32.mrb[0].mxu0
  %677 = vmatprep.mubr.bf16.mxu0 %v478
  %678 = vmatmul.mubr.bf16.gmra.mrb[0].mxu0 %v314
  %v679 = vpop.f32.mrb[0].mxu0
  %v680 = vadd.f32 %v99, %v679
  %v681 = vpop.f32.mrb[0].mxu0
  %v682 = vpop.f32.mrb[0].mxu0
  %v683 = vadd.f32 %v99, %v682
  %v684 = vpop.f32.mrb[0].mxu0
  %685 = vmatprep.mubr.bf16.mxu0 %v481
  %686 = vmatmul.mubr.bf16.gmra.mrb[0].mxu0 %v316
  %v687 = vpop.f32.mrb[0].mxu0
  %v688 = vadd.f32 %v99, %v687
  %v689 = vpop.f32.mrb[0].mxu0
  %v690 = vpop.f32.mrb[0].mxu0
  %v691 = vadd.f32 %v99, %v690
  %v692 = vpop.f32.mrb[0].mxu0
  %693 = vmatprep.mubr.bf16.mxu0 %v484
  %694 = vmatmul.mubr.bf16.gmra.mrb[0].mxu0 %v318
  %v695 = vpop.f32.mrb[0].mxu0
  %v696 = vadd.f32 %v99, %v695
  %v697 = vpop.f32.mrb[0].mxu0
  %v698 = vpop.f32.mrb[0].mxu0
  %v699 = vadd.f32 %v99, %v698
  %v700 = vpop.f32.mrb[0].mxu0
  %701 = vmatprep.mubr.bf16.mxu0 %v487
  %702 = vmatmul.mubr.bf16.gmra.mrb[0].mxu0 %v320
  %v703 = vpop.f32.mrb[0].mxu0
  %v704 = vadd.f32 %v99, %v703
  %v705 = vpop.f32.mrb[0].mxu0
  %v706 = vpop.f32.mrb[0].mxu0
  %v707 = vadd.f32 %v99, %v706
  %v708 = vpop.f32.mrb[0].mxu0
  %709 = vmatprep.mubr.bf16.mxu0 %v490
  %710 = vmatmul.mubr.bf16.gmra.mrb[0].mxu0 %v322
  %v711 = vpop.f32.mrb[0].mxu0
  %v712 = vadd.f32 %v99, %v711
  %v713 = vpop.f32.mrb[0].mxu0
  %v714 = vpop.f32.mrb[0].mxu0
  %v715 = vadd.f32 %v99, %v714
  %v716 = vpop.f32.mrb[0].mxu0
  %717 = vmatprep.mubr.bf16.mxu0 %v493
  %718 = vmatmul.mubr.bf16.gmra.mrb[0].mxu0 %v324
  %v719 = vpop.f32.mrb[0].mxu0
  %v720 = vadd.f32 %v99, %v719
  %v721 = vpop.f32.mrb[0].mxu0
  %v722 = vpop.f32.mrb[0].mxu0
  %v723 = vadd.f32 %v99, %v722
  %v724 = vpop.f32.mrb[0].mxu0
  %725 = vmatprep.mubr.bf16.mxu0 %v496
  %726 = vmatmul.mubr.bf16.gmra.mrb[0].mxu0 %v326
  %v727 = vpop.f32.mrb[0].mxu0
  %v728 = vadd.f32 %v99, %v727
  %v729 = vpop.f32.mrb[0].mxu0
  %v730 = vpop.f32.mrb[0].mxu0
  %v731 = vadd.f32 %v99, %v730
  %v732 = vpop.f32.mrb[0].mxu0
  %733 = vmatprep.mubr.bf16.mxu0 %v499
  %734 = vmatmul.mubr.bf16.gmra.mrb[0].mxu0 %v328
  %v735 = vpop.f32.mrb[0].mxu0
  %v736 = vadd.f32 %v99, %v735
  %v737 = vpop.f32.mrb[0].mxu0
  %v738 = vpop.f32.mrb[0].mxu0
  %v739 = vadd.f32 %v99, %v738
  %v740 = vpop.f32.mrb[0].mxu0
  %741 = vmatprep.mubr.bf16.mxu0 %v502
  %742 = vmatmul.mubr.bf16.gmra.mrb[0].mxu0 %v330
  %v743 = vpop.f32.mrb[0].mxu0
  %v744 = vadd.f32 %v99, %v743
  %v745 = vpop.f32.mrb[0].mxu0
  %v746 = vpop.f32.mrb[0].mxu0
  %v747 = vadd.f32 %v99, %v746
  %v748 = vpop.f32.mrb[0].mxu0
  %749 = vmatprep.mubr.bf16.mxu0 %v505
  %750 = vmatmul.mubr.bf16.gmra.mrb[0].mxu0 %v332
  %v751 = vpop.f32.mrb[0].mxu0
  %v752 = vadd.f32 %v99, %v751
  %v753 = vpop.f32.mrb[0].mxu0
  %v754 = vpop.f32.mrb[0].mxu0
  %v755 = vadd.f32 %v99, %v754
  %v756 = vpop.f32.mrb[0].mxu0
  %757 = vmatprep.mubr.bf16.mxu0 %v508
  %758 = vmatmul.mubr.bf16.gmra.mrb[0].mxu0 %v334
  %v759 = vpop.f32.mrb[0].mxu0
  %v760 = vadd.f32 %v99, %v759
  %v761 = vpop.f32.mrb[0].mxu0
  %v762 = vpop.f32.mrb[0].mxu0
  %v763 = vadd.f32 %v99, %v762
  %v764 = vpop.f32.mrb[0].mxu0
  %765 = vmatprep.mubr.bf16.mxu0 %v511
  %766 = vmatmul.mubr.bf16.gmra.mrb[0].mxu0 %v336
  %v767 = vpop.f32.mrb[0].mxu0
  %v768 = vadd.f32 %v99, %v767
  %v769 = vpop.f32.mrb[0].mxu0
  %v770 = vpop.f32.mrb[0].mxu0
  %v771 = vadd.f32 %v99, %v770
  %v772 = vpop.f32.mrb[0].mxu0
  %773 = vmatprep.mubr.bf16.mxu0 %v514
  %774 = vmatmul.mubr.bf16.gmra.mrb[0].mxu0 %v338
  %v775 = vpop.f32.mrb[0].mxu0
  %v776 = vadd.f32 %v99, %v775
  %v777 = vpop.f32.mrb[0].mxu0
  %v778 = vpop.f32.mrb[0].mxu0
  %v779 = vadd.f32 %v99, %v778
  %v780 = vpop.f32.mrb[0].mxu0
  %781 = vmatprep.mubr.bf16.mxu0 %v517
  %782 = vmatmul.mubr.bf16.gmra.mrb[0].mxu0 %v340
  %v783 = vpop.f32.mrb[0].mxu0
  %v784 = vadd.f32 %v99, %v783
  %v785 = vpop.f32.mrb[0].mxu0
  %v786 = vpop.f32.mrb[0].mxu0
  %v787 = vadd.f32 %v99, %v786
  %v788 = vpop.f32.mrb[0].mxu0
  %789 = vmatprep.mubr.bf16.mxu0 %v520
  %790 = vmatmul.mubr.bf16.gmra.mrb[0].mxu0 %v342
  %v791 = vpop.f32.mrb[0].mxu0
  %v792 = vadd.f32 %v99, %v791
  %v793 = vpop.f32.mrb[0].mxu0
  %v794 = vpop.f32.mrb[0].mxu0
  %v795 = vadd.f32 %v99, %v794
  %v796 = vpop.f32.mrb[0].mxu0
  %797 = vmatprep.mubr.bf16.mxu0 %v523
  %798 = vmatmul.mubr.bf16.gmra.mrb[0].mxu0 %v344
  %v799 = vpop.f32.mrb[0].mxu0
  %v800 = vadd.f32 %v99, %v799
  %v801 = vpop.f32.mrb[0].mxu0
  %v802 = vpop.f32.mrb[0].mxu0
  %v803 = vpop.f32.mrb[0].mxu0
  %804 = vdwg.mxu0
  %v805 = vmax.f32 %v560, 0.0
  %v806 = vmax.f32 %v563, 0.0
  %v807 = vmax.f32 %v568, 0.0
  %v808 = vmax.f32 %v571, 0.0
  %v809 = vmax.f32 %v576, 0.0
  %v810 = vmax.f32 %v579, 0.0
  %v811 = vmax.f32 %v584, 0.0
  %v812 = vmax.f32 %v587, 0.0
  %v813 = vmax.f32 %v592, 0.0
  %v814 = vmax.f32 %v595, 0.0
  %v815 = vmax.f32 %v600, 0.0
  %v816 = vmax.f32 %v603, 0.0
  %v817 = vmax.f32 %v608, 0.0
  %v818 = vmax.f32 %v611, 0.0
  %v819 = vmax.f32 %v616, 0.0
  %v820 = vmax.f32 %v619, 0.0
  %v821 = vmax.f32 %v624, 0.0
  %v822 = vmax.f32 %v627, 0.0
  %v823 = vmax.f32 %v632, 0.0
  %v824 = vmax.f32 %v635, 0.0
  %v825 = vmax.f32 %v640, 0.0
  %v826 = vmax.f32 %v643, 0.0
  %v827 = vmax.f32 %v648, 0.0
  %v828 = vmax.f32 %v651, 0.0
  %v829 = vmax.f32 %v656, 0.0
  %v830 = vmax.f32 %v659, 0.0
  %v831 = vmax.f32 %v664, 0.0
  %v832 = vmax.f32 %v667, 0.0
  %v833 = vmax.f32 %v672, 0.0
  %v834 = vmax.f32 %v675, 0.0
  %v835 = vmax.f32 %v680, 0.0
  %v836 = vmax.f32 %v683, 0.0
  %v837 = vmax.f32 %v688, 0.0
  %v838 = vmax.f32 %v691, 0.0
  %v839 = vmax.f32 %v696, 0.0
  %v840 = vmax.f32 %v699, 0.0
  %v841 = vmax.f32 %v704, 0.0
  %v842 = vmax.f32 %v707, 0.0
  %v843 = vmax.f32 %v712, 0.0
  %v844 = vmax.f32 %v715, 0.0
  %v845 = vmax.f32 %v720, 0.0
  %v846 = vmax.f32 %v723, 0.0
  %v847 = vmax.f32 %v728, 0.0
  %v848 = vmax.f32 %v731, 0.0
  %v849 = vmax.f32 %v736, 0.0
  %v850 = vmax.f32 %v739, 0.0
  %v851 = vmax.f32 %v744, 0.0
  %v852 = vmax.f32 %v747, 0.0
  %v853 = vmax.f32 %v752, 0.0
  %v854 = vmax.f32 %v755, 0.0
  %v855 = vmax.f32 %v760, 0.0
  %v856 = vmax.f32 %v763, 0.0
  %v857 = vmax.f32 %v768, 0.0
  %v858 = vmax.f32 %v771, 0.0
  %v859 = vmax.f32 %v776, 0.0
  %v860 = vmax.f32 %v779, 0.0
  %v861 = vmax.f32 %v784, 0.0
  %v862 = vmax.f32 %v787, 0.0
  %v863 = vmax.f32 %v792, 0.0
  %v864 = vmax.f32 %v795, 0.0
  %v865 = vmax.f32 %v800, 0.0
  %v866 = vpack.c.bf16 %v806, %v805
  %v867 = vpack.c.bf16 %v808, %v807
  %v868 = vpack.c.bf16 %v810, %v809
  %v869 = vpack.c.bf16 %v812, %v811
  %v870 = vpack.c.bf16 %v814, %v813
  %v871 = vpack.c.bf16 %v816, %v815
  %v872 = vpack.c.bf16 %v818, %v817
  %v873 = vpack.c.bf16 %v820, %v819
  %v874 = vpack.c.bf16 %v822, %v821
  %v875 = vpack.c.bf16 %v824, %v823
  %v876 = vpack.c.bf16 %v826, %v825
  %v877 = vpack.c.bf16 %v828, %v827
  %v878 = vpack.c.bf16 %v830, %v829
  %v879 = vpack.c.bf16 %v832, %v831
  %v880 = vpack.c.bf16 %v834, %v833
  %v881 = vpack.c.bf16 %v836, %v835
  %v882 = vpack.c.bf16 %v838, %v837
  %v883 = vpack.c.bf16 %v840, %v839
  %v884 = vpack.c.bf16 %v842, %v841
  %v885 = vpack.c.bf16 %v844, %v843
  %v886 = vpack.c.bf16 %v846, %v845
  %v887 = vpack.c.bf16 %v848, %v847
  %v888 = vpack.c.bf16 %v850, %v849
  %v889 = vpack.c.bf16 %v852, %v851
  %v890 = vpack.c.bf16 %v854, %v853
  %v891 = vpack.c.bf16 %v856, %v855
  %v892 = vpack.c.bf16 %v858, %v857
  %v893 = vpack.c.bf16 %v860, %v859
  %v894 = vpack.c.bf16 %v862, %v861
  %v895 = vpack.c.bf16 %v864, %v863
  %v896 = vpack.c.bf16 %v865, %v865
  %v928 = vunpack.c.l.b16 %v866
  %v929 = vunpack.c.h.b16 %v866
  %v930 = vunpack.c.l.b16 %v867
  %v931 = vunpack.c.h.b16 %v867
  %v932 = vunpack.c.l.b16 %v868
  %v933 = vunpack.c.h.b16 %v868
  %v934 = vunpack.c.l.b16 %v869
  %v935 = vunpack.c.h.b16 %v869
  %v936 = vunpack.c.l.b16 %v870
  %v937 = vunpack.c.h.b16 %v870
  %v938 = vunpack.c.l.b16 %v871
  %v939 = vunpack.c.h.b16 %v871
  %v940 = vunpack.c.l.b16 %v872
  %v941 = vunpack.c.h.b16 %v872
  %v942 = vunpack.c.l.b16 %v873
  %v943 = vunpack.c.h.b16 %v873
  %v944 = vunpack.c.l.b16 %v874
  %v945 = vunpack.c.h.b16 %v874
  %v946 = vunpack.c.l.b16 %v875
  %v947 = vunpack.c.h.b16 %v875
  %v948 = vunpack.c.l.b16 %v876
  %v949 = vunpack.c.h.b16 %v876
  %v950 = vunpack.c.l.b16 %v877
  %v951 = vunpack.c.h.b16 %v877
  %v952 = vunpack.c.l.b16 %v878
  %v953 = vunpack.c.h.b16 %v878
  %v954 = vunpack.c.l.b16 %v879
  %v955 = vunpack.c.h.b16 %v879
  %v956 = vunpack.c.l.b16 %v880
  %v957 = vunpack.c.h.b16 %v880
  %v958 = vunpack.c.l.b16 %v881
  %v959 = vunpack.c.h.b16 %v881
  %v960 = vunpack.c.l.b16 %v882
  %v961 = vunpack.c.h.b16 %v882
  %v962 = vunpack.c.l.b16 %v883
  %v963 = vunpack.c.h.b16 %v883
  %v964 = vunpack.c.l.b16 %v884
  %v965 = vunpack.c.h.b16 %v884
  %v966 = vunpack.c.l.b16 %v885
  %v967 = vunpack.c.h.b16 %v885
  %v968 = vunpack.c.l.b16 %v886
  %v969 = vunpack.c.h.b16 %v886
  %v970 = vunpack.c.l.b16 %v887
  %v971 = vunpack.c.h.b16 %v887
  %v972 = vunpack.c.l.b16 %v888
  %v973 = vunpack.c.h.b16 %v888
  %v974 = vunpack.c.l.b16 %v889
  %v975 = vunpack.c.h.b16 %v889
  %v976 = vunpack.c.l.b16 %v890
  %v977 = vunpack.c.h.b16 %v890
  %v978 = vunpack.c.l.b16 %v891
  %v979 = vunpack.c.h.b16 %v891
  %v980 = vunpack.c.l.b16 %v892
  %v981 = vunpack.c.h.b16 %v892
  %v982 = vunpack.c.l.b16 %v893
  %v983 = vunpack.c.h.b16 %v893
  %v984 = vunpack.c.l.b16 %v894
  %v985 = vunpack.c.h.b16 %v894
  %v986 = vunpack.c.l.b16 %v895
  %v987 = vunpack.c.h.b16 %v895
  %v988 = vunpack.c.l.b16 %v896
  %v989 = vpack.c.b16 %v928, %v928
  %v990 = vpack.c.b16 %v929, %v929
  %v991 = vpack.c.b16 %v930, %v930
  %v992 = vpack.c.b16 %v931, %v931
  %v993 = vpack.c.b16 %v932, %v932
  %v994 = vpack.c.b16 %v933, %v933
  %v995 = vpack.c.b16 %v934, %v934
  %v996 = vpack.c.b16 %v935, %v935
  %v997 = vpack.c.b16 %v936, %v936
  %v998 = vpack.c.b16 %v937, %v937
  %v999 = vpack.c.b16 %v938, %v938
  %v1000 = vpack.c.b16 %v939, %v939
  %v1001 = vpack.c.b16 %v940, %v940
  %v1002 = vpack.c.b16 %v941, %v941
  %v1003 = vpack.c.b16 %v942, %v942
  %v1004 = vpack.c.b16 %v943, %v943
  %v1005 = vpack.c.b16 %v944, %v944
  %v1006 = vpack.c.b16 %v945, %v945
  %v1007 = vpack.c.b16 %v946, %v946
  %v1008 = vpack.c.b16 %v947, %v947
  %v1009 = vpack.c.b16 %v948, %v948
  %v1010 = vpack.c.b16 %v949, %v949
  %v1011 = vpack.c.b16 %v950, %v950
  %v1012 = vpack.c.b16 %v951, %v951
  %v1013 = vpack.c.b16 %v952, %v952
  %v1014 = vpack.c.b16 %v953, %v953
  %v1015 = vpack.c.b16 %v954, %v954
  %v1016 = vpack.c.b16 %v955, %v955
  %v1017 = vpack.c.b16 %v956, %v956
  %v1018 = vpack.c.b16 %v957, %v957
  %v1019 = vpack.c.b16 %v958, %v958
  %v1020 = vpack.c.b16 %v959, %v959
  %v1021 = vpack.c.b16 %v960, %v960
  %v1022 = vpack.c.b16 %v961, %v961
  %v1023 = vpack.c.b16 %v962, %v962
  %v1024 = vpack.c.b16 %v963, %v963
  %v1025 = vpack.c.b16 %v964, %v964
  %v1026 = vpack.c.b16 %v965, %v965
  %v1027 = vpack.c.b16 %v966, %v966
  %v1028 = vpack.c.b16 %v967, %v967
  %v1029 = vpack.c.b16 %v968, %v968
  %v1030 = vpack.c.b16 %v969, %v969
  %v1031 = vpack.c.b16 %v970, %v970
  %v1032 = vpack.c.b16 %v971, %v971
  %v1033 = vpack.c.b16 %v972, %v972
  %v1034 = vpack.c.b16 %v973, %v973
  %v1035 = vpack.c.b16 %v974, %v974
  %v1036 = vpack.c.b16 %v975, %v975
  %v1037 = vpack.c.b16 %v976, %v976
  %v1038 = vpack.c.b16 %v977, %v977
  %v1039 = vpack.c.b16 %v978, %v978
  %v1040 = vpack.c.b16 %v979, %v979
  %v1041 = vpack.c.b16 %v980, %v980
  %v1042 = vpack.c.b16 %v981, %v981
  %v1043 = vpack.c.b16 %v982, %v982
  %v1044 = vpack.c.b16 %v983, %v983
  %v1045 = vpack.c.b16 %v984, %v984
  %v1046 = vpack.c.b16 %v985, %v985
  %v1047 = vpack.c.b16 %v986, %v986
  %v1048 = vpack.c.b16 %v987, %v987
  %v1049 = vpack.c.b16 %v988, %v988
  %vm1111 = vcmask 257024
  %1112 = vst.msk [vmem:[%s3] sm:$0xf] %vm1111, %v989
  %1113 = vst.msk [vmem:[%s3 + $0x4] sm:$0xf] %vm1111, %v990
  %1114 = vst.msk [vmem:[%s3 + $0x8] sm:$0xf] %vm1111, %v991
  %1115 = vst.msk [vmem:[%s3 + $0xc] sm:$0xf] %vm1111, %v992
  %1116 = vst.msk [vmem:[%s3 + $0x10] sm:$0xf] %vm1111, %v993
  %1117 = vst.msk [vmem:[%s3 + $0x14] sm:$0xf] %vm1111, %v994
  %1118 = vst.msk [vmem:[%s3 + $0x18] sm:$0xf] %vm1111, %v995
  %1119 = vst.msk [vmem:[%s3 + $0x1c] sm:$0xf] %vm1111, %v996
  %1120 = vst.msk [vmem:[%s3 + $0x20] sm:$0xf] %vm1111, %v997
  %1121 = vst.msk [vmem:[%s3 + $0x24] sm:$0xf] %vm1111, %v998
  %1122 = vst.msk [vmem:[%s3 + $0x28] sm:$0xf] %vm1111, %v999
  %1123 = vst.msk [vmem:[%s3 + $0x2c] sm:$0xf] %vm1111, %v1000
  %1124 = vst.msk [vmem:[%s3 + $0x30] sm:$0xf] %vm1111, %v1001
  %1125 = vst.msk [vmem:[%s3 + $0x34] sm:$0xf] %vm1111, %v1002
  %1126 = vst.msk [vmem:[%s3 + $0x38] sm:$0xf] %vm1111, %v1003
  %1127 = vst.msk [vmem:[%s3 + $0x3c] sm:$0xf] %vm1111, %v1004
  %1128 = vst.msk [vmem:[%s3 + $0x40] sm:$0xf] %vm1111, %v1005
  %1129 = vst.msk [vmem:[%s3 + $0x44] sm:$0xf] %vm1111, %v1006
  %1130 = vst.msk [vmem:[%s3 + $0x48] sm:$0xf] %vm1111, %v1007
  %1131 = vst.msk [vmem:[%s3 + $0x4c] sm:$0xf] %vm1111, %v1008
  %1132 = vst.msk [vmem:[%s3 + $0x50] sm:$0xf] %vm1111, %v1009
  %1133 = vst.msk [vmem:[%s3 + $0x54] sm:$0xf] %vm1111, %v1010
  %1134 = vst.msk [vmem:[%s3 + $0x58] sm:$0xf] %vm1111, %v1011
  %1135 = vst.msk [vmem:[%s3 + $0x5c] sm:$0xf] %vm1111, %v1012
  %1136 = vst.msk [vmem:[%s3 + $0x60] sm:$0xf] %vm1111, %v1013
  %1137 = vst.msk [vmem:[%s3 + $0x64] sm:$0xf] %vm1111, %v1014
  %1138 = vst.msk [vmem:[%s3 + $0x68] sm:$0xf] %vm1111, %v1015
  %1139 = vst.msk [vmem:[%s3 + $0x6c] sm:$0xf] %vm1111, %v1016
  %1140 = vst.msk [vmem:[%s3 + $0x70] sm:$0xf] %vm1111, %v1017
  %1141 = vst.msk [vmem:[%s3 + $0x74] sm:$0xf] %vm1111, %v1018
  %1142 = vst.msk [vmem:[%s3 + $0x78] sm:$0xf] %vm1111, %v1019
  %1143 = vst.msk [vmem:[%s3 + $0x7c] sm:$0xf] %vm1111, %v1020
  %1144 = vst.msk [vmem:[%s3 + $0x80] sm:$0xf] %vm1111, %v1021
  %1145 = vst.msk [vmem:[%s3 + $0x84] sm:$0xf] %vm1111, %v1022
  %1146 = vst.msk [vmem:[%s3 + $0x88] sm:$0xf] %vm1111, %v1023
  %1147 = vst.msk [vmem:[%s3 + $0x8c] sm:$0xf] %vm1111, %v1024
  %1148 = vst.msk [vmem:[%s3 + $0x90] sm:$0xf] %vm1111, %v1025
  %1149 = vst.msk [vmem:[%s3 + $0x94] sm:$0xf] %vm1111, %v1026
  %1150 = vst.msk [vmem:[%s3 + $0x98] sm:$0xf] %vm1111, %v1027
  %1151 = vst.msk [vmem:[%s3 + $0x9c] sm:$0xf] %vm1111, %v1028
  %1152 = vst.msk [vmem:[%s3 + $0xa0] sm:$0xf] %vm1111, %v1029
  %1153 = vst.msk [vmem:[%s3 + $0xa4] sm:$0xf] %vm1111, %v1030
  %1154 = vst.msk [vmem:[%s3 + $0xa8] sm:$0xf] %vm1111, %v1031
  %1155 = vst.msk [vmem:[%s3 + $0xac] sm:$0xf] %vm1111, %v1032
  %1156 = vst.msk [vmem:[%s3 + $0xb0] sm:$0xf] %vm1111, %v1033
  %1157 = vst.msk [vmem:[%s3 + $0xb4] sm:$0xf] %vm1111, %v1034
  %1158 = vst.msk [vmem:[%s3 + $0xb8] sm:$0xf] %vm1111, %v1035
  %1159 = vst.msk [vmem:[%s3 + $0xbc] sm:$0xf] %vm1111, %v1036
  %1160 = vst.msk [vmem:[%s3 + $0xc0] sm:$0xf] %vm1111, %v1037
  %1161 = vst.msk [vmem:[%s3 + $0xc4] sm:$0xf] %vm1111, %v1038
  %1162 = vst.msk [vmem:[%s3 + $0xc8] sm:$0xf] %vm1111, %v1039
  %1163 = vst.msk [vmem:[%s3 + $0xcc] sm:$0xf] %vm1111, %v1040
  %1164 = vst.msk [vmem:[%s3 + $0xd0] sm:$0xf] %vm1111, %v1041
  %1165 = vst.msk [vmem:[%s3 + $0xd4] sm:$0xf] %vm1111, %v1042
  %1166 = vst.msk [vmem:[%s3 + $0xd8] sm:$0xf] %vm1111, %v1043
  %1167 = vst.msk [vmem:[%s3 + $0xdc] sm:$0xf] %vm1111, %v1044
  %1168 = vst.msk [vmem:[%s3 + $0xe0] sm:$0xf] %vm1111, %v1045
  %1169 = vst.msk [vmem:[%s3 + $0xe4] sm:$0xf] %vm1111, %v1046
  %1170 = vst.msk [vmem:[%s3 + $0xe8] sm:$0xf] %vm1111, %v1047
  %1171 = vst.msk [vmem:[%s3 + $0xec] sm:$0xf] %vm1111, %v1048
  %1172 = vst.msk [vmem:[%s3 + $0xf0] sm:$0xf] %vm1111, %v1049
  // Predicated region
  $region14: #{two_tower_forward.5} parent=0 // pred_check
    _
  $region15: #{two_tower_forward.5} parent=0 // pred_check_branch
    %1174 = sbr.rel (0) target = $region17
  $region16: #{two_tower_forward.5} parent=0 // pred_region
    _
  $region17: #{two_tower_forward.5} parent=0 // pred_fallthru
    _
  // Predicated region
  $region18: #{two_tower_forward.5} parent=0 // pred_check
    _
  $region19: #{two_tower_forward.5} parent=0 // pred_check_branch
    %1176 = sbr.rel (0) target = $region21
  $region20: #{two_tower_forward.5} parent=0 // pred_region
    _
  $region21: #{two_tower_forward.5} parent=0 // pred_fallthru
    _

// kernel: two_tower_forward.6
$region0: #{two_tower_forward.6}
  #allocation0 [shape = 'u32[]', space=smem, size = 0x4, offset = 0x4, fixed_abs, tag = 'smem constant byte address 0x4 - core index']
  #allocation1 [shape = 'u32[144,128]{1,0:T(1,128)}', space=vmem, size = 0x12000, scoped, tag = 'internal scratch']
  %s0 = inlined_call_operand.vmem [shape: bf16[100,288], index: 0, kind: input, shape index: {}]
  %s1 = inlined_call_operand.vmem [shape: bf16[288,64], index: 1, kind: input, shape index: {}]
  %s2 = inlined_call_operand.vmem [shape: f32[1,64], index: 2, kind: input, shape index: {}]
  %s3 = inlined_call_operand.vmem [shape: bf16[100,64], index: 3, kind: output, shape index: {}]
  %s4 = sld [smem:[#allocation0]]
  $region22: #{two_tower_forward.6} parent=0
    _
  %s6 = ssub.s32 1, %s4
  %s7 = scalar_select 0, %s6, %s4
  // Predicated region
  $region2: #{two_tower_forward.6} parent=0 // pred_check
    _
  $region3: #{two_tower_forward.6} parent=0 // pred_check_branch
    %9 = sbr.rel (0) target = $region5
  $region4: #{two_tower_forward.6} parent=0 // pred_region
    _
  $region5: #{two_tower_forward.6} parent=0 // pred_fallthru
    _
  // Predicated region
  $region6: #{two_tower_forward.6} parent=0 // pred_check
    _
  $region7: #{two_tower_forward.6} parent=0 // pred_check_branch
    %11 = sbr.rel (0) target = $region9
  $region8: #{two_tower_forward.6} parent=0 // pred_region
    _
  $region9: #{two_tower_forward.6} parent=0 // pred_fallthru
    _
  // Predicated region
  $region10: #{two_tower_forward.6} parent=0 // pred_check
    _
  $region11: #{two_tower_forward.6} parent=0 // pred_check_branch
    %13 = sbr.rel (0) target = $region13
  $region12: #{two_tower_forward.6} parent=0 // pred_region
    _
  $region13: #{two_tower_forward.6} parent=0 // pred_fallthru
    _
  %v15 = vld [vmem:[%s0] sm:$0xff]
  %v16 = vld [vmem:[%s0 + $0x8] sm:$0xf]
  %v17 = vld [vmem:[%s0 + $0xc] sm:$0xff]
  %v18 = vld [vmem:[%s0 + $0x14] sm:$0xf]
  %v19 = vld [vmem:[%s0 + $0x18] sm:$0xff]
  %v20 = vld [vmem:[%s0 + $0x20] sm:$0xf]
  %v21 = vld [vmem:[%s0 + $0x24] sm:$0xff]
  %v22 = vld [vmem:[%s0 + $0x2c] sm:$0xf]
  %v23 = vld [vmem:[%s0 + $0x30] sm:$0xff]
  %v24 = vld [vmem:[%s0 + $0x38] sm:$0xf]
  %v25 = vld [vmem:[%s0 + $0x3c] sm:$0xff]
  %v26 = vld [vmem:[%s0 + $0x44] sm:$0xf]
  %v27 = vld [vmem:[%s0 + $0x48] sm:$0xff]
  %v28 = vld [vmem:[%s0 + $0x50] sm:$0xf]
  %v29 = vld [vmem:[%s0 + $0x54] sm:$0xff]
  %v30 = vld [vmem:[%s0 + $0x5c] sm:$0xf]
  %v31 = vld [vmem:[%s0 + $0x60] sm:$0xff]
  %v32 = vld [vmem:[%s0 + $0x68] sm:$0xf]
  %v33 = vld [vmem:[%s0 + $0x6c] sm:$0xff]
  %v34 = vld [vmem:[%s0 + $0x74] sm:$0xf]
  %v35 = vld [vmem:[%s0 + $0x78] sm:$0xff]
  %v36 = vld [vmem:[%s0 + $0x80] sm:$0xf]
  %v37 = vld [vmem:[%s0 + $0x84] sm:$0xff]
  %v38 = vld [vmem:[%s0 + $0x8c] sm:$0xf]
  %v39 = vld [vmem:[%s0 + $0x90] sm:$0xff]
  %v40 = vld [vmem:[%s0 + $0x98] sm:$0xf]
  %v41 = vld [vmem:[%s1] sm:$0xf]
  %v42 = vld [vmem:[%s1 + $0x4] sm:$0xf]
  %v43 = vld [vmem:[%s1 + $0x8] sm:$0xf]
  %v44 = vld [vmem:[%s1 + $0xc] sm:$0xf]
  %v45 = vld [vmem:[%s1 + $0x10] sm:$0xf]
  %v46 = vld [vmem:[%s1 + $0x14] sm:$0xf]
  %v47 = vld [vmem:[%s1 + $0x18] sm:$0xf]
  %v48 = vld [vmem:[%s1 + $0x1c] sm:$0xf]
  %v49 = vld [vmem:[%s1 + $0x20] sm:$0xf]
  %v50 = vld [vmem:[%s1 + $0x24] sm:$0xf]
  %v51 = vld [vmem:[%s1 + $0x28] sm:$0xf]
  %v52 = vld [vmem:[%s1 + $0x2c] sm:$0xf]
  %v53 = vld [vmem:[%s1 + $0x30] sm:$0xf]
  %v54 = vld [vmem:[%s1 + $0x34] sm:$0xf]
  %v55 = vld [vmem:[%s1 + $0x38] sm:$0xf]
  %v56 = vld [vmem:[%s1 + $0x3c] sm:$0xf]
  %v57 = vld [vmem:[%s1 + $0x40] sm:$0xf]
  %v58 = vld [vmem:[%s1 + $0x44] sm:$0xf]
  %v59 = vld [vmem:[%s1 + $0x48] sm:$0xf]
  %v60 = vld [vmem:[%s1 + $0x4c] sm:$0xf]
  %v61 = vld [vmem:[%s1 + $0x50] sm:$0xf]
  %v62 = vld [vmem:[%s1 + $0x54] sm:$0xf]
  %v63 = vld [vmem:[%s1 + $0x58] sm:$0xf]
  %v64 = vld [vmem:[%s1 + $0x5c] sm:$0xf]
  %v65 = vld [vmem:[%s1 + $0x60] sm:$0xf]
  %v66 = vld [vmem:[%s1 + $0x64] sm:$0xf]
  %v67 = vld [vmem:[%s1 + $0x68] sm:$0xf]
  %v68 = vld [vmem:[%s1 + $0x6c] sm:$0xf]
  %v69 = vld [vmem:[%s1 + $0x70] sm:$0xf]
  %v70 = vld [vmem:[%s1 + $0x74] sm:$0xf]
  %v71 = vld [vmem:[%s1 + $0x78] sm:$0xf]
  %v72 = vld [vmem:[%s1 + $0x7c] sm:$0xf]
  %v73 = vld [vmem:[%s1 + $0x80] sm:$0xf]
  %v74 = vld [vmem:[%s1 + $0x84] sm:$0xf]
  %v75 = vld [vmem:[%s1 + $0x88] sm:$0xf]
  %v76 = vld [vmem:[%s1 + $0x8c] sm:$0xf]
  %v77 = vld [vmem:[%s2] sm:$0x1]
  %v79 = vlaneseq
  %v80 = vshrl.u32 %v79, 7
  %v81 = vsub.s32 0, %v80
  %v82 = vrot.slane %v77, %v81
  %v110 = vunpack.c.l.b16 %v15
  %v111 = vunpack.c.h.b16 %v15
  %v112 = vunpack.c.l.b16 %v16
  %v113 = vunpack.c.l.b16 %v17
  %v114 = vunpack.c.h.b16 %v17
  %v115 = vunpack.c.l.b16 %v18
  %v116 = vunpack.c.l.b16 %v19
  %v117 = vunpack.c.h.b16 %v19
  %v118 = vunpack.c.l.b16 %v20
  %v119 = vunpack.c.l.b16 %v21
  %v120 = vunpack.c.h.b16 %v21
  %v121 = vunpack.c.l.b16 %v22
  %v122 = vunpack.c.l.b16 %v23
  %v123 = vunpack.c.h.b16 %v23
  %v124 = vunpack.c.l.b16 %v24
  %v125 = vunpack.c.l.b16 %v25
  %v126 = vunpack.c.h.b16 %v25
  %v127 = vunpack.c.l.b16 %v26
  %v128 = vunpack.c.l.b16 %v27
  %v129 = vunpack.c.h.b16 %v27
  %v130 = vunpack.c.l.b16 %v28
  %v131 = vunpack.c.l.b16 %v29
  %v132 = vunpack.c.h.b16 %v29
  %v133 = vunpack.c.l.b16 %v30
  %v134 = vunpack.c.l.b16 %v31
  %v135 = vunpack.c.h.b16 %v31
  %v136 = vunpack.c.l.b16 %v32
  %v137 = vunpack.c.l.b16 %v33
  %v138 = vunpack.c.h.b16 %v33
  %v139 = vunpack.c.l.b16 %v34
  %v140 = vunpack.c.l.b16 %v35
  %v141 = vunpack.c.h.b16 %v35
  %v142 = vunpack.c.l.b16 %v36
  %v143 = vunpack.c.l.b16 %v37
  %v144 = vunpack.c.h.b16 %v37
  %v145 = vunpack.c.l.b16 %v38
  %v146 = vunpack.c.l.b16 %v39
  %v147 = vunpack.c.h.b16 %v39
  %v148 = vunpack.c.l.b16 %v40
  %v149 = vpack.c.b16 %v113, %v110
  %v150 = vpack.c.b16 %v114, %v111
  %v151 = vpack.c.b16 %v115, %v112
  %v152 = vpack.c.b16 %v119, %v116
  %v153 = vpack.c.b16 %v120, %v117
  %v154 = vpack.c.b16 %v121, %v118
  %v155 = vpack.c.b16 %v125, %v122
  %v156 = vpack.c.b16 %v126, %v123
  %v157 = vpack.c.b16 %v127, %v124
  %v158 = vpack.c.b16 %v131, %v128
  %v159 = vpack.c.b16 %v132, %v129
  %v160 = vpack.c.b16 %v133, %v130
  %v161 = vpack.c.b16 %v137, %v134
  %v162 = vpack.c.b16 %v138, %v135
  %v163 = vpack.c.b16 %v139, %v136
  %v164 = vpack.c.b16 %v143, %v140
  %v165 = vpack.c.b16 %v144, %v141
  %v166 = vpack.c.b16 %v145, %v142
  %v167 = vpack.c.b16 %v146, %v146
  %v168 = vpack.c.b16 %v147, %v147
  %v169 = vpack.c.b16 %v148, %v148
  %v220 = vunpack.c.l.b16 %v41
  %v221 = vunpack.c.l.b16 %v42
  %v222 = vunpack.c.l.b16 %v43
  %v223 = vunpack.c.l.b16 %v44
  %v224 = vunpack.c.l.b16 %v45
  %v225 = vunpack.c.l.b16 %v46
  %v226 = vunpack.c.l.b16 %v47
  %v227 = vunpack.c.l.b16 %v48
  %v228 = vunpack.c.l.b16 %v49
  %v229 = vunpack.c.l.b16 %v50
  %v230 = vunpack.c.l.b16 %v51
  %v231 = vunpack.c.l.b16 %v52
  %v232 = vunpack.c.l.b16 %v53
  %v233 = vunpack.c.l.b16 %v54
  %v234 = vunpack.c.l.b16 %v55
  %v235 = vunpack.c.l.b16 %v56
  %v236 = vunpack.c.l.b16 %v57
  %v237 = vunpack.c.l.b16 %v58
  %v238 = vunpack.c.l.b16 %v59
  %v239 = vunpack.c.l.b16 %v60
  %v240 = vunpack.c.l.b16 %v61
  %v241 = vunpack.c.l.b16 %v62
  %v242 = vunpack.c.l.b16 %v63
  %v243 = vunpack.c.l.b16 %v64
  %v244 = vunpack.c.l.b16 %v65
  %v245 = vunpack.c.l.b16 %v66
  %v246 = vunpack.c.l.b16 %v67
  %v247 = vunpack.c.l.b16 %v68
  %v248 = vunpack.c.l.b16 %v69
  %v249 = vunpack.c.l.b16 %v70
  %v250 = vunpack.c.l.b16 %v71
  %v251 = vunpack.c.l.b16 %v72
  %v252 = vunpack.c.l.b16 %v73
  %v253 = vunpack.c.l.b16 %v74
  %v254 = vunpack.c.l.b16 %v75
  %v255 = vunpack.c.l.b16 %v76
  %v256 = vpack.c.b16 %v221, %v220
  %v257 = vpack.c.b16 %v223, %v222
  %v258 = vpack.c.b16 %v225, %v224
  %v259 = vpack.c.b16 %v227, %v226
  %v260 = vpack.c.b16 %v229, %v228
  %v261 = vpack.c.b16 %v231, %v230
  %v262 = vpack.c.b16 %v233, %v232
  %v263 = vpack.c.b16 %v235, %v234
  %v264 = vpack.c.b16 %v237, %v236
  %v265 = vpack.c.b16 %v239, %v238
  %v266 = vpack.c.b16 %v241, %v240
  %v267 = vpack.c.b16 %v243, %v242
  %v268 = vpack.c.b16 %v245, %v244
  %v269 = vpack.c.b16 %v247, %v246
  %v270 = vpack.c.b16 %v249, %v248
  %v271 = vpack.c.b16 %v251, %v250
  %v272 = vpack.c.b16 %v253, %v252
  %v273 = vpack.c.b16 %v255, %v254
  %vm292 = vcmask 261120
  %v294 = vsel %vm292, %v151, 0
  %v297 = vsel %vm292, %v154, 0
  %v300 = vsel %vm292, %v157, 0
  %v303 = vsel %vm292, %v160, 0
  %v306 = vsel %vm292, %v163, 0
  %v309 = vsel %vm292, %v166, 0
  %v312 = vsel %vm292, %v169, 0
  %314 = vmatprep.subr.bf16.mxu0 0
  %315 = vmatpush1.bf16.msra.mxu0 %v256
  %316 = vmatprep.subr.bf16.mxu0 0
  %317 = vmatpush1.bf16.msra.mxu0 %v257
  %318 = vmatprep.subr.bf16.mxu0 0
  %319 = vmatpush1.bf16.msra.mxu0 %v258
  %320 = vmatprep.subr.bf16.mxu0 0
  %321 = vmatpush1.bf16.msra.mxu0 %v259
  %322 = vmatprep.subr.bf16.mxu0 0
  %323 = vmatpush1.bf16.msra.mxu0 %v260
  %324 = vmatprep.subr.bf16.mxu0 0
  %325 = vmatpush1.bf16.msra.mxu0 %v261
  %326 = vmatprep.subr.bf16.mxu0 0
  %327 = vmatpush1.bf16.msra.mxu0 %v262
  %328 = vmatprep.subr.bf16.mxu0 0
  %329 = vmatpush1.bf16.msra.mxu0 %v263
  %330 = vmatprep.subr.bf16.mxu0 0
  %331 = vmatpush1.bf16.msra.mxu0 %v264
  %332 = vmatprep.subr.bf16.mxu0 0
  %333 = vmatpush1.bf16.msra.mxu0 %v265
  %334 = vmatprep.subr.bf16.mxu0 0
  %335 = vmatpush1.bf16.msra.mxu0 %v266
  %336 = vmatprep.subr.bf16.mxu0 0
  %337 = vmatpush1.bf16.msra.mxu0 %v267
  %338 = vmatprep.subr.bf16.mxu0 0
  %339 = vmatpush1.bf16.msra.mxu0 %v268
  %340 = vmatprep.subr.bf16.mxu0 0
  %341 = vmatpush1.bf16.msra.mxu0 %v269
  %342 = vmatprep.subr.bf16.mxu0 0
  %343 = vmatpush1.bf16.msra.mxu0 %v270
  %344 = vmatprep.subr.bf16.mxu0 0
  %345 = vmatpush1.bf16.msra.mxu0 %v271
  %346 = vmatprep.mubr.bf16.mxu0 %v150
  %347 = vmatmul.mubr.bf16.gmra.mrb[0].mxu0 %v149
  %v348 = vpop.f32.mrb[0].mxu0
  %v349 = vadd.f32 %v82, %v348
  %v350 = vpop.f32.mrb[0].mxu0
  %v351 = vpop.f32.mrb[0].mxu0
  %v352 = vadd.f32 %v82, %v351
  %v353 = vpop.f32.mrb[0].mxu0
  %354 = vmatprep.mubr.bf16.mxu0 %v153
  %355 = vmatmul.mubr.bf16.gmra.mrb[0].mxu0 %v152
  %v356 = vpop.f32.mrb[0].mxu0
  %v357 = vadd.f32 %v82, %v356
  %v358 = vpop.f32.mrb[0].mxu0
  %v359 = vpop.f32.mrb[0].mxu0
  %v360 = vadd.f32 %v82, %v359
  %v361 = vpop.f32.mrb[0].mxu0
  %362 = vmatprep.mubr.bf16.mxu0 %v156
  %363 = vmatmul.mubr.bf16.gmra.mrb[0].mxu0 %v155
  %v364 = vpop.f32.mrb[0].mxu0
  %v365 = vadd.f32 %v82, %v364
  %v366 = vpop.f32.mrb[0].mxu0
  %v367 = vpop.f32.mrb[0].mxu0
  %v368 = vadd.f32 %v82, %v367
  %v369 = vpop.f32.mrb[0].mxu0
  %370 = vmatprep.mubr.bf16.mxu0 %v159
  %371 = vmatmul.mubr.bf16.gmra.mrb[0].mxu0 %v158
  %v372 = vpop.f32.mrb[0].mxu0
  %v373 = vadd.f32 %v82, %v372
  %v374 = vpop.f32.mrb[0].mxu0
  %v375 = vpop.f32.mrb[0].mxu0
  %v376 = vadd.f32 %v82, %v375
  %v377 = vpop.f32.mrb[0].mxu0
  %378 = vmatprep.mubr.bf16.mxu0 %v162
  %379 = vmatmul.mubr.bf16.gmra.mrb[0].mxu0 %v161
  %v380 = vpop.f32.mrb[0].mxu0
  %v381 = vadd.f32 %v82, %v380
  %v382 = vpop.f32.mrb[0].mxu0
  %v383 = vpop.f32.mrb[0].mxu0
  %v384 = vadd.f32 %v82, %v383
  %v385 = vpop.f32.mrb[0].mxu0
  %386 = vmatprep.mubr.bf16.mxu0 %v165
  %387 = vmatmul.mubr.bf16.gmra.mrb[0].mxu0 %v164
  %v388 = vpop.f32.mrb[0].mxu0
  %v389 = vadd.f32 %v82, %v388
  %v390 = vpop.f32.mrb[0].mxu0
  %v391 = vpop.f32.mrb[0].mxu0
  %v392 = vadd.f32 %v82, %v391
  %v393 = vpop.f32.mrb[0].mxu0
  %394 = vmatprep.mubr.bf16.mxu0 %v168
  %395 = vmatmul.mubr.bf16.gmra.mrb[0].mxu0 %v167
  %v396 = vpop.f32.mrb[0].mxu0
  %v397 = vadd.f32 %v82, %v396
  %v398 = vpop.f32.mrb[0].mxu0
  %v399 = vpop.f32.mrb[0].mxu0
  %v400 = vpop.f32.mrb[0].mxu0
  %401 = vdwg.mxu0
  %402 = vmatprep.subr.bf16.mxu0 0
  %403 = vmatpush1.bf16.msra.mxu0 %v272
  %404 = vmatprep.subr.bf16.mxu0 0
  %405 = vmatpush1.bf16.msra.mxu0 %v273
  %406 = vmatprep.subr.bf16.mxu0 0
  %407 = vmatpush1.bf16.msra.mxu0 0
  %408 = vmatprep.subr.bf16.mxu0 0
  %409 = vmatpush1.bf16.msra.mxu0 0
  %410 = vmatprep.subr.bf16.mxu0 0
  %411 = vmatpush1.bf16.msra.mxu0 0
  %412 = vmatprep.subr.bf16.mxu0 0
  %413 = vmatpush1.bf16.msra.mxu0 0
  %414 = vmatprep.subr.bf16.mxu0 0
  %415 = vmatpush1.bf16.msra.mxu0 0
  %416 = vmatprep.subr.bf16.mxu0 0
  %417 = vmatpush1.bf16.msra.mxu0 0
  %418 = vmatprep.subr.bf16.mxu0 0
  %419 = vmatpush1.bf16.msra.mxu0 0
  %420 = vmatprep.subr.bf16.mxu0 0
  %421 = vmatpush1.bf16.msra.mxu0 0
  %422 = vmatprep.subr.bf16.mxu0 0
  %423 = vmatpush1.bf16.msra.mxu0 0
  %424 = vmatprep.subr.bf16.mxu0 0
  %425 = vmatpush1.bf16.msra.mxu0 0
  %426 = vmatprep.subr.bf16.mxu0 0
  %427 = vmatpush1.bf16.msra.mxu0 0
  %428 = vmatprep.subr.bf16.mxu0 0
  %429 = vmatpush1.bf16.msra.mxu0 0
  %430 = vmatprep.subr.bf16.mxu0 0
  %431 = vmatpush1.bf16.msra.mxu0 0
  %432 = vmatprep.subr.bf16.mxu0 0
  %433 = vmatpush1.bf16.msra.mxu0 0
  %434 = vmatprep.mubr.bf16.mxu0 0
  %435 = vmatmul.mubr.bf16.gmra.mrb[0].mxu0 %v294
  %v436 = vpop.f32.mrb[0].mxu0
  %v437 = vadd.f32 %v349, %v436
  %v438 = vpop.f32.mrb[0].mxu0
  %v439 = vpop.f32.mrb[0].mxu0
  %v440 = vadd.f32 %v352, %v439
  %v441 = vpop.f32.mrb[0].mxu0
  %442 = vmatprep.mubr.bf16.mxu0 0
  %443 = vmatmul.mubr.bf16.gmra.mrb[0].mxu0 %v297
  %v444 = vpop.f32.mrb[0].mxu0
  %v445 = vadd.f32 %v357, %v444
  %v446 = vpop.f32.mrb[0].mxu0
  %v447 = vpop.f32.mrb[0].mxu0
  %v448 = vadd.f32 %v360, %v447
  %v449 = vpop.f32.mrb[0].mxu0
  %450 = vmatprep.mubr.bf16.mxu0 0
  %451 = vmatmul.mubr.bf16.gmra.mrb[0].mxu0 %v300
  %v452 = vpop.f32.mrb[0].mxu0
  %v453 = vadd.f32 %v365, %v452
  %v454 = vpop.f32.mrb[0].mxu0
  %v455 = vpop.f32.mrb[0].mxu0
  %v456 = vadd.f32 %v368, %v455
  %v457 = vpop.f32.mrb[0].mxu0
  %458 = vmatprep.mubr.bf16.mxu0 0
  %459 = vmatmul.mubr.bf16.gmra.mrb[0].mxu0 %v303
  %v460 = vpop.f32.mrb[0].mxu0
  %v461 = vadd.f32 %v373, %v460
  %v462 = vpop.f32.mrb[0].mxu0
  %v463 = vpop.f32.mrb[0].mxu0
  %v464 = vadd.f32 %v376, %v463
  %v465 = vpop.f32.mrb[0].mxu0
  %466 = vmatprep.mubr.bf16.mxu0 0
  %467 = vmatmul.mubr.bf16.gmra.mrb[0].mxu0 %v306
  %v468 = vpop.f32.mrb[0].mxu0
  %v469 = vadd.f32 %v381, %v468
  %v470 = vpop.f32.mrb[0].mxu0
  %v471 = vpop.f32.mrb[0].mxu0
  %v472 = vadd.f32 %v384, %v471
  %v473 = vpop.f32.mrb[0].mxu0
  %474 = vmatprep.mubr.bf16.mxu0 0
  %475 = vmatmul.mubr.bf16.gmra.mrb[0].mxu0 %v309
  %v476 = vpop.f32.mrb[0].mxu0
  %v477 = vadd.f32 %v389, %v476
  %v478 = vpop.f32.mrb[0].mxu0
  %v479 = vpop.f32.mrb[0].mxu0
  %v480 = vadd.f32 %v392, %v479
  %v481 = vpop.f32.mrb[0].mxu0
  %482 = vmatprep.mubr.bf16.mxu0 0
  %483 = vmatmul.mubr.bf16.gmra.mrb[0].mxu0 %v312
  %v484 = vpop.f32.mrb[0].mxu0
  %v485 = vadd.f32 %v397, %v484
  %v486 = vpop.f32.mrb[0].mxu0
  %v487 = vpop.f32.mrb[0].mxu0
  %v488 = vpop.f32.mrb[0].mxu0
  %489 = vdwg.mxu0
  %v490 = vmax.f32 %v437, 0.0
  %v491 = vmax.f32 %v440, 0.0
  %v492 = vmax.f32 %v445, 0.0
  %v493 = vmax.f32 %v448, 0.0
  %v494 = vmax.f32 %v453, 0.0
  %v495 = vmax.f32 %v456, 0.0
  %v496 = vmax.f32 %v461, 0.0
  %v497 = vmax.f32 %v464, 0.0
  %v498 = vmax.f32 %v469, 0.0
  %v499 = vmax.f32 %v472, 0.0
  %v500 = vmax.f32 %v477, 0.0
  %v501 = vmax.f32 %v480, 0.0
  %v502 = vmax.f32 %v485, 0.0
  %v503 = vpack.c.bf16 %v491, %v490
  %v504 = vpack.c.bf16 %v493, %v492
  %v505 = vpack.c.bf16 %v495, %v494
  %v506 = vpack.c.bf16 %v497, %v496
  %v507 = vpack.c.bf16 %v499, %v498
  %v508 = vpack.c.bf16 %v501, %v500
  %v509 = vpack.c.bf16 %v502, %v502
  %v517 = vunpack.c.l.b16 %v503
  %v518 = vunpack.c.h.b16 %v503
  %v519 = vunpack.c.l.b16 %v504
  %v520 = vunpack.c.h.b16 %v504
  %v521 = vunpack.c.l.b16 %v505
  %v522 = vunpack.c.h.b16 %v505
  %v523 = vunpack.c.l.b16 %v506
  %v524 = vunpack.c.h.b16 %v506
  %v525 = vunpack.c.l.b16 %v507
  %v526 = vunpack.c.h.b16 %v507
  %v527 = vunpack.c.l.b16 %v508
  %v528 = vunpack.c.h.b16 %v508
  %v529 = vunpack.c.l.b16 %v509
  %v530 = vpack.c.b16 %v517, %v517
  %v531 = vpack.c.b16 %v518, %v518
  %v532 = vpack.c.b16 %v519, %v519
  %v533 = vpack.c.b16 %v520, %v520
  %v534 = vpack.c.b16 %v521, %v521
  %v535 = vpack.c.b16 %v522, %v522
  %v536 = vpack.c.b16 %v523, %v523
  %v537 = vpack.c.b16 %v524, %v524
  %v538 = vpack.c.b16 %v525, %v525
  %v539 = vpack.c.b16 %v526, %v526
  %v540 = vpack.c.b16 %v527, %v527
  %v541 = vpack.c.b16 %v528, %v528
  %v542 = vpack.c.b16 %v529, %v529
  %vm556 = vcmask 519168
  %557 = vst.msk [vmem:[%s3] sm:$0xf] %vm556, %v530
  %558 = vst.msk [vmem:[%s3 + $0x4] sm:$0xf] %vm556, %v531
  %559 = vst.msk [vmem:[%s3 + $0x8] sm:$0xf] %vm556, %v532
  %560 = vst.msk [vmem:[%s3 + $0xc] sm:$0xf] %vm556, %v533
  %561 = vst.msk [vmem:[%s3 + $0x10] sm:$0xf] %vm556, %v534
  %562 = vst.msk [vmem:[%s3 + $0x14] sm:$0xf] %vm556, %v535
  %563 = vst.msk [vmem:[%s3 + $0x18] sm:$0xf] %vm556, %v536
  %564 = vst.msk [vmem:[%s3 + $0x1c] sm:$0xf] %vm556, %v537
  %565 = vst.msk [vmem:[%s3 + $0x20] sm:$0xf] %vm556, %v538
  %566 = vst.msk [vmem:[%s3 + $0x24] sm:$0xf] %vm556, %v539
  %567 = vst.msk [vmem:[%s3 + $0x28] sm:$0xf] %vm556, %v540
  %568 = vst.msk [vmem:[%s3 + $0x2c] sm:$0xf] %vm556, %v541
  %569 = vst.msk [vmem:[%s3 + $0x30] sm:$0xf] %vm556, %v542
  // Predicated region
  $region14: #{two_tower_forward.6} parent=0 // pred_check
    _
  $region15: #{two_tower_forward.6} parent=0 // pred_check_branch
    %571 = sbr.rel (0) target = $region17
  $region16: #{two_tower_forward.6} parent=0 // pred_region
    _
  $region17: #{two_tower_forward.6} parent=0 // pred_fallthru
    _
  // Predicated region
  $region18: #{two_tower_forward.6} parent=0 // pred_check
    _
  $region19: #{two_tower_forward.6} parent=0 // pred_check_branch
    %573 = sbr.rel (0) target = $region21
  $region20: #{two_tower_forward.6} parent=0 // pred_region
    _
  $region21: #{two_tower_forward.6} parent=0 // pred_fallthru
    _

// kernel: two_tower_forward.7
$region0: #{two_tower_forward.7}
  #allocation0 [shape = 'u32[]', space=smem, size = 0x4, offset = 0x4, fixed_abs, tag = 'smem constant byte address 0x4 - core index']
  #allocation1 [shape = 'u32[144,128]{1,0:T(1,128)}', space=vmem, size = 0x12000, scoped, tag = 'internal scratch']
  %s0 = inlined_call_operand.vmem [shape: bf16[2,2,1600], index: 0, kind: input, shape index: {}]
  %s1 = inlined_call_operand.vmem [shape: f32[2,1], index: 1, kind: input, shape index: {}]
  %s2 = inlined_call_operand.vmem [shape: bf16[1600,288], index: 2, kind: input, shape index: {}]
  %s3 = inlined_call_operand.vmem [shape: bf16[1600,288], index: 3, kind: input, shape index: {}]
  %s4 = inlined_call_operand.vmem [shape: f32[1,288], index: 4, kind: input, shape index: {}]
  %s5 = inlined_call_operand.vmem [shape: f32[1,288], index: 5, kind: input, shape index: {}]
  %s6 = inlined_call_operand.vmem [shape: bf16[288,144], index: 6, kind: input, shape index: {}]
  %s7 = inlined_call_operand.vmem [shape: f32[1,144], index: 7, kind: input, shape index: {}]
  %s8 = inlined_call_operand.vmem [shape: bf16[144,10], index: 8, kind: input, shape index: {}]
  %s9 = inlined_call_operand.vmem [shape: f32[1,10], index: 9, kind: input, shape index: {}]
  %s10 = inlined_call_operand.hbm [shape: f32[2,10], index: 10, kind: output, shape index: {}]
  %s11 = sld [smem:[#allocation0]]
  $region50: #{two_tower_forward.7} parent=0
    _
  %s13 = ssub.s32 1, %s11
  %s14 = scalar_select 0, %s13, %s11
  $region1: #{two_tower_forward.7} parent=0
    #allocation2 [shape = 'u8[1024]{0}', space=vmem, size = 0x400, scoped, tag = 'output window, operand 0, single buffered']
    #allocation3 [shape = 's32[1]{0}', space=sflag, size = 0x4, scoped, tag = 'scoped memory for two_tower_forward.7']
    %15 = vsyncpa [#allocation3], 0
    // Predicated region
    $region2: #{two_tower_forward.7} parent=1 // pred_check
      _
    $region3: #{two_tower_forward.7} parent=1 // pred_check_branch
      %17 = sbr.rel (0) target = $region5
    $region4: #{two_tower_forward.7} parent=1 // pred_region
      _
    $region5: #{two_tower_forward.7} parent=1 // pred_fallthru
      _
    // Predicated region
    $region6: #{two_tower_forward.7} parent=1 // pred_check
      _
    $region7: #{two_tower_forward.7} parent=1 // pred_check_branch
      %19 = sbr.rel (0) target = $region9
    $region8: #{two_tower_forward.7} parent=1 // pred_region
      _
    $region9: #{two_tower_forward.7} parent=1 // pred_fallthru
      _
    // Predicated region
    $region10: #{two_tower_forward.7} parent=1 // pred_check
      _
    $region11: #{two_tower_forward.7} parent=1 // pred_check_branch
      %21 = sbr.rel (0) target = $region13
    $region12: #{two_tower_forward.7} parent=1 // pred_region
      _
    $region13: #{two_tower_forward.7} parent=1 // pred_fallthru
      _
    // Predicated region
    $region14: #{two_tower_forward.7} parent=1 // pred_check
      _
    $region15: #{two_tower_forward.7} parent=1 // pred_check_branch
      %23 = sbr.rel (0) target = $region17
    $region16: #{two_tower_forward.7} parent=1 // pred_region
      _
    $region17: #{two_tower_forward.7} parent=1 // pred_fallthru
      _
    // Predicated region
    $region18: #{two_tower_forward.7} parent=1 // pred_check
      _
    $region19: #{two_tower_forward.7} parent=1 // pred_check_branch
      %25 = sbr.rel (0) target = $region21
    $region20: #{two_tower_forward.7} parent=1 // pred_region
      _
    $region21: #{two_tower_forward.7} parent=1 // pred_fallthru
      _
    // Predicated region
    $region22: #{two_tower_forward.7} parent=1 // pred_check
      _
    $region23: #{two_tower_forward.7} parent=1 // pred_check_branch
      %27 = sbr.rel (0) target = $region25
    $region24: #{two_tower_forward.7} parent=1 // pred_region
      _
    $region25: #{two_tower_forward.7} parent=1 // pred_fallthru
      _
    // Predicated region
    $region26: #{two_tower_forward.7} parent=1 // pred_check
      _
    $region27: #{two_tower_forward.7} parent=1 // pred_check_branch
      %29 = sbr.rel (0) target = $region29
    $region28: #{two_tower_forward.7} parent=1 // pred_region
      _
    $region29: #{two_tower_forward.7} parent=1 // pred_fallthru
      _
    // Predicated region
    $region30: #{two_tower_forward.7} parent=1 // pred_check
      _
    $region31: #{two_tower_forward.7} parent=1 // pred_check_branch
      %31 = sbr.rel (0) target = $region33
    $region32: #{two_tower_forward.7} parent=1 // pred_region
      _
    $region33: #{two_tower_forward.7} parent=1 // pred_fallthru
      _
    // Predicated region
    $region34: #{two_tower_forward.7} parent=1 // pred_check
      _
    $region35: #{two_tower_forward.7} parent=1 // pred_check_branch
      %33 = sbr.rel (0) target = $region37
    $region36: #{two_tower_forward.7} parent=1 // pred_region
      _
    $region37: #{two_tower_forward.7} parent=1 // pred_fallthru
      _
    // Predicated region
    $region38: #{two_tower_forward.7} parent=1 // pred_check
      _
    $region39: #{two_tower_forward.7} parent=1 // pred_check_branch
      %35 = sbr.rel (0) target = $region41
    $region40: #{two_tower_forward.7} parent=1 // pred_region
      _
    $region41: #{two_tower_forward.7} parent=1 // pred_fallthru
      _
    %v37 = vld [vmem:[%s0] sm:$0xff]
    %v38 = vld [vmem:[%s0 + $0x8] sm:$0x1f]
    %s39 = scalar_lea.vmem %s0, 13
    %v40 = vld [vmem:[%s39] sm:$0xff]
    %v41 = vld [vmem:[%s39 + $0x8] sm:$0x1f]
    %v42 = vld [vmem:[%s2] sm:$0xff]
    %v43 = vld [vmem:[%s2 + $0x8] sm:$0xf]
    %v44 = vld [vmem:[%s2 + $0xc] sm:$0xff]
    %v45 = vld [vmem:[%s2 + $0x14] sm:$0xf]
    %v46 = vld [vmem:[%s2 + $0x18] sm:$0xff]
    %v47 = vld [vmem:[%s2 + $0x20] sm:$0xf]
    %v48 = vld [vmem:[%s2 + $0x24] sm:$0xff]
    %v49 = vld [vmem:[%s2 + $0x2c] sm:$0xf]
    %v50 = vld [vmem:[%s2 + $0x30] sm:$0xff]
    %v51 = vld [vmem:[%s2 + $0x38] sm:$0xf]
    %v52 = vld [vmem:[%s2 + $0x3c] sm:$0xff]
    %v53 = vld [vmem:[%s2 + $0x44] sm:$0xf]
    %v54 = vld [vmem:[%s2 + $0x48] sm:$0xff]
    %v55 = vld [vmem:[%s2 + $0x50] sm:$0xf]
    %v56 = vld [vmem:[%s2 + $0x54] sm:$0xff]
    %v57 = vld [vmem:[%s2 + $0x5c] sm:$0xf]
    %v58 = vld [vmem:[%s2 + $0x60] sm:$0xff]
    %v59 = vld [vmem:[%s2 + $0x68] sm:$0xf]
    %v60 = vld [vmem:[%s2 + $0x6c] sm:$0xff]
    %v61 = vld [vmem:[%s2 + $0x74] sm:$0xf]
    %v62 = vld [vmem:[%s2 + $0x78] sm:$0xff]
    %v63 = vld [vmem:[%s2 + $0x80] sm:$0xf]
    %v64 = vld [vmem:[%s2 + $0x84] sm:$0xff]
    %v65 = vld [vmem:[%s2 + $0x8c] sm:$0xf]
    %v66 = vld [vmem:[%s2 + $0x90] sm:$0xff]
    %v67 = vld [vmem:[%s2 + $0x98] sm:$0xf]
    %v68 = vld [vmem:[%s2 + $0x9c] sm:$0xff]
    %v69 = vld [vmem:[%s2 + $0xa4] sm:$0xf]
    %v70 = vld [vmem:[%s2 + $0xa8] sm:$0xff]
    %v71 = vld [vmem:[%s2 + $0xb0] sm:$0xf]
    %v72 = vld [vmem:[%s2 + $0xb4] sm:$0xff]
    %v73 = vld [vmem:[%s2 + $0xbc] sm:$0xf]
    %v74 = vld [vmem:[%s2 + $0xc0] sm:$0xff]
    %v75 = vld [vmem:[%s2 + $0xc8] sm:$0xf]
    %v76 = vld [vmem:[%s2 + $0xcc] sm:$0xff]
    %v77 = vld [vmem:[%s2 + $0xd4] sm:$0xf]
    %v78 = vld [vmem:[%s2 + $0xd8] sm:$0xff]
    %v79 = vld [vmem:[%s2 + $0xe0] sm:$0xf]
    %v80 = vld [vmem:[%s2 + $0xe4] sm:$0xff]
    %v81 = vld [vmem:[%s2 + $0xec] sm:$0xf]
    %v82 = vld [vmem:[%s2 + $0xf0] sm:$0xff]
    %v83 = vld [vmem:[%s2 + $0xf8] sm:$0xf]
    %v84 = vld [vmem:[%s2 + $0xfc] sm:$0xff]
    %v85 = vld [vmem:[%s2 + $0x104] sm:$0xf]
    %v86 = vld [vmem:[%s2 + $0x108] sm:$0xff]
    %v87 = vld [vmem:[%s2 + $0x110] sm:$0xf]
    %v88 = vld [vmem:[%s2 + $0x114] sm:$0xff]
    %v89 = vld [vmem:[%s2 + $0x11c] sm:$0xf]
    %v90 = vld [vmem:[%s2 + $0x120] sm:$0xff]
    %v91 = vld [vmem:[%s2 + $0x128] sm:$0xf]
    %v92 = vld [vmem:[%s2 + $0x12c] sm:$0xff]
    %v93 = vld [vmem:[%s2 + $0x134] sm:$0xf]
    %v94 = vld [vmem:[%s2 + $0x138] sm:$0xff]
    %v95 = vld [vmem:[%s2 + $0x140] sm:$0xf]
    %v96 = vld [vmem:[%s2 + $0x144] sm:$0xff]
    %v97 = vld [vmem:[%s2 + $0x14c] sm:$0xf]
    %v98 = vld [vmem:[%s2 + $0x150] sm:$0xff]
    %v99 = vld [vmem:[%s2 + $0x158] sm:$0xf]
    %v100 = vld [vmem:[%s2 + $0x15c] sm:$0xff]
    %v101 = vld [vmem:[%s2 + $0x164] sm:$0xf]
    %v102 = vld [vmem:[%s2 + $0x168] sm:$0xff]
    %v103 = vld [vmem:[%s2 + $0x170] sm:$0xf]
    %v104 = vld [vmem:[%s2 + $0x174] sm:$0xff]
    %v105 = vld [vmem:[%s2 + $0x17c] sm:$0xf]
    %v106 = vld [vmem:[%s2 + $0x180] sm:$0xff]
    %v107 = vld [vmem:[%s2 + $0x188] sm:$0xf]
    %v108 = vld [vmem:[%s2 + $0x18c] sm:$0xff]
    %v109 = vld [vmem:[%s2 + $0x194] sm:$0xf]
    %v110 = vld [vmem:[%s2 + $0x198] sm:$0xff]
    %v111 = vld [vmem:[%s2 + $0x1a0] sm:$0xf]
    %v112 = vld [vmem:[%s2 + $0x1a4] sm:$0xff]
    %v113 = vld [vmem:[%s2 + $0x1ac] sm:$0xf]
    %v114 = vld [vmem:[%s2 + $0x1b0] sm:$0xff]
    %v115 = vld [vmem:[%s2 + $0x1b8] sm:$0xf]
    %v116 = vld [vmem:[%s2 + $0x1bc] sm:$0xff]
    %v117 = vld [vmem:[%s2 + $0x1c4] sm:$0xf]
    %v118 = vld [vmem:[%s2 + $0x1c8] sm:$0xff]
    %v119 = vld [vmem:[%s2 + $0x1d0] sm:$0xf]
    %v120 = vld [vmem:[%s2 + $0x1d4] sm:$0xff]
    %v121 = vld [vmem:[%s2 + $0x1dc] sm:$0xf]
    %v122 = vld [vmem:[%s2 + $0x1e0] sm:$0xff]
    %v123 = vld [vmem:[%s2 + $0x1e8] sm:$0xf]
    %v124 = vld [vmem:[%s2 + $0x1ec] sm:$0xff]
    %v125 = vld [vmem:[%s2 + $0x1f4] sm:$0xf]
    %v126 = vld [vmem:[%s2 + $0x1f8] sm:$0xff]
    %v127 = vld [vmem:[%s2 + $0x200] sm:$0xf]
    %v128 = vld [vmem:[%s2 + $0x204] sm:$0xff]
    %v129 = vld [vmem:[%s2 + $0x20c] sm:$0xf]
    %v130 = vld [vmem:[%s2 + $0x210] sm:$0xff]
    %v131 = vld [vmem:[%s2 + $0x218] sm:$0xf]
    %v132 = vld [vmem:[%s2 + $0x21c] sm:$0xff]
    %v133 = vld [vmem:[%s2 + $0x224] sm:$0xf]
    %v134 = vld [vmem:[%s2 + $0x228] sm:$0xff]
    %v135 = vld [vmem:[%s2 + $0x230] sm:$0xf]
    %v136 = vld [vmem:[%s2 + $0x234] sm:$0xff]
    %v137 = vld [vmem:[%s2 + $0x23c] sm:$0xf]
    %v138 = vld [vmem:[%s2 + $0x240] sm:$0xff]
    %v139 = vld [vmem:[%s2 + $0x248] sm:$0xf]
    %v140 = vld [vmem:[%s2 + $0x24c] sm:$0xff]
    %v141 = vld [vmem:[%s2 + $0x254] sm:$0xf]
    %v142 = vld [vmem:[%s2 + $0x258] sm:$0xff]
    %v143 = vld [vmem:[%s2 + $0x260] sm:$0xf]
    %v144 = vld [vmem:[%s2 + $0x264] sm:$0xff]
    %v145 = vld [vmem:[%s2 + $0x26c] sm:$0xf]
    %v146 = vld [vmem:[%s2 + $0x270] sm:$0xff]
    %v147 = vld [vmem:[%s2 + $0x278] sm:$0xf]
    %v148 = vld [vmem:[%s2 + $0x27c] sm:$0xff]
    %v149 = vld [vmem:[%s2 + $0x284] sm:$0xf]
    %v150 = vld [vmem:[%s2 + $0x288] sm:$0xff]
    %v151 = vld [vmem:[%s2 + $0x290] sm:$0xf]
    %v152 = vld [vmem:[%s2 + $0x294] sm:$0xff]
    %v153 = vld [vmem:[%s2 + $0x29c] sm:$0xf]
    %v154 = vld [vmem:[%s2 + $0x2a0] sm:$0xff]
    %v155 = vld [vmem:[%s2 + $0x2a8] sm:$0xf]
    %v156 = vld [vmem:[%s2 + $0x2ac] sm:$0xff]
    %v157 = vld [vmem:[%s2 + $0x2b4] sm:$0xf]
    %v158 = vld [vmem:[%s2 + $0x2b8] sm:$0xff]
    %v159 = vld [vmem:[%s2 + $0x2c0] sm:$0xf]
    %v160 = vld [vmem:[%s2 + $0x2c4] sm:$0xff]
    %v161 = vld [vmem:[%s2 + $0x2cc] sm:$0xf]
    %v162 = vld [vmem:[%s2 + $0x2d0] sm:$0xff]
    %v163 = vld [vmem:[%s2 + $0x2d8] sm:$0xf]
    %v164 = vld [vmem:[%s2 + $0x2dc] sm:$0xff]
    %v165 = vld [vmem:[%s2 + $0x2e4] sm:$0xf]
    %v166 = vld [vmem:[%s2 + $0x2e8] sm:$0xff]
    %v167 = vld [vmem:[%s2 + $0x2f0] sm:$0xf]
    %v168 = vld [vmem:[%s2 + $0x2f4] sm:$0xff]
    %v169 = vld [vmem:[%s2 + $0x2fc] sm:$0xf]
    %v170 = vld [vmem:[%s2 + $0x300] sm:$0xff]
    %v171 = vld [vmem:[%s2 + $0x308] sm:$0xf]
    %v172 = vld [vmem:[%s2 + $0x30c] sm:$0xff]
    %v173 = vld [vmem:[%s2 + $0x314] sm:$0xf]
    %v174 = vld [vmem:[%s2 + $0x318] sm:$0xff]
    %v175 = vld [vmem:[%s2 + $0x320] sm:$0xf]
    %v176 = vld [vmem:[%s2 + $0x324] sm:$0xff]
    %v177 = vld [vmem:[%s2 + $0x32c] sm:$0xf]
    %v178 = vld [vmem:[%s2 + $0x330] sm:$0xff]
    %v179 = vld [vmem:[%s2 + $0x338] sm:$0xf]
    %v180 = vld [vmem:[%s2 + $0x33c] sm:$0xff]
    %v181 = vld [vmem:[%s2 + $0x344] sm:$0xf]
    %v182 = vld [vmem:[%s2 + $0x348] sm:$0xff]
    %v183 = vld [vmem:[%s2 + $0x350] sm:$0xf]
    %v184 = vld [vmem:[%s2 + $0x354] sm:$0xff]
    %v185 = vld [vmem:[%s2 + $0x35c] sm:$0xf]
    %v186 = vld [vmem:[%s2 + $0x360] sm:$0xff]
    %v187 = vld [vmem:[%s2 + $0x368] sm:$0xf]
    %v188 = vld [vmem:[%s2 + $0x36c] sm:$0xff]
    %v189 = vld [vmem:[%s2 + $0x374] sm:$0xf]
    %v190 = vld [vmem:[%s2 + $0x378] sm:$0xff]
    %v191 = vld [vmem:[%s2 + $0x380] sm:$0xf]
    %v192 = vld [vmem:[%s2 + $0x384] sm:$0xff]
    %v193 = vld [vmem:[%s2 + $0x38c] sm:$0xf]
    %v194 = vld [vmem:[%s2 + $0x390] sm:$0xff]
    %v195 = vld [vmem:[%s2 + $0x398] sm:$0xf]
    %v196 = vld [vmem:[%s2 + $0x39c] sm:$0xff]
    %v197 = vld [vmem:[%s2 + $0x3a4] sm:$0xf]
    %v198 = vld [vmem:[%s2 + $0x3a8] sm:$0xff]
    %v199 = vld [vmem:[%s2 + $0x3b0] sm:$0xf]
    %v200 = vld [vmem:[%s2 + $0x3b4] sm:$0xff]
    %v201 = vld [vmem:[%s2 + $0x3bc] sm:$0xf]
    %v202 = vld [vmem:[%s2 + $0x3c0] sm:$0xff]
    %v203 = vld [vmem:[%s2 + $0x3c8] sm:$0xf]
    %v204 = vld [vmem:[%s2 + $0x3cc] sm:$0xff]
    %v205 = vld [vmem:[%s2 + $0x3d4] sm:$0xf]
    %v206 = vld [vmem:[%s2 + $0x3d8] sm:$0xff]
    %v207 = vld [vmem:[%s2 + $0x3e0] sm:$0xf]
    %v208 = vld [vmem:[%s2 + $0x3e4] sm:$0xff]
    %v209 = vld [vmem:[%s2 + $0x3ec] sm:$0xf]
    %v210 = vld [vmem:[%s2 + $0x3f0] sm:$0xff]
    %v211 = vld [vmem:[%s2 + $0x3f8] sm:$0xf]
    %v212 = vld [vmem:[%s2 + $0x3fc] sm:$0xff]
    %v213 = vld [vmem:[%s2 + $0x404] sm:$0xf]
    %v214 = vld [vmem:[%s2 + $0x408] sm:$0xff]
    %v215 = vld [vmem:[%s2 + $0x410] sm:$0xf]
    %v216 = vld [vmem:[%s2 + $0x414] sm:$0xff]
    %v217 = vld [vmem:[%s2 + $0x41c] sm:$0xf]
    %v218 = vld [vmem:[%s2 + $0x420] sm:$0xff]
    %v219 = vld [vmem:[%s2 + $0x428] sm:$0xf]
    %v220 = vld [vmem:[%s2 + $0x42c] sm:$0xff]
    %v221 = vld [vmem:[%s2 + $0x434] sm:$0xf]
    %v222 = vld [vmem:[%s2 + $0x438] sm:$0xff]
    %v223 = vld [vmem:[%s2 + $0x440] sm:$0xf]
    %v224 = vld [vmem:[%s2 + $0x444] sm:$0xff]
    %v225 = vld [vmem:[%s2 + $0x44c] sm:$0xf]
    %v226 = vld [vmem:[%s2 + $0x450] sm:$0xff]
    %v227 = vld [vmem:[%s2 + $0x458] sm:$0xf]
    %v228 = vld [vmem:[%s2 + $0x45c] sm:$0xff]
    %v229 = vld [vmem:[%s2 + $0x464] sm:$0xf]
    %v230 = vld [vmem:[%s2 + $0x468] sm:$0xff]
    %v231 = vld [vmem:[%s2 + $0x470] sm:$0xf]
    %v232 = vld [vmem:[%s2 + $0x474] sm:$0xff]
    %v233 = vld [vmem:[%s2 + $0x47c] sm:$0xf]
    %v234 = vld [vmem:[%s2 + $0x480] sm:$0xff]
    %v235 = vld [vmem:[%s2 + $0x488] sm:$0xf]
    %v236 = vld [vmem:[%s2 + $0x48c] sm:$0xff]
    %v237 = vld [vmem:[%s2 + $0x494] sm:$0xf]
    %v238 = vld [vmem:[%s2 + $0x498] sm:$0xff]
    %v239 = vld [vmem:[%s2 + $0x4a0] sm:$0xf]
    %v240 = vld [vmem:[%s2 + $0x4a4] sm:$0xff]
    %v241 = vld [vmem:[%s2 + $0x4ac] sm:$0xf]
    %v242 = vld [vmem:[%s2 + $0x4b0] sm:$0xff]
    %v243 = vld [vmem:[%s2 + $0x4b8] sm:$0xf]
    %v244 = vld [vmem:[%s2 + $0x4bc] sm:$0xff]
    %v245 = vld [vmem:[%s2 + $0x4c4] sm:$0xf]
    %v246 = vld [vmem:[%s2 + $0x4c8] sm:$0xff]
    %v247 = vld [vmem:[%s2 + $0x4d0] sm:$0xf]
    %v248 = vld [vmem:[%s2 + $0x4d4] sm:$0xff]
    %v249 = vld [vmem:[%s2 + $0x4dc] sm:$0xf]
    %v250 = vld [vmem:[%s2 + $0x4e0] sm:$0xff]
    %v251 = vld [vmem:[%s2 + $0x4e8] sm:$0xf]
    %v252 = vld [vmem:[%s2 + $0x4ec] sm:$0xff]
    %v253 = vld [vmem:[%s2 + $0x4f4] sm:$0xf]
    %v254 = vld [vmem:[%s2 + $0x4f8] sm:$0xff]
    %v255 = vld [vmem:[%s2 + $0x500] sm:$0xf]
    %v256 = vld [vmem:[%s2 + $0x504] sm:$0xff]
    %v257 = vld [vmem:[%s2 + $0x50c] sm:$0xf]
    %v258 = vld [vmem:[%s2 + $0x510] sm:$0xff]
    %v259 = vld [vmem:[%s2 + $0x518] sm:$0xf]
    %v260 = vld [vmem:[%s2 + $0x51c] sm:$0xff]
    %v261 = vld [vmem:[%s2 + $0x524] sm:$0xf]
    %v262 = vld [vmem:[%s2 + $0x528] sm:$0xff]
    %v263 = vld [vmem:[%s2 + $0x530] sm:$0xf]
    %v264 = vld [vmem:[%s2 + $0x534] sm:$0xff]
    %v265 = vld [vmem:[%s2 + $0x53c] sm:$0xf]
    %v266 = vld [vmem:[%s2 + $0x540] sm:$0xff]
    %v267 = vld [vmem:[%s2 + $0x548] sm:$0xf]
    %v268 = vld [vmem:[%s2 + $0x54c] sm:$0xff]
    %v269 = vld [vmem:[%s2 + $0x554] sm:$0xf]
    %v270 = vld [vmem:[%s2 + $0x558] sm:$0xff]
    %v271 = vld [vmem:[%s2 + $0x560] sm:$0xf]
    %v272 = vld [vmem:[%s2 + $0x564] sm:$0xff]
    %v273 = vld [vmem:[%s2 + $0x56c] sm:$0xf]
    %v274 = vld [vmem:[%s2 + $0x570] sm:$0xff]
    %v275 = vld [vmem:[%s2 + $0x578] sm:$0xf]
    %v276 = vld [vmem:[%s2 + $0x57c] sm:$0xff]
    %v277 = vld [vmem:[%s2 + $0x584] sm:$0xf]
    %v278 = vld [vmem:[%s2 + $0x588] sm:$0xff]
    %v279 = vld [vmem:[%s2 + $0x590] sm:$0xf]
    %v280 = vld [vmem:[%s2 + $0x594] sm:$0xff]
    %v281 = vld [vmem:[%s2 + $0x59c] sm:$0xf]
    %v282 = vld [vmem:[%s2 + $0x5a0] sm:$0xff]
    %v283 = vld [vmem:[%s2 + $0x5a8] sm:$0xf]
    %v284 = vld [vmem:[%s2 + $0x5ac] sm:$0xff]
    %v285 = vld [vmem:[%s2 + $0x5b4] sm:$0xf]
    %v286 = vld [vmem:[%s2 + $0x5b8] sm:$0xff]
    %v287 = vld [vmem:[%s2 + $0x5c0] sm:$0xf]
    %v288 = vld [vmem:[%s2 + $0x5c4] sm:$0xff]
    %v289 = vld [vmem:[%s2 + $0x5cc] sm:$0xf]
    %v290 = vld [vmem:[%s2 + $0x5d0] sm:$0xff]
    %v291 = vld [vmem:[%s2 + $0x5d8] sm:$0xf]
    %v292 = vld [vmem:[%s2 + $0x5dc] sm:$0xff]
    %v293 = vld [vmem:[%s2 + $0x5e4] sm:$0xf]
    %v294 = vld [vmem:[%s2 + $0x5e8] sm:$0xff]
    %v295 = vld [vmem:[%s2 + $0x5f0] sm:$0xf]
    %v296 = vld [vmem:[%s2 + $0x5f4] sm:$0xff]
    %v297 = vld [vmem:[%s2 + $0x5fc] sm:$0xf]
    %v298 = vld [vmem:[%s2 + $0x600] sm:$0xff]
    %v299 = vld [vmem:[%s2 + $0x608] sm:$0xf]
    %v300 = vld [vmem:[%s2 + $0x60c] sm:$0xff]
    %v301 = vld [vmem:[%s2 + $0x614] sm:$0xf]
    %v302 = vld [vmem:[%s2 + $0x618] sm:$0xff]
    %v303 = vld [vmem:[%s2 + $0x620] sm:$0xf]
    %v304 = vld [vmem:[%s2 + $0x624] sm:$0xff]
    %v305 = vld [vmem:[%s2 + $0x62c] sm:$0xf]
    %v306 = vld [vmem:[%s2 + $0x630] sm:$0xff]
    %v307 = vld [vmem:[%s2 + $0x638] sm:$0xf]
    %v308 = vld [vmem:[%s2 + $0x63c] sm:$0xff]
    %v309 = vld [vmem:[%s2 + $0x644] sm:$0xf]
    %v310 = vld [vmem:[%s2 + $0x648] sm:$0xff]
    %v311 = vld [vmem:[%s2 + $0x650] sm:$0xf]
    %v312 = vld [vmem:[%s2 + $0x654] sm:$0xff]
    %v313 = vld [vmem:[%s2 + $0x65c] sm:$0xf]
    %v314 = vld [vmem:[%s2 + $0x660] sm:$0xff]
    %v315 = vld [vmem:[%s2 + $0x668] sm:$0xf]
    %v316 = vld [vmem:[%s2 + $0x66c] sm:$0xff]
    %v317 = vld [vmem:[%s2 + $0x674] sm:$0xf]
    %v318 = vld [vmem:[%s2 + $0x678] sm:$0xff]
    %v319 = vld [vmem:[%s2 + $0x680] sm:$0xf]
    %v320 = vld [vmem:[%s2 + $0x684] sm:$0xff]
    %v321 = vld [vmem:[%s2 + $0x68c] sm:$0xf]
    %v322 = vld [vmem:[%s2 + $0x690] sm:$0xff]
    %v323 = vld [vmem:[%s2 + $0x698] sm:$0xf]
    %v324 = vld [vmem:[%s2 + $0x69c] sm:$0xff]
    %v325 = vld [vmem:[%s2 + $0x6a4] sm:$0xf]
    %v326 = vld [vmem:[%s2 + $0x6a8] sm:$0xff]
    %v327 = vld [vmem:[%s2 + $0x6b0] sm:$0xf]
    %v328 = vld [vmem:[%s2 + $0x6b4] sm:$0xff]
    %v329 = vld [vmem:[%s2 + $0x6bc] sm:$0xf]
    %v330 = vld [vmem:[%s2 + $0x6c0] sm:$0xff]
    %v331 = vld [vmem:[%s2 + $0x6c8] sm:$0xf]
    %v332 = vld [vmem:[%s2 + $0x6cc] sm:$0xff]
    %v333 = vld [vmem:[%s2 + $0x6d4] sm:$0xf]
    %v334 = vld [vmem:[%s2 + $0x6d8] sm:$0xff]
    %v335 = vld [vmem:[%s2 + $0x6e0] sm:$0xf]
    %v336 = vld [vmem:[%s2 + $0x6e4] sm:$0xff]
    %v337 = vld [vmem:[%s2 + $0x6ec] sm:$0xf]
    %v338 = vld [vmem:[%s2 + $0x6f0] sm:$0xff]
    %v339 = vld [vmem:[%s2 + $0x6f8] sm:$0xf]
    %v340 = vld [vmem:[%s2 + $0x6fc] sm:$0xff]
    %v341 = vld [vmem:[%s2 + $0x704] sm:$0xf]
    %v342 = vld [vmem:[%s2 + $0x708] sm:$0xff]
    %v343 = vld [vmem:[%s2 + $0x710] sm:$0xf]
    %v344 = vld [vmem:[%s2 + $0x714] sm:$0xff]
    %v345 = vld [vmem:[%s2 + $0x71c] sm:$0xf]
    %v346 = vld [vmem:[%s2 + $0x720] sm:$0xff]
    %v347 = vld [vmem:[%s2 + $0x728] sm:$0xf]
    %v348 = vld [vmem:[%s2 + $0x72c] sm:$0xff]
    %v349 = vld [vmem:[%s2 + $0x734] sm:$0xf]
    %v350 = vld [vmem:[%s2 + $0x738] sm:$0xff]
    %v351 = vld [vmem:[%s2 + $0x740] sm:$0xf]
    %v352 = vld [vmem:[%s2 + $0x744] sm:$0xff]
    %v353 = vld [vmem:[%s2 + $0x74c] sm:$0xf]
    %v354 = vld [vmem:[%s2 + $0x750] sm:$0xff]
    %v355 = vld [vmem:[%s2 + $0x758] sm:$0xf]
    %v356 = vld [vmem:[%s2 + $0x75c] sm:$0xff]
    %v357 = vld [vmem:[%s2 + $0x764] sm:$0xf]
    %v358 = vld [vmem:[%s2 + $0x768] sm:$0xff]
    %v359 = vld [vmem:[%s2 + $0x770] sm:$0xf]
    %v360 = vld [vmem:[%s2 + $0x774] sm:$0xff]
    %v361 = vld [vmem:[%s2 + $0x77c] sm:$0xf]
    %v362 = vld [vmem:[%s2 + $0x780] sm:$0xff]
    %v363 = vld [vmem:[%s2 + $0x788] sm:$0xf]
    %v364 = vld [vmem:[%s2 + $0x78c] sm:$0xff]
    %v365 = vld [vmem:[%s2 + $0x794] sm:$0xf]
    %v366 = vld [vmem:[%s2 + $0x798] sm:$0xff]
    %v367 = vld [vmem:[%s2 + $0x7a0] sm:$0xf]
    %v368 = vld [vmem:[%s2 + $0x7a4] sm:$0xff]
    %v369 = vld [vmem:[%s2 + $0x7ac] sm:$0xf]
    %v370 = vld [vmem:[%s2 + $0x7b0] sm:$0xff]
    %v371 = vld [vmem:[%s2 + $0x7b8] sm:$0xf]
    %v372 = vld [vmem:[%s2 + $0x7bc] sm:$0xff]
    %v373 = vld [vmem:[%s2 + $0x7c4] sm:$0xf]
    %v374 = vld [vmem:[%s2 + $0x7c8] sm:$0xff]
    %v375 = vld [vmem:[%s2 + $0x7d0] sm:$0xf]
    %v376 = vld [vmem:[%s2 + $0x7d4] sm:$0xff]
    %v377 = vld [vmem:[%s2 + $0x7dc] sm:$0xf]
    %v378 = vld [vmem:[%s2 + $0x7e0] sm:$0xff]
    %v379 = vld [vmem:[%s2 + $0x7e8] sm:$0xf]
    %v380 = vld [vmem:[%s2 + $0x7ec] sm:$0xff]
    %v381 = vld [vmem:[%s2 + $0x7f4] sm:$0xf]
    %v382 = vld [vmem:[%s2 + $0x7f8] sm:$0xff]
    %v383 = vld [vmem:[%s2 + $0x800] sm:$0xf]
    %v384 = vld [vmem:[%s2 + $0x804] sm:$0xff]
    %v385 = vld [vmem:[%s2 + $0x80c] sm:$0xf]
    %v386 = vld [vmem:[%s2 + $0x810] sm:$0xff]
    %v387 = vld [vmem:[%s2 + $0x818] sm:$0xf]
    %v388 = vld [vmem:[%s2 + $0x81c] sm:$0xff]
    %v389 = vld [vmem:[%s2 + $0x824] sm:$0xf]
    %v390 = vld [vmem:[%s2 + $0x828] sm:$0xff]
    %v391 = vld [vmem:[%s2 + $0x830] sm:$0xf]
    %v392 = vld [vmem:[%s2 + $0x834] sm:$0xff]
    %v393 = vld [vmem:[%s2 + $0x83c] sm:$0xf]
    %v394 = vld [vmem:[%s2 + $0x840] sm:$0xff]
    %v395 = vld [vmem:[%s2 + $0x848] sm:$0xf]
    %v396 = vld [vmem:[%s2 + $0x84c] sm:$0xff]
    %v397 = vld [vmem:[%s2 + $0x854] sm:$0xf]
    %v398 = vld [vmem:[%s2 + $0x858] sm:$0xff]
    %v399 = vld [vmem:[%s2 + $0x860] sm:$0xf]
    %v400 = vld [vmem:[%s2 + $0x864] sm:$0xff]
    %v401 = vld [vmem:[%s2 + $0x86c] sm:$0xf]
    %v402 = vld [vmem:[%s2 + $0x870] sm:$0xff]
    %v403 = vld [vmem:[%s2 + $0x878] sm:$0xf]
    %v404 = vld [vmem:[%s2 + $0x87c] sm:$0xff]
    %v405 = vld [vmem:[%s2 + $0x884] sm:$0xf]
    %v406 = vld [vmem:[%s2 + $0x888] sm:$0xff]
    %v407 = vld [vmem:[%s2 + $0x890] sm:$0xf]
    %v408 = vld [vmem:[%s2 + $0x894] sm:$0xff]
    %v409 = vld [vmem:[%s2 + $0x89c] sm:$0xf]
    %v410 = vld [vmem:[%s2 + $0x8a0] sm:$0xff]
    %v411 = vld [vmem:[%s2 + $0x8a8] sm:$0xf]
    %v412 = vld [vmem:[%s2 + $0x8ac] sm:$0xff]
    %v413 = vld [vmem:[%s2 + $0x8b4] sm:$0xf]
    %v414 = vld [vmem:[%s2 + $0x8b8] sm:$0xff]
    %v415 = vld [vmem:[%s2 + $0x8c0] sm:$0xf]
    %v416 = vld [vmem:[%s2 + $0x8c4] sm:$0xff]
    %v417 = vld [vmem:[%s2 + $0x8cc] sm:$0xf]
    %v418 = vld [vmem:[%s2 + $0x8d0] sm:$0xff]
    %v419 = vld [vmem:[%s2 + $0x8d8] sm:$0xf]
    %v420 = vld [vmem:[%s2 + $0x8dc] sm:$0xff]
    %v421 = vld [vmem:[%s2 + $0x8e4] sm:$0xf]
    %v422 = vld [vmem:[%s2 + $0x8e8] sm:$0xff]
    %v423 = vld [vmem:[%s2 + $0x8f0] sm:$0xf]
    %v424 = vld [vmem:[%s2 + $0x8f4] sm:$0xff]
    %v425 = vld [vmem:[%s2 + $0x8fc] sm:$0xf]
    %v426 = vld [vmem:[%s2 + $0x900] sm:$0xff]
    %v427 = vld [vmem:[%s2 + $0x908] sm:$0xf]
    %v428 = vld [vmem:[%s2 + $0x90c] sm:$0xff]
    %v429 = vld [vmem:[%s2 + $0x914] sm:$0xf]
    %v430 = vld [vmem:[%s2 + $0x918] sm:$0xff]
    %v431 = vld [vmem:[%s2 + $0x920] sm:$0xf]
    %v432 = vld [vmem:[%s2 + $0x924] sm:$0xff]
    %v433 = vld [vmem:[%s2 + $0x92c] sm:$0xf]
    %v434 = vld [vmem:[%s2 + $0x930] sm:$0xff]
    %v435 = vld [vmem:[%s2 + $0x938] sm:$0xf]
    %v436 = vld [vmem:[%s2 + $0x93c] sm:$0xff]
    %v437 = vld [vmem:[%s2 + $0x944] sm:$0xf]
    %v438 = vld [vmem:[%s2 + $0x948] sm:$0xff]
    %v439 = vld [vmem:[%s2 + $0x950] sm:$0xf]
    %v440 = vld [vmem:[%s2 + $0x954] sm:$0xff]
    %v441 = vld [vmem:[%s2 + $0x95c] sm:$0xf]
    %v442 = vld [vmem:[%s3] sm:$0xff]
    %v443 = vld [vmem:[%s3 + $0x8] sm:$0xf]
    %v444 = vld [vmem:[%s3 + $0xc] sm:$0xff]
    %v445 = vld [vmem:[%s3 + $0x14] sm:$0xf]
    %v446 = vld [vmem:[%s3 + $0x18] sm:$0xff]
    %v447 = vld [vmem:[%s3 + $0x20] sm:$0xf]
    %v448 = vld [vmem:[%s3 + $0x24] sm:$0xff]
    %v449 = vld [vmem:[%s3 + $0x2c] sm:$0xf]
    %v450 = vld [vmem:[%s3 + $0x30] sm:$0xff]
    %v451 = vld [vmem:[%s3 + $0x38] sm:$0xf]
    %v452 = vld [vmem:[%s3 + $0x3c] sm:$0xff]
    %v453 = vld [vmem:[%s3 + $0x44] sm:$0xf]
    %v454 = vld [vmem:[%s3 + $0x48] sm:$0xff]
    %v455 = vld [vmem:[%s3 + $0x50] sm:$0xf]
    %v456 = vld [vmem:[%s3 + $0x54] sm:$0xff]
    %v457 = vld [vmem:[%s3 + $0x5c] sm:$0xf]
    %v458 = vld [vmem:[%s3 + $0x60] sm:$0xff]
    %v459 = vld [vmem:[%s3 + $0x68] sm:$0xf]
    %v460 = vld [vmem:[%s3 + $0x6c] sm:$0xff]
    %v461 = vld [vmem:[%s3 + $0x74] sm:$0xf]
    %v462 = vld [vmem:[%s3 + $0x78] sm:$0xff]
    %v463 = vld [vmem:[%s3 + $0x80] sm:$0xf]
    %v464 = vld [vmem:[%s3 + $0x84] sm:$0xff]
    %v465 = vld [vmem:[%s3 + $0x8c] sm:$0xf]
    %v466 = vld [vmem:[%s3 + $0x90] sm:$0xff]
    %v467 = vld [vmem:[%s3 + $0x98] sm:$0xf]
    %v468 = vld [vmem:[%s3 + $0x9c] sm:$0xff]
    %v469 = vld [vmem:[%s3 + $0xa4] sm:$0xf]
    %v470 = vld [vmem:[%s3 + $0xa8] sm:$0xff]
    %v471 = vld [vmem:[%s3 + $0xb0] sm:$0xf]
    %v472 = vld [vmem:[%s3 + $0xb4] sm:$0xff]
    %v473 = vld [vmem:[%s3 + $0xbc] sm:$0xf]
    %v474 = vld [vmem:[%s3 + $0xc0] sm:$0xff]
    %v475 = vld [vmem:[%s3 + $0xc8] sm:$0xf]
    %v476 = vld [vmem:[%s3 + $0xcc] sm:$0xff]
    %v477 = vld [vmem:[%s3 + $0xd4] sm:$0xf]
    %v478 = vld [vmem:[%s3 + $0xd8] sm:$0xff]
    %v479 = vld [vmem:[%s3 + $0xe0] sm:$0xf]
    %v480 = vld [vmem:[%s3 + $0xe4] sm:$0xff]
    %v481 = vld [vmem:[%s3 + $0xec] sm:$0xf]
    %v482 = vld [vmem:[%s3 + $0xf0] sm:$0xff]
    %v483 = vld [vmem:[%s3 + $0xf8] sm:$0xf]
    %v484 = vld [vmem:[%s3 + $0xfc] sm:$0xff]
    %v485 = vld [vmem:[%s3 + $0x104] sm:$0xf]
    %v486 = vld [vmem:[%s3 + $0x108] sm:$0xff]
    %v487 = vld [vmem:[%s3 + $0x110] sm:$0xf]
    %v488 = vld [vmem:[%s3 + $0x114] sm:$0xff]
    %v489 = vld [vmem:[%s3 + $0x11c] sm:$0xf]
    %v490 = vld [vmem:[%s3 + $0x120] sm:$0xff]
    %v491 = vld [vmem:[%s3 + $0x128] sm:$0xf]
    %v492 = vld [vmem:[%s3 + $0x12c] sm:$0xff]
    %v493 = vld [vmem:[%s3 + $0x134] sm:$0xf]
    %v494 = vld [vmem:[%s3 + $0x138] sm:$0xff]
    %v495 = vld [vmem:[%s3 + $0x140] sm:$0xf]
    %v496 = vld [vmem:[%s3 + $0x144] sm:$0xff]
    %v497 = vld [vmem:[%s3 + $0x14c] sm:$0xf]
    %v498 = vld [vmem:[%s3 + $0x150] sm:$0xff]
    %v499 = vld [vmem:[%s3 + $0x158] sm:$0xf]
    %v500 = vld [vmem:[%s3 + $0x15c] sm:$0xff]
    %v501 = vld [vmem:[%s3 + $0x164] sm:$0xf]
    %v502 = vld [vmem:[%s3 + $0x168] sm:$0xff]
    %v503 = vld [vmem:[%s3 + $0x170] sm:$0xf]
    %v504 = vld [vmem:[%s3 + $0x174] sm:$0xff]
    %v505 = vld [vmem:[%s3 + $0x17c] sm:$0xf]
    %v506 = vld [vmem:[%s3 + $0x180] sm:$0xff]
    %v507 = vld [vmem:[%s3 + $0x188] sm:$0xf]
    %v508 = vld [vmem:[%s3 + $0x18c] sm:$0xff]
    %v509 = vld [vmem:[%s3 + $0x194] sm:$0xf]
    %v510 = vld [vmem:[%s3 + $0x198] sm:$0xff]
    %v511 = vld [vmem:[%s3 + $0x1a0] sm:$0xf]
    %v512 = vld [vmem:[%s3 + $0x1a4] sm:$0xff]
    %v513 = vld [vmem:[%s3 + $0x1ac] sm:$0xf]
    %v514 = vld [vmem:[%s3 + $0x1b0] sm:$0xff]
    %v515 = vld [vmem:[%s3 + $0x1b8] sm:$0xf]
    %v516 = vld [vmem:[%s3 + $0x1bc] sm:$0xff]
    %v517 = vld [vmem:[%s3 + $0x1c4] sm:$0xf]
    %v518 = vld [vmem:[%s3 + $0x1c8] sm:$0xff]
    %v519 = vld [vmem:[%s3 + $0x1d0] sm:$0xf]
    %v520 = vld [vmem:[%s3 + $0x1d4] sm:$0xff]
    %v521 = vld [vmem:[%s3 + $0x1dc] sm:$0xf]
    %v522 = vld [vmem:[%s3 + $0x1e0] sm:$0xff]
    %v523 = vld [vmem:[%s3 + $0x1e8] sm:$0xf]
    %v524 = vld [vmem:[%s3 + $0x1ec] sm:$0xff]
    %v525 = vld [vmem:[%s3 + $0x1f4] sm:$0xf]
    %v526 = vld [vmem:[%s3 + $0x1f8] sm:$0xff]
    %v527 = vld [vmem:[%s3 + $0x200] sm:$0xf]
    %v528 = vld [vmem:[%s3 + $0x204] sm:$0xff]
    %v529 = vld [vmem:[%s3 + $0x20c] sm:$0xf]
    %v530 = vld [vmem:[%s3 + $0x210] sm:$0xff]
    %v531 = vld [vmem:[%s3 + $0x218] sm:$0xf]
    %v532 = vld [vmem:[%s3 + $0x21c] sm:$0xff]
    %v533 = vld [vmem:[%s3 + $0x224] sm:$0xf]
    %v534 = vld [vmem:[%s3 + $0x228] sm:$0xff]
    %v535 = vld [vmem:[%s3 + $0x230] sm:$0xf]
    %v536 = vld [vmem:[%s3 + $0x234] sm:$0xff]
    %v537 = vld [vmem:[%s3 + $0x23c] sm:$0xf]
    %v538 = vld [vmem:[%s3 + $0x240] sm:$0xff]
    %v539 = vld [vmem:[%s3 + $0x248] sm:$0xf]
    %v540 = vld [vmem:[%s3 + $0x24c] sm:$0xff]
    %v541 = vld [vmem:[%s3 + $0x254] sm:$0xf]
    %v542 = vld [vmem:[%s3 + $0x258] sm:$0xff]
    %v543 = vld [vmem:[%s3 + $0x260] sm:$0xf]
    %v544 = vld [vmem:[%s3 + $0x264] sm:$0xff]
    %v545 = vld [vmem:[%s3 + $0x26c] sm:$0xf]
    %v546 = vld [vmem:[%s3 + $0x270] sm:$0xff]
    %v547 = vld [vmem:[%s3 + $0x278] sm:$0xf]
    %v548 = vld [vmem:[%s3 + $0x27c] sm:$0xff]
    %v549 = vld [vmem:[%s3 + $0x284] sm:$0xf]
    %v550 = vld [vmem:[%s3 + $0x288] sm:$0xff]
    %v551 = vld [vmem:[%s3 + $0x290] sm:$0xf]
    %v552 = vld [vmem:[%s3 + $0x294] sm:$0xff]
    %v553 = vld [vmem:[%s3 + $0x29c] sm:$0xf]
    %v554 = vld [vmem:[%s3 + $0x2a0] sm:$0xff]
    %v555 = vld [vmem:[%s3 + $0x2a8] sm:$0xf]
    %v556 = vld [vmem:[%s3 + $0x2ac] sm:$0xff]
    %v557 = vld [vmem:[%s3 + $0x2b4] sm:$0xf]
    %v558 = vld [vmem:[%s3 + $0x2b8] sm:$0xff]
    %v559 = vld [vmem:[%s3 + $0x2c0] sm:$0xf]
    %v560 = vld [vmem:[%s3 + $0x2c4] sm:$0xff]
    %v561 = vld [vmem:[%s3 + $0x2cc] sm:$0xf]
    %v562 = vld [vmem:[%s3 + $0x2d0] sm:$0xff]
    %v563 = vld [vmem:[%s3 + $0x2d8] sm:$0xf]
    %v564 = vld [vmem:[%s3 + $0x2dc] sm:$0xff]
    %v565 = vld [vmem:[%s3 + $0x2e4] sm:$0xf]
    %v566 = vld [vmem:[%s3 + $0x2e8] sm:$0xff]
    %v567 = vld [vmem:[%s3 + $0x2f0] sm:$0xf]
    %v568 = vld [vmem:[%s3 + $0x2f4] sm:$0xff]
    %v569 = vld [vmem:[%s3 + $0x2fc] sm:$0xf]
    %v570 = vld [vmem:[%s3 + $0x300] sm:$0xff]
    %v571 = vld [vmem:[%s3 + $0x308] sm:$0xf]
    %v572 = vld [vmem:[%s3 + $0x30c] sm:$0xff]
    %v573 = vld [vmem:[%s3 + $0x314] sm:$0xf]
    %v574 = vld [vmem:[%s3 + $0x318] sm:$0xff]
    %v575 = vld [vmem:[%s3 + $0x320] sm:$0xf]
    %v576 = vld [vmem:[%s3 + $0x324] sm:$0xff]
    %v577 = vld [vmem:[%s3 + $0x32c] sm:$0xf]
    %v578 = vld [vmem:[%s3 + $0x330] sm:$0xff]
    %v579 = vld [vmem:[%s3 + $0x338] sm:$0xf]
    %v580 = vld [vmem:[%s3 + $0x33c] sm:$0xff]
    %v581 = vld [vmem:[%s3 + $0x344] sm:$0xf]
    %v582 = vld [vmem:[%s3 + $0x348] sm:$0xff]
    %v583 = vld [vmem:[%s3 + $0x350] sm:$0xf]
    %v584 = vld [vmem:[%s3 + $0x354] sm:$0xff]
    %v585 = vld [vmem:[%s3 + $0x35c] sm:$0xf]
    %v586 = vld [vmem:[%s3 + $0x360] sm:$0xff]
    %v587 = vld [vmem:[%s3 + $0x368] sm:$0xf]
    %v588 = vld [vmem:[%s3 + $0x36c] sm:$0xff]
    %v589 = vld [vmem:[%s3 + $0x374] sm:$0xf]
    %v590 = vld [vmem:[%s3 + $0x378] sm:$0xff]
    %v591 = vld [vmem:[%s3 + $0x380] sm:$0xf]
    %v592 = vld [vmem:[%s3 + $0x384] sm:$0xff]
    %v593 = vld [vmem:[%s3 + $0x38c] sm:$0xf]
    %v594 = vld [vmem:[%s3 + $0x390] sm:$0xff]
    %v595 = vld [vmem:[%s3 + $0x398] sm:$0xf]
    %v596 = vld [vmem:[%s3 + $0x39c] sm:$0xff]
    %v597 = vld [vmem:[%s3 + $0x3a4] sm:$0xf]
    %v598 = vld [vmem:[%s3 + $0x3a8] sm:$0xff]
    %v599 = vld [vmem:[%s3 + $0x3b0] sm:$0xf]
    %v600 = vld [vmem:[%s3 + $0x3b4] sm:$0xff]
    %v601 = vld [vmem:[%s3 + $0x3bc] sm:$0xf]
    %v602 = vld [vmem:[%s3 + $0x3c0] sm:$0xff]
    %v603 = vld [vmem:[%s3 + $0x3c8] sm:$0xf]
    %v604 = vld [vmem:[%s3 + $0x3cc] sm:$0xff]
    %v605 = vld [vmem:[%s3 + $0x3d4] sm:$0xf]
    %v606 = vld [vmem:[%s3 + $0x3d8] sm:$0xff]
    %v607 = vld [vmem:[%s3 + $0x3e0] sm:$0xf]
    %v608 = vld [vmem:[%s3 + $0x3e4] sm:$0xff]
    %v609 = vld [vmem:[%s3 + $0x3ec] sm:$0xf]
    %v610 = vld [vmem:[%s3 + $0x3f0] sm:$0xff]
    %v611 = vld [vmem:[%s3 + $0x3f8] sm:$0xf]
    %v612 = vld [vmem:[%s3 + $0x3fc] sm:$0xff]
    %v613 = vld [vmem:[%s3 + $0x404] sm:$0xf]
    %v614 = vld [vmem:[%s3 + $0x408] sm:$0xff]
    %v615 = vld [vmem:[%s3 + $0x410] sm:$0xf]
    %v616 = vld [vmem:[%s3 + $0x414] sm:$0xff]
    %v617 = vld [vmem:[%s3 + $0x41c] sm:$0xf]
    %v618 = vld [vmem:[%s3 + $0x420] sm:$0xff]
    %v619 = vld [vmem:[%s3 + $0x428] sm:$0xf]
    %v620 = vld [vmem:[%s3 + $0x42c] sm:$0xff]
    %v621 = vld [vmem:[%s3 + $0x434] sm:$0xf]
    %v622 = vld [vmem:[%s3 + $0x438] sm:$0xff]
    %v623 = vld [vmem:[%s3 + $0x440] sm:$0xf]
    %v624 = vld [vmem:[%s3 + $0x444] sm:$0xff]
    %v625 = vld [vmem:[%s3 + $0x44c] sm:$0xf]
    %v626 = vld [vmem:[%s3 + $0x450] sm:$0xff]
    %v627 = vld [vmem:[%s3 + $0x458] sm:$0xf]
    %v628 = vld [vmem:[%s3 + $0x45c] sm:$0xff]
    %v629 = vld [vmem:[%s3 + $0x464] sm:$0xf]
    %v630 = vld [vmem:[%s3 + $0x468] sm:$0xff]
    %v631 = vld [vmem:[%s3 + $0x470] sm:$0xf]
    %v632 = vld [vmem:[%s3 + $0x474] sm:$0xff]
    %v633 = vld [vmem:[%s3 + $0x47c] sm:$0xf]
    %v634 = vld [vmem:[%s3 + $0x480] sm:$0xff]
    %v635 = vld [vmem:[%s3 + $0x488] sm:$0xf]
    %v636 = vld [vmem:[%s3 + $0x48c] sm:$0xff]
    %v637 = vld [vmem:[%s3 + $0x494] sm:$0xf]
    %v638 = vld [vmem:[%s3 + $0x498] sm:$0xff]
    %v639 = vld [vmem:[%s3 + $0x4a0] sm:$0xf]
    %v640 = vld [vmem:[%s3 + $0x4a4] sm:$0xff]
    %v641 = vld [vmem:[%s3 + $0x4ac] sm:$0xf]
    %v642 = vld [vmem:[%s3 + $0x4b0] sm:$0xff]
    %v643 = vld [vmem:[%s3 + $0x4b8] sm:$0xf]
    %v644 = vld [vmem:[%s3 + $0x4bc] sm:$0xff]
    %v645 = vld [vmem:[%s3 + $0x4c4] sm:$0xf]
    %v646 = vld [vmem:[%s3 + $0x4c8] sm:$0xff]
    %v647 = vld [vmem:[%s3 + $0x4d0] sm:$0xf]
    %v648 = vld [vmem:[%s3 + $0x4d4] sm:$0xff]
    %v649 = vld [vmem:[%s3 + $0x4dc] sm:$0xf]
    %v650 = vld [vmem:[%s3 + $0x4e0] sm:$0xff]
    %v651 = vld [vmem:[%s3 + $0x4e8] sm:$0xf]
    %v652 = vld [vmem:[%s3 + $0x4ec] sm:$0xff]
    %v653 = vld [vmem:[%s3 + $0x4f4] sm:$0xf]
    %v654 = vld [vmem:[%s3 + $0x4f8] sm:$0xff]
    %v655 = vld [vmem:[%s3 + $0x500] sm:$0xf]
    %v656 = vld [vmem:[%s3 + $0x504] sm:$0xff]
    %v657 = vld [vmem:[%s3 + $0x50c] sm:$0xf]
    %v658 = vld [vmem:[%s3 + $0x510] sm:$0xff]
    %v659 = vld [vmem:[%s3 + $0x518] sm:$0xf]
    %v660 = vld [vmem:[%s3 + $0x51c] sm:$0xff]
    %v661 = vld [vmem:[%s3 + $0x524] sm:$0xf]
    %v662 = vld [vmem:[%s3 + $0x528] sm:$0xff]
    %v663 = vld [vmem:[%s3 + $0x530] sm:$0xf]
    %v664 = vld [vmem:[%s3 + $0x534] sm:$0xff]
    %v665 = vld [vmem:[%s3 + $0x53c] sm:$0xf]
    %v666 = vld [vmem:[%s3 + $0x540] sm:$0xff]
    %v667 = vld [vmem:[%s3 + $0x548] sm:$0xf]
    %v668 = vld [vmem:[%s3 + $0x54c] sm:$0xff]
    %v669 = vld [vmem:[%s3 + $0x554] sm:$0xf]
    %v670 = vld [vmem:[%s3 + $0x558] sm:$0xff]
    %v671 = vld [vmem:[%s3 + $0x560] sm:$0xf]
    %v672 = vld [vmem:[%s3 + $0x564] sm:$0xff]
    %v673 = vld [vmem:[%s3 + $0x56c] sm:$0xf]
    %v674 = vld [vmem:[%s3 + $0x570] sm:$0xff]
    %v675 = vld [vmem:[%s3 + $0x578] sm:$0xf]
    %v676 = vld [vmem:[%s3 + $0x57c] sm:$0xff]
    %v677 = vld [vmem:[%s3 + $0x584] sm:$0xf]
    %v678 = vld [vmem:[%s3 + $0x588] sm:$0xff]
    %v679 = vld [vmem:[%s3 + $0x590] sm:$0xf]
    %v680 = vld [vmem:[%s3 + $0x594] sm:$0xff]
    %v681 = vld [vmem:[%s3 + $0x59c] sm:$0xf]
    %v682 = vld [vmem:[%s3 + $0x5a0] sm:$0xff]
    %v683 = vld [vmem:[%s3 + $0x5a8] sm:$0xf]
    %v684 = vld [vmem:[%s3 + $0x5ac] sm:$0xff]
    %v685 = vld [vmem:[%s3 + $0x5b4] sm:$0xf]
    %v686 = vld [vmem:[%s3 + $0x5b8] sm:$0xff]
    %v687 = vld [vmem:[%s3 + $0x5c0] sm:$0xf]
    %v688 = vld [vmem:[%s3 + $0x5c4] sm:$0xff]
    %v689 = vld [vmem:[%s3 + $0x5cc] sm:$0xf]
    %v690 = vld [vmem:[%s3 + $0x5d0] sm:$0xff]
    %v691 = vld [vmem:[%s3 + $0x5d8] sm:$0xf]
    %v692 = vld [vmem:[%s3 + $0x5dc] sm:$0xff]
    %v693 = vld [vmem:[%s3 + $0x5e4] sm:$0xf]
    %v694 = vld [vmem:[%s3 + $0x5e8] sm:$0xff]
    %v695 = vld [vmem:[%s3 + $0x5f0] sm:$0xf]
    %v696 = vld [vmem:[%s3 + $0x5f4] sm:$0xff]
    %v697 = vld [vmem:[%s3 + $0x5fc] sm:$0xf]
    %v698 = vld [vmem:[%s3 + $0x600] sm:$0xff]
    %v699 = vld [vmem:[%s3 + $0x608] sm:$0xf]
    %v700 = vld [vmem:[%s3 + $0x60c] sm:$0xff]
    %v701 = vld [vmem:[%s3 + $0x614] sm:$0xf]
    %v702 = vld [vmem:[%s3 + $0x618] sm:$0xff]
    %v703 = vld [vmem:[%s3 + $0x620] sm:$0xf]
    %v704 = vld [vmem:[%s3 + $0x624] sm:$0xff]
    %v705 = vld [vmem:[%s3 + $0x62c] sm:$0xf]
    %v706 = vld [vmem:[%s3 + $0x630] sm:$0xff]
    %v707 = vld [vmem:[%s3 + $0x638] sm:$0xf]
    %v708 = vld [vmem:[%s3 + $0x63c] sm:$0xff]
    %v709 = vld [vmem:[%s3 + $0x644] sm:$0xf]
    %v710 = vld [vmem:[%s3 + $0x648] sm:$0xff]
    %v711 = vld [vmem:[%s3 + $0x650] sm:$0xf]
    %v712 = vld [vmem:[%s3 + $0x654] sm:$0xff]
    %v713 = vld [vmem:[%s3 + $0x65c] sm:$0xf]
    %v714 = vld [vmem:[%s3 + $0x660] sm:$0xff]
    %v715 = vld [vmem:[%s3 + $0x668] sm:$0xf]
    %v716 = vld [vmem:[%s3 + $0x66c] sm:$0xff]
    %v717 = vld [vmem:[%s3 + $0x674] sm:$0xf]
    %v718 = vld [vmem:[%s3 + $0x678] sm:$0xff]
    %v719 = vld [vmem:[%s3 + $0x680] sm:$0xf]
    %v720 = vld [vmem:[%s3 + $0x684] sm:$0xff]
    %v721 = vld [vmem:[%s3 + $0x68c] sm:$0xf]
    %v722 = vld [vmem:[%s3 + $0x690] sm:$0xff]
    %v723 = vld [vmem:[%s3 + $0x698] sm:$0xf]
    %v724 = vld [vmem:[%s3 + $0x69c] sm:$0xff]
    %v725 = vld [vmem:[%s3 + $0x6a4] sm:$0xf]
    %v726 = vld [vmem:[%s3 + $0x6a8] sm:$0xff]
    %v727 = vld [vmem:[%s3 + $0x6b0] sm:$0xf]
    %v728 = vld [vmem:[%s3 + $0x6b4] sm:$0xff]
    %v729 = vld [vmem:[%s3 + $0x6bc] sm:$0xf]
    %v730 = vld [vmem:[%s3 + $0x6c0] sm:$0xff]
    %v731 = vld [vmem:[%s3 + $0x6c8] sm:$0xf]
    %v732 = vld [vmem:[%s3 + $0x6cc] sm:$0xff]
    %v733 = vld [vmem:[%s3 + $0x6d4] sm:$0xf]
    %v734 = vld [vmem:[%s3 + $0x6d8] sm:$0xff]
    %v735 = vld [vmem:[%s3 + $0x6e0] sm:$0xf]
    %v736 = vld [vmem:[%s3 + $0x6e4] sm:$0xff]
    %v737 = vld [vmem:[%s3 + $0x6ec] sm:$0xf]
    %v738 = vld [vmem:[%s3 + $0x6f0] sm:$0xff]
    %v739 = vld [vmem:[%s3 + $0x6f8] sm:$0xf]
    %v740 = vld [vmem:[%s3 + $0x6fc] sm:$0xff]
    %v741 = vld [vmem:[%s3 + $0x704] sm:$0xf]
    %v742 = vld [vmem:[%s3 + $0x708] sm:$0xff]
    %v743 = vld [vmem:[%s3 + $0x710] sm:$0xf]
    %v744 = vld [vmem:[%s3 + $0x714] sm:$0xff]
    %v745 = vld [vmem:[%s3 + $0x71c] sm:$0xf]
    %v746 = vld [vmem:[%s3 + $0x720] sm:$0xff]
    %v747 = vld [vmem:[%s3 + $0x728] sm:$0xf]
    %v748 = vld [vmem:[%s3 + $0x72c] sm:$0xff]
    %v749 = vld [vmem:[%s3 + $0x734] sm:$0xf]
    %v750 = vld [vmem:[%s3 + $0x738] sm:$0xff]
    %v751 = vld [vmem:[%s3 + $0x740] sm:$0xf]
    %v752 = vld [vmem:[%s3 + $0x744] sm:$0xff]
    %v753 = vld [vmem:[%s3 + $0x74c] sm:$0xf]
    %v754 = vld [vmem:[%s3 + $0x750] sm:$0xff]
    %v755 = vld [vmem:[%s3 + $0x758] sm:$0xf]
    %v756 = vld [vmem:[%s3 + $0x75c] sm:$0xff]
    %v757 = vld [vmem:[%s3 + $0x764] sm:$0xf]
    %v758 = vld [vmem:[%s3 + $0x768] sm:$0xff]
    %v759 = vld [vmem:[%s3 + $0x770] sm:$0xf]
    %v760 = vld [vmem:[%s3 + $0x774] sm:$0xff]
    %v761 = vld [vmem:[%s3 + $0x77c] sm:$0xf]
    %v762 = vld [vmem:[%s3 + $0x780] sm:$0xff]
    %v763 = vld [vmem:[%s3 + $0x788] sm:$0xf]
    %v764 = vld [vmem:[%s3 + $0x78c] sm:$0xff]
    %v765 = vld [vmem:[%s3 + $0x794] sm:$0xf]
    %v766 = vld [vmem:[%s3 + $0x798] sm:$0xff]
    %v767 = vld [vmem:[%s3 + $0x7a0] sm:$0xf]
    %v768 = vld [vmem:[%s3 + $0x7a4] sm:$0xff]
    %v769 = vld [vmem:[%s3 + $0x7ac] sm:$0xf]
    %v770 = vld [vmem:[%s3 + $0x7b0] sm:$0xff]
    %v771 = vld [vmem:[%s3 + $0x7b8] sm:$0xf]
    %v772 = vld [vmem:[%s3 + $0x7bc] sm:$0xff]
    %v773 = vld [vmem:[%s3 + $0x7c4] sm:$0xf]
    %v774 = vld [vmem:[%s3 + $0x7c8] sm:$0xff]
    %v775 = vld [vmem:[%s3 + $0x7d0] sm:$0xf]
    %v776 = vld [vmem:[%s3 + $0x7d4] sm:$0xff]
    %v777 = vld [vmem:[%s3 + $0x7dc] sm:$0xf]
    %v778 = vld [vmem:[%s3 + $0x7e0] sm:$0xff]
    %v779 = vld [vmem:[%s3 + $0x7e8] sm:$0xf]
    %v780 = vld [vmem:[%s3 + $0x7ec] sm:$0xff]
    %v781 = vld [vmem:[%s3 + $0x7f4] sm:$0xf]
    %v782 = vld [vmem:[%s3 + $0x7f8] sm:$0xff]
    %v783 = vld [vmem:[%s3 + $0x800] sm:$0xf]
    %v784 = vld [vmem:[%s3 + $0x804] sm:$0xff]
    %v785 = vld [vmem:[%s3 + $0x80c] sm:$0xf]
    %v786 = vld [vmem:[%s3 + $0x810] sm:$0xff]
    %v787 = vld [vmem:[%s3 + $0x818] sm:$0xf]
    %v788 = vld [vmem:[%s3 + $0x81c] sm:$0xff]
    %v789 = vld [vmem:[%s3 + $0x824] sm:$0xf]
    %v790 = vld [vmem:[%s3 + $0x828] sm:$0xff]
    %v791 = vld [vmem:[%s3 + $0x830] sm:$0xf]
    %v792 = vld [vmem:[%s3 + $0x834] sm:$0xff]
    %v793 = vld [vmem:[%s3 + $0x83c] sm:$0xf]
    %v794 = vld [vmem:[%s3 + $0x840] sm:$0xff]
    %v795 = vld [vmem:[%s3 + $0x848] sm:$0xf]
    %v796 = vld [vmem:[%s3 + $0x84c] sm:$0xff]
    %v797 = vld [vmem:[%s3 + $0x854] sm:$0xf]
    %v798 = vld [vmem:[%s3 + $0x858] sm:$0xff]
    %v799 = vld [vmem:[%s3 + $0x860] sm:$0xf]
    %v800 = vld [vmem:[%s3 + $0x864] sm:$0xff]
    %v801 = vld [vmem:[%s3 + $0x86c] sm:$0xf]
    %v802 = vld [vmem:[%s3 + $0x870] sm:$0xff]
    %v803 = vld [vmem:[%s3 + $0x878] sm:$0xf]
    %v804 = vld [vmem:[%s3 + $0x87c] sm:$0xff]
    %v805 = vld [vmem:[%s3 + $0x884] sm:$0xf]
    %v806 = vld [vmem:[%s3 + $0x888] sm:$0xff]
    %v807 = vld [vmem:[%s3 + $0x890] sm:$0xf]
    %v808 = vld [vmem:[%s3 + $0x894] sm:$0xff]
    %v809 = vld [vmem:[%s3 + $0x89c] sm:$0xf]
    %v810 = vld [vmem:[%s3 + $0x8a0] sm:$0xff]
    %v811 = vld [vmem:[%s3 + $0x8a8] sm:$0xf]
    %v812 = vld [vmem:[%s3 + $0x8ac] sm:$0xff]
    %v813 = vld [vmem:[%s3 + $0x8b4] sm:$0xf]
    %v814 = vld [vmem:[%s3 + $0x8b8] sm:$0xff]
    %v815 = vld [vmem:[%s3 + $0x8c0] sm:$0xf]
    %v816 = vld [vmem:[%s3 + $0x8c4] sm:$0xff]
    %v817 = vld [vmem:[%s3 + $0x8cc] sm:$0xf]
    %v818 = vld [vmem:[%s3 + $0x8d0] sm:$0xff]
    %v819 = vld [vmem:[%s3 + $0x8d8] sm:$0xf]
    %v820 = vld [vmem:[%s3 + $0x8dc] sm:$0xff]
    %v821 = vld [vmem:[%s3 + $0x8e4] sm:$0xf]
    %v822 = vld [vmem:[%s3 + $0x8e8] sm:$0xff]
    %v823 = vld [vmem:[%s3 + $0x8f0] sm:$0xf]
    %v824 = vld [vmem:[%s3 + $0x8f4] sm:$0xff]
    %v825 = vld [vmem:[%s3 + $0x8fc] sm:$0xf]
    %v826 = vld [vmem:[%s3 + $0x900] sm:$0xff]
    %v827 = vld [vmem:[%s3 + $0x908] sm:$0xf]
    %v828 = vld [vmem:[%s3 + $0x90c] sm:$0xff]
    %v829 = vld [vmem:[%s3 + $0x914] sm:$0xf]
    %v830 = vld [vmem:[%s3 + $0x918] sm:$0xff]
    %v831 = vld [vmem:[%s3 + $0x920] sm:$0xf]
    %v832 = vld [vmem:[%s3 + $0x924] sm:$0xff]
    %v833 = vld [vmem:[%s3 + $0x92c] sm:$0xf]
    %v834 = vld [vmem:[%s3 + $0x930] sm:$0xff]
    %v835 = vld [vmem:[%s3 + $0x938] sm:$0xf]
    %v836 = vld [vmem:[%s3 + $0x93c] sm:$0xff]
    %v837 = vld [vmem:[%s3 + $0x944] sm:$0xf]
    %v838 = vld [vmem:[%s3 + $0x948] sm:$0xff]
    %v839 = vld [vmem:[%s3 + $0x950] sm:$0xf]
    %v840 = vld [vmem:[%s3 + $0x954] sm:$0xff]
    %v841 = vld [vmem:[%s3 + $0x95c] sm:$0xf]
    %v844 = vcombine.high %v40, %v40
    %v846 = vunpack.c.l.s4 1966171168
    %v847 = vunpack.c.0.s8 %v846
    %v848 = vlaneseq
    %v849 = vshrl.u32 %v848, 7
    %v850 = vsub.s32 %v847, %v849
    %v851 = vrot.slane %v40, %v850
    %v853 = vunpack.c.l.s4 1966171168
    %v854 = vunpack.c.0.s8 %v853
    %v855 = vlaneseq
    %v856 = vshrl.u32 %v855, 7
    %v857 = vsub.s32 %v854, %v856
    %v858 = vrot.slane %v844, %v857
    %v859 = vcombine.high %v851, %v851
    %v860 = vcombine.high %v858, %v858
    %v862 = vunpack.c.l.s4 1966171168
    %v863 = vunpack.c.0.s8 %v862
    %v864 = vlaneseq
    %v865 = vshrl.u32 %v864, 7
    %v866 = vsub.s32 %v863, %v865
    %v867 = vrot.slane %v851, %v866
    %v869 = vunpack.c.l.s4 1966171168
    %v870 = vunpack.c.0.s8 %v869
    %v871 = vlaneseq
    %v872 = vshrl.u32 %v871, 7
    %v873 = vsub.s32 %v870, %v872
    %v874 = vrot.slane %v858, %v873
    %v876 = vunpack.c.l.s4 1966171168
    %v877 = vunpack.c.0.s8 %v876
    %v878 = vlaneseq
    %v879 = vshrl.u32 %v878, 7
    %v880 = vsub.s32 %v877, %v879
    %v881 = vrot.slane %v859, %v880
    %v883 = vunpack.c.l.s4 1966171168
    %v884 = vunpack.c.0.s8 %v883
    %v885 = vlaneseq
    %v886 = vshrl.u32 %v885, 7
    %v887 = vsub.s32 %v884, %v886
    %v888 = vrot.slane %v860, %v887
    %v889 = vcombine.high %v867, %v867
    %v890 = vcombine.high %v874, %v874
    %v891 = vcombine.high %v881, %v881
    %v892 = vcombine.high %v888, %v888
    %v893 = vcombine.high %v41, %v41
    %v895 = vunpack.c.l.s4 1966171168
    %v896 = vunpack.c.0.s8 %v895
    %v897 = vlaneseq
    %v898 = vshrl.u32 %v897, 7
    %v899 = vsub.s32 %v896, %v898
    %v900 = vrot.slane %v41, %v899
    %v902 = vunpack.c.l.s4 1966171168
    %v903 = vunpack.c.0.s8 %v902
    %v904 = vlaneseq
    %v905 = vshrl.u32 %v904, 7
    %v906 = vsub.s32 %v903, %v905
    %v907 = vrot.slane %v893, %v906
    %v908 = vcombine.high %v900, %v900
    %v910 = vunpack.c.l.s4 1966171168
    %v911 = vunpack.c.0.s8 %v910
    %v912 = vlaneseq
    %v913 = vshrl.u32 %v912, 7
    %v914 = vsub.s32 %v911, %v913
    %v915 = vrot.slane %v900, %v914
    %v917 = vunpack.c.l.s4 1966171168
    %v918 = vunpack.c.0.s8 %v917
    %v919 = vlaneseq
    %v920 = vshrl.u32 %v919, 7
    %v921 = vsub.s32 %v918, %v920
    %v922 = vrot.slane %v907, %v921
    %v924 = vunpack.c.l.s4 1966171168
    %v925 = vunpack.c.0.s8 %v924
    %v926 = vlaneseq
    %v927 = vshrl.u32 %v926, 7
    %v928 = vsub.s32 %v925, %v927
    %v929 = vrot.slane %v908, %v928
    %v930 = vcombine.high %v915, %v915
    %v931 = vcombine.high %v929, %v929
    %v1344 = vunpack.c.l.b16 %v442
    %v1345 = vunpack.c.h.b16 %v442
    %v1346 = vunpack.c.l.b16 %v443
    %v1347 = vunpack.c.l.b16 %v444
    %v1348 = vunpack.c.h.b16 %v444
    %v1349 = vunpack.c.l.b16 %v445
    %v1350 = vunpack.c.l.b16 %v446
    %v1351 = vunpack.c.h.b16 %v446
    %v1352 = vunpack.c.l.b16 %v447
    %v1353 = vunpack.c.l.b16 %v448
    %v1354 = vunpack.c.h.b16 %v448
    %v1355 = vunpack.c.l.b16 %v449
    %v1356 = vunpack.c.l.b16 %v450
    %v1357 = vunpack.c.h.b16 %v450
    %v1358 = vunpack.c.l.b16 %v451
    %v1359 = vunpack.c.l.b16 %v452
    %v1360 = vunpack.c.h.b16 %v452
    %v1361 = vunpack.c.l.b16 %v453
    %v1362 = vunpack.c.l.b16 %v454
    %v1363 = vunpack.c.h.b16 %v454
    %v1364 = vunpack.c.l.b16 %v455
    %v1365 = vunpack.c.l.b16 %v456
    %v1366 = vunpack.c.h.b16 %v456
    %v1367 = vunpack.c.l.b16 %v457
    %v1368 = vunpack.c.l.b16 %v458
    %v1369 = vunpack.c.h.b16 %v458
    %v1370 = vunpack.c.l.b16 %v459
    %v1371 = vunpack.c.l.b16 %v460
    %v1372 = vunpack.c.h.b16 %v460
    %v1373 = vunpack.c.l.b16 %v461
    %v1374 = vunpack.c.l.b16 %v462
    %v1375 = vunpack.c.h.b16 %v462
    %v1376 = vunpack.c.l.b16 %v463
    %v1377 = vunpack.c.l.b16 %v464
    %v1378 = vunpack.c.h.b16 %v464
    %v1379 = vunpack.c.l.b16 %v465
    %v1380 = vunpack.c.l.b16 %v466
    %v1381 = vunpack.c.h.b16 %v466
    %v1382 = vunpack.c.l.b16 %v467
    %v1383 = vunpack.c.l.b16 %v468
    %v1384 = vunpack.c.h.b16 %v468
    %v1385 = vunpack.c.l.b16 %v469
    %v1386 = vunpack.c.l.b16 %v470
    %v1387 = vunpack.c.h.b16 %v470
    %v1388 = vunpack.c.l.b16 %v471
    %v1389 = vunpack.c.l.b16 %v472
    %v1390 = vunpack.c.h.b16 %v472
    %v1391 = vunpack.c.l.b16 %v473
    %v1392 = vunpack.c.l.b16 %v474
    %v1393 = vunpack.c.h.b16 %v474
    %v1394 = vunpack.c.l.b16 %v475
    %v1395 = vunpack.c.l.b16 %v476
    %v1396 = vunpack.c.h.b16 %v476
    %v1397 = vunpack.c.l.b16 %v477
    %v1398 = vunpack.c.l.b16 %v478
    %v1399 = vunpack.c.h.b16 %v478
    %v1400 = vunpack.c.l.b16 %v479
    %v1401 = vunpack.c.l.b16 %v480
    %v1402 = vunpack.c.h.b16 %v480
    %v1403 = vunpack.c.l.b16 %v481
    %v1404 = vunpack.c.l.b16 %v482
    %v1405 = vunpack.c.h.b16 %v482
    %v1406 = vunpack.c.l.b16 %v483
    %v1407 = vunpack.c.l.b16 %v484
    %v1408 = vunpack.c.h.b16 %v484
    %v1409 = vunpack.c.l.b16 %v485
    %v1410 = vunpack.c.l.b16 %v486
    %v1411 = vunpack.c.h.b16 %v486
    %v1412 = vunpack.c.l.b16 %v487
    %v1413 = vunpack.c.l.b16 %v488
    %v1414 = vunpack.c.h.b16 %v488
    %v1415 = vunpack.c.l.b16 %v489
    %v1416 = vunpack.c.l.b16 %v490
    %v1417 = vunpack.c.h.b16 %v490
    %v1418 = vunpack.c.l.b16 %v491
    %v1419 = vunpack.c.l.b16 %v492
    %v1420 = vunpack.c.h.b16 %v492
    %v1421 = vunpack.c.l.b16 %v493
    %v1422 = vunpack.c.l.b16 %v494
    %v1423 = vunpack.c.h.b16 %v494
    %v1424 = vunpack.c.l.b16 %v495
    %v1425 = vunpack.c.l.b16 %v496
    %v1426 = vunpack.c.h.b16 %v496
    %v1427 = vunpack.c.l.b16 %v497
    %v1428 = vunpack.c.l.b16 %v498
    %v1429 = vunpack.c.h.b16 %v498
    %v1430 = vunpack.c.l.b16 %v499
    %v1431 = vunpack.c.l.b16 %v500
    %v1432 = vunpack.c.h.b16 %v500
    %v1433 = vunpack.c.l.b16 %v501
    %v1434 = vunpack.c.l.b16 %v502
    %v1435 = vunpack.c.h.b16 %v502
    %v1436 = vunpack.c.l.b16 %v503
    %v1437 = vunpack.c.l.b16 %v504
    %v1438 = vunpack.c.h.b16 %v504
    %v1439 = vunpack.c.l.b16 %v505
    %v1440 = vunpack.c.l.b16 %v506
    %v1441 = vunpack.c.h.b16 %v506
    %v1442 = vunpack.c.l.b16 %v507
    %v1443 = vunpack.c.l.b16 %v508
    %v1444 = vunpack.c.h.b16 %v508
    %v1445 = vunpack.c.l.b16 %v509
    %v1446 = vunpack.c.l.b16 %v510
    %v1447 = vunpack.c.h.b16 %v510
    %v1448 = vunpack.c.l.b16 %v511
    %v1449 = vunpack.c.l.b16 %v512
    %v1450 = vunpack.c.h.b16 %v512
    %v1451 = vunpack.c.l.b16 %v513
    %v1452 = vunpack.c.l.b16 %v514
    %v1453 = vunpack.c.h.b16 %v514
    %v1454 = vunpack.c.l.b16 %v515
    %v1455 = vunpack.c.l.b16 %v516
    %v1456 = vunpack.c.h.b16 %v516
    %v1457 = vunpack.c.l.b16 %v517
    %v1458 = vunpack.c.l.b16 %v518
    %v1459 = vunpack.c.h.b16 %v518
    %v1460 = vunpack.c.l.b16 %v519
    %v1461 = vunpack.c.l.b16 %v520
    %v1462 = vunpack.c.h.b16 %v520
    %v1463 = vunpack.c.l.b16 %v521
    %v1464 = vunpack.c.l.b16 %v522
    %v1465 = vunpack.c.h.b16 %v522
    %v1466 = vunpack.c.l.b16 %v523
    %v1467 = vunpack.c.l.b16 %v524
    %v1468 = vunpack.c.h.b16 %v524
    %v1469 = vunpack.c.l.b16 %v525
    %v1470 = vunpack.c.l.b16 %v526
    %v1471 = vunpack.c.h.b16 %v526
    %v1472 = vunpack.c.l.b16 %v527
    %v1473 = vunpack.c.l.b16 %v528
    %v1474 = vunpack.c.h.b16 %v528
    %v1475 = vunpack.c.l.b16 %v529
    %v1476 = vunpack.c.l.b16 %v530
    %v1477 = vunpack.c.h.b16 %v530
    %v1478 = vunpack.c.l.b16 %v531
    %v1479 = vunpack.c.l.b16 %v532
    %v1480 = vunpack.c.h.b16 %v532
    %v1481 = vunpack.c.l.b16 %v533
    %v1482 = vunpack.c.l.b16 %v534
    %v1483 = vunpack.c.h.b16 %v534
    %v1484 = vunpack.c.l.b16 %v535
    %v1485 = vunpack.c.l.b16 %v536
    %v1486 = vunpack.c.h.b16 %v536
    %v1487 = vunpack.c.l.b16 %v537
    %v1488 = vunpack.c.l.b16 %v538
    %v1489 = vunpack.c.h.b16 %v538
    %v1490 = vunpack.c.l.b16 %v539
    %v1491 = vunpack.c.l.b16 %v540
    %v1492 = vunpack.c.h.b16 %v540
    %v1493 = vunpack.c.l.b16 %v541
    %v1494 = vunpack.c.l.b16 %v542
    %v1495 = vunpack.c.h.b16 %v542
    %v1496 = vunpack.c.l.b16 %v543
    %v1497 = vunpack.c.l.b16 %v544
    %v1498 = vunpack.c.h.b16 %v544
    %v1499 = vunpack.c.l.b16 %v545
    %v1500 = vunpack.c.l.b16 %v546
    %v1501 = vunpack.c.h.b16 %v546
    %v1502 = vunpack.c.l.b16 %v547
    %v1503 = vunpack.c.l.b16 %v548
    %v1504 = vunpack.c.h.b16 %v548
    %v1505 = vunpack.c.l.b16 %v549
    %v1506 = vunpack.c.l.b16 %v550
    %v1507 = vunpack.c.h.b16 %v550
    %v1508 = vunpack.c.l.b16 %v551
    %v1509 = vunpack.c.l.b16 %v552
    %v1510 = vunpack.c.h.b16 %v552
    %v1511 = vunpack.c.l.b16 %v553
    %v1512 = vunpack.c.l.b16 %v554
    %v1513 = vunpack.c.h.b16 %v554
    %v1514 = vunpack.c.l.b16 %v555
    %v1515 = vunpack.c.l.b16 %v556
    %v1516 = vunpack.c.h.b16 %v556
    %v1517 = vunpack.c.l.b16 %v557
    %v1518 = vunpack.c.l.b16 %v558
    %v1519 = vunpack.c.h.b16 %v558
    %v1520 = vunpack.c.l.b16 %v559
    %v1521 = vunpack.c.l.b16 %v560
    %v1522 = vunpack.c.h.b16 %v560
    %v1523 = vunpack.c.l.b16 %v561
    %v1524 = vunpack.c.l.b16 %v562
    %v1525 = vunpack.c.h.b16 %v562
    %v1526 = vunpack.c.l.b16 %v563
    %v1527 = vunpack.c.l.b16 %v564
    %v1528 = vunpack.c.h.b16 %v564
    %v1529 = vunpack.c.l.b16 %v565
    %v1530 = vunpack.c.l.b16 %v566
    %v1531 = vunpack.c.h.b16 %v566
    %v1532 = vunpack.c.l.b16 %v567
    %v1533 = vunpack.c.l.b16 %v568
    %v1534 = vunpack.c.h.b16 %v568
    %v1535 = vunpack.c.l.b16 %v569
    %v1536 = vunpack.c.l.b16 %v570
    %v1537 = vunpack.c.h.b16 %v570
    %v1538 = vunpack.c.l.b16 %v571
    %v1539 = vunpack.c.l.b16 %v572
    %v1540 = vunpack.c.h.b16 %v572
    %v1541 = vunpack.c.l.b16 %v573
    %v1542 = vunpack.c.l.b16 %v574
    %v1543 = vunpack.c.h.b16 %v574
    %v1544 = vunpack.c.l.b16 %v575
    %v1545 = vunpack.c.l.b16 %v576
    %v1546 = vunpack.c.h.b16 %v576
    %v1547 = vunpack.c.l.b16 %v577
    %v1548 = vunpack.c.l.b16 %v578
    %v1549 = vunpack.c.h.b16 %v578
    %v1550 = vunpack.c.l.b16 %v579
    %v1551 = vunpack.c.l.b16 %v580
    %v1552 = vunpack.c.h.b16 %v580
    %v1553 = vunpack.c.l.b16 %v581
    %v1554 = vunpack.c.l.b16 %v582
    %v1555 = vunpack.c.h.b16 %v582
    %v1556 = vunpack.c.l.b16 %v583
    %v1557 = vunpack.c.l.b16 %v584
    %v1558 = vunpack.c.h.b16 %v584
    %v1559 = vunpack.c.l.b16 %v585
    %v1560 = vunpack.c.l.b16 %v586
    %v1561 = vunpack.c.h.b16 %v586
    %v1562 = vunpack.c.l.b16 %v587
    %v1563 = vunpack.c.l.b16 %v588
    %v1564 = vunpack.c.h.b16 %v588
    %v1565 = vunpack.c.l.b16 %v589
    %v1566 = vunpack.c.l.b16 %v590
    %v1567 = vunpack.c.h.b16 %v590
    %v1568 = vunpack.c.l.b16 %v591
    %v1569 = vunpack.c.l.b16 %v592
    %v1570 = vunpack.c.h.b16 %v592
    %v1571 = vunpack.c.l.b16 %v593
    %v1572 = vunpack.c.l.b16 %v594
    %v1573 = vunpack.c.h.b16 %v594
    %v1574 = vunpack.c.l.b16 %v595
    %v1575 = vunpack.c.l.b16 %v596
    %v1576 = vunpack.c.h.b16 %v596
    %v1577 = vunpack.c.l.b16 %v597
    %v1578 = vunpack.c.l.b16 %v598
    %v1579 = vunpack.c.h.b16 %v598
    %v1580 = vunpack.c.l.b16 %v599
    %v1581 = vunpack.c.l.b16 %v600
    %v1582 = vunpack.c.h.b16 %v600
    %v1583 = vunpack.c.l.b16 %v601
    %v1584 = vunpack.c.l.b16 %v602
    %v1585 = vunpack.c.h.b16 %v602
    %v1586 = vunpack.c.l.b16 %v603
    %v1587 = vunpack.c.l.b16 %v604
    %v1588 = vunpack.c.h.b16 %v604
    %v1589 = vunpack.c.l.b16 %v605
    %v1590 = vunpack.c.l.b16 %v606
    %v1591 = vunpack.c.h.b16 %v606
    %v1592 = vunpack.c.l.b16 %v607
    %v1593 = vunpack.c.l.b16 %v608
    %v1594 = vunpack.c.h.b16 %v608
    %v1595 = vunpack.c.l.b16 %v609
    %v1596 = vunpack.c.l.b16 %v610
    %v1597 = vunpack.c.h.b16 %v610
    %v1598 = vunpack.c.l.b16 %v611
    %v1599 = vunpack.c.l.b16 %v612
    %v1600 = vunpack.c.h.b16 %v612
    %v1601 = vunpack.c.l.b16 %v613
    %v1602 = vunpack.c.l.b16 %v614
    %v1603 = vunpack.c.h.b16 %v614
    %v1604 = vunpack.c.l.b16 %v615
    %v1605 = vunpack.c.l.b16 %v616
    %v1606 = vunpack.c.h.b16 %v616
    %v1607 = vunpack.c.l.b16 %v617
    %v1608 = vunpack.c.l.b16 %v618
    %v1609 = vunpack.c.h.b16 %v618
    %v1610 = vunpack.c.l.b16 %v619
    %v1611 = vunpack.c.l.b16 %v620
    %v1612 = vunpack.c.h.b16 %v620
    %v1613 = vunpack.c.l.b16 %v621
    %v1614 = vunpack.c.l.b16 %v622
    %v1615 = vunpack.c.h.b16 %v622
    %v1616 = vunpack.c.l.b16 %v623
    %v1617 = vunpack.c.l.b16 %v624
    %v1618 = vunpack.c.h.b16 %v624
    %v1619 = vunpack.c.l.b16 %v625
    %v1620 = vunpack.c.l.b16 %v626
    %v1621 = vunpack.c.h.b16 %v626
    %v1622 = vunpack.c.l.b16 %v627
    %v1623 = vunpack.c.l.b16 %v628
    %v1624 = vunpack.c.h.b16 %v628
    %v1625 = vunpack.c.l.b16 %v629
    %v1626 = vunpack.c.l.b16 %v630
    %v1627 = vunpack.c.h.b16 %v630
    %v1628 = vunpack.c.l.b16 %v631
    %v1629 = vunpack.c.l.b16 %v632
    %v1630 = vunpack.c.h.b16 %v632
    %v1631 = vunpack.c.l.b16 %v633
    %v1632 = vunpack.c.l.b16 %v634
    %v1633 = vunpack.c.h.b16 %v634
    %v1634 = vunpack.c.l.b16 %v635
    %v1635 = vunpack.c.l.b16 %v636
    %v1636 = vunpack.c.h.b16 %v636
    %v1637 = vunpack.c.l.b16 %v637
    %v1638 = vunpack.c.l.b16 %v638
    %v1639 = vunpack.c.h.b16 %v638
    %v1640 = vunpack.c.l.b16 %v639
    %v1641 = vunpack.c.l.b16 %v640
    %v1642 = vunpack.c.h.b16 %v640
    %v1643 = vunpack.c.l.b16 %v641
    %v1644 = vunpack.c.l.b16 %v642
    %v1645 = vunpack.c.h.b16 %v642
    %v1646 = vunpack.c.l.b16 %v643
    %v1647 = vunpack.c.l.b16 %v644
    %v1648 = vunpack.c.h.b16 %v644
    %v1649 = vunpack.c.l.b16 %v645
    %v1650 = vunpack.c.l.b16 %v646
    %v1651 = vunpack.c.h.b16 %v646
    %v1652 = vunpack.c.l.b16 %v647
    %v1653 = vunpack.c.l.b16 %v648
    %v1654 = vunpack.c.h.b16 %v648
    %v1655 = vunpack.c.l.b16 %v649
    %v1656 = vunpack.c.l.b16 %v650
    %v1657 = vunpack.c.h.b16 %v650
    %v1658 = vunpack.c.l.b16 %v651
    %v1659 = vunpack.c.l.b16 %v652
    %v1660 = vunpack.c.h.b16 %v652
    %v1661 = vunpack.c.l.b16 %v653
    %v1662 = vunpack.c.l.b16 %v654
    %v1663 = vunpack.c.h.b16 %v654
    %v1664 = vunpack.c.l.b16 %v655
    %v1665 = vunpack.c.l.b16 %v656
    %v1666 = vunpack.c.h.b16 %v656
    %v1667 = vunpack.c.l.b16 %v657
    %v1668 = vunpack.c.l.b16 %v658
    %v1669 = vunpack.c.h.b16 %v658
    %v1670 = vunpack.c.l.b16 %v659
    %v1671 = vunpack.c.l.b16 %v660
    %v1672 = vunpack.c.h.b16 %v660
    %v1673 = vunpack.c.l.b16 %v661
    %v1674 = vunpack.c.l.b16 %v662
    %v1675 = vunpack.c.h.b16 %v662
    %v1676 = vunpack.c.l.b16 %v663
    %v1677 = vunpack.c.l.b16 %v664
    %v1678 = vunpack.c.h.b16 %v664
    %v1679 = vunpack.c.l.b16 %v665
    %v1680 = vunpack.c.l.b16 %v666
    %v1681 = vunpack.c.h.b16 %v666
    %v1682 = vunpack.c.l.b16 %v667
    %v1683 = vunpack.c.l.b16 %v668
    %v1684 = vunpack.c.h.b16 %v668
    %v1685 = vunpack.c.l.b16 %v669
    %v1686 = vunpack.c.l.b16 %v670
    %v1687 = vunpack.c.h.b16 %v670
    %v1688 = vunpack.c.l.b16 %v671
    %v1689 = vunpack.c.l.b16 %v672
    %v1690 = vunpack.c.h.b16 %v672
    %v1691 = vunpack.c.l.b16 %v673
    %v1692 = vunpack.c.l.b16 %v674
    %v1693 = vunpack.c.h.b16 %v674
    %v1694 = vunpack.c.l.b16 %v675
    %v1695 = vunpack.c.l.b16 %v676
    %v1696 = vunpack.c.h.b16 %v676
    %v1697 = vunpack.c.l.b16 %v677
    %v1698 = vunpack.c.l.b16 %v678
    %v1699 = vunpack.c.h.b16 %v678
    %v1700 = vunpack.c.l.b16 %v679
    %v1701 = vunpack.c.l.b16 %v680
    %v1702 = vunpack.c.h.b16 %v680
    %v1703 = vunpack.c.l.b16 %v681
    %v1704 = vunpack.c.l.b16 %v682
    %v1705 = vunpack.c.h.b16 %v682
    %v1706 = vunpack.c.l.b16 %v683
    %v1707 = vunpack.c.l.b16 %v684
    %v1708 = vunpack.c.h.b16 %v684
    %v1709 = vunpack.c.l.b16 %v685
    %v1710 = vunpack.c.l.b16 %v686
    %v1711 = vunpack.c.h.b16 %v686
    %v1712 = vunpack.c.l.b16 %v687
    %v1713 = vunpack.c.l.b16 %v688
    %v1714 = vunpack.c.h.b16 %v688
    %v1715 = vunpack.c.l.b16 %v689
    %v1716 = vunpack.c.l.b16 %v690
    %v1717 = vunpack.c.h.b16 %v690
    %v1718 = vunpack.c.l.b16 %v691
    %v1719 = vunpack.c.l.b16 %v692
    %v1720 = vunpack.c.h.b16 %v692
    %v1721 = vunpack.c.l.b16 %v693
    %v1722 = vunpack.c.l.b16 %v694
    %v1723 = vunpack.c.h.b16 %v694
    %v1724 = vunpack.c.l.b16 %v695
    %v1725 = vunpack.c.l.b16 %v696
    %v1726 = vunpack.c.h.b16 %v696
    %v1727 = vunpack.c.l.b16 %v697
    %v1728 = vunpack.c.l.b16 %v698
    %v1729 = vunpack.c.h.b16 %v698
    %v1730 = vunpack.c.l.b16 %v699
    %v1731 = vunpack.c.l.b16 %v700
    %v1732 = vunpack.c.h.b16 %v700
    %v1733 = vunpack.c.l.b16 %v701
    %v1734 = vunpack.c.l.b16 %v702
    %v1735 = vunpack.c.h.b16 %v702
    %v1736 = vunpack.c.l.b16 %v703
    %v1737 = vunpack.c.l.b16 %v704
    %v1738 = vunpack.c.h.b16 %v704
    %v1739 = vunpack.c.l.b16 %v705
    %v1740 = vunpack.c.l.b16 %v706
    %v1741 = vunpack.c.h.b16 %v706
    %v1742 = vunpack.c.l.b16 %v707
    %v1743 = vunpack.c.l.b16 %v708
    %v1744 = vunpack.c.h.b16 %v708
    %v1745 = vunpack.c.l.b16 %v709
    %v1746 = vunpack.c.l.b16 %v710
    %v1747 = vunpack.c.h.b16 %v710
    %v1748 = vunpack.c.l.b16 %v711
    %v1749 = vunpack.c.l.b16 %v712
    %v1750 = vunpack.c.h.b16 %v712
    %v1751 = vunpack.c.l.b16 %v713
    %v1752 = vunpack.c.l.b16 %v714
    %v1753 = vunpack.c.h.b16 %v714
    %v1754 = vunpack.c.l.b16 %v715
    %v1755 = vunpack.c.l.b16 %v716
    %v1756 = vunpack.c.h.b16 %v716
    %v1757 = vunpack.c.l.b16 %v717
    %v1758 = vunpack.c.l.b16 %v718
    %v1759 = vunpack.c.h.b16 %v718
    %v1760 = vunpack.c.l.b16 %v719
    %v1761 = vunpack.c.l.b16 %v720
    %v1762 = vunpack.c.h.b16 %v720
    %v1763 = vunpack.c.l.b16 %v721
    %v1764 = vunpack.c.l.b16 %v722
    %v1765 = vunpack.c.h.b16 %v722
    %v1766 = vunpack.c.l.b16 %v723
    %v1767 = vunpack.c.l.b16 %v724
    %v1768 = vunpack.c.h.b16 %v724
    %v1769 = vunpack.c.l.b16 %v725
    %v1770 = vunpack.c.l.b16 %v726
    %v1771 = vunpack.c.h.b16 %v726
    %v1772 = vunpack.c.l.b16 %v727
    %v1773 = vunpack.c.l.b16 %v728
    %v1774 = vunpack.c.h.b16 %v728
    %v1775 = vunpack.c.l.b16 %v729
    %v1776 = vunpack.c.l.b16 %v730
    %v1777 = vunpack.c.h.b16 %v730
    %v1778 = vunpack.c.l.b16 %v731
    %v1779 = vunpack.c.l.b16 %v732
    %v1780 = vunpack.c.h.b16 %v732
    %v1781 = vunpack.c.l.b16 %v733
    %v1782 = vunpack.c.l.b16 %v734
    %v1783 = vunpack.c.h.b16 %v734
    %v1784 = vunpack.c.l.b16 %v735
    %v1785 = vunpack.c.l.b16 %v736
    %v1786 = vunpack.c.h.b16 %v736
    %v1787 = vunpack.c.l.b16 %v737
    %v1788 = vunpack.c.l.b16 %v738
    %v1789 = vunpack.c.h.b16 %v738
    %v1790 = vunpack.c.l.b16 %v739
    %v1791 = vunpack.c.l.b16 %v740
    %v1792 = vunpack.c.h.b16 %v740
    %v1793 = vunpack.c.l.b16 %v741
    %v1794 = vunpack.c.l.b16 %v742
    %v1795 = vunpack.c.h.b16 %v742
    %v1796 = vunpack.c.l.b16 %v743
    %v1797 = vunpack.c.l.b16 %v744
    %v1798 = vunpack.c.h.b16 %v744
    %v1799 = vunpack.c.l.b16 %v745
    %v1800 = vunpack.c.l.b16 %v746
    %v1801 = vunpack.c.h.b16 %v746
    %v1802 = vunpack.c.l.b16 %v747
    %v1803 = vunpack.c.l.b16 %v748
    %v1804 = vunpack.c.h.b16 %v748
    %v1805 = vunpack.c.l.b16 %v749
    %v1806 = vunpack.c.l.b16 %v750
    %v1807 = vunpack.c.h.b16 %v750
    %v1808 = vunpack.c.l.b16 %v751
    %v1809 = vunpack.c.l.b16 %v752
    %v1810 = vunpack.c.h.b16 %v752
    %v1811 = vunpack.c.l.b16 %v753
    %v1812 = vunpack.c.l.b16 %v754
    %v1813 = vunpack.c.h.b16 %v754
    %v1814 = vunpack.c.l.b16 %v755
    %v1815 = vunpack.c.l.b16 %v756
    %v1816 = vunpack.c.h.b16 %v756
    %v1817 = vunpack.c.l.b16 %v757
    %v1818 = vunpack.c.l.b16 %v758
    %v1819 = vunpack.c.h.b16 %v758
    %v1820 = vunpack.c.l.b16 %v759
    %v1821 = vunpack.c.l.b16 %v760
    %v1822 = vunpack.c.h.b16 %v760
    %v1823 = vunpack.c.l.b16 %v761
    %v1824 = vunpack.c.l.b16 %v762
    %v1825 = vunpack.c.h.b16 %v762
    %v1826 = vunpack.c.l.b16 %v763
    %v1827 = vunpack.c.l.b16 %v764
    %v1828 = vunpack.c.h.b16 %v764
    %v1829 = vunpack.c.l.b16 %v765
    %v1830 = vunpack.c.l.b16 %v766
    %v1831 = vunpack.c.h.b16 %v766
    %v1832 = vunpack.c.l.b16 %v767
    %v1833 = vunpack.c.l.b16 %v768
    %v1834 = vunpack.c.h.b16 %v768
    %v1835 = vunpack.c.l.b16 %v769
    %v1836 = vunpack.c.l.b16 %v770
    %v1837 = vunpack.c.h.b16 %v770
    %v1838 = vunpack.c.l.b16 %v771
    %v1839 = vunpack.c.l.b16 %v772
    %v1840 = vunpack.c.h.b16 %v772
    %v1841 = vunpack.c.l.b16 %v773
    %v1842 = vunpack.c.l.b16 %v774
    %v1843 = vunpack.c.h.b16 %v774
    %v1844 = vunpack.c.l.b16 %v775
    %v1845 = vunpack.c.l.b16 %v776
    %v1846 = vunpack.c.h.b16 %v776
    %v1847 = vunpack.c.l.b16 %v777
    %v1848 = vunpack.c.l.b16 %v778
    %v1849 = vunpack.c.h.b16 %v778
    %v1850 = vunpack.c.l.b16 %v779
    %v1851 = vunpack.c.l.b16 %v780
    %v1852 = vunpack.c.h.b16 %v780
    %v1853 = vunpack.c.l.b16 %v781
    %v1854 = vunpack.c.l.b16 %v782
    %v1855 = vunpack.c.h.b16 %v782
    %v1856 = vunpack.c.l.b16 %v783
    %v1857 = vunpack.c.l.b16 %v784
    %v1858 = vunpack.c.h.b16 %v784
    %v1859 = vunpack.c.l.b16 %v785
    %v1860 = vunpack.c.l.b16 %v786
    %v1861 = vunpack.c.h.b16 %v786
    %v1862 = vunpack.c.l.b16 %v787
    %v1863 = vunpack.c.l.b16 %v788
    %v1864 = vunpack.c.h.b16 %v788
    %v1865 = vunpack.c.l.b16 %v789
    %v1866 = vunpack.c.l.b16 %v790
    %v1867 = vunpack.c.h.b16 %v790
    %v1868 = vunpack.c.l.b16 %v791
    %v1869 = vunpack.c.l.b16 %v792
    %v1870 = vunpack.c.h.b16 %v792
    %v1871 = vunpack.c.l.b16 %v793
    %v1872 = vunpack.c.l.b16 %v794
    %v1873 = vunpack.c.h.b16 %v794
    %v1874 = vunpack.c.l.b16 %v795
    %v1875 = vunpack.c.l.b16 %v796
    %v1876 = vunpack.c.h.b16 %v796
    %v1877 = vunpack.c.l.b16 %v797
    %v1878 = vunpack.c.l.b16 %v798
    %v1879 = vunpack.c.h.b16 %v798
    %v1880 = vunpack.c.l.b16 %v799
    %v1881 = vunpack.c.l.b16 %v800
    %v1882 = vunpack.c.h.b16 %v800
    %v1883 = vunpack.c.l.b16 %v801
    %v1884 = vunpack.c.l.b16 %v802
    %v1885 = vunpack.c.h.b16 %v802
    %v1886 = vunpack.c.l.b16 %v803
    %v1887 = vunpack.c.l.b16 %v804
    %v1888 = vunpack.c.h.b16 %v804
    %v1889 = vunpack.c.l.b16 %v805
    %v1890 = vunpack.c.l.b16 %v806
    %v1891 = vunpack.c.h.b16 %v806
    %v1892 = vunpack.c.l.b16 %v807
    %v1893 = vunpack.c.l.b16 %v808
    %v1894 = vunpack.c.h.b16 %v808
    %v1895 = vunpack.c.l.b16 %v809
    %v1896 = vunpack.c.l.b16 %v810
    %v1897 = vunpack.c.h.b16 %v810
    %v1898 = vunpack.c.l.b16 %v811
    %v1899 = vunpack.c.l.b16 %v812
    %v1900 = vunpack.c.h.b16 %v812
    %v1901 = vunpack.c.l.b16 %v813
    %v1902 = vunpack.c.l.b16 %v814
    %v1903 = vunpack.c.h.b16 %v814
    %v1904 = vunpack.c.l.b16 %v815
    %v1905 = vunpack.c.l.b16 %v816
    %v1906 = vunpack.c.h.b16 %v816
    %v1907 = vunpack.c.l.b16 %v817
    %v1908 = vunpack.c.l.b16 %v818
    %v1909 = vunpack.c.h.b16 %v818
    %v1910 = vunpack.c.l.b16 %v819
    %v1911 = vunpack.c.l.b16 %v820
    %v1912 = vunpack.c.h.b16 %v820
    %v1913 = vunpack.c.l.b16 %v821
    %v1914 = vunpack.c.l.b16 %v822
    %v1915 = vunpack.c.h.b16 %v822
    %v1916 = vunpack.c.l.b16 %v823
    %v1917 = vunpack.c.l.b16 %v824
    %v1918 = vunpack.c.h.b16 %v824
    %v1919 = vunpack.c.l.b16 %v825
    %v1920 = vunpack.c.l.b16 %v826
    %v1921 = vunpack.c.h.b16 %v826
    %v1922 = vunpack.c.l.b16 %v827
    %v1923 = vunpack.c.l.b16 %v828
    %v1924 = vunpack.c.h.b16 %v828
    %v1925 = vunpack.c.l.b16 %v829
    %v1926 = vunpack.c.l.b16 %v830
    %v1927 = vunpack.c.h.b16 %v830
    %v1928 = vunpack.c.l.b16 %v831
    %v1929 = vunpack.c.l.b16 %v832
    %v1930 = vunpack.c.h.b16 %v832
    %v1931 = vunpack.c.l.b16 %v833
    %v1932 = vunpack.c.l.b16 %v834
    %v1933 = vunpack.c.h.b16 %v834
    %v1934 = vunpack.c.l.b16 %v835
    %v1935 = vunpack.c.l.b16 %v836
    %v1936 = vunpack.c.h.b16 %v836
    %v1937 = vunpack.c.l.b16 %v837
    %v1938 = vunpack.c.l.b16 %v838
    %v1939 = vunpack.c.h.b16 %v838
    %v1940 = vunpack.c.l.b16 %v839
    %v1941 = vunpack.c.l.b16 %v840
    %v1942 = vunpack.c.h.b16 %v840
    %v1943 = vunpack.c.l.b16 %v841
    %v1944 = vpack.c.b16 %v1347, %v1344
    %v1945 = vpack.c.b16 %v1348, %v1345
    %v1946 = vpack.c.b16 %v1349, %v1346
    %v1947 = vpack.c.b16 %v1353, %v1350
    %v1948 = vpack.c.b16 %v1354, %v1351
    %v1949 = vpack.c.b16 %v1355, %v1352
    %v1950 = vpack.c.b16 %v1359, %v1356
    %v1951 = vpack.c.b16 %v1360, %v1357
    %v1952 = vpack.c.b16 %v1361, %v1358
    %v1953 = vpack.c.b16 %v1365, %v1362
    %v1954 = vpack.c.b16 %v1366, %v1363
    %v1955 = vpack.c.b16 %v1367, %v1364
    %v1956 = vpack.c.b16 %v1371, %v1368
    %v1957 = vpack.c.b16 %v1372, %v1369
    %v1958 = vpack.c.b16 %v1373, %v1370
    %v1959 = vpack.c.b16 %v1377, %v1374
    %v1960 = vpack.c.b16 %v1378, %v1375
    %v1961 = vpack.c.b16 %v1379, %v1376
    %v1962 = vpack.c.b16 %v1383, %v1380
    %v1963 = vpack.c.b16 %v1384, %v1381
    %v1964 = vpack.c.b16 %v1385, %v1382
    %v1965 = vpack.c.b16 %v1389, %v1386
    %v1966 = vpack.c.b16 %v1390, %v1387
    %v1967 = vpack.c.b16 %v1391, %v1388
    %v1968 = vpack.c.b16 %v1395, %v1392
    %v1969 = vpack.c.b16 %v1396, %v1393
    %v1970 = vpack.c.b16 %v1397, %v1394
    %v1971 = vpack.c.b16 %v1401, %v1398
    %v1972 = vpack.c.b16 %v1402, %v1399
    %v1973 = vpack.c.b16 %v1403, %v1400
    %v1974 = vpack.c.b16 %v1407, %v1404
    %v1975 = vpack.c.b16 %v1408, %v1405
    %v1976 = vpack.c.b16 %v1409, %v1406
    %v1977 = vpack.c.b16 %v1413, %v1410
    %v1978 = vpack.c.b16 %v1414, %v1411
    %v1979 = vpack.c.b16 %v1415, %v1412
    %v1980 = vpack.c.b16 %v1419, %v1416
    %v1981 = vpack.c.b16 %v1420, %v1417
    %v1982 = vpack.c.b16 %v1421, %v1418
    %v1983 = vpack.c.b16 %v1425, %v1422
    %v1984 = vpack.c.b16 %v1426, %v1423
    %v1985 = vpack.c.b16 %v1427, %v1424
    %v1986 = vpack.c.b16 %v1431, %v1428
    %v1987 = vpack.c.b16 %v1432, %v1429
    %v1988 = vpack.c.b16 %v1433, %v1430
    %v1989 = vpack.c.b16 %v1437, %v1434
    %v1990 = vpack.c.b16 %v1438, %v1435
    %v1991 = vpack.c.b16 %v1439, %v1436
    %v1992 = vpack.c.b16 %v1443, %v1440
    %v1993 = vpack.c.b16 %v1444, %v1441
    %v1994 = vpack.c.b16 %v1445, %v1442
    %v1995 = vpack.c.b16 %v1449, %v1446
    %v1996 = vpack.c.b16 %v1450, %v1447
    %v1997 = vpack.c.b16 %v1451, %v1448
    %v1998 = vpack.c.b16 %v1455, %v1452
    %v1999 = vpack.c.b16 %v1456, %v1453
    %v2000 = vpack.c.b16 %v1457, %v1454
    %v2001 = vpack.c.b16 %v1461, %v1458
    %v2002 = vpack.c.b16 %v1462, %v1459
    %v2003 = vpack.c.b16 %v1463, %v1460
    %v2004 = vpack.c.b16 %v1467, %v1464
    %v2005 = vpack.c.b16 %v1468, %v1465
    %v2006 = vpack.c.b16 %v1469, %v1466
    %v2007 = vpack.c.b16 %v1473, %v1470
    %v2008 = vpack.c.b16 %v1474, %v1471
    %v2009 = vpack.c.b16 %v1475, %v1472
    %v2010 = vpack.c.b16 %v1479, %v1476
    %v2011 = vpack.c.b16 %v1480, %v1477
    %v2012 = vpack.c.b16 %v1481, %v1478
    %v2013 = vpack.c.b16 %v1485, %v1482
    %v2014 = vpack.c.b16 %v1486, %v1483
    %v2015 = vpack.c.b16 %v1487, %v1484
    %v2016 = vpack.c.b16 %v1491, %v1488
    %v2017 = vpack.c.b16 %v1492, %v1489
    %v2018 = vpack.c.b16 %v1493, %v1490
    %v2019 = vpack.c.b16 %v1497, %v1494
    %v2020 = vpack.c.b16 %v1498, %v1495
    %v2021 = vpack.c.b16 %v1499, %v1496
    %v2022 = vpack.c.b16 %v1503, %v1500
    %v2023 = vpack.c.b16 %v1504, %v1501
    %v2024 = vpack.c.b16 %v1505, %v1502
    %v2025 = vpack.c.b16 %v1509, %v1506
    %v2026 = vpack.c.b16 %v1510, %v1507
    %v2027 = vpack.c.b16 %v1511, %v1508
    %v2028 = vpack.c.b16 %v1515, %v1512
    %v2029 = vpack.c.b16 %v1516, %v1513
    %v2030 = vpack.c.b16 %v1517, %v1514
    %v2031 = vpack.c.b16 %v1521, %v1518
    %v2032 = vpack.c.b16 %v1522, %v1519
    %v2033 = vpack.c.b16 %v1523, %v1520
    %v2034 = vpack.c.b16 %v1527, %v1524
    %v2035 = vpack.c.b16 %v1528, %v1525
    %v2036 = vpack.c.b16 %v1529, %v1526
    %v2037 = vpack.c.b16 %v1533, %v1530
    %v2038 = vpack.c.b16 %v1534, %v1531
    %v2039 = vpack.c.b16 %v1535, %v1532
    %v2040 = vpack.c.b16 %v1539, %v1536
    %v2041 = vpack.c.b16 %v1540, %v1537
    %v2042 = vpack.c.b16 %v1541, %v1538
    %v2043 = vpack.c.b16 %v1545, %v1542
    %v2044 = vpack.c.b16 %v1546, %v1543
    %v2045 = vpack.c.b16 %v1547, %v1544
    %v2046 = vpack.c.b16 %v1551, %v1548
    %v2047 = vpack.c.b16 %v1552, %v1549
    %v2048 = vpack.c.b16 %v1553, %v1550
    %v2049 = vpack.c.b16 %v1557, %v1554
    %v2050 = vpack.c.b16 %v1558, %v1555
    %v2051 = vpack.c.b16 %v1559, %v1556
    %v2052 = vpack.c.b16 %v1563, %v1560
    %v2053 = vpack.c.b16 %v1564, %v1561
    %v2054 = vpack.c.b16 %v1565, %v1562
    %v2055 = vpack.c.b16 %v1569, %v1566
    %v2056 = vpack.c.b16 %v1570, %v1567
    %v2057 = vpack.c.b16 %v1571, %v1568
    %v2058 = vpack.c.b16 %v1575, %v1572
    %v2059 = vpack.c.b16 %v1576, %v1573
    %v2060 = vpack.c.b16 %v1577, %v1574
    %v2061 = vpack.c.b16 %v1581, %v1578
    %v2062 = vpack.c.b16 %v1582, %v1579
    %v2063 = vpack.c.b16 %v1583, %v1580
    %v2064 = vpack.c.b16 %v1587, %v1584
    %v2065 = vpack.c.b16 %v1588, %v1585
    %v2066 = vpack.c.b16 %v1589, %v1586
    %v2067 = vpack.c.b16 %v1593, %v1590
    %v2068 = vpack.c.b16 %v1594, %v1591
    %v2069 = vpack.c.b16 %v1595, %v1592
    %v2070 = vpack.c.b16 %v1599, %v1596
    %v2071 = vpack.c.b16 %v1600, %v1597
    %v2072 = vpack.c.b16 %v1601, %v1598
    %v2073 = vpack.c.b16 %v1605, %v1602
    %v2074 = vpack.c.b16 %v1606, %v1603
    %v2075 = vpack.c.b16 %v1607, %v1604
    %v2076 = vpack.c.b16 %v1611, %v1608
    %v2077 = vpack.c.b16 %v1612, %v1609
    %v2078 = vpack.c.b16 %v1613, %v1610
    %v2079 = vpack.c.b16 %v1617, %v1614
    %v2080 = vpack.c.b16 %v1618, %v1615
    %v2081 = vpack.c.b16 %v1619, %v1616
    %v2082 = vpack.c.b16 %v1623, %v1620
    %v2083 = vpack.c.b16 %v1624, %v1621
    %v2084 = vpack.c.b16 %v1625, %v1622
    %v2085 = vpack.c.b16 %v1629, %v1626
    %v2086 = vpack.c.b16 %v1630, %v1627
    %v2087 = vpack.c.b16 %v1631, %v1628
    %v2088 = vpack.c.b16 %v1635, %v1632
    %v2089 = vpack.c.b16 %v1636, %v1633
    %v2090 = vpack.c.b16 %v1637, %v1634
    %v2091 = vpack.c.b16 %v1641, %v1638
    %v2092 = vpack.c.b16 %v1642, %v1639
    %v2093 = vpack.c.b16 %v1643, %v1640
    %v2094 = vpack.c.b16 %v1647, %v1644
    %v2095 = vpack.c.b16 %v1648, %v1645
    %v2096 = vpack.c.b16 %v1649, %v1646
    %v2097 = vpack.c.b16 %v1653, %v1650
    %v2098 = vpack.c.b16 %v1654, %v1651
    %v2099 = vpack.c.b16 %v1655, %v1652
    %v2100 = vpack.c.b16 %v1659, %v1656
    %v2101 = vpack.c.b16 %v1660, %v1657
    %v2102 = vpack.c.b16 %v1661, %v1658
    %v2103 = vpack.c.b16 %v1665, %v1662
    %v2104 = vpack.c.b16 %v1666, %v1663
    %v2105 = vpack.c.b16 %v1667, %v1664
    %v2106 = vpack.c.b16 %v1671, %v1668
    %v2107 = vpack.c.b16 %v1672, %v1669
    %v2108 = vpack.c.b16 %v1673, %v1670
    %v2109 = vpack.c.b16 %v1677, %v1674
    %v2110 = vpack.c.b16 %v1678, %v1675
    %v2111 = vpack.c.b16 %v1679, %v1676
    %v2112 = vpack.c.b16 %v1683, %v1680
    %v2113 = vpack.c.b16 %v1684, %v1681
    %v2114 = vpack.c.b16 %v1685, %v1682
    %v2115 = vpack.c.b16 %v1689, %v1686
    %v2116 = vpack.c.b16 %v1690, %v1687
    %v2117 = vpack.c.b16 %v1691, %v1688
    %v2118 = vpack.c.b16 %v1695, %v1692
    %v2119 = vpack.c.b16 %v1696, %v1693
    %v2120 = vpack.c.b16 %v1697, %v1694
    %v2121 = vpack.c.b16 %v1701, %v1698
    %v2122 = vpack.c.b16 %v1702, %v1699
    %v2123 = vpack.c.b16 %v1703, %v1700
    %v2124 = vpack.c.b16 %v1707, %v1704
    %v2125 = vpack.c.b16 %v1708, %v1705
    %v2126 = vpack.c.b16 %v1709, %v1706
    %v2127 = vpack.c.b16 %v1713, %v1710
    %v2128 = vpack.c.b16 %v1714, %v1711
    %v2129 = vpack.c.b16 %v1715, %v1712
    %v2130 = vpack.c.b16 %v1719, %v1716
    %v2131 = vpack.c.b16 %v1720, %v1717
    %v2132 = vpack.c.b16 %v1721, %v1718
    %v2133 = vpack.c.b16 %v1725, %v1722
    %v2134 = vpack.c.b16 %v1726, %v1723
    %v2135 = vpack.c.b16 %v1727, %v1724
    %v2136 = vpack.c.b16 %v1731, %v1728
    %v2137 = vpack.c.b16 %v1732, %v1729
    %v2138 = vpack.c.b16 %v1733, %v1730
    %v2139 = vpack.c.b16 %v1737, %v1734
    %v2140 = vpack.c.b16 %v1738, %v1735
    %v2141 = vpack.c.b16 %v1739, %v1736
    %v2142 = vpack.c.b16 %v1743, %v1740
    %v2143 = vpack.c.b16 %v1744, %v1741
    %v2144 = vpack.c.b16 %v1745, %v1742
    %v2145 = vpack.c.b16 %v1749, %v1746
    %v2146 = vpack.c.b16 %v1750, %v1747
    %v2147 = vpack.c.b16 %v1751, %v1748
    %v2148 = vpack.c.b16 %v1755, %v1752
    %v2149 = vpack.c.b16 %v1756, %v1753
    %v2150 = vpack.c.b16 %v1757, %v1754
    %v2151 = vpack.c.b16 %v1761, %v1758
    %v2152 = vpack.c.b16 %v1762, %v1759
    %v2153 = vpack.c.b16 %v1763, %v1760
    %v2154 = vpack.c.b16 %v1767, %v1764
    %v2155 = vpack.c.b16 %v1768, %v1765
    %v2156 = vpack.c.b16 %v1769, %v1766
    %v2157 = vpack.c.b16 %v1773, %v1770
    %v2158 = vpack.c.b16 %v1774, %v1771
    %v2159 = vpack.c.b16 %v1775, %v1772
    %v2160 = vpack.c.b16 %v1779, %v1776
    %v2161 = vpack.c.b16 %v1780, %v1777
    %v2162 = vpack.c.b16 %v1781, %v1778
    %v2163 = vpack.c.b16 %v1785, %v1782
    %v2164 = vpack.c.b16 %v1786, %v1783
    %v2165 = vpack.c.b16 %v1787, %v1784
    %v2166 = vpack.c.b16 %v1791, %v1788
    %v2167 = vpack.c.b16 %v1792, %v1789
    %v2168 = vpack.c.b16 %v1793, %v1790
    %v2169 = vpack.c.b16 %v1797, %v1794
    %v2170 = vpack.c.b16 %v1798, %v1795
    %v2171 = vpack.c.b16 %v1799, %v1796
    %v2172 = vpack.c.b16 %v1803, %v1800
    %v2173 = vpack.c.b16 %v1804, %v1801
    %v2174 = vpack.c.b16 %v1805, %v1802
    %v2175 = vpack.c.b16 %v1809, %v1806
    %v2176 = vpack.c.b16 %v1810, %v1807
    %v2177 = vpack.c.b16 %v1811, %v1808
    %v2178 = vpack.c.b16 %v1815, %v1812
    %v2179 = vpack.c.b16 %v1816, %v1813
    %v2180 = vpack.c.b16 %v1817, %v1814
    %v2181 = vpack.c.b16 %v1821, %v1818
    %v2182 = vpack.c.b16 %v1822, %v1819
    %v2183 = vpack.c.b16 %v1823, %v1820
    %v2184 = vpack.c.b16 %v1827, %v1824
    %v2185 = vpack.c.b16 %v1828, %v1825
    %v2186 = vpack.c.b16 %v1829, %v1826
    %v2187 = vpack.c.b16 %v1833, %v1830
    %v2188 = vpack.c.b16 %v1834, %v1831
    %v2189 = vpack.c.b16 %v1835, %v1832
    %v2190 = vpack.c.b16 %v1839, %v1836
    %v2191 = vpack.c.b16 %v1840, %v1837
    %v2192 = vpack.c.b16 %v1841, %v1838
    %v2193 = vpack.c.b16 %v1845, %v1842
    %v2194 = vpack.c.b16 %v1846, %v1843
    %v2195 = vpack.c.b16 %v1847, %v1844
    %v2196 = vpack.c.b16 %v1851, %v1848
    %v2197 = vpack.c.b16 %v1852, %v1849
    %v2198 = vpack.c.b16 %v1853, %v1850
    %v2199 = vpack.c.b16 %v1857, %v1854
    %v2200 = vpack.c.b16 %v1858, %v1855
    %v2201 = vpack.c.b16 %v1859, %v1856
    %v2202 = vpack.c.b16 %v1863, %v1860
    %v2203 = vpack.c.b16 %v1864, %v1861
    %v2204 = vpack.c.b16 %v1865, %v1862
    %v2205 = vpack.c.b16 %v1869, %v1866
    %v2206 = vpack.c.b16 %v1870, %v1867
    %v2207 = vpack.c.b16 %v1871, %v1868
    %v2208 = vpack.c.b16 %v1875, %v1872
    %v2209 = vpack.c.b16 %v1876, %v1873
    %v2210 = vpack.c.b16 %v1877, %v1874
    %v2211 = vpack.c.b16 %v1881, %v1878
    %v2212 = vpack.c.b16 %v1882, %v1879
    %v2213 = vpack.c.b16 %v1883, %v1880
    %v2214 = vpack.c.b16 %v1887, %v1884
    %v2215 = vpack.c.b16 %v1888, %v1885
    %v2216 = vpack.c.b16 %v1889, %v1886
    %v2217 = vpack.c.b16 %v1893, %v1890
    %v2218 = vpack.c.b16 %v1894, %v1891
    %v2219 = vpack.c.b16 %v1895, %v1892
    %v2220 = vpack.c.b16 %v1899, %v1896
    %v2221 = vpack.c.b16 %v1900, %v1897
    %v2222 = vpack.c.b16 %v1901, %v1898
    %v2223 = vpack.c.b16 %v1905, %v1902
    %v2224 = vpack.c.b16 %v1906, %v1903
    %v2225 = vpack.c.b16 %v1907, %v1904
    %v2226 = vpack.c.b16 %v1911, %v1908
    %v2227 = vpack.c.b16 %v1912, %v1909
    %v2228 = vpack.c.b16 %v1913, %v1910
    %v2229 = vpack.c.b16 %v1917, %v1914
    %v2230 = vpack.c.b16 %v1918, %v1915
    %v2231 = vpack.c.b16 %v1919, %v1916
    %v2232 = vpack.c.b16 %v1923, %v1920
    %v2233 = vpack.c.b16 %v1924, %v1921
    %v2234 = vpack.c.b16 %v1925, %v1922
    %v2235 = vpack.c.b16 %v1929, %v1926
    %v2236 = vpack.c.b16 %v1930, %v1927
    %v2237 = vpack.c.b16 %v1931, %v1928
    %v2238 = vpack.c.b16 %v1935, %v1932
    %v2239 = vpack.c.b16 %v1936, %v1933
    %v2240 = vpack.c.b16 %v1937, %v1934
    %v2241 = vpack.c.b16 %v1941, %v1938
    %v2242 = vpack.c.b16 %v1942, %v1939
    %v2243 = vpack.c.b16 %v1943, %v1940
    %vm2544 = vcmask 523264
    %v2546 = vsel %vm2544, %v922, 0
    %2548 = vmatprep.subr.bf16.mxu0 %v1945
    %2549 = vmatpush1.bf16.msra.mxu0 %v1944
    %2550 = vmatprep.subr.bf16.mxu0 %v1948
    %2551 = vmatpush1.bf16.msra.mxu0 %v1947
    %2552 = vmatprep.subr.bf16.mxu0 %v1951
    %2553 = vmatpush1.bf16.msra.mxu0 %v1950
    %2554 = vmatprep.subr.bf16.mxu0 %v1954
    %2555 = vmatpush1.bf16.msra.mxu0 %v1953
    %2556 = vmatprep.subr.bf16.mxu0 %v1957
    %2557 = vmatpush1.bf16.msra.mxu0 %v1956
    %2558 = vmatprep.subr.bf16.mxu0 %v1960
    %2559 = vmatpush1.bf16.msra.mxu0 %v1959
    %2560 = vmatprep.subr.bf16.mxu0 %v1963
    %2561 = vmatpush1.bf16.msra.mxu0 %v1962
    %2562 = vmatprep.subr.bf16.mxu0 %v1966
    %2563 = vmatpush1.bf16.msra.mxu0 %v1965
    %2564 = vmatprep.subr.bf16.mxu0 %v1969
    %2565 = vmatpush1.bf16.msra.mxu0 %v1968
    %2566 = vmatprep.subr.bf16.mxu0 %v1972
    %2567 = vmatpush1.bf16.msra.mxu0 %v1971
    %2568 = vmatprep.subr.bf16.mxu0 %v1975
    %2569 = vmatpush1.bf16.msra.mxu0 %v1974
    %2570 = vmatprep.subr.bf16.mxu0 %v1978
    %2571 = vmatpush1.bf16.msra.mxu0 %v1977
    %2572 = vmatprep.subr.bf16.mxu0 %v1981
    %2573 = vmatpush1.bf16.msra.mxu0 %v1980
    %2574 = vmatprep.subr.bf16.mxu0 %v1984
    %2575 = vmatpush1.bf16.msra.mxu0 %v1983
    %2576 = vmatprep.subr.bf16.mxu0 %v1987
    %2577 = vmatpush1.bf16.msra.mxu0 %v1986
    %2578 = vmatprep.subr.bf16.mxu0 %v1990
    %2579 = vmatpush1.bf16.msra.mxu0 %v1989
    %2580 = vmatprep.mubr.bf16.mxu0 %v881
    %2581 = vmatmul.mubr.bf16.gmra.mrb[0].mxu0 %v867
    %v2582 = vpop.f32.mrb[0].mxu0
    %v2583 = vadd.f32 0.0, %v2582
    %v2584 = vpop.f32.mrb[0].mxu0
    %v2585 = vadd.f32 0.0, %v2584
    %v2586 = vpop.f32.mrb[0].mxu0
    %v2587 = vpop.f32.mrb[0].mxu0
    %2588 = vdwg.mxu0
    %2589 = vmatprep.subr.bf16.mxu0 %v1993
    %2590 = vmatpush1.bf16.msra.mxu0 %v1992
    %2591 = vmatprep.subr.bf16.mxu0 %v1996
    %2592 = vmatpush1.bf16.msra.mxu0 %v1995
    %2593 = vmatprep.subr.bf16.mxu0 %v1999
    %2594 = vmatpush1.bf16.msra.mxu0 %v1998
    %2595 = vmatprep.subr.bf16.mxu0 %v2002
    %2596 = vmatpush1.bf16.msra.mxu0 %v2001
    %2597 = vmatprep.subr.bf16.mxu0 %v2005
    %2598 = vmatpush1.bf16.msra.mxu0 %v2004
    %2599 = vmatprep.subr.bf16.mxu0 %v2008
    %2600 = vmatpush1.bf16.msra.mxu0 %v2007
    %2601 = vmatprep.subr.bf16.mxu0 %v2011
    %2602 = vmatpush1.bf16.msra.mxu0 %v2010
    %2603 = vmatprep.subr.bf16.mxu0 %v2014
    %2604 = vmatpush1.bf16.msra.mxu0 %v2013
    %2605 = vmatprep.subr.bf16.mxu0 %v2017
    %2606 = vmatpush1.bf16.msra.mxu0 %v2016
    %2607 = vmatprep.subr.bf16.mxu0 %v2020
    %2608 = vmatpush1.bf16.msra.mxu0 %v2019
    %2609 = vmatprep.subr.bf16.mxu0 %v2023
    %2610 = vmatpush1.bf16.msra.mxu0 %v2022
    %2611 = vmatprep.subr.bf16.mxu0 %v2026
    %2612 = vmatpush1.bf16.msra.mxu0 %v2025
    %2613 = vmatprep.subr.bf16.mxu0 %v2029
    %2614 = vmatpush1.bf16.msra.mxu0 %v2028
    %2615 = vmatprep.subr.bf16.mxu0 %v2032
    %2616 = vmatpush1.bf16.msra.mxu0 %v2031
    %2617 = vmatprep.subr.bf16.mxu0 %v2035
    %2618 = vmatpush1.bf16.msra.mxu0 %v2034
    %2619 = vmatprep.subr.bf16.mxu0 %v2038
    %2620 = vmatpush1.bf16.msra.mxu0 %v2037
    %2621 = vmatprep.mubr.bf16.mxu0 %v891
    %2622 = vmatmul.mubr.bf16.gmra.mrb[0].mxu0 %v889
    %v2623 = vpop.f32.mrb[0].mxu0
    %v2624 = vadd.f32 %v2583, %v2623
    %v2625 = vpop.f32.mrb[0].mxu0
    %v2626 = vadd.f32 %v2585, %v2625
    %v2627 = vpop.f32.mrb[0].mxu0
    %v2628 = vpop.f32.mrb[0].mxu0
    %2629 = vdwg.mxu0
    %2630 = vmatprep.subr.bf16.mxu0 %v2041
    %2631 = vmatpush1.bf16.msra.mxu0 %v2040
    %2632 = vmatprep.subr.bf16.mxu0 %v2044
    %2633 = vmatpush1.bf16.msra.mxu0 %v2043
    %2634 = vmatprep.subr.bf16.mxu0 %v2047
    %2635 = vmatpush1.bf16.msra.mxu0 %v2046
    %2636 = vmatprep.subr.bf16.mxu0 %v2050
    %2637 = vmatpush1.bf16.msra.mxu0 %v2049
    %2638 = vmatprep.subr.bf16.mxu0 %v2053
    %2639 = vmatpush1.bf16.msra.mxu0 %v2052
    %2640 = vmatprep.subr.bf16.mxu0 %v2056
    %2641 = vmatpush1.bf16.msra.mxu0 %v2055
    %2642 = vmatprep.subr.bf16.mxu0 %v2059
    %2643 = vmatpush1.bf16.msra.mxu0 %v2058
    %2644 = vmatprep.subr.bf16.mxu0 %v2062
    %2645 = vmatpush1.bf16.msra.mxu0 %v2061
    %2646 = vmatprep.subr.bf16.mxu0 %v2065
    %2647 = vmatpush1.bf16.msra.mxu0 %v2064
    %2648 = vmatprep.subr.bf16.mxu0 %v2068
    %2649 = vmatpush1.bf16.msra.mxu0 %v2067
    %2650 = vmatprep.subr.bf16.mxu0 %v2071
    %2651 = vmatpush1.bf16.msra.mxu0 %v2070
    %2652 = vmatprep.subr.bf16.mxu0 %v2074
    %2653 = vmatpush1.bf16.msra.mxu0 %v2073
    %2654 = vmatprep.subr.bf16.mxu0 %v2077
    %2655 = vmatpush1.bf16.msra.mxu0 %v2076
    %2656 = vmatprep.subr.bf16.mxu0 %v2080
    %2657 = vmatpush1.bf16.msra.mxu0 %v2079
    %2658 = vmatprep.subr.bf16.mxu0 %v2083
    %2659 = vmatpush1.bf16.msra.mxu0 %v2082
    %2660 = vmatprep.subr.bf16.mxu0 %v2086
    %2661 = vmatpush1.bf16.msra.mxu0 %v2085
    %2662 = vmatprep.mubr.bf16.mxu0 %v888
    %2663 = vmatmul.mubr.bf16.gmra.mrb[0].mxu0 %v874
    %v2664 = vpop.f32.mrb[0].mxu0
    %v2665 = vadd.f32 %v2624, %v2664
    %v2666 = vpop.f32.mrb[0].mxu0
    %v2667 = vadd.f32 %v2626, %v2666
    %v2668 = vpop.f32.mrb[0].mxu0
    %v2669 = vpop.f32.mrb[0].mxu0
    %2670 = vdwg.mxu0
    %2671 = vmatprep.subr.bf16.mxu0 %v2089
    %2672 = vmatpush1.bf16.msra.mxu0 %v2088
    %2673 = vmatprep.subr.bf16.mxu0 %v2092
    %2674 = vmatpush1.bf16.msra.mxu0 %v2091
    %2675 = vmatprep.subr.bf16.mxu0 %v2095
    %2676 = vmatpush1.bf16.msra.mxu0 %v2094
    %2677 = vmatprep.subr.bf16.mxu0 %v2098
    %2678 = vmatpush1.bf16.msra.mxu0 %v2097
    %2679 = vmatprep.subr.bf16.mxu0 %v2101
    %2680 = vmatpush1.bf16.msra.mxu0 %v2100
    %2681 = vmatprep.subr.bf16.mxu0 %v2104
    %2682 = vmatpush1.bf16.msra.mxu0 %v2103
    %2683 = vmatprep.subr.bf16.mxu0 %v2107
    %2684 = vmatpush1.bf16.msra.mxu0 %v2106
    %2685 = vmatprep.subr.bf16.mxu0 %v2110
    %2686 = vmatpush1.bf16.msra.mxu0 %v2109
    %2687 = vmatprep.subr.bf16.mxu0 %v2113
    %2688 = vmatpush1.bf16.msra.mxu0 %v2112
    %2689 = vmatprep.subr.bf16.mxu0 %v2116
    %2690 = vmatpush1.bf16.msra.mxu0 %v2115
    %2691 = vmatprep.subr.bf16.mxu0 %v2119
    %2692 = vmatpush1.bf16.msra.mxu0 %v2118
    %2693 = vmatprep.subr.bf16.mxu0 %v2122
    %2694 = vmatpush1.bf16.msra.mxu0 %v2121
    %2695 = vmatprep.subr.bf16.mxu0 %v2125
    %2696 = vmatpush1.bf16.msra.mxu0 %v2124
    %2697 = vmatprep.subr.bf16.mxu0 %v2128
    %2698 = vmatpush1.bf16.msra.mxu0 %v2127
    %2699 = vmatprep.subr.bf16.mxu0 %v2131
    %2700 = vmatpush1.bf16.msra.mxu0 %v2130
    %2701 = vmatprep.subr.bf16.mxu0 %v2134
    %2702 = vmatpush1.bf16.msra.mxu0 %v2133
    %2703 = vmatprep.mubr.bf16.mxu0 %v892
    %2704 = vmatmul.mubr.bf16.gmra.mrb[0].mxu0 %v890
    %v2705 = vpop.f32.mrb[0].mxu0
    %v2706 = vadd.f32 %v2665, %v2705
    %v2707 = vpop.f32.mrb[0].mxu0
    %v2708 = vadd.f32 %v2667, %v2707
    %v2709 = vpop.f32.mrb[0].mxu0
    %v2710 = vpop.f32.mrb[0].mxu0
    %2711 = vdwg.mxu0
    %2712 = vmatprep.subr.bf16.mxu0 %v2137
    %2713 = vmatpush1.bf16.msra.mxu0 %v2136
    %2714 = vmatprep.subr.bf16.mxu0 %v2140
    %2715 = vmatpush1.bf16.msra.mxu0 %v2139
    %2716 = vmatprep.subr.bf16.mxu0 %v2143
    %2717 = vmatpush1.bf16.msra.mxu0 %v2142
    %2718 = vmatprep.subr.bf16.mxu0 %v2146
    %2719 = vmatpush1.bf16.msra.mxu0 %v2145
    %2720 = vmatprep.subr.bf16.mxu0 %v2149
    %2721 = vmatpush1.bf16.msra.mxu0 %v2148
    %2722 = vmatprep.subr.bf16.mxu0 %v2152
    %2723 = vmatpush1.bf16.msra.mxu0 %v2151
    %2724 = vmatprep.subr.bf16.mxu0 %v2155
    %2725 = vmatpush1.bf16.msra.mxu0 %v2154
    %2726 = vmatprep.subr.bf16.mxu0 %v2158
    %2727 = vmatpush1.bf16.msra.mxu0 %v2157
    %2728 = vmatprep.subr.bf16.mxu0 %v2161
    %2729 = vmatpush1.bf16.msra.mxu0 %v2160
    %2730 = vmatprep.subr.bf16.mxu0 %v2164
    %2731 = vmatpush1.bf16.msra.mxu0 %v2163
    %2732 = vmatprep.subr.bf16.mxu0 %v2167
    %2733 = vmatpush1.bf16.msra.mxu0 %v2166
    %2734 = vmatprep.subr.bf16.mxu0 %v2170
    %2735 = vmatpush1.bf16.msra.mxu0 %v2169
    %2736 = vmatprep.subr.bf16.mxu0 %v2173
    %2737 = vmatpush1.bf16.msra.mxu0 %v2172
    %2738 = vmatprep.subr.bf16.mxu0 %v2176
    %2739 = vmatpush1.bf16.msra.mxu0 %v2175
    %2740 = vmatprep.subr.bf16.mxu0 %v2179
    %2741 = vmatpush1.bf16.msra.mxu0 %v2178
    %2742 = vmatprep.subr.bf16.mxu0 %v2182
    %2743 = vmatpush1.bf16.msra.mxu0 %v2181
    %2744 = vmatprep.mubr.bf16.mxu0 %v929
    %2745 = vmatmul.mubr.bf16.gmra.mrb[0].mxu0 %v915
    %v2746 = vpop.f32.mrb[0].mxu0
    %v2747 = vadd.f32 %v2706, %v2746
    %v2748 = vpop.f32.mrb[0].mxu0
    %v2749 = vadd.f32 %v2708, %v2748
    %v2750 = vpop.f32.mrb[0].mxu0
    %v2751 = vpop.f32.mrb[0].mxu0
    %2752 = vdwg.mxu0
    %2753 = vmatprep.subr.bf16.mxu0 %v2185
    %2754 = vmatpush1.bf16.msra.mxu0 %v2184
    %2755 = vmatprep.subr.bf16.mxu0 %v2188
    %2756 = vmatpush1.bf16.msra.mxu0 %v2187
    %2757 = vmatprep.subr.bf16.mxu0 %v2191
    %2758 = vmatpush1.bf16.msra.mxu0 %v2190
    %2759 = vmatprep.subr.bf16.mxu0 %v2194
    %2760 = vmatpush1.bf16.msra.mxu0 %v2193
    %2761 = vmatprep.subr.bf16.mxu0 %v2197
    %2762 = vmatpush1.bf16.msra.mxu0 %v2196
    %2763 = vmatprep.subr.bf16.mxu0 %v2200
    %2764 = vmatpush1.bf16.msra.mxu0 %v2199
    %2765 = vmatprep.subr.bf16.mxu0 %v2203
    %2766 = vmatpush1.bf16.msra.mxu0 %v2202
    %2767 = vmatprep.subr.bf16.mxu0 %v2206
    %2768 = vmatpush1.bf16.msra.mxu0 %v2205
    %2769 = vmatprep.subr.bf16.mxu0 %v2209
    %2770 = vmatpush1.bf16.msra.mxu0 %v2208
    %2771 = vmatprep.subr.bf16.mxu0 %v2212
    %2772 = vmatpush1.bf16.msra.mxu0 %v2211
    %2773 = vmatprep.subr.bf16.mxu0 %v2215
    %2774 = vmatpush1.bf16.msra.mxu0 %v2214
    %2775 = vmatprep.subr.bf16.mxu0 %v2218
    %2776 = vmatpush1.bf16.msra.mxu0 %v2217
    %2777 = vmatprep.subr.bf16.mxu0 %v2221
    %2778 = vmatpush1.bf16.msra.mxu0 %v2220
    %2779 = vmatprep.subr.bf16.mxu0 %v2224
    %2780 = vmatpush1.bf16.msra.mxu0 %v2223
    %2781 = vmatprep.subr.bf16.mxu0 %v2227
    %2782 = vmatpush1.bf16.msra.mxu0 %v2226
    %2783 = vmatprep.subr.bf16.mxu0 %v2230
    %2784 = vmatpush1.bf16.msra.mxu0 %v2229
    %2785 = vmatprep.mubr.bf16.mxu0 %v931
    %2786 = vmatmul.mubr.bf16.gmra.mrb[0].mxu0 %v930
    %v2787 = vpop.f32.mrb[0].mxu0
    %v2788 = vadd.f32 %v2747, %v2787
    %v2789 = vpop.f32.mrb[0].mxu0
    %v2790 = vadd.f32 %v2749, %v2789
    %v2791 = vpop.f32.mrb[0].mxu0
    %v2792 = vpop.f32.mrb[0].mxu0
    %2793 = vdwg.mxu0
    %2794 = vmatprep.subr.bf16.mxu0 %v2233
    %2795 = vmatpush1.bf16.msra.mxu0 %v2232
    %2796 = vmatprep.subr.bf16.mxu0 %v2236
    %2797 = vmatpush1.bf16.msra.mxu0 %v2235
    %2798 = vmatprep.subr.bf16.mxu0 %v2239
    %2799 = vmatpush1.bf16.msra.mxu0 %v2238
    %2800 = vmatprep.subr.bf16.mxu0 %v2242
    %2801 = vmatpush1.bf16.msra.mxu0 %v2241
    %2802 = vmatprep.subr.bf16.mxu0 0
    %2803 = vmatpush1.bf16.msra.mxu0 0
    %2804 = vmatprep.subr.bf16.mxu0 0
    %2805 = vmatpush1.bf16.msra.mxu0 0
    %2806 = vmatprep.subr.bf16.mxu0 0
    %2807 = vmatpush1.bf16.msra.mxu0 0
    %2808 = vmatprep.subr.bf16.mxu0 0
    %2809 = vmatpush1.bf16.msra.mxu0 0
    %2810 = vmatprep.subr.bf16.mxu0 0
    %2811 = vmatpush1.bf16.msra.mxu0 0
    %2812 = vmatprep.subr.bf16.mxu0 0
    %2813 = vmatpush1.bf16.msra.mxu0 0
    %2814 = vmatprep.subr.bf16.mxu0 0
    %2815 = vmatpush1.bf16.msra.mxu0 0
    %2816 = vmatprep.subr.bf16.mxu0 0
    %2817 = vmatpush1.bf16.msra.mxu0 0
    %2818 = vmatprep.subr.bf16.mxu0 0
    %2819 = vmatpush1.bf16.msra.mxu0 0
    %2820 = vmatprep.subr.bf16.mxu0 0
    %2821 = vmatpush1.bf16.msra.mxu0 0
    %2822 = vmatprep.subr.bf16.mxu0 0
    %2823 = vmatpush1.bf16.msra.mxu0 0
    %2824 = vmatprep.subr.bf16.mxu0 0
    %2825 = vmatpush1.bf16.msra.mxu0 0
    %2826 = vmatprep.mubr.bf16.mxu0 0
    %2827 = vmatmul.mubr.bf16.gmra.mrb[0].mxu0 %v2546
    %v2828 = vpop.f32.mrb[0].mxu0
    %v2829 = vadd.f32 %v2788, %v2828
    %v2830 = vpop.f32.mrb[0].mxu0
    %v2831 = vadd.f32 %v2790, %v2830
    %v2832 = vpop.f32.mrb[0].mxu0
    %v2833 = vpop.f32.mrb[0].mxu0
    %2834 = vdwg.mxu0
    %2835 = vmatprep.subr.bf16.mxu0 0
    %2836 = vmatpush1.bf16.msra.mxu0 %v1946
    %2837 = vmatprep.subr.bf16.mxu0 0
    %2838 = vmatpush1.bf16.msra.mxu0 %v1949
    %2839 = vmatprep.subr.bf16.mxu0 0
    %2840 = vmatpush1.bf16.msra.mxu0 %v1952
    %2841 = vmatprep.subr.bf16.mxu0 0
    %2842 = vmatpush1.bf16.msra.mxu0 %v1955
    %2843 = vmatprep.subr.bf16.mxu0 0
    %2844 = vmatpush1.bf16.msra.mxu0 %v1958
    %2845 = vmatprep.subr.bf16.mxu0 0
    %2846 = vmatpush1.bf16.msra.mxu0 %v1961
    %2847 = vmatprep.subr.bf16.mxu0 0
    %2848 = vmatpush1.bf16.msra.mxu0 %v1964
    %2849 = vmatprep.subr.bf16.mxu0 0
    %2850 = vmatpush1.bf16.msra.mxu0 %v1967
    %2851 = vmatprep.subr.bf16.mxu0 0
    %2852 = vmatpush1.bf16.msra.mxu0 %v1970
    %2853 = vmatprep.subr.bf16.mxu0 0
    %2854 = vmatpush1.bf16.msra.mxu0 %v1973
    %2855 = vmatprep.subr.bf16.mxu0 0
    %2856 = vmatpush1.bf16.msra.mxu0 %v1976
    %2857 = vmatprep.subr.bf16.mxu0 0
    %2858 = vmatpush1.bf16.msra.mxu0 %v1979
    %2859 = vmatprep.subr.bf16.mxu0 0
    %2860 = vmatpush1.bf16.msra.mxu0 %v1982
    %2861 = vmatprep.subr.bf16.mxu0 0
    %2862 = vmatpush1.bf16.msra.mxu0 %v1985
    %2863 = vmatprep.subr.bf16.mxu0 0
    %2864 = vmatpush1.bf16.msra.mxu0 %v1988
    %2865 = vmatprep.subr.bf16.mxu0 0
    %2866 = vmatpush1.bf16.msra.mxu0 %v1991
    %2867 = vmatprep.mubr.bf16.mxu0 %v881
    %2868 = vmatmul.mubr.bf16.gmra.mrb[0].mxu0 %v867
    %v2869 = vpop.f32.mrb[0].mxu0
    %v2870 = vadd.f32 0.0, %v2869
    %v2871 = vpop.f32.mrb[0].mxu0
    %v2872 = vpop.f32.mrb[0].mxu0
    %v2873 = vpop.f32.mrb[0].mxu0
    %2874 = vdwg.mxu0
    %2875 = vmatprep.subr.bf16.mxu0 0
    %2876 = vmatpush1.bf16.msra.mxu0 %v1994
    %2877 = vmatprep.subr.bf16.mxu0 0
    %2878 = vmatpush1.bf16.msra.mxu0 %v1997
    %2879 = vmatprep.subr.bf16.mxu0 0
    %2880 = vmatpush1.bf16.msra.mxu0 %v2000
    %2881 = vmatprep.subr.bf16.mxu0 0
    %2882 = vmatpush1.bf16.msra.mxu0 %v2003
    %2883 = vmatprep.subr.bf16.mxu0 0
    %2884 = vmatpush1.bf16.msra.mxu0 %v2006
    %2885 = vmatprep.subr.bf16.mxu0 0
    %2886 = vmatpush1.bf16.msra.mxu0 %v2009
    %2887 = vmatprep.subr.bf16.mxu0 0
    %2888 = vmatpush1.bf16.msra.mxu0 %v2012
    %2889 = vmatprep.subr.bf16.mxu0 0
    %2890 = vmatpush1.bf16.msra.mxu0 %v2015
    %2891 = vmatprep.subr.bf16.mxu0 0
    %2892 = vmatpush1.bf16.msra.mxu0 %v2018
    %2893 = vmatprep.subr.bf16.mxu0 0
    %2894 = vmatpush1.bf16.msra.mxu0 %v2021
    %2895 = vmatprep.subr.bf16.mxu0 0
    %2896 = vmatpush1.bf16.msra.mxu0 %v2024
    %2897 = vmatprep.subr.bf16.mxu0 0
    %2898 = vmatpush1.bf16.msra.mxu0 %v2027
    %2899 = vmatprep.subr.bf16.mxu0 0
    %2900 = vmatpush1.bf16.msra.mxu0 %v2030
    %2901 = vmatprep.subr.bf16.mxu0 0
    %2902 = vmatpush1.bf16.msra.mxu0 %v2033
    %2903 = vmatprep.subr.bf16.mxu0 0
    %2904 = vmatpush1.bf16.msra.mxu0 %v2036
    %2905 = vmatprep.subr.bf16.mxu0 0
    %2906 = vmatpush1.bf16.msra.mxu0 %v2039
    %2907 = vmatprep.mubr.bf16.mxu0 %v891
    %2908 = vmatmul.mubr.bf16.gmra.mrb[0].mxu0 %v889
    %v2909 = vpop.f32.mrb[0].mxu0
    %v2910 = vadd.f32 %v2870, %v2909
    %v2911 = vpop.f32.mrb[0].mxu0
    %v2912 = vpop.f32.mrb[0].mxu0
    %v2913 = vpop.f32.mrb[0].mxu0
    %2914 = vdwg.mxu0
    %2915 = vmatprep.subr.bf16.mxu0 0
    %2916 = vmatpush1.bf16.msra.mxu0 %v2042
    %2917 = vmatprep.subr.bf16.mxu0 0
    %2918 = vmatpush1.bf16.msra.mxu0 %v2045
    %2919 = vmatprep.subr.bf16.mxu0 0
    %2920 = vmatpush1.bf16.msra.mxu0 %v2048
    %2921 = vmatprep.subr.bf16.mxu0 0
    %2922 = vmatpush1.bf16.msra.mxu0 %v2051
    %2923 = vmatprep.subr.bf16.mxu0 0
    %2924 = vmatpush1.bf16.msra.mxu0 %v2054
    %2925 = vmatprep.subr.bf16.mxu0 0
    %2926 = vmatpush1.bf16.msra.mxu0 %v2057
    %2927 = vmatprep.subr.bf16.mxu0 0
    %2928 = vmatpush1.bf16.msra.mxu0 %v2060
    %2929 = vmatprep.subr.bf16.mxu0 0
    %2930 = vmatpush1.bf16.msra.mxu0 %v2063
    %2931 = vmatprep.subr.bf16.mxu0 0
    %2932 = vmatpush1.bf16.msra.mxu0 %v2066
    %2933 = vmatprep.subr.bf16.mxu0 0
    %2934 = vmatpush1.bf16.msra.mxu0 %v2069
    %2935 = vmatprep.subr.bf16.mxu0 0
    %2936 = vmatpush1.bf16.msra.mxu0 %v2072
    %2937 = vmatprep.subr.bf16.mxu0 0
    %2938 = vmatpush1.bf16.msra.mxu0 %v2075
    %2939 = vmatprep.subr.bf16.mxu0 0
    %2940 = vmatpush1.bf16.msra.mxu0 %v2078
    %2941 = vmatprep.subr.bf16.mxu0 0
    %2942 = vmatpush1.bf16.msra.mxu0 %v2081
    %2943 = vmatprep.subr.bf16.mxu0 0
    %2944 = vmatpush1.bf16.msra.mxu0 %v2084
    %2945 = vmatprep.subr.bf16.mxu0 0
    %2946 = vmatpush1.bf16.msra.mxu0 %v2087
    %2947 = vmatprep.mubr.bf16.mxu0 %v888
    %2948 = vmatmul.mubr.bf16.gmra.mrb[0].mxu0 %v874
    %v2949 = vpop.f32.mrb[0].mxu0
    %v2950 = vadd.f32 %v2910, %v2949
    %v2951 = vpop.f32.mrb[0].mxu0
    %v2952 = vpop.f32.mrb[0].mxu0
    %v2953 = vpop.f32.mrb[0].mxu0
    %2954 = vdwg.mxu0
    %2955 = vmatprep.subr.bf16.mxu0 0
    %2956 = vmatpush1.bf16.msra.mxu0 %v2090
    %2957 = vmatprep.subr.bf16.mxu0 0
    %2958 = vmatpush1.bf16.msra.mxu0 %v2093
    %2959 = vmatprep.subr.bf16.mxu0 0
    %2960 = vmatpush1.bf16.msra.mxu0 %v2096
    %2961 = vmatprep.subr.bf16.mxu0 0
    %2962 = vmatpush1.bf16.msra.mxu0 %v2099
    %2963 = vmatprep.subr.bf16.mxu0 0
    %2964 = vmatpush1.bf16.msra.mxu0 %v2102
    %2965 = vmatprep.subr.bf16.mxu0 0
    %2966 = vmatpush1.bf16.msra.mxu0 %v2105
    %2967 = vmatprep.subr.bf16.mxu0 0
    %2968 = vmatpush1.bf16.msra.mxu0 %v2108
    %2969 = vmatprep.subr.bf16.mxu0 0
    %2970 = vmatpush1.bf16.msra.mxu0 %v2111
    %2971 = vmatprep.subr.bf16.mxu0 0
    %2972 = vmatpush1.bf16.msra.mxu0 %v2114
    %2973 = vmatprep.subr.bf16.mxu0 0
    %2974 = vmatpush1.bf16.msra.mxu0 %v2117
    %2975 = vmatprep.subr.bf16.mxu0 0
    %2976 = vmatpush1.bf16.msra.mxu0 %v2120
    %2977 = vmatprep.subr.bf16.mxu0 0
    %2978 = vmatpush1.bf16.msra.mxu0 %v2123
    %2979 = vmatprep.subr.bf16.mxu0 0
    %2980 = vmatpush1.bf16.msra.mxu0 %v2126
    %2981 = vmatprep.subr.bf16.mxu0 0
    %2982 = vmatpush1.bf16.msra.mxu0 %v2129
    %2983 = vmatprep.subr.bf16.mxu0 0
    %2984 = vmatpush1.bf16.msra.mxu0 %v2132
    %2985 = vmatprep.subr.bf16.mxu0 0
    %2986 = vmatpush1.bf16.msra.mxu0 %v2135
    %2987 = vmatprep.mubr.bf16.mxu0 %v892
    %2988 = vmatmul.mubr.bf16.gmra.mrb[0].mxu0 %v890
    %v2989 = vpop.f32.mrb[0].mxu0
    %v2990 = vadd.f32 %v2950, %v2989
    %v2991 = vpop.f32.mrb[0].mxu0
    %v2992 = vpop.f32.mrb[0].mxu0
    %v2993 = vpop.f32.mrb[0].mxu0
    %2994 = vdwg.mxu0
    %2995 = vmatprep.subr.bf16.mxu0 0
    %2996 = vmatpush1.bf16.msra.mxu0 %v2138
    %2997 = vmatprep.subr.bf16.mxu0 0
    %2998 = vmatpush1.bf16.msra.mxu0 %v2141
    %2999 = vmatprep.subr.bf16.mxu0 0
    %3000 = vmatpush1.bf16.msra.mxu0 %v2144
    %3001 = vmatprep.subr.bf16.mxu0 0
    %3002 = vmatpush1.bf16.msra.mxu0 %v2147
    %3003 = vmatprep.subr.bf16.mxu0 0
    %3004 = vmatpush1.bf16.msra.mxu0 %v2150
    %3005 = vmatprep.subr.bf16.mxu0 0
    %3006 = vmatpush1.bf16.msra.mxu0 %v2153
    %3007 = vmatprep.subr.bf16.mxu0 0
    %3008 = vmatpush1.bf16.msra.mxu0 %v2156
    %3009 = vmatprep.subr.bf16.mxu0 0
    %3010 = vmatpush1.bf16.msra.mxu0 %v2159
    %3011 = vmatprep.subr.bf16.mxu0 0
    %3012 = vmatpush1.bf16.msra.mxu0 %v2162
    %3013 = vmatprep.subr.bf16.mxu0 0
    %3014 = vmatpush1.bf16.msra.mxu0 %v2165
    %3015 = vmatprep.subr.bf16.mxu0 0
    %3016 = vmatpush1.bf16.msra.mxu0 %v2168
    %3017 = vmatprep.subr.bf16.mxu0 0
    %3018 = vmatpush1.bf16.msra.mxu0 %v2171
    %3019 = vmatprep.subr.bf16.mxu0 0
    %3020 = vmatpush1.bf16.msra.mxu0 %v2174
    %3021 = vmatprep.subr.bf16.mxu0 0
    %3022 = vmatpush1.bf16.msra.mxu0 %v2177
    %3023 = vmatprep.subr.bf16.mxu0 0
    %3024 = vmatpush1.bf16.msra.mxu0 %v2180
    %3025 = vmatprep.subr.bf16.mxu0 0
    %3026 = vmatpush1.bf16.msra.mxu0 %v2183
    %3027 = vmatprep.mubr.bf16.mxu0 %v929
    %3028 = vmatmul.mubr.bf16.gmra.mrb[0].mxu0 %v915
    %v3029 = vpop.f32.mrb[0].mxu0
    %v3030 = vadd.f32 %v2990, %v3029
    %v3031 = vpop.f32.mrb[0].mxu0
    %v3032 = vpop.f32.mrb[0].mxu0
    %v3033 = vpop.f32.mrb[0].mxu0
    %3034 = vdwg.mxu0
    %3035 = vmatprep.subr.bf16.mxu0 0
    %3036 = vmatpush1.bf16.msra.mxu0 %v2186
    %3037 = vmatprep.subr.bf16.mxu0 0
    %3038 = vmatpush1.bf16.msra.mxu0 %v2189
    %3039 = vmatprep.subr.bf16.mxu0 0
    %3040 = vmatpush1.bf16.msra.mxu0 %v2192
    %3041 = vmatprep.subr.bf16.mxu0 0
    %3042 = vmatpush1.bf16.msra.mxu0 %v2195
    %3043 = vmatprep.subr.bf16.mxu0 0
    %3044 = vmatpush1.bf16.msra.mxu0 %v2198
    %3045 = vmatprep.subr.bf16.mxu0 0
    %3046 = vmatpush1.bf16.msra.mxu0 %v2201
    %3047 = vmatprep.subr.bf16.mxu0 0
    %3048 = vmatpush1.bf16.msra.mxu0 %v2204
    %3049 = vmatprep.subr.bf16.mxu0 0
    %3050 = vmatpush1.bf16.msra.mxu0 %v2207
    %3051 = vmatprep.subr.bf16.mxu0 0
    %3052 = vmatpush1.bf16.msra.mxu0 %v2210
    %3053 = vmatprep.subr.bf16.mxu0 0
    %3054 = vmatpush1.bf16.msra.mxu0 %v2213
    %3055 = vmatprep.subr.bf16.mxu0 0
    %3056 = vmatpush1.bf16.msra.mxu0 %v2216
    %3057 = vmatprep.subr.bf16.mxu0 0
    %3058 = vmatpush1.bf16.msra.mxu0 %v2219
    %3059 = vmatprep.subr.bf16.mxu0 0
    %3060 = vmatpush1.bf16.msra.mxu0 %v2222
    %3061 = vmatprep.subr.bf16.mxu0 0
    %3062 = vmatpush1.bf16.msra.mxu0 %v2225
    %3063 = vmatprep.subr.bf16.mxu0 0
    %3064 = vmatpush1.bf16.msra.mxu0 %v2228
    %3065 = vmatprep.subr.bf16.mxu0 0
    %3066 = vmatpush1.bf16.msra.mxu0 %v2231
    %3067 = vmatprep.mubr.bf16.mxu0 %v931
    %3068 = vmatmul.mubr.bf16.gmra.mrb[0].mxu0 %v930
    %v3069 = vpop.f32.mrb[0].mxu0
    %v3070 = vadd.f32 %v3030, %v3069
    %v3071 = vpop.f32.mrb[0].mxu0
    %v3072 = vpop.f32.mrb[0].mxu0
    %v3073 = vpop.f32.mrb[0].mxu0
    %3074 = vdwg.mxu0
    %3075 = vmatprep.subr.bf16.mxu0 0
    %3076 = vmatpush1.bf16.msra.mxu0 %v2234
    %3077 = vmatprep.subr.bf16.mxu0 0
    %3078 = vmatpush1.bf16.msra.mxu0 %v2237
    %3079 = vmatprep.subr.bf16.mxu0 0
    %3080 = vmatpush1.bf16.msra.mxu0 %v2240
    %3081 = vmatprep.subr.bf16.mxu0 0
    %3082 = vmatpush1.bf16.msra.mxu0 %v2243
    %3083 = vmatprep.subr.bf16.mxu0 0
    %3084 = vmatpush1.bf16.msra.mxu0 0
    %3085 = vmatprep.subr.bf16.mxu0 0
    %3086 = vmatpush1.bf16.msra.mxu0 0
    %3087 = vmatprep.subr.bf16.mxu0 0
    %3088 = vmatpush1.bf16.msra.mxu0 0
    %3089 = vmatprep.subr.bf16.mxu0 0
    %3090 = vmatpush1.bf16.msra.mxu0 0
    %3091 = vmatprep.subr.bf16.mxu0 0
    %3092 = vmatpush1.bf16.msra.mxu0 0
    %3093 = vmatprep.subr.bf16.mxu0 0
    %3094 = vmatpush1.bf16.msra.mxu0 0
    %3095 = vmatprep.subr.bf16.mxu0 0
    %3096 = vmatpush1.bf16.msra.mxu0 0
    %3097 = vmatprep.subr.bf16.mxu0 0
    %3098 = vmatpush1.bf16.msra.mxu0 0
    %3099 = vmatprep.subr.bf16.mxu0 0
    %3100 = vmatpush1.bf16.msra.mxu0 0
    %3101 = vmatprep.subr.bf16.mxu0 0
    %3102 = vmatpush1.bf16.msra.mxu0 0
    %3103 = vmatprep.subr.bf16.mxu0 0
    %3104 = vmatpush1.bf16.msra.mxu0 0
    %3105 = vmatprep.subr.bf16.mxu0 0
    %3106 = vmatpush1.bf16.msra.mxu0 0
    %3107 = vmatprep.mubr.bf16.mxu0 0
    %3108 = vmatmul.mubr.bf16.gmra.mrb[0].mxu0 %v2546
    %v3109 = vpop.f32.mrb[0].mxu0
    %v3110 = vadd.f32 %v3070, %v3109
    %v3111 = vpop.f32.mrb[0].mxu0
    %v3112 = vpop.f32.mrb[0].mxu0
    %v3113 = vpop.f32.mrb[0].mxu0
    %3114 = vdwg.mxu0
    %v3117 = vcombine.high %v37, %v37
    %v3119 = vunpack.c.l.s4 1966171168
    %v3120 = vunpack.c.0.s8 %v3119
    %v3121 = vlaneseq
    %v3122 = vshrl.u32 %v3121, 7
    %v3123 = vsub.s32 %v3120, %v3122
    %v3124 = vrot.slane %v37, %v3123
    %v3126 = vunpack.c.l.s4 1966171168
    %v3127 = vunpack.c.0.s8 %v3126
    %v3128 = vlaneseq
    %v3129 = vshrl.u32 %v3128, 7
    %v3130 = vsub.s32 %v3127, %v3129
    %v3131 = vrot.slane %v3117, %v3130
    %v3132 = vcombine.high %v3124, %v3124
    %v3133 = vcombine.high %v3131, %v3131
    %v3135 = vunpack.c.l.s4 1966171168
    %v3136 = vunpack.c.0.s8 %v3135
    %v3137 = vlaneseq
    %v3138 = vshrl.u32 %v3137, 7
    %v3139 = vsub.s32 %v3136, %v3138
    %v3140 = vrot.slane %v3124, %v3139
    %v3142 = vunpack.c.l.s4 1966171168
    %v3143 = vunpack.c.0.s8 %v3142
    %v3144 = vlaneseq
    %v3145 = vshrl.u32 %v3144, 7
    %v3146 = vsub.s32 %v3143, %v3145
    %v3147 = vrot.slane %v3131, %v3146
    %v3149 = vunpack.c.l.s4 1966171168
    %v3150 = vunpack.c.0.s8 %v3149
    %v3151 = vlaneseq
    %v3152 = vshrl.u32 %v3151, 7
    %v3153 = vsub.s32 %v3150, %v3152
    %v3154 = vrot.slane %v3132, %v3153
    %v3156 = vunpack.c.l.s4 1966171168
    %v3157 = vunpack.c.0.s8 %v3156
    %v3158 = vlaneseq
    %v3159 = vshrl.u32 %v3158, 7
    %v3160 = vsub.s32 %v3157, %v3159
    %v3161 = vrot.slane %v3133, %v3160
    %v3162 = vcombine.high %v3140, %v3140
    %v3163 = vcombine.high %v3147, %v3147
    %v3164 = vcombine.high %v3154, %v3154
    %v3165 = vcombine.high %v3161, %v3161
    %v3166 = vcombine.high %v38, %v38
    %v3168 = vunpack.c.l.s4 1966171168
    %v3169 = vunpack.c.0.s8 %v3168
    %v3170 = vlaneseq
    %v3171 = vshrl.u32 %v3170, 7
    %v3172 = vsub.s32 %v3169, %v3171
    %v3173 = vrot.slane %v38, %v3172
    %v3175 = vunpack.c.l.s4 1966171168
    %v3176 = vunpack.c.0.s8 %v3175
    %v3177 = vlaneseq
    %v3178 = vshrl.u32 %v3177, 7
    %v3179 = vsub.s32 %v3176, %v3178
    %v3180 = vrot.slane %v3166, %v3179
    %v3181 = vcombine.high %v3173, %v3173
    %v3183 = vunpack.c.l.s4 1966171168
    %v3184 = vunpack.c.0.s8 %v3183
    %v3185 = vlaneseq
    %v3186 = vshrl.u32 %v3185, 7
    %v3187 = vsub.s32 %v3184, %v3186
    %v3188 = vrot.slane %v3173, %v3187
    %v3190 = vunpack.c.l.s4 1966171168
    %v3191 = vunpack.c.0.s8 %v3190
    %v3192 = vlaneseq
    %v3193 = vshrl.u32 %v3192, 7
    %v3194 = vsub.s32 %v3191, %v3193
    %v3195 = vrot.slane %v3180, %v3194
    %v3197 = vunpack.c.l.s4 1966171168
    %v3198 = vunpack.c.0.s8 %v3197
    %v3199 = vlaneseq
    %v3200 = vshrl.u32 %v3199, 7
    %v3201 = vsub.s32 %v3198, %v3200
    %v3202 = vrot.slane %v3181, %v3201
    %v3203 = vcombine.high %v3188, %v3188
    %v3204 = vcombine.high %v3202, %v3202
    %v3617 = vunpack.c.l.b16 %v42
    %v3618 = vunpack.c.h.b16 %v42
    %v3619 = vunpack.c.l.b16 %v43
    %v3620 = vunpack.c.l.b16 %v44
    %v3621 = vunpack.c.h.b16 %v44
    %v3622 = vunpack.c.l.b16 %v45
    %v3623 = vunpack.c.l.b16 %v46
    %v3624 = vunpack.c.h.b16 %v46
    %v3625 = vunpack.c.l.b16 %v47
    %v3626 = vunpack.c.l.b16 %v48
    %v3627 = vunpack.c.h.b16 %v48
    %v3628 = vunpack.c.l.b16 %v49
    %v3629 = vunpack.c.l.b16 %v50
    %v3630 = vunpack.c.h.b16 %v50
    %v3631 = vunpack.c.l.b16 %v51
    %v3632 = vunpack.c.l.b16 %v52
    %v3633 = vunpack.c.h.b16 %v52
    %v3634 = vunpack.c.l.b16 %v53
    %v3635 = vunpack.c.l.b16 %v54
    %v3636 = vunpack.c.h.b16 %v54
    %v3637 = vunpack.c.l.b16 %v55
    %v3638 = vunpack.c.l.b16 %v56
    %v3639 = vunpack.c.h.b16 %v56
    %v3640 = vunpack.c.l.b16 %v57
    %v3641 = vunpack.c.l.b16 %v58
    %v3642 = vunpack.c.h.b16 %v58
    %v3643 = vunpack.c.l.b16 %v59
    %v3644 = vunpack.c.l.b16 %v60
    %v3645 = vunpack.c.h.b16 %v60
    %v3646 = vunpack.c.l.b16 %v61
    %v3647 = vunpack.c.l.b16 %v62
    %v3648 = vunpack.c.h.b16 %v62
    %v3649 = vunpack.c.l.b16 %v63
    %v3650 = vunpack.c.l.b16 %v64
    %v3651 = vunpack.c.h.b16 %v64
    %v3652 = vunpack.c.l.b16 %v65
    %v3653 = vunpack.c.l.b16 %v66
    %v3654 = vunpack.c.h.b16 %v66
    %v3655 = vunpack.c.l.b16 %v67
    %v3656 = vunpack.c.l.b16 %v68
    %v3657 = vunpack.c.h.b16 %v68
    %v3658 = vunpack.c.l.b16 %v69
    %v3659 = vunpack.c.l.b16 %v70
    %v3660 = vunpack.c.h.b16 %v70
    %v3661 = vunpack.c.l.b16 %v71
    %v3662 = vunpack.c.l.b16 %v72
    %v3663 = vunpack.c.h.b16 %v72
    %v3664 = vunpack.c.l.b16 %v73
    %v3665 = vunpack.c.l.b16 %v74
    %v3666 = vunpack.c.h.b16 %v74
    %v3667 = vunpack.c.l.b16 %v75
    %v3668 = vunpack.c.l.b16 %v76
    %v3669 = vunpack.c.h.b16 %v76
    %v3670 = vunpack.c.l.b16 %v77
    %v3671 = vunpack.c.l.b16 %v78
    %v3672 = vunpack.c.h.b16 %v78
    %v3673 = vunpack.c.l.b16 %v79
    %v3674 = vunpack.c.l.b16 %v80
    %v3675 = vunpack.c.h.b16 %v80
    %v3676 = vunpack.c.l.b16 %v81
    %v3677 = vunpack.c.l.b16 %v82
    %v3678 = vunpack.c.h.b16 %v82
    %v3679 = vunpack.c.l.b16 %v83
    %v3680 = vunpack.c.l.b16 %v84
    %v3681 = vunpack.c.h.b16 %v84
    %v3682 = vunpack.c.l.b16 %v85
    %v3683 = vunpack.c.l.b16 %v86
    %v3684 = vunpack.c.h.b16 %v86
    %v3685 = vunpack.c.l.b16 %v87
    %v3686 = vunpack.c.l.b16 %v88
    %v3687 = vunpack.c.h.b16 %v88
    %v3688 = vunpack.c.l.b16 %v89
    %v3689 = vunpack.c.l.b16 %v90
    %v3690 = vunpack.c.h.b16 %v90
    %v3691 = vunpack.c.l.b16 %v91
    %v3692 = vunpack.c.l.b16 %v92
    %v3693 = vunpack.c.h.b16 %v92
    %v3694 = vunpack.c.l.b16 %v93
    %v3695 = vunpack.c.l.b16 %v94
    %v3696 = vunpack.c.h.b16 %v94
    %v3697 = vunpack.c.l.b16 %v95
    %v3698 = vunpack.c.l.b16 %v96
    %v3699 = vunpack.c.h.b16 %v96
    %v3700 = vunpack.c.l.b16 %v97
    %v3701 = vunpack.c.l.b16 %v98
    %v3702 = vunpack.c.h.b16 %v98
    %v3703 = vunpack.c.l.b16 %v99
    %v3704 = vunpack.c.l.b16 %v100
    %v3705 = vunpack.c.h.b16 %v100
    %v3706 = vunpack.c.l.b16 %v101
    %v3707 = vunpack.c.l.b16 %v102
    %v3708 = vunpack.c.h.b16 %v102
    %v3709 = vunpack.c.l.b16 %v103
    %v3710 = vunpack.c.l.b16 %v104
    %v3711 = vunpack.c.h.b16 %v104
    %v3712 = vunpack.c.l.b16 %v105
    %v3713 = vunpack.c.l.b16 %v106
    %v3714 = vunpack.c.h.b16 %v106
    %v3715 = vunpack.c.l.b16 %v107
    %v3716 = vunpack.c.l.b16 %v108
    %v3717 = vunpack.c.h.b16 %v108
    %v3718 = vunpack.c.l.b16 %v109
    %v3719 = vunpack.c.l.b16 %v110
    %v3720 = vunpack.c.h.b16 %v110
    %v3721 = vunpack.c.l.b16 %v111
    %v3722 = vunpack.c.l.b16 %v112
    %v3723 = vunpack.c.h.b16 %v112
    %v3724 = vunpack.c.l.b16 %v113
    %v3725 = vunpack.c.l.b16 %v114
    %v3726 = vunpack.c.h.b16 %v114
    %v3727 = vunpack.c.l.b16 %v115
    %v3728 = vunpack.c.l.b16 %v116
    %v3729 = vunpack.c.h.b16 %v116
    %v3730 = vunpack.c.l.b16 %v117
    %v3731 = vunpack.c.l.b16 %v118
    %v3732 = vunpack.c.h.b16 %v118
    %v3733 = vunpack.c.l.b16 %v119
    %v3734 = vunpack.c.l.b16 %v120
    %v3735 = vunpack.c.h.b16 %v120
    %v3736 = vunpack.c.l.b16 %v121
    %v3737 = vunpack.c.l.b16 %v122
    %v3738 = vunpack.c.h.b16 %v122
    %v3739 = vunpack.c.l.b16 %v123
    %v3740 = vunpack.c.l.b16 %v124
    %v3741 = vunpack.c.h.b16 %v124
    %v3742 = vunpack.c.l.b16 %v125
    %v3743 = vunpack.c.l.b16 %v126
    %v3744 = vunpack.c.h.b16 %v126
    %v3745 = vunpack.c.l.b16 %v127
    %v3746 = vunpack.c.l.b16 %v128
    %v3747 = vunpack.c.h.b16 %v128
    %v3748 = vunpack.c.l.b16 %v129
    %v3749 = vunpack.c.l.b16 %v130
    %v3750 = vunpack.c.h.b16 %v130
    %v3751 = vunpack.c.l.b16 %v131
    %v3752 = vunpack.c.l.b16 %v132
    %v3753 = vunpack.c.h.b16 %v132
    %v3754 = vunpack.c.l.b16 %v133
    %v3755 = vunpack.c.l.b16 %v134
    %v3756 = vunpack.c.h.b16 %v134
    %v3757 = vunpack.c.l.b16 %v135
    %v3758 = vunpack.c.l.b16 %v136
    %v3759 = vunpack.c.h.b16 %v136
    %v3760 = vunpack.c.l.b16 %v137
    %v3761 = vunpack.c.l.b16 %v138
    %v3762 = vunpack.c.h.b16 %v138
    %v3763 = vunpack.c.l.b16 %v139
    %v3764 = vunpack.c.l.b16 %v140
    %v3765 = vunpack.c.h.b16 %v140
    %v3766 = vunpack.c.l.b16 %v141
    %v3767 = vunpack.c.l.b16 %v142
    %v3768 = vunpack.c.h.b16 %v142
    %v3769 = vunpack.c.l.b16 %v143
    %v3770 = vunpack.c.l.b16 %v144
    %v3771 = vunpack.c.h.b16 %v144
    %v3772 = vunpack.c.l.b16 %v145
    %v3773 = vunpack.c.l.b16 %v146
    %v3774 = vunpack.c.h.b16 %v146
    %v3775 = vunpack.c.l.b16 %v147
    %v3776 = vunpack.c.l.b16 %v148
    %v3777 = vunpack.c.h.b16 %v148
    %v3778 = vunpack.c.l.b16 %v149
    %v3779 = vunpack.c.l.b16 %v150
    %v3780 = vunpack.c.h.b16 %v150
    %v3781 = vunpack.c.l.b16 %v151
    %v3782 = vunpack.c.l.b16 %v152
    %v3783 = vunpack.c.h.b16 %v152
    %v3784 = vunpack.c.l.b16 %v153
    %v3785 = vunpack.c.l.b16 %v154
    %v3786 = vunpack.c.h.b16 %v154
    %v3787 = vunpack.c.l.b16 %v155
    %v3788 = vunpack.c.l.b16 %v156
    %v3789 = vunpack.c.h.b16 %v156
    %v3790 = vunpack.c.l.b16 %v157
    %v3791 = vunpack.c.l.b16 %v158
    %v3792 = vunpack.c.h.b16 %v158
    %v3793 = vunpack.c.l.b16 %v159
    %v3794 = vunpack.c.l.b16 %v160
    %v3795 = vunpack.c.h.b16 %v160
    %v3796 = vunpack.c.l.b16 %v161
    %v3797 = vunpack.c.l.b16 %v162
    %v3798 = vunpack.c.h.b16 %v162
    %v3799 = vunpack.c.l.b16 %v163
    %v3800 = vunpack.c.l.b16 %v164
    %v3801 = vunpack.c.h.b16 %v164
    %v3802 = vunpack.c.l.b16 %v165
    %v3803 = vunpack.c.l.b16 %v166
    %v3804 = vunpack.c.h.b16 %v166
    %v3805 = vunpack.c.l.b16 %v167
    %v3806 = vunpack.c.l.b16 %v168
    %v3807 = vunpack.c.h.b16 %v168
    %v3808 = vunpack.c.l.b16 %v169
    %v3809 = vunpack.c.l.b16 %v170
    %v3810 = vunpack.c.h.b16 %v170
    %v3811 = vunpack.c.l.b16 %v171
    %v3812 = vunpack.c.l.b16 %v172
    %v3813 = vunpack.c.h.b16 %v172
    %v3814 = vunpack.c.l.b16 %v173
    %v3815 = vunpack.c.l.b16 %v174
    %v3816 = vunpack.c.h.b16 %v174
    %v3817 = vunpack.c.l.b16 %v175
    %v3818 = vunpack.c.l.b16 %v176
    %v3819 = vunpack.c.h.b16 %v176
    %v3820 = vunpack.c.l.b16 %v177
    %v3821 = vunpack.c.l.b16 %v178
    %v3822 = vunpack.c.h.b16 %v178
    %v3823 = vunpack.c.l.b16 %v179
    %v3824 = vunpack.c.l.b16 %v180
    %v3825 = vunpack.c.h.b16 %v180
    %v3826 = vunpack.c.l.b16 %v181
    %v3827 = vunpack.c.l.b16 %v182
    %v3828 = vunpack.c.h.b16 %v182
    %v3829 = vunpack.c.l.b16 %v183
    %v3830 = vunpack.c.l.b16 %v184
    %v3831 = vunpack.c.h.b16 %v184
    %v3832 = vunpack.c.l.b16 %v185
    %v3833 = vunpack.c.l.b16 %v186
    %v3834 = vunpack.c.h.b16 %v186
    %v3835 = vunpack.c.l.b16 %v187
    %v3836 = vunpack.c.l.b16 %v188
    %v3837 = vunpack.c.h.b16 %v188
    %v3838 = vunpack.c.l.b16 %v189
    %v3839 = vunpack.c.l.b16 %v190
    %v3840 = vunpack.c.h.b16 %v190
    %v3841 = vunpack.c.l.b16 %v191
    %v3842 = vunpack.c.l.b16 %v192
    %v3843 = vunpack.c.h.b16 %v192
    %v3844 = vunpack.c.l.b16 %v193
    %v3845 = vunpack.c.l.b16 %v194
    %v3846 = vunpack.c.h.b16 %v194
    %v3847 = vunpack.c.l.b16 %v195
    %v3848 = vunpack.c.l.b16 %v196
    %v3849 = vunpack.c.h.b16 %v196
    %v3850 = vunpack.c.l.b16 %v197
    %v3851 = vunpack.c.l.b16 %v198
    %v3852 = vunpack.c.h.b16 %v198
    %v3853 = vunpack.c.l.b16 %v199
    %v3854 = vunpack.c.l.b16 %v200
    %v3855 = vunpack.c.h.b16 %v200
    %v3856 = vunpack.c.l.b16 %v201
    %v3857 = vunpack.c.l.b16 %v202
    %v3858 = vunpack.c.h.b16 %v202
    %v3859 = vunpack.c.l.b16 %v203
    %v3860 = vunpack.c.l.b16 %v204
    %v3861 = vunpack.c.h.b16 %v204
    %v3862 = vunpack.c.l.b16 %v205
    %v3863 = vunpack.c.l.b16 %v206
    %v3864 = vunpack.c.h.b16 %v206
    %v3865 = vunpack.c.l.b16 %v207
    %v3866 = vunpack.c.l.b16 %v208
    %v3867 = vunpack.c.h.b16 %v208
    %v3868 = vunpack.c.l.b16 %v209
    %v3869 = vunpack.c.l.b16 %v210
    %v3870 = vunpack.c.h.b16 %v210
    %v3871 = vunpack.c.l.b16 %v211
    %v3872 = vunpack.c.l.b16 %v212
    %v3873 = vunpack.c.h.b16 %v212
    %v3874 = vunpack.c.l.b16 %v213
    %v3875 = vunpack.c.l.b16 %v214
    %v3876 = vunpack.c.h.b16 %v214
    %v3877 = vunpack.c.l.b16 %v215
    %v3878 = vunpack.c.l.b16 %v216
    %v3879 = vunpack.c.h.b16 %v216
    %v3880 = vunpack.c.l.b16 %v217
    %v3881 = vunpack.c.l.b16 %v218
    %v3882 = vunpack.c.h.b16 %v218
    %v3883 = vunpack.c.l.b16 %v219
    %v3884 = vunpack.c.l.b16 %v220
    %v3885 = vunpack.c.h.b16 %v220
    %v3886 = vunpack.c.l.b16 %v221
    %v3887 = vunpack.c.l.b16 %v222
    %v3888 = vunpack.c.h.b16 %v222
    %v3889 = vunpack.c.l.b16 %v223
    %v3890 = vunpack.c.l.b16 %v224
    %v3891 = vunpack.c.h.b16 %v224
    %v3892 = vunpack.c.l.b16 %v225
    %v3893 = vunpack.c.l.b16 %v226
    %v3894 = vunpack.c.h.b16 %v226
    %v3895 = vunpack.c.l.b16 %v227
    %v3896 = vunpack.c.l.b16 %v228
    %v3897 = vunpack.c.h.b16 %v228
    %v3898 = vunpack.c.l.b16 %v229
    %v3899 = vunpack.c.l.b16 %v230
    %v3900 = vunpack.c.h.b16 %v230
    %v3901 = vunpack.c.l.b16 %v231
    %v3902 = vunpack.c.l.b16 %v232
    %v3903 = vunpack.c.h.b16 %v232
    %v3904 = vunpack.c.l.b16 %v233
    %v3905 = vunpack.c.l.b16 %v234
    %v3906 = vunpack.c.h.b16 %v234
    %v3907 = vunpack.c.l.b16 %v235
    %v3908 = vunpack.c.l.b16 %v236
    %v3909 = vunpack.c.h.b16 %v236
    %v3910 = vunpack.c.l.b16 %v237
    %v3911 = vunpack.c.l.b16 %v238
    %v3912 = vunpack.c.h.b16 %v238
    %v3913 = vunpack.c.l.b16 %v239
    %v3914 = vunpack.c.l.b16 %v240
    %v3915 = vunpack.c.h.b16 %v240
    %v3916 = vunpack.c.l.b16 %v241
    %v3917 = vunpack.c.l.b16 %v242
    %v3918 = vunpack.c.h.b16 %v242
    %v3919 = vunpack.c.l.b16 %v243
    %v3920 = vunpack.c.l.b16 %v244
    %v3921 = vunpack.c.h.b16 %v244
    %v3922 = vunpack.c.l.b16 %v245
    %v3923 = vunpack.c.l.b16 %v246
    %v3924 = vunpack.c.h.b16 %v246
    %v3925 = vunpack.c.l.b16 %v247
    %v3926 = vunpack.c.l.b16 %v248
    %v3927 = vunpack.c.h.b16 %v248
    %v3928 = vunpack.c.l.b16 %v249
    %v3929 = vunpack.c.l.b16 %v250
    %v3930 = vunpack.c.h.b16 %v250
    %v3931 = vunpack.c.l.b16 %v251
    %v3932 = vunpack.c.l.b16 %v252
    %v3933 = vunpack.c.h.b16 %v252
    %v3934 = vunpack.c.l.b16 %v253
    %v3935 = vunpack.c.l.b16 %v254
    %v3936 = vunpack.c.h.b16 %v254
    %v3937 = vunpack.c.l.b16 %v255
    %v3938 = vunpack.c.l.b16 %v256
    %v3939 = vunpack.c.h.b16 %v256
    %v3940 = vunpack.c.l.b16 %v257
    %v3941 = vunpack.c.l.b16 %v258
    %v3942 = vunpack.c.h.b16 %v258
    %v3943 = vunpack.c.l.b16 %v259
    %v3944 = vunpack.c.l.b16 %v260
    %v3945 = vunpack.c.h.b16 %v260
    %v3946 = vunpack.c.l.b16 %v261
    %v3947 = vunpack.c.l.b16 %v262
    %v3948 = vunpack.c.h.b16 %v262
    %v3949 = vunpack.c.l.b16 %v263
    %v3950 = vunpack.c.l.b16 %v264
    %v3951 = vunpack.c.h.b16 %v264
    %v3952 = vunpack.c.l.b16 %v265
    %v3953 = vunpack.c.l.b16 %v266
    %v3954 = vunpack.c.h.b16 %v266
    %v3955 = vunpack.c.l.b16 %v267
    %v3956 = vunpack.c.l.b16 %v268
    %v3957 = vunpack.c.h.b16 %v268
    %v3958 = vunpack.c.l.b16 %v269
    %v3959 = vunpack.c.l.b16 %v270
    %v3960 = vunpack.c.h.b16 %v270
    %v3961 = vunpack.c.l.b16 %v271
    %v3962 = vunpack.c.l.b16 %v272
    %v3963 = vunpack.c.h.b16 %v272
    %v3964 = vunpack.c.l.b16 %v273
    %v3965 = vunpack.c.l.b16 %v274
    %v3966 = vunpack.c.h.b16 %v274
    %v3967 = vunpack.c.l.b16 %v275
    %v3968 = vunpack.c.l.b16 %v276
    %v3969 = vunpack.c.h.b16 %v276
    %v3970 = vunpack.c.l.b16 %v277
    %v3971 = vunpack.c.l.b16 %v278
    %v3972 = vunpack.c.h.b16 %v278
    %v3973 = vunpack.c.l.b16 %v279
    %v3974 = vunpack.c.l.b16 %v280
    %v3975 = vunpack.c.h.b16 %v280
    %v3976 = vunpack.c.l.b16 %v281
    %v3977 = vunpack.c.l.b16 %v282
    %v3978 = vunpack.c.h.b16 %v282
    %v3979 = vunpack.c.l.b16 %v283
    %v3980 = vunpack.c.l.b16 %v284
    %v3981 = vunpack.c.h.b16 %v284
    %v3982 = vunpack.c.l.b16 %v285
    %v3983 = vunpack.c.l.b16 %v286
    %v3984 = vunpack.c.h.b16 %v286
    %v3985 = vunpack.c.l.b16 %v287
    %v3986 = vunpack.c.l.b16 %v288
    %v3987 = vunpack.c.h.b16 %v288
    %v3988 = vunpack.c.l.b16 %v289
    %v3989 = vunpack.c.l.b16 %v290
    %v3990 = vunpack.c.h.b16 %v290
    %v3991 = vunpack.c.l.b16 %v291
    %v3992 = vunpack.c.l.b16 %v292
    %v3993 = vunpack.c.h.b16 %v292
    %v3994 = vunpack.c.l.b16 %v293
    %v3995 = vunpack.c.l.b16 %v294
    %v3996 = vunpack.c.h.b16 %v294
    %v3997 = vunpack.c.l.b16 %v295
    %v3998 = vunpack.c.l.b16 %v296
    %v3999 = vunpack.c.h.b16 %v296
    %v4000 = vunpack.c.l.b16 %v297
    %v4001 = vunpack.c.l.b16 %v298
    %v4002 = vunpack.c.h.b16 %v298
    %v4003 = vunpack.c.l.b16 %v299
    %v4004 = vunpack.c.l.b16 %v300
    %v4005 = vunpack.c.h.b16 %v300
    %v4006 = vunpack.c.l.b16 %v301
    %v4007 = vunpack.c.l.b16 %v302
    %v4008 = vunpack.c.h.b16 %v302
    %v4009 = vunpack.c.l.b16 %v303
    %v4010 = vunpack.c.l.b16 %v304
    %v4011 = vunpack.c.h.b16 %v304
    %v4012 = vunpack.c.l.b16 %v305
    %v4013 = vunpack.c.l.b16 %v306
    %v4014 = vunpack.c.h.b16 %v306
    %v4015 = vunpack.c.l.b16 %v307
    %v4016 = vunpack.c.l.b16 %v308
    %v4017 = vunpack.c.h.b16 %v308
    %v4018 = vunpack.c.l.b16 %v309
    %v4019 = vunpack.c.l.b16 %v310
    %v4020 = vunpack.c.h.b16 %v310
    %v4021 = vunpack.c.l.b16 %v311
    %v4022 = vunpack.c.l.b16 %v312
    %v4023 = vunpack.c.h.b16 %v312
    %v4024 = vunpack.c.l.b16 %v313
    %v4025 = vunpack.c.l.b16 %v314
    %v4026 = vunpack.c.h.b16 %v314
    %v4027 = vunpack.c.l.b16 %v315
    %v4028 = vunpack.c.l.b16 %v316
    %v4029 = vunpack.c.h.b16 %v316
    %v4030 = vunpack.c.l.b16 %v317
    %v4031 = vunpack.c.l.b16 %v318
    %v4032 = vunpack.c.h.b16 %v318
    %v4033 = vunpack.c.l.b16 %v319
    %v4034 = vunpack.c.l.b16 %v320
    %v4035 = vunpack.c.h.b16 %v320
    %v4036 = vunpack.c.l.b16 %v321
    %v4037 = vunpack.c.l.b16 %v322
    %v4038 = vunpack.c.h.b16 %v322
    %v4039 = vunpack.c.l.b16 %v323
    %v4040 = vunpack.c.l.b16 %v324
    %v4041 = vunpack.c.h.b16 %v324
    %v4042 = vunpack.c.l.b16 %v325
    %v4043 = vunpack.c.l.b16 %v326
    %v4044 = vunpack.c.h.b16 %v326
    %v4045 = vunpack.c.l.b16 %v327
    %v4046 = vunpack.c.l.b16 %v328
    %v4047 = vunpack.c.h.b16 %v328
    %v4048 = vunpack.c.l.b16 %v329
    %v4049 = vunpack.c.l.b16 %v330
    %v4050 = vunpack.c.h.b16 %v330
    %v4051 = vunpack.c.l.b16 %v331
    %v4052 = vunpack.c.l.b16 %v332
    %v4053 = vunpack.c.h.b16 %v332
    %v4054 = vunpack.c.l.b16 %v333
    %v4055 = vunpack.c.l.b16 %v334
    %v4056 = vunpack.c.h.b16 %v334
    %v4057 = vunpack.c.l.b16 %v335
    %v4058 = vunpack.c.l.b16 %v336
    %v4059 = vunpack.c.h.b16 %v336
    %v4060 = vunpack.c.l.b16 %v337
    %v4061 = vunpack.c.l.b16 %v338
    %v4062 = vunpack.c.h.b16 %v338
    %v4063 = vunpack.c.l.b16 %v339
    %v4064 = vunpack.c.l.b16 %v340
    %v4065 = vunpack.c.h.b16 %v340
    %v4066 = vunpack.c.l.b16 %v341
    %v4067 = vunpack.c.l.b16 %v342
    %v4068 = vunpack.c.h.b16 %v342
    %v4069 = vunpack.c.l.b16 %v343
    %v4070 = vunpack.c.l.b16 %v344
    %v4071 = vunpack.c.h.b16 %v344
    %v4072 = vunpack.c.l.b16 %v345
    %v4073 = vunpack.c.l.b16 %v346
    %v4074 = vunpack.c.h.b16 %v346
    %v4075 = vunpack.c.l.b16 %v347
    %v4076 = vunpack.c.l.b16 %v348
    %v4077 = vunpack.c.h.b16 %v348
    %v4078 = vunpack.c.l.b16 %v349
    %v4079 = vunpack.c.l.b16 %v350
    %v4080 = vunpack.c.h.b16 %v350
    %v4081 = vunpack.c.l.b16 %v351
    %v4082 = vunpack.c.l.b16 %v352
    %v4083 = vunpack.c.h.b16 %v352
    %v4084 = vunpack.c.l.b16 %v353
    %v4085 = vunpack.c.l.b16 %v354
    %v4086 = vunpack.c.h.b16 %v354
    %v4087 = vunpack.c.l.b16 %v355
    %v4088 = vunpack.c.l.b16 %v356
    %v4089 = vunpack.c.h.b16 %v356
    %v4090 = vunpack.c.l.b16 %v357
    %v4091 = vunpack.c.l.b16 %v358
    %v4092 = vunpack.c.h.b16 %v358
    %v4093 = vunpack.c.l.b16 %v359
    %v4094 = vunpack.c.l.b16 %v360
    %v4095 = vunpack.c.h.b16 %v360
    %v4096 = vunpack.c.l.b16 %v361
    %v4097 = vunpack.c.l.b16 %v362
    %v4098 = vunpack.c.h.b16 %v362
    %v4099 = vunpack.c.l.b16 %v363
    %v4100 = vunpack.c.l.b16 %v364
    %v4101 = vunpack.c.h.b16 %v364
    %v4102 = vunpack.c.l.b16 %v365
    %v4103 = vunpack.c.l.b16 %v366
    %v4104 = vunpack.c.h.b16 %v366
    %v4105 = vunpack.c.l.b16 %v367
    %v4106 = vunpack.c.l.b16 %v368
    %v4107 = vunpack.c.h.b16 %v368
    %v4108 = vunpack.c.l.b16 %v369
    %v4109 = vunpack.c.l.b16 %v370
    %v4110 = vunpack.c.h.b16 %v370
    %v4111 = vunpack.c.l.b16 %v371
    %v4112 = vunpack.c.l.b16 %v372
    %v4113 = vunpack.c.h.b16 %v372
    %v4114 = vunpack.c.l.b16 %v373
    %v4115 = vunpack.c.l.b16 %v374
    %v4116 = vunpack.c.h.b16 %v374
    %v4117 = vunpack.c.l.b16 %v375
    %v4118 = vunpack.c.l.b16 %v376
    %v4119 = vunpack.c.h.b16 %v376
    %v4120 = vunpack.c.l.b16 %v377
    %v4121 = vunpack.c.l.b16 %v378
    %v4122 = vunpack.c.h.b16 %v378
    %v4123 = vunpack.c.l.b16 %v379
    %v4124 = vunpack.c.l.b16 %v380
    %v4125 = vunpack.c.h.b16 %v380
    %v4126 = vunpack.c.l.b16 %v381
    %v4127 = vunpack.c.l.b16 %v382
    %v4128 = vunpack.c.h.b16 %v382
    %v4129 = vunpack.c.l.b16 %v383
    %v4130 = vunpack.c.l.b16 %v384
    %v4131 = vunpack.c.h.b16 %v384
    %v4132 = vunpack.c.l.b16 %v385
    %v4133 = vunpack.c.l.b16 %v386
    %v4134 = vunpack.c.h.b16 %v386
    %v4135 = vunpack.c.l.b16 %v387
    %v4136 = vunpack.c.l.b16 %v388
    %v4137 = vunpack.c.h.b16 %v388
    %v4138 = vunpack.c.l.b16 %v389
    %v4139 = vunpack.c.l.b16 %v390
    %v4140 = vunpack.c.h.b16 %v390
    %v4141 = vunpack.c.l.b16 %v391
    %v4142 = vunpack.c.l.b16 %v392
    %v4143 = vunpack.c.h.b16 %v392
    %v4144 = vunpack.c.l.b16 %v393
    %v4145 = vunpack.c.l.b16 %v394
    %v4146 = vunpack.c.h.b16 %v394
    %v4147 = vunpack.c.l.b16 %v395
    %v4148 = vunpack.c.l.b16 %v396
    %v4149 = vunpack.c.h.b16 %v396
    %v4150 = vunpack.c.l.b16 %v397
    %v4151 = vunpack.c.l.b16 %v398
    %v4152 = vunpack.c.h.b16 %v398
    %v4153 = vunpack.c.l.b16 %v399
    %v4154 = vunpack.c.l.b16 %v400
    %v4155 = vunpack.c.h.b16 %v400
    %v4156 = vunpack.c.l.b16 %v401
    %v4157 = vunpack.c.l.b16 %v402
    %v4158 = vunpack.c.h.b16 %v402
    %v4159 = vunpack.c.l.b16 %v403
    %v4160 = vunpack.c.l.b16 %v404
    %v4161 = vunpack.c.h.b16 %v404
    %v4162 = vunpack.c.l.b16 %v405
    %v4163 = vunpack.c.l.b16 %v406
    %v4164 = vunpack.c.h.b16 %v406
    %v4165 = vunpack.c.l.b16 %v407
    %v4166 = vunpack.c.l.b16 %v408
    %v4167 = vunpack.c.h.b16 %v408
    %v4168 = vunpack.c.l.b16 %v409
    %v4169 = vunpack.c.l.b16 %v410
    %v4170 = vunpack.c.h.b16 %v410
    %v4171 = vunpack.c.l.b16 %v411
    %v4172 = vunpack.c.l.b16 %v412
    %v4173 = vunpack.c.h.b16 %v412
    %v4174 = vunpack.c.l.b16 %v413
    %v4175 = vunpack.c.l.b16 %v414
    %v4176 = vunpack.c.h.b16 %v414
    %v4177 = vunpack.c.l.b16 %v415
    %v4178 = vunpack.c.l.b16 %v416
    %v4179 = vunpack.c.h.b16 %v416
    %v4180 = vunpack.c.l.b16 %v417
    %v4181 = vunpack.c.l.b16 %v418
    %v4182 = vunpack.c.h.b16 %v418
    %v4183 = vunpack.c.l.b16 %v419
    %v4184 = vunpack.c.l.b16 %v420
    %v4185 = vunpack.c.h.b16 %v420
    %v4186 = vunpack.c.l.b16 %v421
    %v4187 = vunpack.c.l.b16 %v422
    %v4188 = vunpack.c.h.b16 %v422
    %v4189 = vunpack.c.l.b16 %v423
    %v4190 = vunpack.c.l.b16 %v424
    %v4191 = vunpack.c.h.b16 %v424
    %v4192 = vunpack.c.l.b16 %v425
    %v4193 = vunpack.c.l.b16 %v426
    %v4194 = vunpack.c.h.b16 %v426
    %v4195 = vunpack.c.l.b16 %v427
    %v4196 = vunpack.c.l.b16 %v428
    %v4197 = vunpack.c.h.b16 %v428
    %v4198 = vunpack.c.l.b16 %v429
    %v4199 = vunpack.c.l.b16 %v430
    %v4200 = vunpack.c.h.b16 %v430
    %v4201 = vunpack.c.l.b16 %v431
    %v4202 = vunpack.c.l.b16 %v432
    %v4203 = vunpack.c.h.b16 %v432
    %v4204 = vunpack.c.l.b16 %v433
    %v4205 = vunpack.c.l.b16 %v434
    %v4206 = vunpack.c.h.b16 %v434
    %v4207 = vunpack.c.l.b16 %v435
    %v4208 = vunpack.c.l.b16 %v436
    %v4209 = vunpack.c.h.b16 %v436
    %v4210 = vunpack.c.l.b16 %v437
    %v4211 = vunpack.c.l.b16 %v438
    %v4212 = vunpack.c.h.b16 %v438
    %v4213 = vunpack.c.l.b16 %v439
    %v4214 = vunpack.c.l.b16 %v440
    %v4215 = vunpack.c.h.b16 %v440
    %v4216 = vunpack.c.l.b16 %v441
    %v4217 = vpack.c.b16 %v3620, %v3617
    %v4218 = vpack.c.b16 %v3621, %v3618
    %v4219 = vpack.c.b16 %v3622, %v3619
    %v4220 = vpack.c.b16 %v3626, %v3623
    %v4221 = vpack.c.b16 %v3627, %v3624
    %v4222 = vpack.c.b16 %v3628, %v3625
    %v4223 = vpack.c.b16 %v3632, %v3629
    %v4224 = vpack.c.b16 %v3633, %v3630
    %v4225 = vpack.c.b16 %v3634, %v3631
    %v4226 = vpack.c.b16 %v3638, %v3635
    %v4227 = vpack.c.b16 %v3639, %v3636
    %v4228 = vpack.c.b16 %v3640, %v3637
    %v4229 = vpack.c.b16 %v3644, %v3641
    %v4230 = vpack.c.b16 %v3645, %v3642
    %v4231 = vpack.c.b16 %v3646, %v3643
    %v4232 = vpack.c.b16 %v3650, %v3647
    %v4233 = vpack.c.b16 %v3651, %v3648
    %v4234 = vpack.c.b16 %v3652, %v3649
    %v4235 = vpack.c.b16 %v3656, %v3653
    %v4236 = vpack.c.b16 %v3657, %v3654
    %v4237 = vpack.c.b16 %v3658, %v3655
    %v4238 = vpack.c.b16 %v3662, %v3659
    %v4239 = vpack.c.b16 %v3663, %v3660
    %v4240 = vpack.c.b16 %v3664, %v3661
    %v4241 = vpack.c.b16 %v3668, %v3665
    %v4242 = vpack.c.b16 %v3669, %v3666
    %v4243 = vpack.c.b16 %v3670, %v3667
    %v4244 = vpack.c.b16 %v3674, %v3671
    %v4245 = vpack.c.b16 %v3675, %v3672
    %v4246 = vpack.c.b16 %v3676, %v3673
    %v4247 = vpack.c.b16 %v3680, %v3677
    %v4248 = vpack.c.b16 %v3681, %v3678
    %v4249 = vpack.c.b16 %v3682, %v3679
    %v4250 = vpack.c.b16 %v3686, %v3683
    %v4251 = vpack.c.b16 %v3687, %v3684
    %v4252 = vpack.c.b16 %v3688, %v3685
    %v4253 = vpack.c.b16 %v3692, %v3689
    %v4254 = vpack.c.b16 %v3693, %v3690
    %v4255 = vpack.c.b16 %v3694, %v3691
    %v4256 = vpack.c.b16 %v3698, %v3695
    %v4257 = vpack.c.b16 %v3699, %v3696
    %v4258 = vpack.c.b16 %v3700, %v3697
    %v4259 = vpack.c.b16 %v3704, %v3701
    %v4260 = vpack.c.b16 %v3705, %v3702
    %v4261 = vpack.c.b16 %v3706, %v3703
    %v4262 = vpack.c.b16 %v3710, %v3707
    %v4263 = vpack.c.b16 %v3711, %v3708
    %v4264 = vpack.c.b16 %v3712, %v3709
    %v4265 = vpack.c.b16 %v3716, %v3713
    %v4266 = vpack.c.b16 %v3717, %v3714
    %v4267 = vpack.c.b16 %v3718, %v3715
    %v4268 = vpack.c.b16 %v3722, %v3719
    %v4269 = vpack.c.b16 %v3723, %v3720
    %v4270 = vpack.c.b16 %v3724, %v3721
    %v4271 = vpack.c.b16 %v3728, %v3725
    %v4272 = vpack.c.b16 %v3729, %v3726
    %v4273 = vpack.c.b16 %v3730, %v3727
    %v4274 = vpack.c.b16 %v3734, %v3731
    %v4275 = vpack.c.b16 %v3735, %v3732
    %v4276 = vpack.c.b16 %v3736, %v3733
    %v4277 = vpack.c.b16 %v3740, %v3737
    %v4278 = vpack.c.b16 %v3741, %v3738
    %v4279 = vpack.c.b16 %v3742, %v3739
    %v4280 = vpack.c.b16 %v3746, %v3743
    %v4281 = vpack.c.b16 %v3747, %v3744
    %v4282 = vpack.c.b16 %v3748, %v3745
    %v4283 = vpack.c.b16 %v3752, %v3749
    %v4284 = vpack.c.b16 %v3753, %v3750
    %v4285 = vpack.c.b16 %v3754, %v3751
    %v4286 = vpack.c.b16 %v3758, %v3755
    %v4287 = vpack.c.b16 %v3759, %v3756
    %v4288 = vpack.c.b16 %v3760, %v3757
    %v4289 = vpack.c.b16 %v3764, %v3761
    %v4290 = vpack.c.b16 %v3765, %v3762
    %v4291 = vpack.c.b16 %v3766, %v3763
    %v4292 = vpack.c.b16 %v3770, %v3767
    %v4293 = vpack.c.b16 %v3771, %v3768
    %v4294 = vpack.c.b16 %v3772, %v3769
    %v4295 = vpack.c.b16 %v3776, %v3773
    %v4296 = vpack.c.b16 %v3777, %v3774
    %v4297 = vpack.c.b16 %v3778, %v3775
    %v4298 = vpack.c.b16 %v3782, %v3779
    %v4299 = vpack.c.b16 %v3783, %v3780
    %v4300 = vpack.c.b16 %v3784, %v3781
    %v4301 = vpack.c.b16 %v3788, %v3785
    %v4302 = vpack.c.b16 %v3789, %v3786
    %v4303 = vpack.c.b16 %v3790, %v3787
    %v4304 = vpack.c.b16 %v3794, %v3791
    %v4305 = vpack.c.b16 %v3795, %v3792
    %v4306 = vpack.c.b16 %v3796, %v3793
    %v4307 = vpack.c.b16 %v3800, %v3797
    %v4308 = vpack.c.b16 %v3801, %v3798
    %v4309 = vpack.c.b16 %v3802, %v3799
    %v4310 = vpack.c.b16 %v3806, %v3803
    %v4311 = vpack.c.b16 %v3807, %v3804
    %v4312 = vpack.c.b16 %v3808, %v3805
    %v4313 = vpack.c.b16 %v3812, %v3809
    %v4314 = vpack.c.b16 %v3813, %v3810
    %v4315 = vpack.c.b16 %v3814, %v3811
    %v4316 = vpack.c.b16 %v3818, %v3815
    %v4317 = vpack.c.b16 %v3819, %v3816
    %v4318 = vpack.c.b16 %v3820, %v3817
    %v4319 = vpack.c.b16 %v3824, %v3821
    %v4320 = vpack.c.b16 %v3825, %v3822
    %v4321 = vpack.c.b16 %v3826, %v3823
    %v4322 = vpack.c.b16 %v3830, %v3827
    %v4323 = vpack.c.b16 %v3831, %v3828
    %v4324 = vpack.c.b16 %v3832, %v3829
    %v4325 = vpack.c.b16 %v3836, %v3833
    %v4326 = vpack.c.b16 %v3837, %v3834
    %v4327 = vpack.c.b16 %v3838, %v3835
    %v4328 = vpack.c.b16 %v3842, %v3839
    %v4329 = vpack.c.b16 %v3843, %v3840
    %v4330 = vpack.c.b16 %v3844, %v3841
    %v4331 = vpack.c.b16 %v3848, %v3845
    %v4332 = vpack.c.b16 %v3849, %v3846
    %v4333 = vpack.c.b16 %v3850, %v3847
    %v4334 = vpack.c.b16 %v3854, %v3851
    %v4335 = vpack.c.b16 %v3855, %v3852
    %v4336 = vpack.c.b16 %v3856, %v3853
    %v4337 = vpack.c.b16 %v3860, %v3857
    %v4338 = vpack.c.b16 %v3861, %v3858
    %v4339 = vpack.c.b16 %v3862, %v3859
    %v4340 = vpack.c.b16 %v3866, %v3863
    %v4341 = vpack.c.b16 %v3867, %v3864
    %v4342 = vpack.c.b16 %v3868, %v3865
    %v4343 = vpack.c.b16 %v3872, %v3869
    %v4344 = vpack.c.b16 %v3873, %v3870
    %v4345 = vpack.c.b16 %v3874, %v3871
    %v4346 = vpack.c.b16 %v3878, %v3875
    %v4347 = vpack.c.b16 %v3879, %v3876
    %v4348 = vpack.c.b16 %v3880, %v3877
    %v4349 = vpack.c.b16 %v3884, %v3881
    %v4350 = vpack.c.b16 %v3885, %v3882
    %v4351 = vpack.c.b16 %v3886, %v3883
    %v4352 = vpack.c.b16 %v3890, %v3887
    %v4353 = vpack.c.b16 %v3891, %v3888
    %v4354 = vpack.c.b16 %v3892, %v3889
    %v4355 = vpack.c.b16 %v3896, %v3893
    %v4356 = vpack.c.b16 %v3897, %v3894
    %v4357 = vpack.c.b16 %v3898, %v3895
    %v4358 = vpack.c.b16 %v3902, %v3899
    %v4359 = vpack.c.b16 %v3903, %v3900
    %v4360 = vpack.c.b16 %v3904, %v3901
    %v4361 = vpack.c.b16 %v3908, %v3905
    %v4362 = vpack.c.b16 %v3909, %v3906
    %v4363 = vpack.c.b16 %v3910, %v3907
    %v4364 = vpack.c.b16 %v3914, %v3911
    %v4365 = vpack.c.b16 %v3915, %v3912
    %v4366 = vpack.c.b16 %v3916, %v3913
    %v4367 = vpack.c.b16 %v3920, %v3917
    %v4368 = vpack.c.b16 %v3921, %v3918
    %v4369 = vpack.c.b16 %v3922, %v3919
    %v4370 = vpack.c.b16 %v3926, %v3923
    %v4371 = vpack.c.b16 %v3927, %v3924
    %v4372 = vpack.c.b16 %v3928, %v3925
    %v4373 = vpack.c.b16 %v3932, %v3929
    %v4374 = vpack.c.b16 %v3933, %v3930
    %v4375 = vpack.c.b16 %v3934, %v3931
    %v4376 = vpack.c.b16 %v3938, %v3935
    %v4377 = vpack.c.b16 %v3939, %v3936
    %v4378 = vpack.c.b16 %v3940, %v3937
    %v4379 = vpack.c.b16 %v3944, %v3941
    %v4380 = vpack.c.b16 %v3945, %v3942
    %v4381 = vpack.c.b16 %v3946, %v3943
    %v4382 = vpack.c.b16 %v3950, %v3947
    %v4383 = vpack.c.b16 %v3951, %v3948
    %v4384 = vpack.c.b16 %v3952, %v3949
    %v4385 = vpack.c.b16 %v3956, %v3953
    %v4386 = vpack.c.b16 %v3957, %v3954
    %v4387 = vpack.c.b16 %v3958, %v3955
    %v4388 = vpack.c.b16 %v3962, %v3959
    %v4389 = vpack.c.b16 %v3963, %v3960
    %v4390 = vpack.c.b16 %v3964, %v3961
    %v4391 = vpack.c.b16 %v3968, %v3965
    %v4392 = vpack.c.b16 %v3969, %v3966
    %v4393 = vpack.c.b16 %v3970, %v3967
    %v4394 = vpack.c.b16 %v3974, %v3971
    %v4395 = vpack.c.b16 %v3975, %v3972
    %v4396 = vpack.c.b16 %v3976, %v3973
    %v4397 = vpack.c.b16 %v3980, %v3977
    %v4398 = vpack.c.b16 %v3981, %v3978
    %v4399 = vpack.c.b16 %v3982, %v3979
    %v4400 = vpack.c.b16 %v3986, %v3983
    %v4401 = vpack.c.b16 %v3987, %v3984
    %v4402 = vpack.c.b16 %v3988, %v3985
    %v4403 = vpack.c.b16 %v3992, %v3989
    %v4404 = vpack.c.b16 %v3993, %v3990
    %v4405 = vpack.c.b16 %v3994, %v3991
    %v4406 = vpack.c.b16 %v3998, %v3995
    %v4407 = vpack.c.b16 %v3999, %v3996
    %v4408 = vpack.c.b16 %v4000, %v3997
    %v4409 = vpack.c.b16 %v4004, %v4001
    %v4410 = vpack.c.b16 %v4005, %v4002
    %v4411 = vpack.c.b16 %v4006, %v4003
    %v4412 = vpack.c.b16 %v4010, %v4007
    %v4413 = vpack.c.b16 %v4011, %v4008
    %v4414 = vpack.c.b16 %v4012, %v4009
    %v4415 = vpack.c.b16 %v4016, %v4013
    %v4416 = vpack.c.b16 %v4017, %v4014
    %v4417 = vpack.c.b16 %v4018, %v4015
    %v4418 = vpack.c.b16 %v4022, %v4019
    %v4419 = vpack.c.b16 %v4023, %v4020
    %v4420 = vpack.c.b16 %v4024, %v4021
    %v4421 = vpack.c.b16 %v4028, %v4025
    %v4422 = vpack.c.b16 %v4029, %v4026
    %v4423 = vpack.c.b16 %v4030, %v4027
    %v4424 = vpack.c.b16 %v4034, %v4031
    %v4425 = vpack.c.b16 %v4035, %v4032
    %v4426 = vpack.c.b16 %v4036, %v4033
    %v4427 = vpack.c.b16 %v4040, %v4037
    %v4428 = vpack.c.b16 %v4041, %v4038
    %v4429 = vpack.c.b16 %v4042, %v4039
    %v4430 = vpack.c.b16 %v4046, %v4043
    %v4431 = vpack.c.b16 %v4047, %v4044
    %v4432 = vpack.c.b16 %v4048, %v4045
    %v4433 = vpack.c.b16 %v4052, %v4049
    %v4434 = vpack.c.b16 %v4053, %v4050
    %v4435 = vpack.c.b16 %v4054, %v4051
    %v4436 = vpack.c.b16 %v4058, %v4055
    %v4437 = vpack.c.b16 %v4059, %v4056
    %v4438 = vpack.c.b16 %v4060, %v4057
    %v4439 = vpack.c.b16 %v4064, %v4061
    %v4440 = vpack.c.b16 %v4065, %v4062
    %v4441 = vpack.c.b16 %v4066, %v4063
    %v4442 = vpack.c.b16 %v4070, %v4067
    %v4443 = vpack.c.b16 %v4071, %v4068
    %v4444 = vpack.c.b16 %v4072, %v4069
    %v4445 = vpack.c.b16 %v4076, %v4073
    %v4446 = vpack.c.b16 %v4077, %v4074
    %v4447 = vpack.c.b16 %v4078, %v4075
    %v4448 = vpack.c.b16 %v4082, %v4079
    %v4449 = vpack.c.b16 %v4083, %v4080
    %v4450 = vpack.c.b16 %v4084, %v4081
    %v4451 = vpack.c.b16 %v4088, %v4085
    %v4452 = vpack.c.b16 %v4089, %v4086
    %v4453 = vpack.c.b16 %v4090, %v4087
    %v4454 = vpack.c.b16 %v4094, %v4091
    %v4455 = vpack.c.b16 %v4095, %v4092
    %v4456 = vpack.c.b16 %v4096, %v4093
    %v4457 = vpack.c.b16 %v4100, %v4097
    %v4458 = vpack.c.b16 %v4101, %v4098
    %v4459 = vpack.c.b16 %v4102, %v4099
    %v4460 = vpack.c.b16 %v4106, %v4103
    %v4461 = vpack.c.b16 %v4107, %v4104
    %v4462 = vpack.c.b16 %v4108, %v4105
    %v4463 = vpack.c.b16 %v4112, %v4109
    %v4464 = vpack.c.b16 %v4113, %v4110
    %v4465 = vpack.c.b16 %v4114, %v4111
    %v4466 = vpack.c.b16 %v4118, %v4115
    %v4467 = vpack.c.b16 %v4119, %v4116
    %v4468 = vpack.c.b16 %v4120, %v4117
    %v4469 = vpack.c.b16 %v4124, %v4121
    %v4470 = vpack.c.b16 %v4125, %v4122
    %v4471 = vpack.c.b16 %v4126, %v4123
    %v4472 = vpack.c.b16 %v4130, %v4127
    %v4473 = vpack.c.b16 %v4131, %v4128
    %v4474 = vpack.c.b16 %v4132, %v4129
    %v4475 = vpack.c.b16 %v4136, %v4133
    %v4476 = vpack.c.b16 %v4137, %v4134
    %v4477 = vpack.c.b16 %v4138, %v4135
    %v4478 = vpack.c.b16 %v4142, %v4139
    %v4479 = vpack.c.b16 %v4143, %v4140
    %v4480 = vpack.c.b16 %v4144, %v4141
    %v4481 = vpack.c.b16 %v4148, %v4145
    %v4482 = vpack.c.b16 %v4149, %v4146
    %v4483 = vpack.c.b16 %v4150, %v4147
    %v4484 = vpack.c.b16 %v4154, %v4151
    %v4485 = vpack.c.b16 %v4155, %v4152
    %v4486 = vpack.c.b16 %v4156, %v4153
    %v4487 = vpack.c.b16 %v4160, %v4157
    %v4488 = vpack.c.b16 %v4161, %v4158
    %v4489 = vpack.c.b16 %v4162, %v4159
    %v4490 = vpack.c.b16 %v4166, %v4163
    %v4491 = vpack.c.b16 %v4167, %v4164
    %v4492 = vpack.c.b16 %v4168, %v4165
    %v4493 = vpack.c.b16 %v4172, %v4169
    %v4494 = vpack.c.b16 %v4173, %v4170
    %v4495 = vpack.c.b16 %v4174, %v4171
    %v4496 = vpack.c.b16 %v4178, %v4175
    %v4497 = vpack.c.b16 %v4179, %v4176
    %v4498 = vpack.c.b16 %v4180, %v4177
    %v4499 = vpack.c.b16 %v4184, %v4181
    %v4500 = vpack.c.b16 %v4185, %v4182
    %v4501 = vpack.c.b16 %v4186, %v4183
    %v4502 = vpack.c.b16 %v4190, %v4187
    %v4503 = vpack.c.b16 %v4191, %v4188
    %v4504 = vpack.c.b16 %v4192, %v4189
    %v4505 = vpack.c.b16 %v4196, %v4193
    %v4506 = vpack.c.b16 %v4197, %v4194
    %v4507 = vpack.c.b16 %v4198, %v4195
    %v4508 = vpack.c.b16 %v4202, %v4199
    %v4509 = vpack.c.b16 %v4203, %v4200
    %v4510 = vpack.c.b16 %v4204, %v4201
    %v4511 = vpack.c.b16 %v4208, %v4205
    %v4512 = vpack.c.b16 %v4209, %v4206
    %v4513 = vpack.c.b16 %v4210, %v4207
    %v4514 = vpack.c.b16 %v4214, %v4211
    %v4515 = vpack.c.b16 %v4215, %v4212
    %v4516 = vpack.c.b16 %v4216, %v4213
    %v4818 = vsel %vm2544, %v3195, 0
    %4820 = vmatprep.subr.bf16.mxu0 %v4218
    %4821 = vmatpush1.bf16.msra.mxu0 %v4217
    %4822 = vmatprep.subr.bf16.mxu0 %v4221
    %4823 = vmatpush1.bf16.msra.mxu0 %v4220
    %4824 = vmatprep.subr.bf16.mxu0 %v4224
    %4825 = vmatpush1.bf16.msra.mxu0 %v4223
    %4826 = vmatprep.subr.bf16.mxu0 %v4227
    %4827 = vmatpush1.bf16.msra.mxu0 %v4226
    %4828 = vmatprep.subr.bf16.mxu0 %v4230
    %4829 = vmatpush1.bf16.msra.mxu0 %v4229
    %4830 = vmatprep.subr.bf16.mxu0 %v4233
    %4831 = vmatpush1.bf16.msra.mxu0 %v4232
    %4832 = vmatprep.subr.bf16.mxu0 %v4236
    %4833 = vmatpush1.bf16.msra.mxu0 %v4235
    %4834 = vmatprep.subr.bf16.mxu0 %v4239
    %4835 = vmatpush1.bf16.msra.mxu0 %v4238
    %4836 = vmatprep.subr.bf16.mxu0 %v4242
    %4837 = vmatpush1.bf16.msra.mxu0 %v4241
    %4838 = vmatprep.subr.bf16.mxu0 %v4245
    %4839 = vmatpush1.bf16.msra.mxu0 %v4244
    %4840 = vmatprep.subr.bf16.mxu0 %v4248
    %4841 = vmatpush1.bf16.msra.mxu0 %v4247
    %4842 = vmatprep.subr.bf16.mxu0 %v4251
    %4843 = vmatpush1.bf16.msra.mxu0 %v4250
    %4844 = vmatprep.subr.bf16.mxu0 %v4254
    %4845 = vmatpush1.bf16.msra.mxu0 %v4253
    %4846 = vmatprep.subr.bf16.mxu0 %v4257
    %4847 = vmatpush1.bf16.msra.mxu0 %v4256
    %4848 = vmatprep.subr.bf16.mxu0 %v4260
    %4849 = vmatpush1.bf16.msra.mxu0 %v4259
    %4850 = vmatprep.subr.bf16.mxu0 %v4263
    %4851 = vmatpush1.bf16.msra.mxu0 %v4262
    %4852 = vmatprep.mubr.bf16.mxu0 %v3154
    %4853 = vmatmul.mubr.bf16.gmra.mrb[0].mxu0 %v3140
    %v4854 = vpop.f32.mrb[0].mxu0
    %v4855 = vadd.f32 %v2829, %v4854
    %v4856 = vpop.f32.mrb[0].mxu0
    %v4857 = vadd.f32 %v2831, %v4856
    %v4858 = vpop.f32.mrb[0].mxu0
    %v4859 = vpop.f32.mrb[0].mxu0
    %4860 = vdwg.mxu0
    %4861 = vmatprep.subr.bf16.mxu0 %v4266
    %4862 = vmatpush1.bf16.msra.mxu0 %v4265
    %4863 = vmatprep.subr.bf16.mxu0 %v4269
    %4864 = vmatpush1.bf16.msra.mxu0 %v4268
    %4865 = vmatprep.subr.bf16.mxu0 %v4272
    %4866 = vmatpush1.bf16.msra.mxu0 %v4271
    %4867 = vmatprep.subr.bf16.mxu0 %v4275
    %4868 = vmatpush1.bf16.msra.mxu0 %v4274
    %4869 = vmatprep.subr.bf16.mxu0 %v4278
    %4870 = vmatpush1.bf16.msra.mxu0 %v4277
    %4871 = vmatprep.subr.bf16.mxu0 %v4281
    %4872 = vmatpush1.bf16.msra.mxu0 %v4280
    %4873 = vmatprep.subr.bf16.mxu0 %v4284
    %4874 = vmatpush1.bf16.msra.mxu0 %v4283
    %4875 = vmatprep.subr.bf16.mxu0 %v4287
    %4876 = vmatpush1.bf16.msra.mxu0 %v4286
    %4877 = vmatprep.subr.bf16.mxu0 %v4290
    %4878 = vmatpush1.bf16.msra.mxu0 %v4289
    %4879 = vmatprep.subr.bf16.mxu0 %v4293
    %4880 = vmatpush1.bf16.msra.mxu0 %v4292
    %4881 = vmatprep.subr.bf16.mxu0 %v4296
    %4882 = vmatpush1.bf16.msra.mxu0 %v4295
    %4883 = vmatprep.subr.bf16.mxu0 %v4299
    %4884 = vmatpush1.bf16.msra.mxu0 %v4298
    %4885 = vmatprep.subr.bf16.mxu0 %v4302
    %4886 = vmatpush1.bf16.msra.mxu0 %v4301
    %4887 = vmatprep.subr.bf16.mxu0 %v4305
    %4888 = vmatpush1.bf16.msra.mxu0 %v4304
    %4889 = vmatprep.subr.bf16.mxu0 %v4308
    %4890 = vmatpush1.bf16.msra.mxu0 %v4307
    %4891 = vmatprep.subr.bf16.mxu0 %v4311
    %4892 = vmatpush1.bf16.msra.mxu0 %v4310
    %4893 = vmatprep.mubr.bf16.mxu0 %v3164
    %4894 = vmatmul.mubr.bf16.gmra.mrb[0].mxu0 %v3162
    %v4895 = vpop.f32.mrb[0].mxu0
    %v4896 = vadd.f32 %v4855, %v4895
    %v4897 = vpop.f32.mrb[0].mxu0
    %v4898 = vadd.f32 %v4857, %v4897
    %v4899 = vpop.f32.mrb[0].mxu0
    %v4900 = vpop.f32.mrb[0].mxu0
    %4901 = vdwg.mxu0
    %4902 = vmatprep.subr.bf16.mxu0 %v4314
    %4903 = vmatpush1.bf16.msra.mxu0 %v4313
    %4904 = vmatprep.subr.bf16.mxu0 %v4317
    %4905 = vmatpush1.bf16.msra.mxu0 %v4316
    %4906 = vmatprep.subr.bf16.mxu0 %v4320
    %4907 = vmatpush1.bf16.msra.mxu0 %v4319
    %4908 = vmatprep.subr.bf16.mxu0 %v4323
    %4909 = vmatpush1.bf16.msra.mxu0 %v4322
    %4910 = vmatprep.subr.bf16.mxu0 %v4326
    %4911 = vmatpush1.bf16.msra.mxu0 %v4325
    %4912 = vmatprep.subr.bf16.mxu0 %v4329
    %4913 = vmatpush1.bf16.msra.mxu0 %v4328
    %4914 = vmatprep.subr.bf16.mxu0 %v4332
    %4915 = vmatpush1.bf16.msra.mxu0 %v4331
    %4916 = vmatprep.subr.bf16.mxu0 %v4335
    %4917 = vmatpush1.bf16.msra.mxu0 %v4334
    %4918 = vmatprep.subr.bf16.mxu0 %v4338
    %4919 = vmatpush1.bf16.msra.mxu0 %v4337
    %4920 = vmatprep.subr.bf16.mxu0 %v4341
    %4921 = vmatpush1.bf16.msra.mxu0 %v4340
    %4922 = vmatprep.subr.bf16.mxu0 %v4344
    %4923 = vmatpush1.bf16.msra.mxu0 %v4343
    %4924 = vmatprep.subr.bf16.mxu0 %v4347
    %4925 = vmatpush1.bf16.msra.mxu0 %v4346
    %4926 = vmatprep.subr.bf16.mxu0 %v4350
    %4927 = vmatpush1.bf16.msra.mxu0 %v4349
    %4928 = vmatprep.subr.bf16.mxu0 %v4353
    %4929 = vmatpush1.bf16.msra.mxu0 %v4352
    %4930 = vmatprep.subr.bf16.mxu0 %v4356
    %4931 = vmatpush1.bf16.msra.mxu0 %v4355
    %4932 = vmatprep.subr.bf16.mxu0 %v4359
    %4933 = vmatpush1.bf16.msra.mxu0 %v4358
    %4934 = vmatprep.mubr.bf16.mxu0 %v3161
    %4935 = vmatmul.mubr.bf16.gmra.mrb[0].mxu0 %v3147
    %v4936 = vpop.f32.mrb[0].mxu0
    %v4937 = vadd.f32 %v4896, %v4936
    %v4938 = vpop.f32.mrb[0].mxu0
    %v4939 = vadd.f32 %v4898, %v4938
    %v4940 = vpop.f32.mrb[0].mxu0
    %v4941 = vpop.f32.mrb[0].mxu0
    %4942 = vdwg.mxu0
    %4943 = vmatprep.subr.bf16.mxu0 %v4362
    %4944 = vmatpush1.bf16.msra.mxu0 %v4361
    %4945 = vmatprep.subr.bf16.mxu0 %v4365
    %4946 = vmatpush1.bf16.msra.mxu0 %v4364
    %4947 = vmatprep.subr.bf16.mxu0 %v4368
    %4948 = vmatpush1.bf16.msra.mxu0 %v4367
    %4949 = vmatprep.subr.bf16.mxu0 %v4371
    %4950 = vmatpush1.bf16.msra.mxu0 %v4370
    %4951 = vmatprep.subr.bf16.mxu0 %v4374
    %4952 = vmatpush1.bf16.msra.mxu0 %v4373
    %4953 = vmatprep.subr.bf16.mxu0 %v4377
    %4954 = vmatpush1.bf16.msra.mxu0 %v4376
    %4955 = vmatprep.subr.bf16.mxu0 %v4380
    %4956 = vmatpush1.bf16.msra.mxu0 %v4379
    %4957 = vmatprep.subr.bf16.mxu0 %v4383
    %4958 = vmatpush1.bf16.msra.mxu0 %v4382
    %4959 = vmatprep.subr.bf16.mxu0 %v4386
    %4960 = vmatpush1.bf16.msra.mxu0 %v4385
    %4961 = vmatprep.subr.bf16.mxu0 %v4389
    %4962 = vmatpush1.bf16.msra.mxu0 %v4388
    %4963 = vmatprep.subr.bf16.mxu0 %v4392
    %4964 = vmatpush1.bf16.msra.mxu0 %v4391
    %4965 = vmatprep.subr.bf16.mxu0 %v4395
    %4966 = vmatpush1.bf16.msra.mxu0 %v4394
    %4967 = vmatprep.subr.bf16.mxu0 %v4398
    %4968 = vmatpush1.bf16.msra.mxu0 %v4397
    %4969 = vmatprep.subr.bf16.mxu0 %v4401
    %4970 = vmatpush1.bf16.msra.mxu0 %v4400
    %4971 = vmatprep.subr.bf16.mxu0 %v4404
    %4972 = vmatpush1.bf16.msra.mxu0 %v4403
    %4973 = vmatprep.subr.bf16.mxu0 %v4407
    %4974 = vmatpush1.bf16.msra.mxu0 %v4406
    %4975 = vmatprep.mubr.bf16.mxu0 %v3165
    %4976 = vmatmul.mubr.bf16.gmra.mrb[0].mxu0 %v3163
    %v4977 = vpop.f32.mrb[0].mxu0
    %v4978 = vadd.f32 %v4937, %v4977
    %v4979 = vpop.f32.mrb[0].mxu0
    %v4980 = vadd.f32 %v4939, %v4979
    %v4981 = vpop.f32.mrb[0].mxu0
    %v4982 = vpop.f32.mrb[0].mxu0
    %4983 = vdwg.mxu0
    %4984 = vmatprep.subr.bf16.mxu0 %v4410
    %4985 = vmatpush1.bf16.msra.mxu0 %v4409
    %4986 = vmatprep.subr.bf16.mxu0 %v4413
    %4987 = vmatpush1.bf16.msra.mxu0 %v4412
    %4988 = vmatprep.subr.bf16.mxu0 %v4416
    %4989 = vmatpush1.bf16.msra.mxu0 %v4415
    %4990 = vmatprep.subr.bf16.mxu0 %v4419
    %4991 = vmatpush1.bf16.msra.mxu0 %v4418
    %4992 = vmatprep.subr.bf16.mxu0 %v4422
    %4993 = vmatpush1.bf16.msra.mxu0 %v4421
    %4994 = vmatprep.subr.bf16.mxu0 %v4425
    %4995 = vmatpush1.bf16.msra.mxu0 %v4424
    %4996 = vmatprep.subr.bf16.mxu0 %v4428
    %4997 = vmatpush1.bf16.msra.mxu0 %v4427
    %4998 = vmatprep.subr.bf16.mxu0 %v4431
    %4999 = vmatpush1.bf16.msra.mxu0 %v4430
    %5000 = vmatprep.subr.bf16.mxu0 %v4434
    %5001 = vmatpush1.bf16.msra.mxu0 %v4433
    %5002 = vmatprep.subr.bf16.mxu0 %v4437
    %5003 = vmatpush1.bf16.msra.mxu0 %v4436
    %5004 = vmatprep.subr.bf16.mxu0 %v4440
    %5005 = vmatpush1.bf16.msra.mxu0 %v4439
    %5006 = vmatprep.subr.bf16.mxu0 %v4443
    %5007 = vmatpush1.bf16.msra.mxu0 %v4442
    %5008 = vmatprep.subr.bf16.mxu0 %v4446
    %5009 = vmatpush1.bf16.msra.mxu0 %v4445
    %5010 = vmatprep.subr.bf16.mxu0 %v4449
    %5011 = vmatpush1.bf16.msra.mxu0 %v4448
    %5012 = vmatprep.subr.bf16.mxu0 %v4452
    %5013 = vmatpush1.bf16.msra.mxu0 %v4451
    %5014 = vmatprep.subr.bf16.mxu0 %v4455
    %5015 = vmatpush1.bf16.msra.mxu0 %v4454
    %5016 = vmatprep.mubr.bf16.mxu0 %v3202
    %5017 = vmatmul.mubr.bf16.gmra.mrb[0].mxu0 %v3188
    %v5018 = vpop.f32.mrb[0].mxu0
    %v5019 = vadd.f32 %v4978, %v5018
    %v5020 = vpop.f32.mrb[0].mxu0
    %v5021 = vadd.f32 %v4980, %v5020
    %v5022 = vpop.f32.mrb[0].mxu0
    %v5023 = vpop.f32.mrb[0].mxu0
    %5024 = vdwg.mxu0
    %5025 = vmatprep.subr.bf16.mxu0 %v4458
    %5026 = vmatpush1.bf16.msra.mxu0 %v4457
    %5027 = vmatprep.subr.bf16.mxu0 %v4461
    %5028 = vmatpush1.bf16.msra.mxu0 %v4460
    %5029 = vmatprep.subr.bf16.mxu0 %v4464
    %5030 = vmatpush1.bf16.msra.mxu0 %v4463
    %5031 = vmatprep.subr.bf16.mxu0 %v4467
    %5032 = vmatpush1.bf16.msra.mxu0 %v4466
    %5033 = vmatprep.subr.bf16.mxu0 %v4470
    %5034 = vmatpush1.bf16.msra.mxu0 %v4469
    %5035 = vmatprep.subr.bf16.mxu0 %v4473
    %5036 = vmatpush1.bf16.msra.mxu0 %v4472
    %5037 = vmatprep.subr.bf16.mxu0 %v4476
    %5038 = vmatpush1.bf16.msra.mxu0 %v4475
    %5039 = vmatprep.subr.bf16.mxu0 %v4479
    %5040 = vmatpush1.bf16.msra.mxu0 %v4478
    %5041 = vmatprep.subr.bf16.mxu0 %v4482
    %5042 = vmatpush1.bf16.msra.mxu0 %v4481
    %5043 = vmatprep.subr.bf16.mxu0 %v4485
    %5044 = vmatpush1.bf16.msra.mxu0 %v4484
    %5045 = vmatprep.subr.bf16.mxu0 %v4488
    %5046 = vmatpush1.bf16.msra.mxu0 %v4487
    %5047 = vmatprep.subr.bf16.mxu0 %v4491
    %5048 = vmatpush1.bf16.msra.mxu0 %v4490
    %5049 = vmatprep.subr.bf16.mxu0 %v4494
    %5050 = vmatpush1.bf16.msra.mxu0 %v4493
    %5051 = vmatprep.subr.bf16.mxu0 %v4497
    %5052 = vmatpush1.bf16.msra.mxu0 %v4496
    %5053 = vmatprep.subr.bf16.mxu0 %v4500
    %5054 = vmatpush1.bf16.msra.mxu0 %v4499
    %5055 = vmatprep.subr.bf16.mxu0 %v4503
    %5056 = vmatpush1.bf16.msra.mxu0 %v4502
    %5057 = vmatprep.mubr.bf16.mxu0 %v3204
    %5058 = vmatmul.mubr.bf16.gmra.mrb[0].mxu0 %v3203
    %v5059 = vpop.f32.mrb[0].mxu0
    %v5060 = vadd.f32 %v5019, %v5059
    %v5061 = vpop.f32.mrb[0].mxu0
    %v5062 = vadd.f32 %v5021, %v5061
    %v5063 = vpop.f32.mrb[0].mxu0
    %v5064 = vpop.f32.mrb[0].mxu0
    %5065 = vdwg.mxu0
    %5066 = vmatprep.subr.bf16.mxu0 %v4506
    %5067 = vmatpush1.bf16.msra.mxu0 %v4505
    %5068 = vmatprep.subr.bf16.mxu0 %v4509
    %5069 = vmatpush1.bf16.msra.mxu0 %v4508
    %5070 = vmatprep.subr.bf16.mxu0 %v4512
    %5071 = vmatpush1.bf16.msra.mxu0 %v4511
    %5072 = vmatprep.subr.bf16.mxu0 %v4515
    %5073 = vmatpush1.bf16.msra.mxu0 %v4514
    %5074 = vmatprep.subr.bf16.mxu0 0
    %5075 = vmatpush1.bf16.msra.mxu0 0
    %5076 = vmatprep.subr.bf16.mxu0 0
    %5077 = vmatpush1.bf16.msra.mxu0 0
    %5078 = vmatprep.subr.bf16.mxu0 0
    %5079 = vmatpush1.bf16.msra.mxu0 0
    %5080 = vmatprep.subr.bf16.mxu0 0
    %5081 = vmatpush1.bf16.msra.mxu0 0
    %5082 = vmatprep.subr.bf16.mxu0 0
    %5083 = vmatpush1.bf16.msra.mxu0 0
    %5084 = vmatprep.subr.bf16.mxu0 0
    %5085 = vmatpush1.bf16.msra.mxu0 0
    %5086 = vmatprep.subr.bf16.mxu0 0
    %5087 = vmatpush1.bf16.msra.mxu0 0
    %5088 = vmatprep.subr.bf16.mxu0 0
    %5089 = vmatpush1.bf16.msra.mxu0 0
    %5090 = vmatprep.subr.bf16.mxu0 0
    %5091 = vmatpush1.bf16.msra.mxu0 0
    %5092 = vmatprep.subr.bf16.mxu0 0
    %5093 = vmatpush1.bf16.msra.mxu0 0
    %5094 = vmatprep.subr.bf16.mxu0 0
    %5095 = vmatpush1.bf16.msra.mxu0 0
    %5096 = vmatprep.subr.bf16.mxu0 0
    %5097 = vmatpush1.bf16.msra.mxu0 0
    %5098 = vmatprep.mubr.bf16.mxu0 0
    %5099 = vmatmul.mubr.bf16.gmra.mrb[0].mxu0 %v4818
    %v5100 = vpop.f32.mrb[0].mxu0
    %v5101 = vadd.f32 %v5060, %v5100
    %v5102 = vpop.f32.mrb[0].mxu0
    %v5103 = vadd.f32 %v5062, %v5102
    %v5104 = vpop.f32.mrb[0].mxu0
    %v5105 = vpop.f32.mrb[0].mxu0
    %5106 = vdwg.mxu0
    %5107 = vmatprep.subr.bf16.mxu0 0
    %5108 = vmatpush1.bf16.msra.mxu0 %v4219
    %5109 = vmatprep.subr.bf16.mxu0 0
    %5110 = vmatpush1.bf16.msra.mxu0 %v4222
    %5111 = vmatprep.subr.bf16.mxu0 0
    %5112 = vmatpush1.bf16.msra.mxu0 %v4225
    %5113 = vmatprep.subr.bf16.mxu0 0
    %5114 = vmatpush1.bf16.msra.mxu0 %v4228
    %5115 = vmatprep.subr.bf16.mxu0 0
    %5116 = vmatpush1.bf16.msra.mxu0 %v4231
    %5117 = vmatprep.subr.bf16.mxu0 0
    %5118 = vmatpush1.bf16.msra.mxu0 %v4234
    %5119 = vmatprep.subr.bf16.mxu0 0
    %5120 = vmatpush1.bf16.msra.mxu0 %v4237
    %5121 = vmatprep.subr.bf16.mxu0 0
    %5122 = vmatpush1.bf16.msra.mxu0 %v4240
    %5123 = vmatprep.subr.bf16.mxu0 0
    %5124 = vmatpush1.bf16.msra.mxu0 %v4243
    %5125 = vmatprep.subr.bf16.mxu0 0
    %5126 = vmatpush1.bf16.msra.mxu0 %v4246
    %5127 = vmatprep.subr.bf16.mxu0 0
    %5128 = vmatpush1.bf16.msra.mxu0 %v4249
    %5129 = vmatprep.subr.bf16.mxu0 0
    %5130 = vmatpush1.bf16.msra.mxu0 %v4252
    %5131 = vmatprep.subr.bf16.mxu0 0
    %5132 = vmatpush1.bf16.msra.mxu0 %v4255
    %5133 = vmatprep.subr.bf16.mxu0 0
    %5134 = vmatpush1.bf16.msra.mxu0 %v4258
    %5135 = vmatprep.subr.bf16.mxu0 0
    %5136 = vmatpush1.bf16.msra.mxu0 %v4261
    %5137 = vmatprep.subr.bf16.mxu0 0
    %5138 = vmatpush1.bf16.msra.mxu0 %v4264
    %5139 = vmatprep.mubr.bf16.mxu0 %v3154
    %5140 = vmatmul.mubr.bf16.gmra.mrb[0].mxu0 %v3140
    %v5141 = vpop.f32.mrb[0].mxu0
    %v5142 = vadd.f32 %v3110, %v5141
    %v5143 = vpop.f32.mrb[0].mxu0
    %v5144 = vpop.f32.mrb[0].mxu0
    %v5145 = vpop.f32.mrb[0].mxu0
    %5146 = vdwg.mxu0
    %5147 = vmatprep.subr.bf16.mxu0 0
    %5148 = vmatpush1.bf16.msra.mxu0 %v4267
    %5149 = vmatprep.subr.bf16.mxu0 0
    %5150 = vmatpush1.bf16.msra.mxu0 %v4270
    %5151 = vmatprep.subr.bf16.mxu0 0
    %5152 = vmatpush1.bf16.msra.mxu0 %v4273
    %5153 = vmatprep.subr.bf16.mxu0 0
    %5154 = vmatpush1.bf16.msra.mxu0 %v4276
    %5155 = vmatprep.subr.bf16.mxu0 0
    %5156 = vmatpush1.bf16.msra.mxu0 %v4279
    %5157 = vmatprep.subr.bf16.mxu0 0
    %5158 = vmatpush1.bf16.msra.mxu0 %v4282
    %5159 = vmatprep.subr.bf16.mxu0 0
    %5160 = vmatpush1.bf16.msra.mxu0 %v4285
    %5161 = vmatprep.subr.bf16.mxu0 0
    %5162 = vmatpush1.bf16.msra.mxu0 %v4288
    %5163 = vmatprep.subr.bf16.mxu0 0
    %5164 = vmatpush1.bf16.msra.mxu0 %v4291
    %5165 = vmatprep.subr.bf16.mxu0 0
    %5166 = vmatpush1.bf16.msra.mxu0 %v4294
    %5167 = vmatprep.subr.bf16.mxu0 0
    %5168 = vmatpush1.bf16.msra.mxu0 %v4297
    %5169 = vmatprep.subr.bf16.mxu0 0
    %5170 = vmatpush1.bf16.msra.mxu0 %v4300
    %5171 = vmatprep.subr.bf16.mxu0 0
    %5172 = vmatpush1.bf16.msra.mxu0 %v4303
    %5173 = vmatprep.subr.bf16.mxu0 0
    %5174 = vmatpush1.bf16.msra.mxu0 %v4306
    %5175 = vmatprep.subr.bf16.mxu0 0
    %5176 = vmatpush1.bf16.msra.mxu0 %v4309
    %5177 = vmatprep.subr.bf16.mxu0 0
    %5178 = vmatpush1.bf16.msra.mxu0 %v4312
    %5179 = vmatprep.mubr.bf16.mxu0 %v3164
    %5180 = vmatmul.mubr.bf16.gmra.mrb[0].mxu0 %v3162
    %v5181 = vpop.f32.mrb[0].mxu0
    %v5182 = vadd.f32 %v5142, %v5181
    %v5183 = vpop.f32.mrb[0].mxu0
    %v5184 = vpop.f32.mrb[0].mxu0
    %v5185 = vpop.f32.mrb[0].mxu0
    %5186 = vdwg.mxu0
    %5187 = vmatprep.subr.bf16.mxu0 0
    %5188 = vmatpush1.bf16.msra.mxu0 %v4315
    %5189 = vmatprep.subr.bf16.mxu0 0
    %5190 = vmatpush1.bf16.msra.mxu0 %v4318
    %5191 = vmatprep.subr.bf16.mxu0 0
    %5192 = vmatpush1.bf16.msra.mxu0 %v4321
    %5193 = vmatprep.subr.bf16.mxu0 0
    %5194 = vmatpush1.bf16.msra.mxu0 %v4324
    %5195 = vmatprep.subr.bf16.mxu0 0
    %5196 = vmatpush1.bf16.msra.mxu0 %v4327
    %5197 = vmatprep.subr.bf16.mxu0 0
    %5198 = vmatpush1.bf16.msra.mxu0 %v4330
    %5199 = vmatprep.subr.bf16.mxu0 0
    %5200 = vmatpush1.bf16.msra.mxu0 %v4333
    %5201 = vmatprep.subr.bf16.mxu0 0
    %5202 = vmatpush1.bf16.msra.mxu0 %v4336
    %5203 = vmatprep.subr.bf16.mxu0 0
    %5204 = vmatpush1.bf16.msra.mxu0 %v4339
    %5205 = vmatprep.subr.bf16.mxu0 0
    %5206 = vmatpush1.bf16.msra.mxu0 %v4342
    %5207 = vmatprep.subr.bf16.mxu0 0
    %5208 = vmatpush1.bf16.msra.mxu0 %v4345
    %5209 = vmatprep.subr.bf16.mxu0 0
    %5210 = vmatpush1.bf16.msra.mxu0 %v4348
    %5211 = vmatprep.subr.bf16.mxu0 0
    %5212 = vmatpush1.bf16.msra.mxu0 %v4351
    %5213 = vmatprep.subr.bf16.mxu0 0
    %5214 = vmatpush1.bf16.msra.mxu0 %v4354
    %5215 = vmatprep.subr.bf16.mxu0 0
    %5216 = vmatpush1.bf16.msra.mxu0 %v4357
    %5217 = vmatprep.subr.bf16.mxu0 0
    %5218 = vmatpush1.bf16.msra.mxu0 %v4360
    %5219 = vmatprep.mubr.bf16.mxu0 %v3161
    %5220 = vmatmul.mubr.bf16.gmra.mrb[0].mxu0 %v3147
    %v5221 = vpop.f32.mrb[0].mxu0
    %v5222 = vadd.f32 %v5182, %v5221
    %v5223 = vpop.f32.mrb[0].mxu0
    %v5224 = vpop.f32.mrb[0].mxu0
    %v5225 = vpop.f32.mrb[0].mxu0
    %5226 = vdwg.mxu0
    %5227 = vmatprep.subr.bf16.mxu0 0
    %5228 = vmatpush1.bf16.msra.mxu0 %v4363
    %5229 = vmatprep.subr.bf16.mxu0 0
    %5230 = vmatpush1.bf16.msra.mxu0 %v4366
    %5231 = vmatprep.subr.bf16.mxu0 0
    %5232 = vmatpush1.bf16.msra.mxu0 %v4369
    %5233 = vmatprep.subr.bf16.mxu0 0
    %5234 = vmatpush1.bf16.msra.mxu0 %v4372
    %5235 = vmatprep.subr.bf16.mxu0 0
    %5236 = vmatpush1.bf16.msra.mxu0 %v4375
    %5237 = vmatprep.subr.bf16.mxu0 0
    %5238 = vmatpush1.bf16.msra.mxu0 %v4378
    %5239 = vmatprep.subr.bf16.mxu0 0
    %5240 = vmatpush1.bf16.msra.mxu0 %v4381
    %5241 = vmatprep.subr.bf16.mxu0 0
    %5242 = vmatpush1.bf16.msra.mxu0 %v4384
    %5243 = vmatprep.subr.bf16.mxu0 0
    %5244 = vmatpush1.bf16.msra.mxu0 %v4387
    %5245 = vmatprep.subr.bf16.mxu0 0
    %5246 = vmatpush1.bf16.msra.mxu0 %v4390
    %5247 = vmatprep.subr.bf16.mxu0 0
    %5248 = vmatpush1.bf16.msra.mxu0 %v4393
    %5249 = vmatprep.subr.bf16.mxu0 0
    %5250 = vmatpush1.bf16.msra.mxu0 %v4396
    %5251 = vmatprep.subr.bf16.mxu0 0
    %5252 = vmatpush1.bf16.msra.mxu0 %v4399
    %5253 = vmatprep.subr.bf16.mxu0 0
    %5254 = vmatpush1.bf16.msra.mxu0 %v4402
    %5255 = vmatprep.subr.bf16.mxu0 0
    %5256 = vmatpush1.bf16.msra.mxu0 %v4405
    %5257 = vmatprep.subr.bf16.mxu0 0
    %5258 = vmatpush1.bf16.msra.mxu0 %v4408
    %5259 = vmatprep.mubr.bf16.mxu0 %v3165
    %5260 = vmatmul.mubr.bf16.gmra.mrb[0].mxu0 %v3163
    %v5261 = vpop.f32.mrb[0].mxu0
    %v5262 = vadd.f32 %v5222, %v5261
    %v5263 = vpop.f32.mrb[0].mxu0
    %v5264 = vpop.f32.mrb[0].mxu0
    %v5265 = vpop.f32.mrb[0].mxu0
    %5266 = vdwg.mxu0
    %5267 = vmatprep.subr.bf16.mxu0 0
    %5268 = vmatpush1.bf16.msra.mxu0 %v4411
    %5269 = vmatprep.subr.bf16.mxu0 0
    %5270 = vmatpush1.bf16.msra.mxu0 %v4414
    %5271 = vmatprep.subr.bf16.mxu0 0
    %5272 = vmatpush1.bf16.msra.mxu0 %v4417
    %5273 = vmatprep.subr.bf16.mxu0 0
    %5274 = vmatpush1.bf16.msra.mxu0 %v4420
    %5275 = vmatprep.subr.bf16.mxu0 0
    %5276 = vmatpush1.bf16.msra.mxu0 %v4423
    %5277 = vmatprep.subr.bf16.mxu0 0
    %5278 = vmatpush1.bf16.msra.mxu0 %v4426
    %5279 = vmatprep.subr.bf16.mxu0 0
    %5280 = vmatpush1.bf16.msra.mxu0 %v4429
    %5281 = vmatprep.subr.bf16.mxu0 0
    %5282 = vmatpush1.bf16.msra.mxu0 %v4432
    %5283 = vmatprep.subr.bf16.mxu0 0
    %5284 = vmatpush1.bf16.msra.mxu0 %v4435
    %5285 = vmatprep.subr.bf16.mxu0 0
    %5286 = vmatpush1.bf16.msra.mxu0 %v4438
    %5287 = vmatprep.subr.bf16.mxu0 0
    %5288 = vmatpush1.bf16.msra.mxu0 %v4441
    %5289 = vmatprep.subr.bf16.mxu0 0
    %5290 = vmatpush1.bf16.msra.mxu0 %v4444
    %5291 = vmatprep.subr.bf16.mxu0 0
    %5292 = vmatpush1.bf16.msra.mxu0 %v4447
    %5293 = vmatprep.subr.bf16.mxu0 0
    %5294 = vmatpush1.bf16.msra.mxu0 %v4450
    %5295 = vmatprep.subr.bf16.mxu0 0
    %5296 = vmatpush1.bf16.msra.mxu0 %v4453
    %5297 = vmatprep.subr.bf16.mxu0 0
    %5298 = vmatpush1.bf16.msra.mxu0 %v4456
    %5299 = vmatprep.mubr.bf16.mxu0 %v3202
    %5300 = vmatmul.mubr.bf16.gmra.mrb[0].mxu0 %v3188
    %v5301 = vpop.f32.mrb[0].mxu0
    %v5302 = vadd.f32 %v5262, %v5301
    %v5303 = vpop.f32.mrb[0].mxu0
    %v5304 = vpop.f32.mrb[0].mxu0
    %v5305 = vpop.f32.mrb[0].mxu0
    %5306 = vdwg.mxu0
    %5307 = vmatprep.subr.bf16.mxu0 0
    %5308 = vmatpush1.bf16.msra.mxu0 %v4459
    %5309 = vmatprep.subr.bf16.mxu0 0
    %5310 = vmatpush1.bf16.msra.mxu0 %v4462
    %5311 = vmatprep.subr.bf16.mxu0 0
    %5312 = vmatpush1.bf16.msra.mxu0 %v4465
    %5313 = vmatprep.subr.bf16.mxu0 0
    %5314 = vmatpush1.bf16.msra.mxu0 %v4468
    %5315 = vmatprep.subr.bf16.mxu0 0
    %5316 = vmatpush1.bf16.msra.mxu0 %v4471
    %5317 = vmatprep.subr.bf16.mxu0 0
    %5318 = vmatpush1.bf16.msra.mxu0 %v4474
    %5319 = vmatprep.subr.bf16.mxu0 0
    %5320 = vmatpush1.bf16.msra.mxu0 %v4477
    %5321 = vmatprep.subr.bf16.mxu0 0
    %5322 = vmatpush1.bf16.msra.mxu0 %v4480
    %5323 = vmatprep.subr.bf16.mxu0 0
    %5324 = vmatpush1.bf16.msra.mxu0 %v4483
    %5325 = vmatprep.subr.bf16.mxu0 0
    %5326 = vmatpush1.bf16.msra.mxu0 %v4486
    %5327 = vmatprep.subr.bf16.mxu0 0
    %5328 = vmatpush1.bf16.msra.mxu0 %v4489
    %5329 = vmatprep.subr.bf16.mxu0 0
    %5330 = vmatpush1.bf16.msra.mxu0 %v4492
    %5331 = vmatprep.subr.bf16.mxu0 0
    %5332 = vmatpush1.bf16.msra.mxu0 %v4495
    %5333 = vmatprep.subr.bf16.mxu0 0
    %5334 = vmatpush1.bf16.msra.mxu0 %v4498
    %5335 = vmatprep.subr.bf16.mxu0 0
    %5336 = vmatpush1.bf16.msra.mxu0 %v4501
    %5337 = vmatprep.subr.bf16.mxu0 0
    %5338 = vmatpush1.bf16.msra.mxu0 %v4504
    %5339 = vmatprep.mubr.bf16.mxu0 %v3204
    %5340 = vmatmul.mubr.bf16.gmra.mrb[0].mxu0 %v3203
    %v5341 = vpop.f32.mrb[0].mxu0
    %v5342 = vadd.f32 %v5302, %v5341
    %v5343 = vpop.f32.mrb[0].mxu0
    %v5344 = vpop.f32.mrb[0].mxu0
    %v5345 = vpop.f32.mrb[0].mxu0
    %5346 = vdwg.mxu0
    %5347 = vmatprep.subr.bf16.mxu0 0
    %5348 = vmatpush1.bf16.msra.mxu0 %v4507
    %5349 = vmatprep.subr.bf16.mxu0 0
    %5350 = vmatpush1.bf16.msra.mxu0 %v4510
    %5351 = vmatprep.subr.bf16.mxu0 0
    %5352 = vmatpush1.bf16.msra.mxu0 %v4513
    %5353 = vmatprep.subr.bf16.mxu0 0
    %5354 = vmatpush1.bf16.msra.mxu0 %v4516
    %5355 = vmatprep.subr.bf16.mxu0 0
    %5356 = vmatpush1.bf16.msra.mxu0 0
    %5357 = vmatprep.subr.bf16.mxu0 0
    %5358 = vmatpush1.bf16.msra.mxu0 0
    %5359 = vmatprep.subr.bf16.mxu0 0
    %5360 = vmatpush1.bf16.msra.mxu0 0
    %5361 = vmatprep.subr.bf16.mxu0 0
    %5362 = vmatpush1.bf16.msra.mxu0 0
    %5363 = vmatprep.subr.bf16.mxu0 0
    %5364 = vmatpush1.bf16.msra.mxu0 0
    %5365 = vmatprep.subr.bf16.mxu0 0
    %5366 = vmatpush1.bf16.msra.mxu0 0
    %5367 = vmatprep.subr.bf16.mxu0 0
    %5368 = vmatpush1.bf16.msra.mxu0 0
    %5369 = vmatprep.subr.bf16.mxu0 0
    %5370 = vmatpush1.bf16.msra.mxu0 0
    %5371 = vmatprep.subr.bf16.mxu0 0
    %5372 = vmatpush1.bf16.msra.mxu0 0
    %5373 = vmatprep.subr.bf16.mxu0 0
    %5374 = vmatpush1.bf16.msra.mxu0 0
    %5375 = vmatprep.subr.bf16.mxu0 0
    %5376 = vmatpush1.bf16.msra.mxu0 0
    %5377 = vmatprep.subr.bf16.mxu0 0
    %5378 = vmatpush1.bf16.msra.mxu0 0
    %5379 = vmatprep.mubr.bf16.mxu0 0
    %5380 = vmatmul.mubr.bf16.gmra.mrb[0].mxu0 %v4818
    %v5381 = vpop.f32.mrb[0].mxu0
    %v5382 = vadd.f32 %v5342, %v5381
    %v5383 = vpop.f32.mrb[0].mxu0
    %v5384 = vpop.f32.mrb[0].mxu0
    %v5385 = vpop.f32.mrb[0].mxu0
    %5386 = vdwg.mxu0
    %v5387 = vld [vmem:[%s1] sm:$0x3]
    %v5388 = vld [vmem:[%s4] sm:$0x7]
    %5390 = vset.pattern.permute.xlu0 0
    %5391 = vperm.xlu0 %5390, %v5387
    %v5392 = vpop.permute.xlu0 %5391
    %v5395 = vlaneseq
    %v5396 = vshrl.u32 %v5395, 7
    %v5397 = vsub.s32 0, %v5396
    %v5398 = vrot.slane %v5388, %v5397
    %v5399 = vlaneseq
    %v5400 = vshrl.u32 %v5399, 7
    %v5401 = vsub.s32 1, %v5400
    %v5402 = vrot.slane %v5388, %v5401
    %v5403 = vlaneseq
    %v5404 = vshrl.u32 %v5403, 7
    %v5405 = vsub.s32 2, %v5404
    %v5406 = vrot.slane %v5388, %v5405
    %v5410 = vmul.f32 %v5392, %v5398
    %v5411 = vmul.f32 %v5392, %v5402
    %v5412 = vmul.f32 %v5392, %v5406
    %v5413 = vadd.f32 %v5101, %v5410
    %v5414 = vadd.f32 %v5103, %v5411
    %v5415 = vadd.f32 %v5382, %v5412
    %v5416 = vld [vmem:[%s5] sm:$0x7]
    %v5418 = vlaneseq
    %v5419 = vshrl.u32 %v5418, 7
    %v5420 = vsub.s32 0, %v5419
    %v5421 = vrot.slane %v5416, %v5420
    %v5422 = vlaneseq
    %v5423 = vshrl.u32 %v5422, 7
    %v5424 = vsub.s32 1, %v5423
    %v5425 = vrot.slane %v5416, %v5424
    %v5426 = vlaneseq
    %v5427 = vshrl.u32 %v5426, 7
    %v5428 = vsub.s32 2, %v5427
    %v5429 = vrot.slane %v5416, %v5428
    %v5433 = vadd.f32 %v5413, %v5421
    %v5434 = vadd.f32 %v5414, %v5425
    %v5435 = vadd.f32 %v5415, %v5429
    %v5436 = vmax.f32 %v5433, 0.0
    %v5437 = vmax.f32 %v5434, 0.0
    %v5438 = vmax.f32 %v5435, 0.0
    %v5439 = vpack.c.bf16 %v5436, %v5436
    %v5440 = vpack.c.bf16 %v5437, %v5437
    %v5441 = vpack.c.bf16 %v5438, %v5438
    %v5442 = vld [vmem:[%s6] sm:$0xff]
    %v5443 = vld [vmem:[%s6 + $0x8] sm:$0xff]
    %v5444 = vld [vmem:[%s6 + $0x10] sm:$0xff]
    %v5445 = vld [vmem:[%s6 + $0x18] sm:$0xff]
    %v5446 = vld [vmem:[%s6 + $0x20] sm:$0xff]
    %v5447 = vld [vmem:[%s6 + $0x28] sm:$0xff]
    %v5448 = vld [vmem:[%s6 + $0x30] sm:$0xff]
    %v5449 = vld [vmem:[%s6 + $0x38] sm:$0xff]
    %v5450 = vld [vmem:[%s6 + $0x40] sm:$0xff]
    %v5451 = vld [vmem:[%s6 + $0x48] sm:$0xff]
    %v5452 = vld [vmem:[%s6 + $0x50] sm:$0xff]
    %v5453 = vld [vmem:[%s6 + $0x58] sm:$0xff]
    %v5454 = vld [vmem:[%s6 + $0x60] sm:$0xff]
    %v5455 = vld [vmem:[%s6 + $0x68] sm:$0xff]
    %v5456 = vld [vmem:[%s6 + $0x70] sm:$0xff]
    %v5457 = vld [vmem:[%s6 + $0x78] sm:$0xff]
    %v5458 = vld [vmem:[%s6 + $0x80] sm:$0xff]
    %v5459 = vld [vmem:[%s6 + $0x88] sm:$0xff]
    %v5460 = vld [vmem:[%s6 + $0x90] sm:$0xff]
    %v5461 = vld [vmem:[%s6 + $0x98] sm:$0xff]
    %v5462 = vld [vmem:[%s6 + $0xa0] sm:$0xff]
    %v5463 = vld [vmem:[%s6 + $0xa8] sm:$0xff]
    %v5464 = vld [vmem:[%s6 + $0xb0] sm:$0xff]
    %v5465 = vld [vmem:[%s6 + $0xb8] sm:$0xff]
    %v5466 = vld [vmem:[%s6 + $0xc0] sm:$0xff]
    %v5467 = vld [vmem:[%s6 + $0xc8] sm:$0xff]
    %v5468 = vld [vmem:[%s6 + $0xd0] sm:$0xff]
    %v5469 = vld [vmem:[%s6 + $0xd8] sm:$0xff]
    %v5470 = vld [vmem:[%s6 + $0xe0] sm:$0xff]
    %v5471 = vld [vmem:[%s6 + $0xe8] sm:$0xff]
    %v5472 = vld [vmem:[%s6 + $0xf0] sm:$0xff]
    %v5473 = vld [vmem:[%s6 + $0xf8] sm:$0xff]
    %v5474 = vld [vmem:[%s6 + $0x100] sm:$0xff]
    %v5475 = vld [vmem:[%s6 + $0x108] sm:$0xff]
    %v5476 = vld [vmem:[%s6 + $0x110] sm:$0xff]
    %v5477 = vld [vmem:[%s6 + $0x118] sm:$0xff]
    %v5478 = vld [vmem:[%s7] sm:$0x3]
    %v5480 = vlaneseq
    %v5481 = vshrl.u32 %v5480, 7
    %v5482 = vsub.s32 0, %v5481
    %v5483 = vrot.slane %v5478, %v5482
    %v5484 = vlaneseq
    %v5485 = vshrl.u32 %v5484, 7
    %v5486 = vsub.s32 1, %v5485
    %v5487 = vrot.slane %v5478, %v5486
    %v5526 = vunpack.c.l.b16 %v5442
    %v5527 = vunpack.c.h.b16 %v5442
    %v5528 = vunpack.c.l.b16 %v5443
    %v5529 = vunpack.c.h.b16 %v5443
    %v5530 = vunpack.c.l.b16 %v5444
    %v5531 = vunpack.c.h.b16 %v5444
    %v5532 = vunpack.c.l.b16 %v5445
    %v5533 = vunpack.c.h.b16 %v5445
    %v5534 = vunpack.c.l.b16 %v5446
    %v5535 = vunpack.c.h.b16 %v5446
    %v5536 = vunpack.c.l.b16 %v5447
    %v5537 = vunpack.c.h.b16 %v5447
    %v5538 = vunpack.c.l.b16 %v5448
    %v5539 = vunpack.c.h.b16 %v5448
    %v5540 = vunpack.c.l.b16 %v5449
    %v5541 = vunpack.c.h.b16 %v5449
    %v5542 = vunpack.c.l.b16 %v5450
    %v5543 = vunpack.c.h.b16 %v5450
    %v5544 = vunpack.c.l.b16 %v5451
    %v5545 = vunpack.c.h.b16 %v5451
    %v5546 = vunpack.c.l.b16 %v5452
    %v5547 = vunpack.c.h.b16 %v5452
    %v5548 = vunpack.c.l.b16 %v5453
    %v5549 = vunpack.c.h.b16 %v5453
    %v5550 = vunpack.c.l.b16 %v5454
    %v5551 = vunpack.c.h.b16 %v5454
    %v5552 = vunpack.c.l.b16 %v5455
    %v5553 = vunpack.c.h.b16 %v5455
    %v5554 = vunpack.c.l.b16 %v5456
    %v5555 = vunpack.c.h.b16 %v5456
    %v5556 = vunpack.c.l.b16 %v5457
    %v5557 = vunpack.c.h.b16 %v5457
    %v5558 = vunpack.c.l.b16 %v5458
    %v5559 = vunpack.c.h.b16 %v5458
    %v5560 = vunpack.c.l.b16 %v5459
    %v5561 = vunpack.c.h.b16 %v5459
    %v5562 = vunpack.c.l.b16 %v5460
    %v5563 = vunpack.c.h.b16 %v5460
    %v5564 = vunpack.c.l.b16 %v5461
    %v5565 = vunpack.c.h.b16 %v5461
    %v5566 = vunpack.c.l.b16 %v5462
    %v5567 = vunpack.c.h.b16 %v5462
    %v5568 = vunpack.c.l.b16 %v5463
    %v5569 = vunpack.c.h.b16 %v5463
    %v5570 = vunpack.c.l.b16 %v5464
    %v5571 = vunpack.c.h.b16 %v5464
    %v5572 = vunpack.c.l.b16 %v5465
    %v5573 = vunpack.c.h.b16 %v5465
    %v5574 = vunpack.c.l.b16 %v5466
    %v5575 = vunpack.c.h.b16 %v5466
    %v5576 = vunpack.c.l.b16 %v5467
    %v5577 = vunpack.c.h.b16 %v5467
    %v5578 = vunpack.c.l.b16 %v5468
    %v5579 = vunpack.c.h.b16 %v5468
    %v5580 = vunpack.c.l.b16 %v5469
    %v5581 = vunpack.c.h.b16 %v5469
    %v5582 = vunpack.c.l.b16 %v5470
    %v5583 = vunpack.c.h.b16 %v5470
    %v5584 = vunpack.c.l.b16 %v5471
    %v5585 = vunpack.c.h.b16 %v5471
    %v5586 = vunpack.c.l.b16 %v5472
    %v5587 = vunpack.c.h.b16 %v5472
    %v5588 = vunpack.c.l.b16 %v5473
    %v5589 = vunpack.c.h.b16 %v5473
    %v5590 = vunpack.c.l.b16 %v5474
    %v5591 = vunpack.c.h.b16 %v5474
    %v5592 = vunpack.c.l.b16 %v5475
    %v5593 = vunpack.c.h.b16 %v5475
    %v5594 = vunpack.c.l.b16 %v5476
    %v5595 = vunpack.c.h.b16 %v5476
    %v5596 = vunpack.c.l.b16 %v5477
    %v5597 = vunpack.c.h.b16 %v5477
    %v5598 = vpack.c.b16 %v5528, %v5526
    %v5599 = vpack.c.b16 %v5529, %v5527
    %v5600 = vpack.c.b16 %v5532, %v5530
    %v5601 = vpack.c.b16 %v5533, %v5531
    %v5602 = vpack.c.b16 %v5536, %v5534
    %v5603 = vpack.c.b16 %v5537, %v5535
    %v5604 = vpack.c.b16 %v5540, %v5538
    %v5605 = vpack.c.b16 %v5541, %v5539
    %v5606 = vpack.c.b16 %v5544, %v5542
    %v5607 = vpack.c.b16 %v5545, %v5543
    %v5608 = vpack.c.b16 %v5548, %v5546
    %v5609 = vpack.c.b16 %v5549, %v5547
    %v5610 = vpack.c.b16 %v5552, %v5550
    %v5611 = vpack.c.b16 %v5553, %v5551
    %v5612 = vpack.c.b16 %v5556, %v5554
    %v5613 = vpack.c.b16 %v5557, %v5555
    %v5614 = vpack.c.b16 %v5560, %v5558
    %v5615 = vpack.c.b16 %v5561, %v5559
    %v5616 = vpack.c.b16 %v5564, %v5562
    %v5617 = vpack.c.b16 %v5565, %v5563
    %v5618 = vpack.c.b16 %v5568, %v5566
    %v5619 = vpack.c.b16 %v5569, %v5567
    %v5620 = vpack.c.b16 %v5572, %v5570
    %v5621 = vpack.c.b16 %v5573, %v5571
    %v5622 = vpack.c.b16 %v5576, %v5574
    %v5623 = vpack.c.b16 %v5577, %v5575
    %v5624 = vpack.c.b16 %v5580, %v5578
    %v5625 = vpack.c.b16 %v5581, %v5579
    %v5626 = vpack.c.b16 %v5584, %v5582
    %v5627 = vpack.c.b16 %v5585, %v5583
    %v5628 = vpack.c.b16 %v5588, %v5586
    %v5629 = vpack.c.b16 %v5589, %v5587
    %v5630 = vpack.c.b16 %v5592, %v5590
    %v5631 = vpack.c.b16 %v5593, %v5591
    %v5632 = vpack.c.b16 %v5596, %v5594
    %v5633 = vpack.c.b16 %v5597, %v5595
    %vm5670 = vcmask 261120
    %v5672 = vsel %vm5670, %v5441, 0
    %5674 = vmatprep.subr.bf16.mxu0 %v5599
    %5675 = vmatpush1.bf16.msra.mxu0 %v5598
    %5676 = vmatprep.subr.bf16.mxu0 %v5601
    %5677 = vmatpush1.bf16.msra.mxu0 %v5600
    %5678 = vmatprep.subr.bf16.mxu0 %v5603
    %5679 = vmatpush1.bf16.msra.mxu0 %v5602
    %5680 = vmatprep.subr.bf16.mxu0 %v5605
    %5681 = vmatpush1.bf16.msra.mxu0 %v5604
    %5682 = vmatprep.subr.bf16.mxu0 %v5607
    %5683 = vmatpush1.bf16.msra.mxu0 %v5606
    %5684 = vmatprep.subr.bf16.mxu0 %v5609
    %5685 = vmatpush1.bf16.msra.mxu0 %v5608
    %5686 = vmatprep.subr.bf16.mxu0 %v5611
    %5687 = vmatpush1.bf16.msra.mxu0 %v5610
    %5688 = vmatprep.subr.bf16.mxu0 %v5613
    %5689 = vmatpush1.bf16.msra.mxu0 %v5612
    %5690 = vmatprep.subr.bf16.mxu0 %v5615
    %5691 = vmatpush1.bf16.msra.mxu0 %v5614
    %5692 = vmatprep.subr.bf16.mxu0 %v5617
    %5693 = vmatpush1.bf16.msra.mxu0 %v5616
    %5694 = vmatprep.subr.bf16.mxu0 %v5619
    %5695 = vmatpush1.bf16.msra.mxu0 %v5618
    %5696 = vmatprep.subr.bf16.mxu0 %v5621
    %5697 = vmatpush1.bf16.msra.mxu0 %v5620
    %5698 = vmatprep.subr.bf16.mxu0 %v5623
    %5699 = vmatpush1.bf16.msra.mxu0 %v5622
    %5700 = vmatprep.subr.bf16.mxu0 %v5625
    %5701 = vmatpush1.bf16.msra.mxu0 %v5624
    %5702 = vmatprep.subr.bf16.mxu0 %v5627
    %5703 = vmatpush1.bf16.msra.mxu0 %v5626
    %5704 = vmatprep.subr.bf16.mxu0 %v5629
    %5705 = vmatpush1.bf16.msra.mxu0 %v5628
    %5706 = vmatprep.mubr.bf16.mxu0 %v5440
    %5707 = vmatmul.mubr.bf16.gmra.mrb[0].mxu0 %v5439
    %v5708 = vpop.f32.mrb[0].mxu0
    %v5709 = vadd.f32 %v5483, %v5708
    %v5710 = vpop.f32.mrb[0].mxu0
    %v5711 = vadd.f32 %v5487, %v5710
    %v5712 = vpop.f32.mrb[0].mxu0
    %v5713 = vpop.f32.mrb[0].mxu0
    %5714 = vdwg.mxu0
    %5715 = vmatprep.subr.bf16.mxu0 %v5631
    %5716 = vmatpush1.bf16.msra.mxu0 %v5630
    %5717 = vmatprep.subr.bf16.mxu0 %v5633
    %5718 = vmatpush1.bf16.msra.mxu0 %v5632
    %5719 = vmatprep.subr.bf16.mxu0 0
    %5720 = vmatpush1.bf16.msra.mxu0 0
    %5721 = vmatprep.subr.bf16.mxu0 0
    %5722 = vmatpush1.bf16.msra.mxu0 0
    %5723 = vmatprep.subr.bf16.mxu0 0
    %5724 = vmatpush1.bf16.msra.mxu0 0
    %5725 = vmatprep.subr.bf16.mxu0 0
    %5726 = vmatpush1.bf16.msra.mxu0 0
    %5727 = vmatprep.subr.bf16.mxu0 0
    %5728 = vmatpush1.bf16.msra.mxu0 0
    %5729 = vmatprep.subr.bf16.mxu0 0
    %5730 = vmatpush1.bf16.msra.mxu0 0
    %5731 = vmatprep.subr.bf16.mxu0 0
    %5732 = vmatpush1.bf16.msra.mxu0 0
    %5733 = vmatprep.subr.bf16.mxu0 0
    %5734 = vmatpush1.bf16.msra.mxu0 0
    %5735 = vmatprep.subr.bf16.mxu0 0
    %5736 = vmatpush1.bf16.msra.mxu0 0
    %5737 = vmatprep.subr.bf16.mxu0 0
    %5738 = vmatpush1.bf16.msra.mxu0 0
    %5739 = vmatprep.subr.bf16.mxu0 0
    %5740 = vmatpush1.bf16.msra.mxu0 0
    %5741 = vmatprep.subr.bf16.mxu0 0
    %5742 = vmatpush1.bf16.msra.mxu0 0
    %5743 = vmatprep.subr.bf16.mxu0 0
    %5744 = vmatpush1.bf16.msra.mxu0 0
    %5745 = vmatprep.subr.bf16.mxu0 0
    %5746 = vmatpush1.bf16.msra.mxu0 0
    %5747 = vmatprep.mubr.bf16.mxu0 0
    %5748 = vmatmul.mubr.bf16.gmra.mrb[0].mxu0 %v5672
    %v5749 = vpop.f32.mrb[0].mxu0
    %v5750 = vadd.f32 %v5709, %v5749
    %v5751 = vpop.f32.mrb[0].mxu0
    %v5752 = vadd.f32 %v5711, %v5751
    %v5753 = vpop.f32.mrb[0].mxu0
    %v5754 = vpop.f32.mrb[0].mxu0
    %5755 = vdwg.mxu0
    %v5756 = vmax.f32 %v5750, 0.0
    %v5757 = vmax.f32 %v5752, 0.0
    %v5758 = vpack.c.bf16 %v5756, %v5756
    %v5759 = vpack.c.bf16 %v5757, %v5757
    %v5760 = vld [vmem:[%s8] sm:$0xf]
    %v5761 = vld [vmem:[%s8 + $0x4] sm:$0xf]
    %v5762 = vld [vmem:[%s8 + $0x8] sm:$0xf]
    %v5763 = vld [vmem:[%s8 + $0xc] sm:$0xf]
    %v5764 = vld [vmem:[%s8 + $0x10] sm:$0xf]
    %v5765 = vld [vmem:[%s8 + $0x14] sm:$0xf]
    %v5766 = vld [vmem:[%s8 + $0x18] sm:$0xf]
    %v5767 = vld [vmem:[%s8 + $0x1c] sm:$0xf]
    %v5768 = vld [vmem:[%s8 + $0x20] sm:$0xf]
    %v5769 = vld [vmem:[%s8 + $0x24] sm:$0xf]
    %v5770 = vld [vmem:[%s8 + $0x28] sm:$0xf]
    %v5771 = vld [vmem:[%s8 + $0x2c] sm:$0xf]
    %v5772 = vld [vmem:[%s8 + $0x30] sm:$0xf]
    %v5773 = vld [vmem:[%s8 + $0x34] sm:$0xf]
    %v5774 = vld [vmem:[%s8 + $0x38] sm:$0xf]
    %v5775 = vld [vmem:[%s8 + $0x3c] sm:$0xf]
    %v5776 = vld [vmem:[%s8 + $0x40] sm:$0xf]
    %v5777 = vld [vmem:[%s8 + $0x44] sm:$0xf]
    %v5778 = vld [vmem:[%s9] sm:$0x1]
    %v5780 = vlaneseq
    %v5781 = vshrl.u32 %v5780, 7
    %v5782 = vsub.s32 0, %v5781
    %v5783 = vrot.slane %v5778, %v5782
    %v5803 = vunpack.c.l.b16 %v5760
    %v5804 = vunpack.c.l.b16 %v5761
    %v5805 = vunpack.c.l.b16 %v5762
    %v5806 = vunpack.c.l.b16 %v5763
    %v5807 = vunpack.c.l.b16 %v5764
    %v5808 = vunpack.c.l.b16 %v5765
    %v5809 = vunpack.c.l.b16 %v5766
    %v5810 = vunpack.c.l.b16 %v5767
    %v5811 = vunpack.c.l.b16 %v5768
    %v5812 = vunpack.c.l.b16 %v5769
    %v5813 = vunpack.c.l.b16 %v5770
    %v5814 = vunpack.c.l.b16 %v5771
    %v5815 = vunpack.c.l.b16 %v5772
    %v5816 = vunpack.c.l.b16 %v5773
    %v5817 = vunpack.c.l.b16 %v5774
    %v5818 = vunpack.c.l.b16 %v5775
    %v5819 = vunpack.c.l.b16 %v5776
    %v5820 = vunpack.c.l.b16 %v5777
    %v5821 = vpack.c.b16 %v5804, %v5803
    %v5822 = vpack.c.b16 %v5806, %v5805
    %v5823 = vpack.c.b16 %v5808, %v5807
    %v5824 = vpack.c.b16 %v5810, %v5809
    %v5825 = vpack.c.b16 %v5812, %v5811
    %v5826 = vpack.c.b16 %v5814, %v5813
    %v5827 = vpack.c.b16 %v5816, %v5815
    %v5828 = vpack.c.b16 %v5818, %v5817
    %v5829 = vpack.c.b16 %v5820, %v5819
    %vm5839 = vcmask 130048
    %v5841 = vsel %vm5839, %v5759, 0
    %5843 = vmatprep.subr.bf16.mxu0 0
    %5844 = vmatpush1.bf16.msra.mxu0 %v5821
    %5845 = vmatprep.subr.bf16.mxu0 0
    %5846 = vmatpush1.bf16.msra.mxu0 %v5822
    %5847 = vmatprep.subr.bf16.mxu0 0
    %5848 = vmatpush1.bf16.msra.mxu0 %v5823
    %5849 = vmatprep.subr.bf16.mxu0 0
    %5850 = vmatpush1.bf16.msra.mxu0 %v5824
    %5851 = vmatprep.subr.bf16.mxu0 0
    %5852 = vmatpush1.bf16.msra.mxu0 %v5825
    %5853 = vmatprep.subr.bf16.mxu0 0
    %5854 = vmatpush1.bf16.msra.mxu0 %v5826
    %5855 = vmatprep.subr.bf16.mxu0 0
    %5856 = vmatpush1.bf16.msra.mxu0 %v5827
    %5857 = vmatprep.subr.bf16.mxu0 0
    %5858 = vmatpush1.bf16.msra.mxu0 %v5828
    %5859 = vmatprep.subr.bf16.mxu0 0
    %5860 = vmatpush1.bf16.msra.mxu0 %v5829
    %5861 = vmatprep.subr.bf16.mxu0 0
    %5862 = vmatpush1.bf16.msra.mxu0 0
    %5863 = vmatprep.subr.bf16.mxu0 0
    %5864 = vmatpush1.bf16.msra.mxu0 0
    %5865 = vmatprep.subr.bf16.mxu0 0
    %5866 = vmatpush1.bf16.msra.mxu0 0
    %5867 = vmatprep.subr.bf16.mxu0 0
    %5868 = vmatpush1.bf16.msra.mxu0 0
    %5869 = vmatprep.subr.bf16.mxu0 0
    %5870 = vmatpush1.bf16.msra.mxu0 0
    %5871 = vmatprep.subr.bf16.mxu0 0
    %5872 = vmatpush1.bf16.msra.mxu0 0
    %5873 = vmatprep.subr.bf16.mxu0 0
    %5874 = vmatpush1.bf16.msra.mxu0 0
    %5875 = vmatprep.mubr.bf16.mxu0 %v5841
    %5876 = vmatmul.mubr.bf16.gmra.mrb[0].mxu0 %v5758
    %v5877 = vpop.f32.mrb[0].mxu0
    %v5878 = vadd.f32 %v5783, %v5877
    %v5879 = vpop.f32.mrb[0].mxu0
    %v5880 = vpop.f32.mrb[0].mxu0
    %v5881 = vpop.f32.mrb[0].mxu0
    %5882 = vdwg.mxu0
    %v5883 = vmax.f32 %v5878, 0.0
    %vm5884 = vcmask 74752
    %5885 = vst.msk [vmem:[#allocation2] sm:$0x3] %vm5884, %v5883
    // Predicated region
    $region42: #{two_tower_forward.7} parent=1 // pred_check
      _
    $region43: #{two_tower_forward.7} parent=1 // pred_check_branch
      %5887 = sbr.rel (0) target = $region45
    $region44: #{two_tower_forward.7} parent=1 // pred_region
      %s5889 = ssub.s32 32, 32
      %5890 = vsyncadd [#allocation3], %s5889
      %s5892 = sshll.u32 [#allocation2], 4
      %s5893 = int_to_ptr.vmem [resolvable:$true] %s5892
      %5895 = dma.vmem_to_hbm [thread:$0]  %s5893, 32, %s10, [#allocation3]
    $region45: #{two_tower_forward.7} parent=1 // pred_fallthru
      _
    // Predicated region
    $region46: #{two_tower_forward.7} parent=1 // pred_check
      _
    $region47: #{two_tower_forward.7} parent=1 // pred_check_branch
      %5897 = sbr.rel (0) target = $region49
    $region48: #{two_tower_forward.7} parent=1 // pred_region
      %5898 = dma.done [#allocation3], 32
    $region49: #{two_tower_forward.7} parent=1 // pred_fallthru
      _
    %5899 = vsyncpa [#allocation3], 1

</llo_original>
